<compile_context>
chip_gen: v7x
topology: tpu7x:2x2x1
jax: 0.10.0
libtpu: 0.0.40
codegen_flags: <defaults>
</compile_context>

<pallas_src>
import functools

import jax
import jax.numpy as jnp
from jax.experimental import pallas as pl
from jax.experimental.pallas import tpu as pltpu

NEG = -1e9                      # "minus infinity" for padded labels / transitions
VMEM_LIMIT = 48 * 1024 * 1024   # safe on v5e/v6e (128 MiB) and v7x (64 MiB physical)


def _round_up(x, m):
    return ((x + m - 1) // m) * m


# ----------------------------------------------------------------------------
# Linear projection kernels (row-tiled matmuls on the MXU)
# ----------------------------------------------------------------------------

def _linear_kernel(x_ref, w_ref, b_ref, o_ref):
    o_ref[...] = (
        jnp.dot(x_ref[...], w_ref[...], preferred_element_type=jnp.float32)
        + b_ref[...]
    ).astype(o_ref.dtype)


def linear(x, w, b, *, out_dtype=jnp.float32, block_m=512):
    """o = x @ w + b, tiled over rows (bf16 operands ok, f32 accumulate)."""
    m, k = x.shape
    n = w.shape[1]
    tm = min(block_m, _round_up(m, 16))
    mp = _round_up(m, tm)
    if mp != m:
        x = jnp.pad(x, ((0, mp - m), (0, 0)))
    out = pl.pallas_call(
        _linear_kernel,
        out_shape=jax.ShapeDtypeStruct((mp, n), out_dtype),
        grid=(mp // tm,),
        in_specs=[
            pl.BlockSpec((tm, k), lambda i: (i, 0)),
            pl.BlockSpec((k, n), lambda i: (0, 0)),
            pl.BlockSpec((1, n), lambda i: (0, 0)),
        ],
        out_specs=pl.BlockSpec((tm, n), lambda i: (i, 0)),
        compiler_params=pltpu.CompilerParams(
            dimension_semantics=("parallel",),
            vmem_limit_bytes=VMEM_LIMIT),
    )(x, w, b.reshape(1, n))
    return out[:m]


def _linear2_kernel(x1_ref, x2_ref, w1_ref, w2_ref, b_ref, o_ref):
    acc = jnp.dot(x1_ref[...], w1_ref[...], preferred_element_type=jnp.float32)
    acc = acc + jnp.dot(x2_ref[...], w2_ref[...],
                        preferred_element_type=jnp.float32)
    o_ref[...] = (acc + b_ref[...]).astype(o_ref.dtype)


def linear2(x1, x2, w1, w2, b, *, out_dtype=jnp.float32, block_m=512):
    """o = x1 @ w1 + x2 @ w2 + b  (avoids concatenating x1/x2 in HBM)."""
    m, k = x1.shape
    n = w1.shape[1]
    tm = min(block_m, _round_up(m, 16))
    mp = _round_up(m, tm)
    if mp != m:
        x1 = jnp.pad(x1, ((0, mp - m), (0, 0)))
        x2 = jnp.pad(x2, ((0, mp - m), (0, 0)))
    out = pl.pallas_call(
        _linear2_kernel,
        out_shape=jax.ShapeDtypeStruct((mp, n), out_dtype),
        grid=(mp // tm,),
        in_specs=[
            pl.BlockSpec((tm, k), lambda i: (i, 0)),
            pl.BlockSpec((tm, k), lambda i: (i, 0)),
            pl.BlockSpec((k, n), lambda i: (0, 0)),
            pl.BlockSpec((k, n), lambda i: (0, 0)),
            pl.BlockSpec((1, n), lambda i: (0, 0)),
        ],
        out_specs=pl.BlockSpec((tm, n), lambda i: (i, 0)),
        compiler_params=pltpu.CompilerParams(
            dimension_semantics=("parallel",),
            vmem_limit_bytes=VMEM_LIMIT),
    )(x1, x2, w1, w2, b.reshape(1, n))
    return out[:m]


# ----------------------------------------------------------------------------
# Fused bidirectional LSTM (time-blocked recurrence, fused recurrent matmul)
# ----------------------------------------------------------------------------

def _sigmoid(x):
    # one EUP transcendental instead of exp+reciprocal
    return 0.5 * (jnp.tanh(0.5 * x) + 1.0)


def _bilstm_kernel(gxf_ref, gxb_ref, wh_ref, mf_ref, mb_ref,
                   hf_ref, hb_ref, h_sc, c_sc, *, hp, tb):
    """Both LSTM directions, `tb` timesteps per grid iteration.

    gxf_ref : (tb, B, 4*hp) bf16  forward-dir x@Wx+b, forward-time block
    gxb_ref : (tb, B, 4*hp) bf16  backward-dir x@Wx+b, time-REVERSED block stream
    wh_ref  : (2*hp, 8*hp)  bf16  block-diagonal [Wh_f 0 ; 0 Wh_b]
    mf/mb   : (tb, B, 1)    f32   mask blocks (forward / reversed block stream)
    hf/hb   : (tb, B, hp)   bf16  hidden outputs, BOTH in real time order
    h_sc/c_sc: (B, 2*hp)    f32   persistent state [h_f | h_b]
    Gate blocks live at hp-aligned (multiple-of-128) lane offsets. Order i,f,g,o.
    """
    step = pl.program_id(0)

    @pl.when(step == 0)
    def _():
        h_sc[...] = jnp.zeros_like(h_sc)
        c_sc[...] = jnp.zeros_like(c_sc)

    def body(i, carry):
        j = tb - 1 - i                      # in-block reversed index for dir 1
        # one fused bf16 MXU push for both directions' recurrent projections
        rec = jnp.dot(h_sc[...].astype(jnp.bfloat16), wh_ref[...],
                      preferred_element_type=jnp.float32)       # (B, 8*hp) f32

        # ---- forward direction -------------------------------------------
        gates = gxf_ref[i] + rec[:, 0:4 * hp]
        ig = _sigmoid(gates[:, 0 * hp:1 * hp])
        fg = _sigmoid(gates[:, 1 * hp:2 * hp])
        gg = jnp.tanh(gates[:, 2 * hp:3 * hp])
        og = _sigmoid(gates[:, 3 * hp:4 * hp])
        c = fg * c_sc[:, 0:hp] + ig * gg
        h = og * jnp.tanh(c)
        m = mf_ref[i]                       # (B,1): zero state on padding
        c_sc[:, 0:hp] = c * m
        h = h * m
        h_sc[:, 0:hp] = h
        hf_ref[i] = h.astype(hf_ref.dtype)

        # ---- backward direction (reads/writes its block back-to-front) ----
        gates = gxb_ref[j] + rec[:, 4 * hp:8 * hp]
        ig = _sigmoid(gates[:, 0 * hp:1 * hp])
        fg = _sigmoid(gates[:, 1 * hp:2 * hp])
        gg = jnp.tanh(gates[:, 2 * hp:3 * hp])
        og = _sigmoid(gates[:, 3 * hp:4 * hp])
        c = fg * c_sc[:, hp:2 * hp] + ig * gg
        h = og * jnp.tanh(c)
        m = mb_ref[j]
        c_sc[:, hp:2 * hp] = c * m
        h = h * m
        h_sc[:, hp:2 * hp] = h
        hb_ref[j] = h.astype(hb_ref.dtype)
        return carry

    jax.lax.fori_loop(0, tb, body, 0, unroll=min(8, tb))


def bilstm(gx, wh_blk, mask_p, *, hp, tb):
    """gx: (TP, B, 8*hp) bf16 (fwd gates in lanes [0:4hp], bwd in [4hp:8hp])."""
    tp, b, _ = gx.shape
    nsteps = tp // tb
    return pl.pallas_call(
        functools.partial(_bilstm_kernel, hp=hp, tb=tb),
        out_shape=(
            jax.ShapeDtypeStruct((tp, b, hp), jnp.bfloat16),   # h forward
            jax.ShapeDtypeStruct((tp, b, hp), jnp.bfloat16),   # h backward
        ),
        grid=(nsteps,),
        in_specs=[
            # forward gate half, forward time order
            pl.BlockSpec((tb, b, 4 * hp), lambda s: (s, 0, 0)),
            # backward gate half, reversed block order (no wrapper restack)
            pl.BlockSpec((tb, b, 4 * hp), lambda s: (nsteps - 1 - s, 0, 1)),
            pl.BlockSpec((2 * hp, 8 * hp), lambda s: (0, 0)),
            pl.BlockSpec((tb, b, 1), lambda s: (s, 0, 0)),
            pl.BlockSpec((tb, b, 1), lambda s: (nsteps - 1 - s, 0, 0)),
        ],
        out_specs=(
            pl.BlockSpec((tb, b, hp), lambda s: (s, 0, 0)),
            # backward hiddens written back already in real-time order
            pl.BlockSpec((tb, b, hp), lambda s: (nsteps - 1 - s, 0, 0)),
        ),
        scratch_shapes=[
            pltpu.VMEM((b, 2 * hp), jnp.float32),   # h state [fwd|bwd]
            pltpu.VMEM((b, 2 * hp), jnp.float32),   # c state [fwd|bwd]
        ],
        compiler_params=pltpu.CompilerParams(
            dimension_semantics=("arbitrary",),
            vmem_limit_bytes=VMEM_LIMIT),
    )(gx, gx, wh_blk, mask_p, mask_p)


# ----------------------------------------------------------------------------
# CRF Viterbi forward DP (time-blocked; 'to' on sublanes, 'from' on lanes)
# ----------------------------------------------------------------------------

def _viterbi_kernel(feat_ref, trans_ref, mask_ref, bp_ref, part_ref, part_sc,
                    *, tb, ls, start_idx):
    """Viterbi DP, `tb` timesteps per grid iteration.

    feat_ref : (tb, B, LP) f32   emissions (padded labels = NEG via bias)
    trans_ref: (ls, LP)    f32   trans[to, from] (to restricted to ls sublanes)
    mask_ref : (tb, B, 1)  f32
    bp_ref   : (tb, B, ls) int32 backpointers ('from' index per 'to')
    part_ref : (B, LP)     f32   final partition scores (lane layout)
    part_sc  : (B, LP)     f32   running partition, 'from' label on lanes
    t==0 is handled by initializing part to {START: 0, else NEG}; the first DP
    step then yields trans[START, to] + feats[0, to] with no per-step selects.
    """
    step = pl.program_id(0)
    nb, lp = part_sc.shape
    trans_sub = trans_ref[...]                              # (ls, lp)

    @pl.when(step == 0)
    def _():
        from_iota = jax.lax.broadcasted_iota(jnp.int32, (nb, lp), 1)
        part_sc[...] = jnp.where(from_iota == start_idx, 0.0, NEG
                                 ).astype(jnp.float32)

    ident = jax.lax.broadcasted_iota(jnp.int32, (nb, ls), 1)  # hoisted

    def body(i, carry):
        f = feat_ref[i]                                     # (B, LP)
        m = mask_ref[i]                                     # (B, 1)
        f_to = f[:, 0:ls][:, :, None]                       # (B, ls, 1) 'to'->sublanes
        # cur[b, to, from] = part[b, from] + trans[from, to] + feats[b, to]
        cur = part_sc[...][:, None, :] + trans_sub[None, :, :] + f_to
        new_part = jnp.max(cur, axis=-1)                    # (B, ls)
        new_bp = jnp.argmax(cur, axis=-1).astype(jnp.int32)  # (B, ls)
        keep = m > 0.0
        part_sc[:, 0:ls] = jnp.where(keep, new_part, part_sc[:, 0:ls])
        bp_ref[i] = jnp.where(keep, new_bp, ident)
        return carry

    jax.lax.fori_loop(0, tb, body, 0, unroll=min(8, tb))

    @pl.when(step == pl.num_programs(0) - 1)
    def _():
        part_ref[...] = part_sc[...]


def viterbi_forward(feats, trans_to_sub, mask_p, *, tb, ls, start_idx):
    tp, b, lp = feats.shape
    return pl.pallas_call(
        functools.partial(_viterbi_kernel, tb=tb, ls=ls, start_idx=start_idx),
        out_shape=(
            jax.ShapeDtypeStruct((tp, b, ls), jnp.int32),   # backpointers
            jax.ShapeDtypeStruct((b, lp), jnp.float32),     # final partition
        ),
        grid=(tp // tb,),
        in_specs=[
            pl.BlockSpec((tb, b, lp), lambda s: (s, 0, 0)),
            pl.BlockSpec((ls, lp), lambda s: (0, 0)),
            pl.BlockSpec((tb, b, 1), lambda s: (s, 0, 0)),   # blocked, not resident
        ],
        out_specs=(
            pl.BlockSpec((tb, b, ls), lambda s: (s, 0, 0)),
            pl.BlockSpec((b, lp), lambda s: (0, 0)),
        ),
        scratch_shapes=[pltpu.VMEM((b, lp), jnp.float32)],
        compiler_params=pltpu.CompilerParams(
            dimension_semantics=("arbitrary",),
            vmem_limit_bytes=VMEM_LIMIT),
    )(feats, trans_to_sub, mask_p)


# ----------------------------------------------------------------------------
# Model wrapper (CWS.forward)
# ----------------------------------------------------------------------------

def _choose_time_block(t, b, hp, budget_bytes=12 << 20):
    # Streamed bytes per timestep (sublane-padded batch, double-buffered):
    # gx halves (bf16) + h_out halves (bf16) + lane-padded mask blocks (f32).
    bp8 = _round_up(b, 8)
    per_t = 2 * (bp8 * 4 * hp * 2 + bp8 * hp * 2 + bp8 * 128 * 4) * 2
    return int(max(1, min(t, budget_bytes // max(per_t, 1), 128)))


def cws_forward(params, word_inputs, biword_inputs, batch_pos, mask,
                label_size, hidden):
    B, T = word_inputs.shape
    L2 = label_size + 2
    start_idx, stop_idx = label_size, label_size + 1
    H = hidden
    HP = _round_up(H, 128)          # lane-aligned hidden / gate blocks
    LP = _round_up(L2, 128)         # lane-dense emission label dimension
    LS = _round_up(L2, 8)           # sublane-aligned 'to' axis for the DP

    # --- Seq.get_output_score: time-major embedding lookup (gather = glue) ---
    we = jnp.take(params["word_emb"], word_inputs.T, axis=0)      # (T,B,Dw)
    be = jnp.take(params["biword_emb"], biword_inputs.T, axis=0)  # (T,B,Db)
    pe = jnp.take(params["pos_emb"], batch_pos.T, axis=0)         # (T,B,Dp)
    x = jnp.concatenate([we, be, pe], axis=-1)                    # (T,B,Din)
    din = x.shape[-1]
    # TODO(synk): word_text (raw strings) / external_pos overrides have no
    # numeric equivalent here; dropout is identity at inference time.

    mask_f = mask.astype(jnp.float32).T[:, :, None]               # (T,B,1)

    # --- pad LSTM params so each gate block sits at a 128-lane-aligned offset ---
    def pad_wx(w):   # (din, 4H) -> (din, 4HP)
        return jnp.pad(w.reshape(din, 4, H),
                       ((0, 0), (0, 0), (0, HP - H))).reshape(din, 4 * HP)

    def pad_wh(w):   # (H, 4H) -> (HP, 4HP)
        return jnp.pad(w.reshape(H, 4, H),
                       ((0, HP - H), (0, 0), (0, HP - H))).reshape(HP, 4 * HP)

    def pad_b(v):    # (4H,) -> (4HP,)
        return jnp.pad(v.reshape(4, H), ((0, 0), (0, HP - H))).reshape(4 * HP)

    wx_all = jnp.concatenate(
        [pad_wx(params["w_x_f"]), pad_wx(params["w_x_b"])], axis=1)  # (din,8HP)
    b_all = jnp.concatenate([pad_b(params["b_f"]), pad_b(params["b_b"])], axis=0)
    wh_blk = jnp.zeros((2 * HP, 8 * HP), jnp.float32)
    wh_blk = wh_blk.at[:HP, :4 * HP].set(pad_wh(params["w_h_f"]))
    wh_blk = wh_blk.at[HP:, 4 * HP:].set(pad_wh(params["w_h_b"]))
    wh_blk = wh_blk.astype(jnp.bfloat16)                  # block-diag, bf16 MXU

    # --- fused input projection for both directions (bf16 in/out, f32 acc) ---
    gx_all = linear(x.reshape(T * B, din).astype(jnp.bfloat16),
                    wx_all.astype(jnp.bfloat16), b_all,
                    out_dtype=jnp.bfloat16)                       # (T*B, 8HP)
    gx_all = gx_all.reshape(T, B, 8 * HP)
    # TODO(synk): fusing x@Wx directly into the bilstm kernel would remove the
    # gx HBM round trip entirely; bf16 already halves it.

    # --- time-block, pad T; the backward stream is handled by BlockSpecs ---
    TB = _choose_time_block(T, B, HP)
    TP = _round_up(T, TB)
    if TP != T:
        padT = ((0, TP - T), (0, 0), (0, 0))
        gx_all = jnp.pad(gx_all, padT)
        mask_p = jnp.pad(mask_f, padT)
    else:
        mask_p = mask_f

    h_f, h_b = bilstm(gx_all, wh_blk, mask_p, hp=HP, tb=TB)  # (TP,B,HP) bf16 each

    # --- hidden2tag projection: h_f @ W_top + h_b @ W_bot + b (bf16 operands) ---
    w_top = jnp.zeros((HP, LP), jnp.float32).at[:H, :L2].set(
        params["w_tag"][:H]).astype(jnp.bfloat16)
    w_bot = jnp.zeros((HP, LP), jnp.float32).at[:H, :L2].set(
        params["w_tag"][H:]).astype(jnp.bfloat16)
    b_tag_p = jnp.full((LP,), NEG, jnp.float32).at[:L2].set(params["b_tag"])
    feats = linear2(h_f.reshape(TP * B, HP), h_b.reshape(TP * B, HP),
                    w_top, w_bot, b_tag_p,
                    out_dtype=jnp.float32).reshape(TP, B, LP)

    # --- CRF._viterbi_decode: DP in Pallas, backtrack as glue ---
    trans = params["trans"]
    trans_p = jnp.full((LP, LP), NEG, jnp.float32).at[:L2, :L2].set(trans)
    trans_to_sub = trans_p[:, :LS].T                      # (LS, LP): [to, from]

    bp, part = viterbi_forward(feats, trans_to_sub, mask_p,
                               tb=TB, ls=LS, start_idx=start_idx)

    last_scores = part[:, :L2] + trans[:, stop_idx][None, :]      # (B,L2)
    best_last = jnp.argmax(last_scores, axis=1).astype(jnp.int32)  # (B,)

    bp = bp[:T]                                                   # (T,B,LS)

    def bt_step(ptr, bp_t):
        prev = jnp.take_along_axis(bp_t, ptr[:, None], axis=1)[:, 0]
        return prev, prev

    _, prevs = jax.lax.scan(bt_step, best_last, bp[1:][::-1])     # (T-1, B)
    tags = jnp.concatenate([prevs[::-1], best_last[None, :]], axis=0)  # (T,B)
    tag_seq = tags.T * mask.astype(jnp.int32)                     # (B,T)
    return tag_seq


# ----------------------------------------------------------------------------
# Deterministic parameters + example inputs
# ----------------------------------------------------------------------------

def make_params(key, *, vw, vb, vp, dw, db, dp, hidden, label_size):
    din = dw + db + dp
    l2 = label_size + 2
    ks = jax.random.split(key, 12)
    s = 0.1
    trans = s * jax.random.normal(ks[11], (l2, l2), jnp.float32)
    # CRF constraint: never transition into START or out of STOP.
    trans = trans.at[:, label_size].set(-1e4)       # to START
    trans = trans.at[label_size + 1, :].set(-1e4)   # from STOP
    return {
        "word_emb":   s * jax.random.normal(ks[0], (vw, dw), jnp.float32),
        "biword_emb": s * jax.random.normal(ks[1], (vb, db), jnp.float32),
        "pos_emb":    s * jax.random.normal(ks[2], (vp, dp), jnp.float32),
        "w_x_f": s * jax.random.normal(ks[3], (din, 4 * hidden), jnp.float32),
        "w_h_f": s * jax.random.normal(ks[4], (hidden, 4 * hidden), jnp.float32),
        "b_f":   s * jax.random.normal(ks[5], (4 * hidden,), jnp.float32),
        "w_x_b": s * jax.random.normal(ks[6], (din, 4 * hidden), jnp.float32),
        "w_h_b": s * jax.random.normal(ks[7], (hidden, 4 * hidden), jnp.float32),
        "b_b":   s * jax.random.normal(ks[8], (4 * hidden,), jnp.float32),
        "w_tag": s * jax.random.normal(ks[9], (2 * hidden, l2), jnp.float32),
        "b_tag": s * jax.random.normal(ks[10], (l2,), jnp.float32),
        "trans": trans,
    }


if __name__ == "__main__":
    B, T = 2, 8
    VW, VB, VP = 50, 100, 10
    DW, DB, DP = 16, 16, 8
    HIDDEN = 32
    LABEL_SIZE = 4  # e.g. B/M/E/S

    key = jax.random.PRNGKey(0)
    kp, k1, k2, k3 = jax.random.split(key, 4)

    params = make_params(kp, vw=VW, vb=VB, vp=VP, dw=DW, db=DB, dp=DP,
                         hidden=HIDDEN, label_size=LABEL_SIZE)

    word_inputs = jax.random.randint(k1, (B, T), 0, VW, dtype=jnp.int32)
    biword_inputs = jax.random.randint(k2, (B, T), 0, VB, dtype=jnp.int32)
    batch_pos = jax.random.randint(k3, (B, T), 0, VP, dtype=jnp.int32)
    word_seq_lens = jnp.array([T, T - 2], dtype=jnp.int32)
    mask = (jnp.arange(T)[None, :] < word_seq_lens[:, None]).astype(jnp.int32)

    fwd = jax.jit(functools.partial(cws_forward,
                                    label_size=LABEL_SIZE, hidden=HIDDEN))
    tag_seq = fwd(params, word_inputs, biword_inputs, batch_pos, mask)
    tag_seq = jax.block_until_ready(tag_seq)

    assert tag_seq.shape == (B, T)
    assert tag_seq.dtype == jnp.int32
    assert bool(jnp.all((tag_seq >= 0) & (tag_seq < LABEL_SIZE)))
    print("KERNEL_OK")
</pallas_src>

<mosaic_0001>
module attributes {stable_mosaic.version = 11 : i64} {
  func.func @_linear_kernel(%arg0: i32, %arg1: memref<16x40xbf16, #tpu.memory_space<vmem>>, %arg2: memref<40x1024xbf16, #tpu.memory_space<vmem>>, %arg3: memref<1x1024xf32, #tpu.memory_space<vmem>>, %arg4: memref<16x1024xbf16, #tpu.memory_space<vmem>>) attributes {dimension_semantics = [#tpu.dimension_semantics<parallel>], iteration_bounds = array<i64: 1>, scalar_prefetch = 0 : i64, scratch_operands = 0 : i64, tpu.core_type = #tpu.core_type<tc>, window_params = [{transform_indices = @transform_0, window_bounds = array<i64: 16, 40>}, {pipeline_mode = #tpu.pipeline_mode<synchronous>, transform_indices = @transform_1, window_bounds = array<i64: 40, 1024>}, {pipeline_mode = #tpu.pipeline_mode<synchronous>, transform_indices = @transform_2, window_bounds = array<i64: 1, 1024>}, {transform_indices = @transform_3, window_bounds = array<i64: 16, 1024>}]} {
    %c0 = arith.constant 0 : index
    %c0_0 = arith.constant 0 : index
    %0 = vector.load %arg1[%c0, %c0_0] : memref<16x40xbf16, #tpu.memory_space<vmem>>, vector<16x40xbf16>
    %c0_1 = arith.constant 0 : index
    %c0_2 = arith.constant 0 : index
    %1 = vector.load %arg2[%c0_1, %c0_2] : memref<40x1024xbf16, #tpu.memory_space<vmem>>, vector<40x1024xbf16>
    %cst = arith.constant dense<0.000000e+00> : vector<16x1024xf32>
    %2 = tpu.matmul %0, %1, %cst {dimension_numbers = #tpu.dot_dimension_numbers<[1], [0], [0], [1], [0, 0, 1, 1], [], []>} : vector<16x40xbf16>, vector<40x1024xbf16>, vector<16x1024xf32> -> vector<16x1024xf32>
    %c0_3 = arith.constant 0 : index
    %c0_4 = arith.constant 0 : index
    %3 = vector.load %arg3[%c0_3, %c0_4] : memref<1x1024xf32, #tpu.memory_space<vmem>>, vector<1x1024xf32>
    %4 = vector.broadcast %3 : vector<1x1024xf32> to vector<16x1024xf32>
    %5 = arith.addf %2, %4 : vector<16x1024xf32>
    %6 = arith.truncf %5 : vector<16x1024xf32> to vector<16x1024xbf16>
    %c0_5 = arith.constant 0 : index
    %c0_6 = arith.constant 0 : index
    %7 = vector.load %arg4[%c0_5, %c0_6] : memref<16x1024xbf16, #tpu.memory_space<vmem>>, vector<16x1024xbf16>
    tpu.vector_store %arg4[%c0_5, %c0_6], %6 {strides = array<i32>} : memref<16x1024xbf16, #tpu.memory_space<vmem>>, vector<16x1024xbf16>,
    return
  }
  func.func @transform_0(%arg0: i32) -> (i32, i32) {
    %c0_i32 = arith.constant 0 : i32
    %c0_i32_0 = arith.constant 0 : i32
    return %arg0, %c0_i32 : i32, i32
  }
  func.func @transform_1(%arg0: i32) -> (i32, i32) {
    %c0_i32 = arith.constant 0 : i32
    %c0_i32_0 = arith.constant 0 : i32
    %c0_i32_1 = arith.constant 0 : i32
    return %c0_i32, %c0_i32_0 : i32, i32
  }
  func.func @transform_2(%arg0: i32) -> (i32, i32) {
    %c0_i32 = arith.constant 0 : i32
    %c0_i32_0 = arith.constant 0 : i32
    %c0_i32_1 = arith.constant 0 : i32
    return %c0_i32, %c0_i32_0 : i32, i32
  }
  func.func @transform_3(%arg0: i32) -> (i32, i32) {
    %c0_i32 = arith.constant 0 : i32
    %c0_i32_0 = arith.constant 0 : i32
    return %arg0, %c0_i32 : i32, i32
  }
}

module attributes {stable_mosaic.version = 11 : i64} {
  func.func @_linear2_kernel(%arg0: i32, %arg1: memref<16x128xbf16, #tpu.memory_space<vmem>>, %arg2: memref<16x128xbf16, #tpu.memory_space<vmem>>, %arg3: memref<128x128xbf16, #tpu.memory_space<vmem>>, %arg4: memref<128x128xbf16, #tpu.memory_space<vmem>>, %arg5: memref<1x128xf32, #tpu.memory_space<vmem>>, %arg6: memref<16x128xf32, #tpu.memory_space<vmem>>) attributes {dimension_semantics = [#tpu.dimension_semantics<parallel>], iteration_bounds = array<i64: 1>, scalar_prefetch = 0 : i64, scratch_operands = 0 : i64, tpu.core_type = #tpu.core_type<tc>, window_params = [{transform_indices = @transform_0, window_bounds = array<i64: 16, 128>}, {transform_indices = @transform_1, window_bounds = array<i64: 16, 128>}, {pipeline_mode = #tpu.pipeline_mode<synchronous>, transform_indices = @transform_2, window_bounds = array<i64: 128, 128>}, {pipeline_mode = #tpu.pipeline_mode<synchronous>, transform_indices = @transform_3, window_bounds = array<i64: 128, 128>}, {pipeline_mode = #tpu.pipeline_mode<synchronous>, transform_indices = @transform_4, window_bounds = array<i64: 1, 128>}, {transform_indices = @transform_5, window_bounds = array<i64: 16, 128>}]} {
    %c0 = arith.constant 0 : index
    %c0_0 = arith.constant 0 : index
    %0 = vector.load %arg1[%c0, %c0_0] : memref<16x128xbf16, #tpu.memory_space<vmem>>, vector<16x128xbf16>
    %c0_1 = arith.constant 0 : index
    %c0_2 = arith.constant 0 : index
    %1 = vector.load %arg3[%c0_1, %c0_2] : memref<128x128xbf16, #tpu.memory_space<vmem>>, vector<128x128xbf16>
    %cst = arith.constant dense<0.000000e+00> : vector<16x128xf32>
    %2 = tpu.matmul %0, %1, %cst {dimension_numbers = #tpu.dot_dimension_numbers<[1], [0], [0], [1], [0, 0, 1, 1], [], []>} : vector<16x128xbf16>, vector<128x128xbf16>, vector<16x128xf32> -> vector<16x128xf32>
    %c0_3 = arith.constant 0 : index
    %c0_4 = arith.constant 0 : index
    %3 = vector.load %arg2[%c0_3, %c0_4] : memref<16x128xbf16, #tpu.memory_space<vmem>>, vector<16x128xbf16>
    %c0_5 = arith.constant 0 : index
    %c0_6 = arith.constant 0 : index
    %4 = vector.load %arg4[%c0_5, %c0_6] : memref<128x128xbf16, #tpu.memory_space<vmem>>, vector<128x128xbf16>
    %cst_7 = arith.constant dense<0.000000e+00> : vector<16x128xf32>
    %5 = tpu.matmul %3, %4, %cst_7 {dimension_numbers = #tpu.dot_dimension_numbers<[1], [0], [0], [1], [0, 0, 1, 1], [], []>} : vector<16x128xbf16>, vector<128x128xbf16>, vector<16x128xf32> -> vector<16x128xf32>
    %6 = arith.addf %2, %5 : vector<16x128xf32>
    %c0_8 = arith.constant 0 : index
    %c0_9 = arith.constant 0 : index
    %7 = vector.load %arg5[%c0_8, %c0_9] : memref<1x128xf32, #tpu.memory_space<vmem>>, vector<1x128xf32>
    %8 = vector.broadcast %7 : vector<1x128xf32> to vector<16x128xf32>
    %9 = arith.addf %6, %8 : vector<16x128xf32>
    %c0_10 = arith.constant 0 : index
    %c0_11 = arith.constant 0 : index
    %10 = vector.load %arg6[%c0_10, %c0_11] : memref<16x128xf32, #tpu.memory_space<vmem>>, vector<16x128xf32>
    tpu.vector_store %arg6[%c0_10, %c0_11], %9 {strides = array<i32>} : memref<16x128xf32, #tpu.memory_space<vmem>>, vector<16x128xf32>,
    return
  }
  func.func @transform_0(%arg0: i32) -> (i32, i32) {
    %c0_i32 = arith.constant 0 : i32
    %c0_i32_0 = arith.constant 0 : i32
    return %arg0, %c0_i32 : i32, i32
  }
  func.func @transform_1(%arg0: i32) -> (i32, i32) {
    %c0_i32 = arith.constant 0 : i32
    %c0_i32_0 = arith.constant 0 : i32
    return %arg0, %c0_i32 : i32, i32
  }
  func.func @transform_2(%arg0: i32) -> (i32, i32) {
    %c0_i32 = arith.constant 0 : i32
    %c0_i32_0 = arith.constant 0 : i32
    %c0_i32_1 = arith.constant 0 : i32
    return %c0_i32, %c0_i32_0 : i32, i32
  }
  func.func @transform_3(%arg0: i32) -> (i32, i32) {
    %c0_i32 = arith.constant 0 : i32
    %c0_i32_0 = arith.constant 0 : i32
    %c0_i32_1 = arith.constant 0 : i32
    return %c0_i32, %c0_i32_0 : i32, i32
  }
  func.func @transform_4(%arg0: i32) -> (i32, i32) {
    %c0_i32 = arith.constant 0 : i32
    %c0_i32_0 = arith.constant 0 : i32
    %c0_i32_1 = arith.constant 0 : i32
    return %c0_i32, %c0_i32_0 : i32, i32
  }
  func.func @transform_5(%arg0: i32) -> (i32, i32) {
    %c0_i32 = arith.constant 0 : i32
    %c0_i32_0 = arith.constant 0 : i32
    return %arg0, %c0_i32 : i32, i32
  }
}

module attributes {stable_mosaic.version = 11 : i64} {
  func.func @_viterbi_kernel(%arg0: i32, %arg1: memref<8x2x128xf32, #tpu.memory_space<vmem>>, %arg2: memref<8x128xf32, #tpu.memory_space<vmem>>, %arg3: memref<8x2x1xf32, #tpu.memory_space<vmem>>, %arg4: memref<8x2x8xi32, #tpu.memory_space<vmem>>, %arg5: memref<2x128xf32, #tpu.memory_space<vmem>>, %arg6: memref<2x128xf32, #tpu.memory_space<vmem>>) attributes {dimension_semantics = [#tpu.dimension_semantics<arbitrary>], iteration_bounds = array<i64: 1>, scalar_prefetch = 0 : i64, scratch_operands = 1 : i64, tpu.core_type = #tpu.core_type<tc>, window_params = [{transform_indices = @transform_0, window_bounds = array<i64: 8, 2, 128>}, {pipeline_mode = #tpu.pipeline_mode<synchronous>, transform_indices = @transform_1, window_bounds = array<i64: 8, 128>}, {transform_indices = @transform_2, window_bounds = array<i64: 8, 2, 1>}, {transform_indices = @transform_3, window_bounds = array<i64: 8, 2, 8>}, {pipeline_mode = #tpu.pipeline_mode<synchronous>, transform_indices = @transform_4, window_bounds = array<i64: 2, 128>}]} {
    %c0 = arith.constant 0 : index
    %c0_0 = arith.constant 0 : index
    %0 = vector.load %arg2[%c0, %c0_0] : memref<8x128xf32, #tpu.memory_space<vmem>>, vector<8x128xf32>
    %c0_i32 = arith.constant 0 : i32
    %1 = arith.cmpi eq, %arg0, %c0_i32 : i32
    %2 = arith.extui %1 : i1 to i32
    %c0_i32_1 = arith.constant 0 : i32
    %3 = arith.cmpi ne, %2, %c0_i32_1 : i32
    scf.if %3 {
      %264 = tpu.iota {dimensions = array<i32: 1>} : vector<2x128xi32>
      %c4_i32_116 = arith.constant 4 : i32
      %265 = vector.broadcast %c4_i32_116 : i32 to vector<2x128xi32>
      %266 = arith.cmpi eq, %264, %265 : vector<2x128xi32>
      %cst_117 = arith.constant 0.000000e+00 : f32
      %cst_118 = arith.constant -1.000000e+09 : f32
      %267 = vector.broadcast %cst_117 : f32 to vector<2x128xf32>
      %268 = vector.broadcast %cst_118 : f32 to vector<2x128xf32>
      %269 = arith.select %266, %267, %268 : vector<2x128xi1>, vector<2x128xf32>
      %c0_119 = arith.constant 0 : index
      %c0_120 = arith.constant 0 : index
      %270 = vector.load %arg6[%c0_119, %c0_120] : memref<2x128xf32, #tpu.memory_space<vmem>>, vector<2x128xf32>
      tpu.vector_store %arg6[%c0_119, %c0_120], %269 {strides = array<i32>} : memref<2x128xf32, #tpu.memory_space<vmem>>, vector<2x128xf32>,
    } else {
    }
    %4 = tpu.iota {dimensions = array<i32: 1>} : vector<2x8xi32>
    %c0_i32_2 = arith.constant 0 : i32
    %5 = arith.index_cast %c0_i32_2 : i32 to index
    %c0_3 = arith.constant 0 : index
    %c0_4 = arith.constant 0 : index
    %6 = vector.load %arg1[%5, %c0_3, %c0_4] : memref<8x2x128xf32, #tpu.memory_space<vmem>>, vector<1x2x128xf32>
    %7 = vector.shape_cast %6 : vector<1x2x128xf32> to vector<2x128xf32>
    %8 = arith.index_cast %c0_i32_2 : i32 to index
    %c0_5 = arith.constant 0 : index
    %c0_6 = arith.constant 0 : index
    %9 = vector.load %arg3[%8, %c0_5, %c0_6] : memref<8x2x1xf32, #tpu.memory_space<vmem>>, vector<1x2x1xf32>
    %10 = vector.shape_cast %9 : vector<1x2x1xf32> to vector<2x1xf32>
    %11 = vector.extract_strided_slice %7 {offsets = [0, 0], sizes = [2, 8], strides = [1, 1]} : vector<2x128xf32> to vector<2x8xf32>
    %12 = vector.shape_cast %11 : vector<2x8xf32> to vector<2x8x1xf32>
    %c0_7 = arith.constant 0 : index
    %c0_8 = arith.constant 0 : index
    %13 = vector.load %arg6[%c0_7, %c0_8] : memref<2x128xf32, #tpu.memory_space<vmem>>, vector<2x128xf32>
    %14 = vector.shape_cast %13 : vector<2x128xf32> to vector<2x1x128xf32>
    %15 = vector.shape_cast %0 : vector<8x128xf32> to vector<1x8x128xf32>
    %16 = vector.broadcast %14 : vector<2x1x128xf32> to vector<2x8x128xf32>
    %17 = vector.broadcast %15 : vector<1x8x128xf32> to vector<2x8x128xf32>
    %18 = arith.addf %16, %17 : vector<2x8x128xf32>
    %19 = vector.broadcast %12 : vector<2x8x1xf32> to vector<2x8x128xf32>
    %20 = arith.addf %18, %19 : vector<2x8x128xf32>
    %cst = arith.constant dense<0xFF800000> : vector<2x8xf32>
    %21 = vector.multi_reduction <maximumf>, %20, %cst [2] : vector<2x8x128xf32> to vector<2x8xf32>
    %22 = tpu.reduce_index %20 {axis = 2 : i32, kind = #tpu.reduction_kind<arg_max>} : vector<2x8x128xf32> -> vector<2x8xi32>
    %cst_9 = arith.constant 0.000000e+00 : f32
    %23 = vector.broadcast %cst_9 : f32 to vector<2x1xf32>
    %24 = arith.cmpf ogt, %10, %23 : vector<2x1xf32>
    %c0_10 = arith.constant 0 : index
    %c0_11 = arith.constant 0 : index
    %25 = vector.load %arg6[%c0_10, %c0_11] : memref<2x128xf32, #tpu.memory_space<vmem>>, vector<2x8xf32>
    %26 = vector.shape_cast %24 : vector<2x1xi1> to vector<2x1xi1>
    %27 = vector.broadcast %26 : vector<2x1xi1> to vector<2x8xi1>
    %28 = arith.select %27, %21, %25 : vector<2x8xi1>, vector<2x8xf32>
    %c0_12 = arith.constant 0 : index
    %c0_13 = arith.constant 0 : index
    %29 = vector.load %arg6[%c0_12, %c0_13] : memref<2x128xf32, #tpu.memory_space<vmem>>, vector<2x8xf32>
    tpu.vector_store %arg6[%c0_12, %c0_13], %28 {strides = array<i32>} : memref<2x128xf32, #tpu.memory_space<vmem>>, vector<2x8xf32>,
    %30 = vector.shape_cast %24 : vector<2x1xi1> to vector<2x1xi1>
    %31 = vector.broadcast %30 : vector<2x1xi1> to vector<2x8xi1>
    %32 = arith.select %31, %22, %4 : vector<2x8xi1>, vector<2x8xi32>
    %33 = arith.index_cast %c0_i32_2 : i32 to index
    %c0_14 = arith.constant 0 : index
    %c0_15 = arith.constant 0 : index
    %34 = vector.load %arg4[%33, %c0_14, %c0_15] : memref<8x2x8xi32, #tpu.memory_space<vmem>>, vector<1x2x8xi32>
    %35 = vector.shape_cast %34 : vector<1x2x8xi32> to vector<2x8xi32>
    %36 = vector.shape_cast %32 : vector<2x8xi32> to vector<1x2x8xi32>
    tpu.vector_store %arg4[%33, %c0_14, %c0_15], %36 {strides = array<i32>} : memref<8x2x8xi32, #tpu.memory_space<vmem>>, vector<1x2x8xi32>,
    %c1_i32 = arith.constant 1 : i32
    %37 = arith.index_cast %c1_i32 : i32 to index
    %c0_16 = arith.constant 0 : index
    %c0_17 = arith.constant 0 : index
    %38 = vector.load %arg1[%37, %c0_16, %c0_17] : memref<8x2x128xf32, #tpu.memory_space<vmem>>, vector<1x2x128xf32>
    %39 = vector.shape_cast %38 : vector<1x2x128xf32> to vector<2x128xf32>
    %40 = arith.index_cast %c1_i32 : i32 to index
    %c0_18 = arith.constant 0 : index
    %c0_19 = arith.constant 0 : index
    %41 = vector.load %arg3[%40, %c0_18, %c0_19] : memref<8x2x1xf32, #tpu.memory_space<vmem>>, vector<1x2x1xf32>
    %42 = vector.shape_cast %41 : vector<1x2x1xf32> to vector<2x1xf32>
    %43 = vector.extract_strided_slice %39 {offsets = [0, 0], sizes = [2, 8], strides = [1, 1]} : vector<2x128xf32> to vector<2x8xf32>
    %44 = vector.shape_cast %43 : vector<2x8xf32> to vector<2x8x1xf32>
    %c0_20 = arith.constant 0 : index
    %c0_21 = arith.constant 0 : index
    %45 = vector.load %arg6[%c0_20, %c0_21] : memref<2x128xf32, #tpu.memory_space<vmem>>, vector<2x128xf32>
    %46 = vector.shape_cast %45 : vector<2x128xf32> to vector<2x1x128xf32>
    %47 = vector.shape_cast %0 : vector<8x128xf32> to vector<1x8x128xf32>
    %48 = vector.broadcast %46 : vector<2x1x128xf32> to vector<2x8x128xf32>
    %49 = vector.broadcast %47 : vector<1x8x128xf32> to vector<2x8x128xf32>
    %50 = arith.addf %48, %49 : vector<2x8x128xf32>
    %51 = vector.broadcast %44 : vector<2x8x1xf32> to vector<2x8x128xf32>
    %52 = arith.addf %50, %51 : vector<2x8x128xf32>
    %cst_22 = arith.constant dense<0xFF800000> : vector<2x8xf32>
    %53 = vector.multi_reduction <maximumf>, %52, %cst_22 [2] : vector<2x8x128xf32> to vector<2x8xf32>
    %54 = tpu.reduce_index %52 {axis = 2 : i32, kind = #tpu.reduction_kind<arg_max>} : vector<2x8x128xf32> -> vector<2x8xi32>
    %cst_23 = arith.constant 0.000000e+00 : f32
    %55 = vector.broadcast %cst_23 : f32 to vector<2x1xf32>
    %56 = arith.cmpf ogt, %42, %55 : vector<2x1xf32>
    %c0_24 = arith.constant 0 : index
    %c0_25 = arith.constant 0 : index
    %57 = vector.load %arg6[%c0_24, %c0_25] : memref<2x128xf32, #tpu.memory_space<vmem>>, vector<2x8xf32>
    %58 = vector.shape_cast %56 : vector<2x1xi1> to vector<2x1xi1>
    %59 = vector.broadcast %58 : vector<2x1xi1> to vector<2x8xi1>
    %60 = arith.select %59, %53, %57 : vector<2x8xi1>, vector<2x8xf32>
    %c0_26 = arith.constant 0 : index
    %c0_27 = arith.constant 0 : index
    %61 = vector.load %arg6[%c0_26, %c0_27] : memref<2x128xf32, #tpu.memory_space<vmem>>, vector<2x8xf32>
    tpu.vector_store %arg6[%c0_26, %c0_27], %60 {strides = array<i32>} : memref<2x128xf32, #tpu.memory_space<vmem>>, vector<2x8xf32>,
    %62 = vector.shape_cast %56 : vector<2x1xi1> to vector<2x1xi1>
    %63 = vector.broadcast %62 : vector<2x1xi1> to vector<2x8xi1>
    %64 = arith.select %63, %54, %4 : vector<2x8xi1>, vector<2x8xi32>
    %65 = arith.index_cast %c1_i32 : i32 to index
    %c0_28 = arith.constant 0 : index
    %c0_29 = arith.constant 0 : index
    %66 = vector.load %arg4[%65, %c0_28, %c0_29] : memref<8x2x8xi32, #tpu.memory_space<vmem>>, vector<1x2x8xi32>
    %67 = vector.shape_cast %66 : vector<1x2x8xi32> to vector<2x8xi32>
    %68 = vector.shape_cast %64 : vector<2x8xi32> to vector<1x2x8xi32>
    tpu.vector_store %arg4[%65, %c0_28, %c0_29], %68 {strides = array<i32>} : memref<8x2x8xi32, #tpu.memory_space<vmem>>, vector<1x2x8xi32>,
    %c2_i32 = arith.constant 2 : i32
    %69 = arith.index_cast %c2_i32 : i32 to index
    %c0_30 = arith.constant 0 : index
    %c0_31 = arith.constant 0 : index
    %70 = vector.load %arg1[%69, %c0_30, %c0_31] : memref<8x2x128xf32, #tpu.memory_space<vmem>>, vector<1x2x128xf32>
    %71 = vector.shape_cast %70 : vector<1x2x128xf32> to vector<2x128xf32>
    %72 = arith.index_cast %c2_i32 : i32 to index
    %c0_32 = arith.constant 0 : index
    %c0_33 = arith.constant 0 : index
    %73 = vector.load %arg3[%72, %c0_32, %c0_33] : memref<8x2x1xf32, #tpu.memory_space<vmem>>, vector<1x2x1xf32>
    %74 = vector.shape_cast %73 : vector<1x2x1xf32> to vector<2x1xf32>
    %75 = vector.extract_strided_slice %71 {offsets = [0, 0], sizes = [2, 8], strides = [1, 1]} : vector<2x128xf32> to vector<2x8xf32>
    %76 = vector.shape_cast %75 : vector<2x8xf32> to vector<2x8x1xf32>
    %c0_34 = arith.constant 0 : index
    %c0_35 = arith.constant 0 : index
    %77 = vector.load %arg6[%c0_34, %c0_35] : memref<2x128xf32, #tpu.memory_space<vmem>>, vector<2x128xf32>
    %78 = vector.shape_cast %77 : vector<2x128xf32> to vector<2x1x128xf32>
    %79 = vector.shape_cast %0 : vector<8x128xf32> to vector<1x8x128xf32>
    %80 = vector.broadcast %78 : vector<2x1x128xf32> to vector<2x8x128xf32>
    %81 = vector.broadcast %79 : vector<1x8x128xf32> to vector<2x8x128xf32>
    %82 = arith.addf %80, %81 : vector<2x8x128xf32>
    %83 = vector.broadcast %76 : vector<2x8x1xf32> to vector<2x8x128xf32>
    %84 = arith.addf %82, %83 : vector<2x8x128xf32>
    %cst_36 = arith.constant dense<0xFF800000> : vector<2x8xf32>
    %85 = vector.multi_reduction <maximumf>, %84, %cst_36 [2] : vector<2x8x128xf32> to vector<2x8xf32>
    %86 = tpu.reduce_index %84 {axis = 2 : i32, kind = #tpu.reduction_kind<arg_max>} : vector<2x8x128xf32> -> vector<2x8xi32>
    %cst_37 = arith.constant 0.000000e+00 : f32
    %87 = vector.broadcast %cst_37 : f32 to vector<2x1xf32>
    %88 = arith.cmpf ogt, %74, %87 : vector<2x1xf32>
    %c0_38 = arith.constant 0 : index
    %c0_39 = arith.constant 0 : index
    %89 = vector.load %arg6[%c0_38, %c0_39] : memref<2x128xf32, #tpu.memory_space<vmem>>, vector<2x8xf32>
    %90 = vector.shape_cast %88 : vector<2x1xi1> to vector<2x1xi1>
    %91 = vector.broadcast %90 : vector<2x1xi1> to vector<2x8xi1>
    %92 = arith.select %91, %85, %89 : vector<2x8xi1>, vector<2x8xf32>
    %c0_40 = arith.constant 0 : index
    %c0_41 = arith.constant 0 : index
    %93 = vector.load %arg6[%c0_40, %c0_41] : memref<2x128xf32, #tpu.memory_space<vmem>>, vector<2x8xf32>
    tpu.vector_store %arg6[%c0_40, %c0_41], %92 {strides = array<i32>} : memref<2x128xf32, #tpu.memory_space<vmem>>, vector<2x8xf32>,
    %94 = vector.shape_cast %88 : vector<2x1xi1> to vector<2x1xi1>
    %95 = vector.broadcast %94 : vector<2x1xi1> to vector<2x8xi1>
    %96 = arith.select %95, %86, %4 : vector<2x8xi1>, vector<2x8xi32>
    %97 = arith.index_cast %c2_i32 : i32 to index
    %c0_42 = arith.constant 0 : index
    %c0_43 = arith.constant 0 : index
    %98 = vector.load %arg4[%97, %c0_42, %c0_43] : memref<8x2x8xi32, #tpu.memory_space<vmem>>, vector<1x2x8xi32>
    %99 = vector.shape_cast %98 : vector<1x2x8xi32> to vector<2x8xi32>
    %100 = vector.shape_cast %96 : vector<2x8xi32> to vector<1x2x8xi32>
    tpu.vector_store %arg4[%97, %c0_42, %c0_43], %100 {strides = array<i32>} : memref<8x2x8xi32, #tpu.memory_space<vmem>>, vector<1x2x8xi32>,
    %c3_i32 = arith.constant 3 : i32
    %101 = arith.index_cast %c3_i32 : i32 to index
    %c0_44 = arith.constant 0 : index
    %c0_45 = arith.constant 0 : index
    %102 = vector.load %arg1[%101, %c0_44, %c0_45] : memref<8x2x128xf32, #tpu.memory_space<vmem>>, vector<1x2x128xf32>
    %103 = vector.shape_cast %102 : vector<1x2x128xf32> to vector<2x128xf32>
    %104 = arith.index_cast %c3_i32 : i32 to index
    %c0_46 = arith.constant 0 : index
    %c0_47 = arith.constant 0 : index
    %105 = vector.load %arg3[%104, %c0_46, %c0_47] : memref<8x2x1xf32, #tpu.memory_space<vmem>>, vector<1x2x1xf32>
    %106 = vector.shape_cast %105 : vector<1x2x1xf32> to vector<2x1xf32>
    %107 = vector.extract_strided_slice %103 {offsets = [0, 0], sizes = [2, 8], strides = [1, 1]} : vector<2x128xf32> to vector<2x8xf32>
    %108 = vector.shape_cast %107 : vector<2x8xf32> to vector<2x8x1xf32>
    %c0_48 = arith.constant 0 : index
    %c0_49 = arith.constant 0 : index
    %109 = vector.load %arg6[%c0_48, %c0_49] : memref<2x128xf32, #tpu.memory_space<vmem>>, vector<2x128xf32>
    %110 = vector.shape_cast %109 : vector<2x128xf32> to vector<2x1x128xf32>
    %111 = vector.shape_cast %0 : vector<8x128xf32> to vector<1x8x128xf32>
    %112 = vector.broadcast %110 : vector<2x1x128xf32> to vector<2x8x128xf32>
    %113 = vector.broadcast %111 : vector<1x8x128xf32> to vector<2x8x128xf32>
    %114 = arith.addf %112, %113 : vector<2x8x128xf32>
    %115 = vector.broadcast %108 : vector<2x8x1xf32> to vector<2x8x128xf32>
    %116 = arith.addf %114, %115 : vector<2x8x128xf32>
    %cst_50 = arith.constant dense<0xFF800000> : vector<2x8xf32>
    %117 = vector.multi_reduction <maximumf>, %116, %cst_50 [2] : vector<2x8x128xf32> to vector<2x8xf32>
    %118 = tpu.reduce_index %116 {axis = 2 : i32, kind = #tpu.reduction_kind<arg_max>} : vector<2x8x128xf32> -> vector<2x8xi32>
    %cst_51 = arith.constant 0.000000e+00 : f32
    %119 = vector.broadcast %cst_51 : f32 to vector<2x1xf32>
    %120 = arith.cmpf ogt, %106, %119 : vector<2x1xf32>
    %c0_52 = arith.constant 0 : index
    %c0_53 = arith.constant 0 : index
    %121 = vector.load %arg6[%c0_52, %c0_53] : memref<2x128xf32, #tpu.memory_space<vmem>>, vector<2x8xf32>
    %122 = vector.shape_cast %120 : vector<2x1xi1> to vector<2x1xi1>
    %123 = vector.broadcast %122 : vector<2x1xi1> to vector<2x8xi1>
    %124 = arith.select %123, %117, %121 : vector<2x8xi1>, vector<2x8xf32>
    %c0_54 = arith.constant 0 : index
    %c0_55 = arith.constant 0 : index
    %125 = vector.load %arg6[%c0_54, %c0_55] : memref<2x128xf32, #tpu.memory_space<vmem>>, vector<2x8xf32>
    tpu.vector_store %arg6[%c0_54, %c0_55], %124 {strides = array<i32>} : memref<2x128xf32, #tpu.memory_space<vmem>>, vector<2x8xf32>,
    %126 = vector.shape_cast %120 : vector<2x1xi1> to vector<2x1xi1>
    %127 = vector.broadcast %126 : vector<2x1xi1> to vector<2x8xi1>
    %128 = arith.select %127, %118, %4 : vector<2x8xi1>, vector<2x8xi32>
    %129 = arith.index_cast %c3_i32 : i32 to index
    %c0_56 = arith.constant 0 : index
    %c0_57 = arith.constant 0 : index
    %130 = vector.load %arg4[%129, %c0_56, %c0_57] : memref<8x2x8xi32, #tpu.memory_space<vmem>>, vector<1x2x8xi32>
    %131 = vector.shape_cast %130 : vector<1x2x8xi32> to vector<2x8xi32>
    %132 = vector.shape_cast %128 : vector<2x8xi32> to vector<1x2x8xi32>
    tpu.vector_store %arg4[%129, %c0_56, %c0_57], %132 {strides = array<i32>} : memref<8x2x8xi32, #tpu.memory_space<vmem>>, vector<1x2x8xi32>,
    %c4_i32 = arith.constant 4 : i32
    %133 = arith.index_cast %c4_i32 : i32 to index
    %c0_58 = arith.constant 0 : index
    %c0_59 = arith.constant 0 : index
    %134 = vector.load %arg1[%133, %c0_58, %c0_59] : memref<8x2x128xf32, #tpu.memory_space<vmem>>, vector<1x2x128xf32>
    %135 = vector.shape_cast %134 : vector<1x2x128xf32> to vector<2x128xf32>
    %136 = arith.index_cast %c4_i32 : i32 to index
    %c0_60 = arith.constant 0 : index
    %c0_61 = arith.constant 0 : index
    %137 = vector.load %arg3[%136, %c0_60, %c0_61] : memref<8x2x1xf32, #tpu.memory_space<vmem>>, vector<1x2x1xf32>
    %138 = vector.shape_cast %137 : vector<1x2x1xf32> to vector<2x1xf32>
    %139 = vector.extract_strided_slice %135 {offsets = [0, 0], sizes = [2, 8], strides = [1, 1]} : vector<2x128xf32> to vector<2x8xf32>
    %140 = vector.shape_cast %139 : vector<2x8xf32> to vector<2x8x1xf32>
    %c0_62 = arith.constant 0 : index
    %c0_63 = arith.constant 0 : index
    %141 = vector.load %arg6[%c0_62, %c0_63] : memref<2x128xf32, #tpu.memory_space<vmem>>, vector<2x128xf32>
    %142 = vector.shape_cast %141 : vector<2x128xf32> to vector<2x1x128xf32>
    %143 = vector.shape_cast %0 : vector<8x128xf32> to vector<1x8x128xf32>
    %144 = vector.broadcast %142 : vector<2x1x128xf32> to vector<2x8x128xf32>
    %145 = vector.broadcast %143 : vector<1x8x128xf32> to vector<2x8x128xf32>
    %146 = arith.addf %144, %145 : vector<2x8x128xf32>
    %147 = vector.broadcast %140 : vector<2x8x1xf32> to vector<2x8x128xf32>
    %148 = arith.addf %146, %147 : vector<2x8x128xf32>
    %cst_64 = arith.constant dense<0xFF800000> : vector<2x8xf32>
    %149 = vector.multi_reduction <maximumf>, %148, %cst_64 [2] : vector<2x8x128xf32> to vector<2x8xf32>
    %150 = tpu.reduce_index %148 {axis = 2 : i32, kind = #tpu.reduction_kind<arg_max>} : vector<2x8x128xf32> -> vector<2x8xi32>
    %cst_65 = arith.constant 0.000000e+00 : f32
    %151 = vector.broadcast %cst_65 : f32 to vector<2x1xf32>
    %152 = arith.cmpf ogt, %138, %151 : vector<2x1xf32>
    %c0_66 = arith.constant 0 : index
    %c0_67 = arith.constant 0 : index
    %153 = vector.load %arg6[%c0_66, %c0_67] : memref<2x128xf32, #tpu.memory_space<vmem>>, vector<2x8xf32>
    %154 = vector.shape_cast %152 : vector<2x1xi1> to vector<2x1xi1>
    %155 = vector.broadcast %154 : vector<2x1xi1> to vector<2x8xi1>
    %156 = arith.select %155, %149, %153 : vector<2x8xi1>, vector<2x8xf32>
    %c0_68 = arith.constant 0 : index
    %c0_69 = arith.constant 0 : index
    %157 = vector.load %arg6[%c0_68, %c0_69] : memref<2x128xf32, #tpu.memory_space<vmem>>, vector<2x8xf32>
    tpu.vector_store %arg6[%c0_68, %c0_69], %156 {strides = array<i32>} : memref<2x128xf32, #tpu.memory_space<vmem>>, vector<2x8xf32>,
    %158 = vector.shape_cast %152 : vector<2x1xi1> to vector<2x1xi1>
    %159 = vector.broadcast %158 : vector<2x1xi1> to vector<2x8xi1>
    %160 = arith.select %159, %150, %4 : vector<2x8xi1>, vector<2x8xi32>
    %161 = arith.index_cast %c4_i32 : i32 to index
    %c0_70 = arith.constant 0 : index
    %c0_71 = arith.constant 0 : index
    %162 = vector.load %arg4[%161, %c0_70, %c0_71] : memref<8x2x8xi32, #tpu.memory_space<vmem>>, vector<1x2x8xi32>
    %163 = vector.shape_cast %162 : vector<1x2x8xi32> to vector<2x8xi32>
    %164 = vector.shape_cast %160 : vector<2x8xi32> to vector<1x2x8xi32>
    tpu.vector_store %arg4[%161, %c0_70, %c0_71], %164 {strides = array<i32>} : memref<8x2x8xi32, #tpu.memory_space<vmem>>, vector<1x2x8xi32>,
    %c5_i32 = arith.constant 5 : i32
    %165 = arith.index_cast %c5_i32 : i32 to index
    %c0_72 = arith.constant 0 : index
    %c0_73 = arith.constant 0 : index
    %166 = vector.load %arg1[%165, %c0_72, %c0_73] : memref<8x2x128xf32, #tpu.memory_space<vmem>>, vector<1x2x128xf32>
    %167 = vector.shape_cast %166 : vector<1x2x128xf32> to vector<2x128xf32>
    %168 = arith.index_cast %c5_i32 : i32 to index
    %c0_74 = arith.constant 0 : index
    %c0_75 = arith.constant 0 : index
    %169 = vector.load %arg3[%168, %c0_74, %c0_75] : memref<8x2x1xf32, #tpu.memory_space<vmem>>, vector<1x2x1xf32>
    %170 = vector.shape_cast %169 : vector<1x2x1xf32> to vector<2x1xf32>
    %171 = vector.extract_strided_slice %167 {offsets = [0, 0], sizes = [2, 8], strides = [1, 1]} : vector<2x128xf32> to vector<2x8xf32>
    %172 = vector.shape_cast %171 : vector<2x8xf32> to vector<2x8x1xf32>
    %c0_76 = arith.constant 0 : index
    %c0_77 = arith.constant 0 : index
    %173 = vector.load %arg6[%c0_76, %c0_77] : memref<2x128xf32, #tpu.memory_space<vmem>>, vector<2x128xf32>
    %174 = vector.shape_cast %173 : vector<2x128xf32> to vector<2x1x128xf32>
    %175 = vector.shape_cast %0 : vector<8x128xf32> to vector<1x8x128xf32>
    %176 = vector.broadcast %174 : vector<2x1x128xf32> to vector<2x8x128xf32>
    %177 = vector.broadcast %175 : vector<1x8x128xf32> to vector<2x8x128xf32>
    %178 = arith.addf %176, %177 : vector<2x8x128xf32>
    %179 = vector.broadcast %172 : vector<2x8x1xf32> to vector<2x8x128xf32>
    %180 = arith.addf %178, %179 : vector<2x8x128xf32>
    %cst_78 = arith.constant dense<0xFF800000> : vector<2x8xf32>
    %181 = vector.multi_reduction <maximumf>, %180, %cst_78 [2] : vector<2x8x128xf32> to vector<2x8xf32>
    %182 = tpu.reduce_index %180 {axis = 2 : i32, kind = #tpu.reduction_kind<arg_max>} : vector<2x8x128xf32> -> vector<2x8xi32>
    %cst_79 = arith.constant 0.000000e+00 : f32
    %183 = vector.broadcast %cst_79 : f32 to vector<2x1xf32>
    %184 = arith.cmpf ogt, %170, %183 : vector<2x1xf32>
    %c0_80 = arith.constant 0 : index
    %c0_81 = arith.constant 0 : index
    %185 = vector.load %arg6[%c0_80, %c0_81] : memref<2x128xf32, #tpu.memory_space<vmem>>, vector<2x8xf32>
    %186 = vector.shape_cast %184 : vector<2x1xi1> to vector<2x1xi1>
    %187 = vector.broadcast %186 : vector<2x1xi1> to vector<2x8xi1>
    %188 = arith.select %187, %181, %185 : vector<2x8xi1>, vector<2x8xf32>
    %c0_82 = arith.constant 0 : index
    %c0_83 = arith.constant 0 : index
    %189 = vector.load %arg6[%c0_82, %c0_83] : memref<2x128xf32, #tpu.memory_space<vmem>>, vector<2x8xf32>
    tpu.vector_store %arg6[%c0_82, %c0_83], %188 {strides = array<i32>} : memref<2x128xf32, #tpu.memory_space<vmem>>, vector<2x8xf32>,
    %190 = vector.shape_cast %184 : vector<2x1xi1> to vector<2x1xi1>
    %191 = vector.broadcast %190 : vector<2x1xi1> to vector<2x8xi1>
    %192 = arith.select %191, %182, %4 : vector<2x8xi1>, vector<2x8xi32>
    %193 = arith.index_cast %c5_i32 : i32 to index
    %c0_84 = arith.constant 0 : index
    %c0_85 = arith.constant 0 : index
    %194 = vector.load %arg4[%193, %c0_84, %c0_85] : memref<8x2x8xi32, #tpu.memory_space<vmem>>, vector<1x2x8xi32>
    %195 = vector.shape_cast %194 : vector<1x2x8xi32> to vector<2x8xi32>
    %196 = vector.shape_cast %192 : vector<2x8xi32> to vector<1x2x8xi32>
    tpu.vector_store %arg4[%193, %c0_84, %c0_85], %196 {strides = array<i32>} : memref<8x2x8xi32, #tpu.memory_space<vmem>>, vector<1x2x8xi32>,
    %c6_i32 = arith.constant 6 : i32
    %197 = arith.index_cast %c6_i32 : i32 to index
    %c0_86 = arith.constant 0 : index
    %c0_87 = arith.constant 0 : index
    %198 = vector.load %arg1[%197, %c0_86, %c0_87] : memref<8x2x128xf32, #tpu.memory_space<vmem>>, vector<1x2x128xf32>
    %199 = vector.shape_cast %198 : vector<1x2x128xf32> to vector<2x128xf32>
    %200 = arith.index_cast %c6_i32 : i32 to index
    %c0_88 = arith.constant 0 : index
    %c0_89 = arith.constant 0 : index
    %201 = vector.load %arg3[%200, %c0_88, %c0_89] : memref<8x2x1xf32, #tpu.memory_space<vmem>>, vector<1x2x1xf32>
    %202 = vector.shape_cast %201 : vector<1x2x1xf32> to vector<2x1xf32>
    %203 = vector.extract_strided_slice %199 {offsets = [0, 0], sizes = [2, 8], strides = [1, 1]} : vector<2x128xf32> to vector<2x8xf32>
    %204 = vector.shape_cast %203 : vector<2x8xf32> to vector<2x8x1xf32>
    %c0_90 = arith.constant 0 : index
    %c0_91 = arith.constant 0 : index
    %205 = vector.load %arg6[%c0_90, %c0_91] : memref<2x128xf32, #tpu.memory_space<vmem>>, vector<2x128xf32>
    %206 = vector.shape_cast %205 : vector<2x128xf32> to vector<2x1x128xf32>
    %207 = vector.shape_cast %0 : vector<8x128xf32> to vector<1x8x128xf32>
    %208 = vector.broadcast %206 : vector<2x1x128xf32> to vector<2x8x128xf32>
    %209 = vector.broadcast %207 : vector<1x8x128xf32> to vector<2x8x128xf32>
    %210 = arith.addf %208, %209 : vector<2x8x128xf32>
    %211 = vector.broadcast %204 : vector<2x8x1xf32> to vector<2x8x128xf32>
    %212 = arith.addf %210, %211 : vector<2x8x128xf32>
    %cst_92 = arith.constant dense<0xFF800000> : vector<2x8xf32>
    %213 = vector.multi_reduction <maximumf>, %212, %cst_92 [2] : vector<2x8x128xf32> to vector<2x8xf32>
    %214 = tpu.reduce_index %212 {axis = 2 : i32, kind = #tpu.reduction_kind<arg_max>} : vector<2x8x128xf32> -> vector<2x8xi32>
    %cst_93 = arith.constant 0.000000e+00 : f32
    %215 = vector.broadcast %cst_93 : f32 to vector<2x1xf32>
    %216 = arith.cmpf ogt, %202, %215 : vector<2x1xf32>
    %c0_94 = arith.constant 0 : index
    %c0_95 = arith.constant 0 : index
    %217 = vector.load %arg6[%c0_94, %c0_95] : memref<2x128xf32, #tpu.memory_space<vmem>>, vector<2x8xf32>
    %218 = vector.shape_cast %216 : vector<2x1xi1> to vector<2x1xi1>
    %219 = vector.broadcast %218 : vector<2x1xi1> to vector<2x8xi1>
    %220 = arith.select %219, %213, %217 : vector<2x8xi1>, vector<2x8xf32>
    %c0_96 = arith.constant 0 : index
    %c0_97 = arith.constant 0 : index
    %221 = vector.load %arg6[%c0_96, %c0_97] : memref<2x128xf32, #tpu.memory_space<vmem>>, vector<2x8xf32>
    tpu.vector_store %arg6[%c0_96, %c0_97], %220 {strides = array<i32>} : memref<2x128xf32, #tpu.memory_space<vmem>>, vector<2x8xf32>,
    %222 = vector.shape_cast %216 : vector<2x1xi1> to vector<2x1xi1>
    %223 = vector.broadcast %222 : vector<2x1xi1> to vector<2x8xi1>
    %224 = arith.select %223, %214, %4 : vector<2x8xi1>, vector<2x8xi32>
    %225 = arith.index_cast %c6_i32 : i32 to index
    %c0_98 = arith.constant 0 : index
    %c0_99 = arith.constant 0 : index
    %226 = vector.load %arg4[%225, %c0_98, %c0_99] : memref<8x2x8xi32, #tpu.memory_space<vmem>>, vector<1x2x8xi32>
    %227 = vector.shape_cast %226 : vector<1x2x8xi32> to vector<2x8xi32>
    %228 = vector.shape_cast %224 : vector<2x8xi32> to vector<1x2x8xi32>
    tpu.vector_store %arg4[%225, %c0_98, %c0_99], %228 {strides = array<i32>} : memref<8x2x8xi32, #tpu.memory_space<vmem>>, vector<1x2x8xi32>,
    %c7_i32 = arith.constant 7 : i32
    %229 = arith.index_cast %c7_i32 : i32 to index
    %c0_100 = arith.constant 0 : index
    %c0_101 = arith.constant 0 : index
    %230 = vector.load %arg1[%229, %c0_100, %c0_101] : memref<8x2x128xf32, #tpu.memory_space<vmem>>, vector<1x2x128xf32>
    %231 = vector.shape_cast %230 : vector<1x2x128xf32> to vector<2x128xf32>
    %232 = arith.index_cast %c7_i32 : i32 to index
    %c0_102 = arith.constant 0 : index
    %c0_103 = arith.constant 0 : index
    %233 = vector.load %arg3[%232, %c0_102, %c0_103] : memref<8x2x1xf32, #tpu.memory_space<vmem>>, vector<1x2x1xf32>
    %234 = vector.shape_cast %233 : vector<1x2x1xf32> to vector<2x1xf32>
    %235 = vector.extract_strided_slice %231 {offsets = [0, 0], sizes = [2, 8], strides = [1, 1]} : vector<2x128xf32> to vector<2x8xf32>
    %236 = vector.shape_cast %235 : vector<2x8xf32> to vector<2x8x1xf32>
    %c0_104 = arith.constant 0 : index
    %c0_105 = arith.constant 0 : index
    %237 = vector.load %arg6[%c0_104, %c0_105] : memref<2x128xf32, #tpu.memory_space<vmem>>, vector<2x128xf32>
    %238 = vector.shape_cast %237 : vector<2x128xf32> to vector<2x1x128xf32>
    %239 = vector.shape_cast %0 : vector<8x128xf32> to vector<1x8x128xf32>
    %240 = vector.broadcast %238 : vector<2x1x128xf32> to vector<2x8x128xf32>
    %241 = vector.broadcast %239 : vector<1x8x128xf32> to vector<2x8x128xf32>
    %242 = arith.addf %240, %241 : vector<2x8x128xf32>
    %243 = vector.broadcast %236 : vector<2x8x1xf32> to vector<2x8x128xf32>
    %244 = arith.addf %242, %243 : vector<2x8x128xf32>
    %cst_106 = arith.constant dense<0xFF800000> : vector<2x8xf32>
    %245 = vector.multi_reduction <maximumf>, %244, %cst_106 [2] : vector<2x8x128xf32> to vector<2x8xf32>
    %246 = tpu.reduce_index %244 {axis = 2 : i32, kind = #tpu.reduction_kind<arg_max>} : vector<2x8x128xf32> -> vector<2x8xi32>
    %cst_107 = arith.constant 0.000000e+00 : f32
    %247 = vector.broadcast %cst_107 : f32 to vector<2x1xf32>
    %248 = arith.cmpf ogt, %234, %247 : vector<2x1xf32>
    %c0_108 = arith.constant 0 : index
    %c0_109 = arith.constant 0 : index
    %249 = vector.load %arg6[%c0_108, %c0_109] : memref<2x128xf32, #tpu.memory_space<vmem>>, vector<2x8xf32>
    %250 = vector.shape_cast %248 : vector<2x1xi1> to vector<2x1xi1>
    %251 = vector.broadcast %250 : vector<2x1xi1> to vector<2x8xi1>
    %252 = arith.select %251, %245, %249 : vector<2x8xi1>, vector<2x8xf32>
    %c0_110 = arith.constant 0 : index
    %c0_111 = arith.constant 0 : index
    %253 = vector.load %arg6[%c0_110, %c0_111] : memref<2x128xf32, #tpu.memory_space<vmem>>, vector<2x8xf32>
    tpu.vector_store %arg6[%c0_110, %c0_111], %252 {strides = array<i32>} : memref<2x128xf32, #tpu.memory_space<vmem>>, vector<2x8xf32>,
    %254 = vector.shape_cast %248 : vector<2x1xi1> to vector<2x1xi1>
    %255 = vector.broadcast %254 : vector<2x1xi1> to vector<2x8xi1>
    %256 = arith.select %255, %246, %4 : vector<2x8xi1>, vector<2x8xi32>
    %257 = arith.index_cast %c7_i32 : i32 to index
    %c0_112 = arith.constant 0 : index
    %c0_113 = arith.constant 0 : index
    %258 = vector.load %arg4[%257, %c0_112, %c0_113] : memref<8x2x8xi32, #tpu.memory_space<vmem>>, vector<1x2x8xi32>
    %259 = vector.shape_cast %258 : vector<1x2x8xi32> to vector<2x8xi32>
    %260 = vector.shape_cast %256 : vector<2x8xi32> to vector<1x2x8xi32>
    tpu.vector_store %arg4[%257, %c0_112, %c0_113], %260 {strides = array<i32>} : memref<8x2x8xi32, #tpu.memory_space<vmem>>, vector<1x2x8xi32>,
    %c8_i32 = arith.constant 8 : i32
    %c0_i32_114 = arith.constant 0 : i32
    %261 = arith.cmpi eq, %arg0, %c0_i32_114 : i32
    %262 = arith.extui %261 : i1 to i32
    %c0_i32_115 = arith.constant 0 : i32
    %263 = arith.cmpi ne, %262, %c0_i32_115 : i32
    scf.if %263 {
      %c0_116 = arith.constant 0 : index
      %c0_117 = arith.constant 0 : index
      %264 = vector.load %arg6[%c0_116, %c0_117] : memref<2x128xf32, #tpu.memory_space<vmem>>, vector<2x128xf32>
      %c0_118 = arith.constant 0 : index
      %c0_119 = arith.constant 0 : index
      %265 = vector.load %arg5[%c0_118, %c0_119] : memref<2x128xf32, #tpu.memory_space<vmem>>, vector<2x128xf32>
      tpu.vector_store %arg5[%c0_118, %c0_119], %264 {strides = array<i32>} : memref<2x128xf32, #tpu.memory_space<vmem>>, vector<2x128xf32>,
    } else {
    }
    return
  }
  func.func @transform_0(%arg0: i32) -> (i32, i32, i32) {
    %c0_i32 = arith.constant 0 : i32
    %c0_i32_0 = arith.constant 0 : i32
    %c0_i32_1 = arith.constant 0 : i32
    return %arg0, %c0_i32, %c0_i32_0 : i32, i32, i32
  }
  func.func @transform_1(%arg0: i32) -> (i32, i32) {
    %c0_i32 = arith.constant 0 : i32
    %c0_i32_0 = arith.constant 0 : i32
    %c0_i32_1 = arith.constant 0 : i32
    return %c0_i32, %c0_i32_0 : i32, i32
  }
  func.func @transform_2(%arg0: i32) -> (i32, i32, i32) {
    %c0_i32 = arith.constant 0 : i32
    %c0_i32_0 = arith.constant 0 : i32
    %c0_i32_1 = arith.constant 0 : i32
    return %arg0, %c0_i32, %c0_i32_0 : i32, i32, i32
  }
  func.func @transform_3(%arg0: i32) -> (i32, i32, i32) {
    %c0_i32 = arith.constant 0 : i32
    %c0_i32_0 = arith.constant 0 : i32
    %c0_i32_1 = arith.constant 0 : i32
    return %arg0, %c0_i32, %c0_i32_0 : i32, i32, i32
  }
  func.func @transform_4(%arg0: i32) -> (i32, i32) {
    %c0_i32 = arith.constant 0 : i32
    %c0_i32_0 = arith.constant 0 : i32
    %c0_i32_1 = arith.constant 0 : i32
    return %c0_i32, %c0_i32_0 : i32, i32
  }
}

module attributes {stable_mosaic.version = 11 : i64} {
  func.func @_bilstm_kernel(%arg0: i32, %arg1: memref<8x2x512xbf16, #tpu.memory_space<vmem>>, %arg2: memref<8x2x512xbf16, #tpu.memory_space<vmem>>, %arg3: memref<256x1024xbf16, #tpu.memory_space<vmem>>, %arg4: memref<8x2x1xf32, #tpu.memory_space<vmem>>, %arg5: memref<8x2x1xf32, #tpu.memory_space<vmem>>, %arg6: memref<8x2x128xbf16, #tpu.memory_space<vmem>>, %arg7: memref<8x2x128xbf16, #tpu.memory_space<vmem>>, %arg8: memref<2x256xf32, #tpu.memory_space<vmem>>, %arg9: memref<2x256xf32, #tpu.memory_space<vmem>>) attributes {dimension_semantics = [#tpu.dimension_semantics<arbitrary>], iteration_bounds = array<i64: 1>, scalar_prefetch = 0 : i64, scratch_operands = 2 : i64, tpu.core_type = #tpu.core_type<tc>, window_params = [{transform_indices = @transform_0, window_bounds = array<i64: 8, 2, 512>}, {transform_indices = @transform_1, window_bounds = array<i64: 8, 2, 512>}, {pipeline_mode = #tpu.pipeline_mode<synchronous>, transform_indices = @transform_2, window_bounds = array<i64: 256, 1024>}, {transform_indices = @transform_3, window_bounds = array<i64: 8, 2, 1>}, {transform_indices = @transform_4, window_bounds = array<i64: 8, 2, 1>}, {transform_indices = @transform_5, window_bounds = array<i64: 8, 2, 128>}, {transform_indices = @transform_6, window_bounds = array<i64: 8, 2, 128>}]} {
    %c0_i32 = arith.constant 0 : i32
    %0 = arith.cmpi eq, %arg0, %c0_i32 : i32
    %1 = arith.extui %0 : i1 to i32
    %c0_i32_0 = arith.constant 0 : i32
    %2 = arith.cmpi ne, %1, %c0_i32_0 : i32
    scf.if %2 {
      %cst_383 = arith.constant 0.000000e+00 : f32
      %875 = vector.broadcast %cst_383 : f32 to vector<2x256xf32>
      %c0_384 = arith.constant 0 : index
      %c0_385 = arith.constant 0 : index
      %876 = vector.load %arg8[%c0_384, %c0_385] : memref<2x256xf32, #tpu.memory_space<vmem>>, vector<2x256xf32>
      tpu.vector_store %arg8[%c0_384, %c0_385], %875 {strides = array<i32>} : memref<2x256xf32, #tpu.memory_space<vmem>>, vector<2x256xf32>,
      %cst_386 = arith.constant 0.000000e+00 : f32
      %877 = vector.broadcast %cst_386 : f32 to vector<2x256xf32>
      %c0_387 = arith.constant 0 : index
      %c0_388 = arith.constant 0 : index
      %878 = vector.load %arg9[%c0_387, %c0_388] : memref<2x256xf32, #tpu.memory_space<vmem>>, vector<2x256xf32>
      tpu.vector_store %arg9[%c0_387, %c0_388], %877 {strides = array<i32>} : memref<2x256xf32, #tpu.memory_space<vmem>>, vector<2x256xf32>,
    } else {
    }
    %c0_i32_1 = arith.constant 0 : i32
    %c7_i32 = arith.constant 7 : i32
    %3 = arith.subi %c7_i32, %c0_i32_1 : i32
    %c0 = arith.constant 0 : index
    %c0_2 = arith.constant 0 : index
    %4 = vector.load %arg8[%c0, %c0_2] : memref<2x256xf32, #tpu.memory_space<vmem>>, vector<2x256xf32>
    %5 = arith.truncf %4 : vector<2x256xf32> to vector<2x256xbf16>
    %c0_3 = arith.constant 0 : index
    %c0_4 = arith.constant 0 : index
    %6 = vector.load %arg3[%c0_3, %c0_4] : memref<256x1024xbf16, #tpu.memory_space<vmem>>, vector<256x1024xbf16>
    %cst = arith.constant dense<0.000000e+00> : vector<2x1024xf32>
    %7 = tpu.matmul %5, %6, %cst {dimension_numbers = #tpu.dot_dimension_numbers<[1], [0], [0], [1], [0, 0, 1, 1], [], []>} : vector<2x256xbf16>, vector<256x1024xbf16>, vector<2x1024xf32> -> vector<2x1024xf32>
    %8 = arith.index_cast %c0_i32_1 : i32 to index
    %c0_5 = arith.constant 0 : index
    %c0_6 = arith.constant 0 : index
    %9 = vector.load %arg1[%8, %c0_5, %c0_6] : memref<8x2x512xbf16, #tpu.memory_space<vmem>>, vector<1x2x512xbf16>
    %10 = vector.shape_cast %9 : vector<1x2x512xbf16> to vector<2x512xbf16>
    %11 = vector.extract_strided_slice %7 {offsets = [0, 0], sizes = [2, 512], strides = [1, 1]} : vector<2x1024xf32> to vector<2x512xf32>
    %12 = arith.extf %10 : vector<2x512xbf16> to vector<2x512xf32>
    %13 = arith.addf %12, %11 : vector<2x512xf32>
    %14 = vector.extract_strided_slice %13 {offsets = [0, 0], sizes = [2, 128], strides = [1, 1]} : vector<2x512xf32> to vector<2x128xf32>
    %cst_7 = arith.constant 5.000000e-01 : f32
    %15 = vector.broadcast %cst_7 : f32 to vector<2x128xf32>
    %16 = arith.mulf %15, %14 : vector<2x128xf32>
    %17 = math.tanh %16 : vector<2x128xf32>
    %cst_8 = arith.constant 1.000000e+00 : f32
    %18 = vector.broadcast %cst_8 : f32 to vector<2x128xf32>
    %19 = arith.addf %17, %18 : vector<2x128xf32>
    %cst_9 = arith.constant 5.000000e-01 : f32
    %20 = vector.broadcast %cst_9 : f32 to vector<2x128xf32>
    %21 = arith.mulf %20, %19 : vector<2x128xf32>
    %22 = vector.extract_strided_slice %13 {offsets = [0, 128], sizes = [2, 128], strides = [1, 1]} : vector<2x512xf32> to vector<2x128xf32>
    %cst_10 = arith.constant 5.000000e-01 : f32
    %23 = vector.broadcast %cst_10 : f32 to vector<2x128xf32>
    %24 = arith.mulf %23, %22 : vector<2x128xf32>
    %25 = math.tanh %24 : vector<2x128xf32>
    %cst_11 = arith.constant 1.000000e+00 : f32
    %26 = vector.broadcast %cst_11 : f32 to vector<2x128xf32>
    %27 = arith.addf %25, %26 : vector<2x128xf32>
    %cst_12 = arith.constant 5.000000e-01 : f32
    %28 = vector.broadcast %cst_12 : f32 to vector<2x128xf32>
    %29 = arith.mulf %28, %27 : vector<2x128xf32>
    %30 = vector.extract_strided_slice %13 {offsets = [0, 256], sizes = [2, 128], strides = [1, 1]} : vector<2x512xf32> to vector<2x128xf32>
    %31 = math.tanh %30 : vector<2x128xf32>
    %32 = vector.extract_strided_slice %13 {offsets = [0, 384], sizes = [2, 128], strides = [1, 1]} : vector<2x512xf32> to vector<2x128xf32>
    %cst_13 = arith.constant 5.000000e-01 : f32
    %33 = vector.broadcast %cst_13 : f32 to vector<2x128xf32>
    %34 = arith.mulf %33, %32 : vector<2x128xf32>
    %35 = math.tanh %34 : vector<2x128xf32>
    %cst_14 = arith.constant 1.000000e+00 : f32
    %36 = vector.broadcast %cst_14 : f32 to vector<2x128xf32>
    %37 = arith.addf %35, %36 : vector<2x128xf32>
    %cst_15 = arith.constant 5.000000e-01 : f32
    %38 = vector.broadcast %cst_15 : f32 to vector<2x128xf32>
    %39 = arith.mulf %38, %37 : vector<2x128xf32>
    %c0_16 = arith.constant 0 : index
    %c0_17 = arith.constant 0 : index
    %40 = vector.load %arg9[%c0_16, %c0_17] : memref<2x256xf32, #tpu.memory_space<vmem>>, vector<2x128xf32>
    %41 = arith.mulf %29, %40 : vector<2x128xf32>
    %42 = arith.mulf %21, %31 : vector<2x128xf32>
    %43 = arith.addf %41, %42 : vector<2x128xf32>
    %44 = math.tanh %43 : vector<2x128xf32>
    %45 = arith.mulf %39, %44 : vector<2x128xf32>
    %46 = arith.index_cast %c0_i32_1 : i32 to index
    %c0_18 = arith.constant 0 : index
    %c0_19 = arith.constant 0 : index
    %47 = vector.load %arg4[%46, %c0_18, %c0_19] : memref<8x2x1xf32, #tpu.memory_space<vmem>>, vector<1x2x1xf32>
    %48 = vector.shape_cast %47 : vector<1x2x1xf32> to vector<2x1xf32>
    %49 = vector.broadcast %48 : vector<2x1xf32> to vector<2x128xf32>
    %50 = arith.mulf %43, %49 : vector<2x128xf32>
    %c0_20 = arith.constant 0 : index
    %c0_21 = arith.constant 0 : index
    %51 = vector.load %arg9[%c0_20, %c0_21] : memref<2x256xf32, #tpu.memory_space<vmem>>, vector<2x128xf32>
    tpu.vector_store %arg9[%c0_20, %c0_21], %50 {strides = array<i32>} : memref<2x256xf32, #tpu.memory_space<vmem>>, vector<2x128xf32>,
    %52 = vector.broadcast %48 : vector<2x1xf32> to vector<2x128xf32>
    %53 = arith.mulf %45, %52 : vector<2x128xf32>
    %c0_22 = arith.constant 0 : index
    %c0_23 = arith.constant 0 : index
    %54 = vector.load %arg8[%c0_22, %c0_23] : memref<2x256xf32, #tpu.memory_space<vmem>>, vector<2x128xf32>
    tpu.vector_store %arg8[%c0_22, %c0_23], %53 {strides = array<i32>} : memref<2x256xf32, #tpu.memory_space<vmem>>, vector<2x128xf32>,
    %55 = arith.truncf %53 : vector<2x128xf32> to vector<2x128xbf16>
    %56 = arith.index_cast %c0_i32_1 : i32 to index
    %c0_24 = arith.constant 0 : index
    %c0_25 = arith.constant 0 : index
    %57 = vector.load %arg6[%56, %c0_24, %c0_25] : memref<8x2x128xbf16, #tpu.memory_space<vmem>>, vector<1x2x128xbf16>
    %58 = vector.shape_cast %57 : vector<1x2x128xbf16> to vector<2x128xbf16>
    %59 = vector.shape_cast %55 : vector<2x128xbf16> to vector<1x2x128xbf16>
    tpu.vector_store %arg6[%56, %c0_24, %c0_25], %59 {strides = array<i32>} : memref<8x2x128xbf16, #tpu.memory_space<vmem>>, vector<1x2x128xbf16>,
    %60 = arith.index_cast %3 : i32 to index
    %c0_26 = arith.constant 0 : index
    %c0_27 = arith.constant 0 : index
    %61 = vector.load %arg2[%60, %c0_26, %c0_27] : memref<8x2x512xbf16, #tpu.memory_space<vmem>>, vector<1x2x512xbf16>
    %62 = vector.shape_cast %61 : vector<1x2x512xbf16> to vector<2x512xbf16>
    %63 = vector.extract_strided_slice %7 {offsets = [0, 512], sizes = [2, 512], strides = [1, 1]} : vector<2x1024xf32> to vector<2x512xf32>
    %64 = arith.extf %62 : vector<2x512xbf16> to vector<2x512xf32>
    %65 = arith.addf %64, %63 : vector<2x512xf32>
    %66 = vector.extract_strided_slice %65 {offsets = [0, 0], sizes = [2, 128], strides = [1, 1]} : vector<2x512xf32> to vector<2x128xf32>
    %cst_28 = arith.constant 5.000000e-01 : f32
    %67 = vector.broadcast %cst_28 : f32 to vector<2x128xf32>
    %68 = arith.mulf %67, %66 : vector<2x128xf32>
    %69 = math.tanh %68 : vector<2x128xf32>
    %cst_29 = arith.constant 1.000000e+00 : f32
    %70 = vector.broadcast %cst_29 : f32 to vector<2x128xf32>
    %71 = arith.addf %69, %70 : vector<2x128xf32>
    %cst_30 = arith.constant 5.000000e-01 : f32
    %72 = vector.broadcast %cst_30 : f32 to vector<2x128xf32>
    %73 = arith.mulf %72, %71 : vector<2x128xf32>
    %74 = vector.extract_strided_slice %65 {offsets = [0, 128], sizes = [2, 128], strides = [1, 1]} : vector<2x512xf32> to vector<2x128xf32>
    %cst_31 = arith.constant 5.000000e-01 : f32
    %75 = vector.broadcast %cst_31 : f32 to vector<2x128xf32>
    %76 = arith.mulf %75, %74 : vector<2x128xf32>
    %77 = math.tanh %76 : vector<2x128xf32>
    %cst_32 = arith.constant 1.000000e+00 : f32
    %78 = vector.broadcast %cst_32 : f32 to vector<2x128xf32>
    %79 = arith.addf %77, %78 : vector<2x128xf32>
    %cst_33 = arith.constant 5.000000e-01 : f32
    %80 = vector.broadcast %cst_33 : f32 to vector<2x128xf32>
    %81 = arith.mulf %80, %79 : vector<2x128xf32>
    %82 = vector.extract_strided_slice %65 {offsets = [0, 256], sizes = [2, 128], strides = [1, 1]} : vector<2x512xf32> to vector<2x128xf32>
    %83 = math.tanh %82 : vector<2x128xf32>
    %84 = vector.extract_strided_slice %65 {offsets = [0, 384], sizes = [2, 128], strides = [1, 1]} : vector<2x512xf32> to vector<2x128xf32>
    %cst_34 = arith.constant 5.000000e-01 : f32
    %85 = vector.broadcast %cst_34 : f32 to vector<2x128xf32>
    %86 = arith.mulf %85, %84 : vector<2x128xf32>
    %87 = math.tanh %86 : vector<2x128xf32>
    %cst_35 = arith.constant 1.000000e+00 : f32
    %88 = vector.broadcast %cst_35 : f32 to vector<2x128xf32>
    %89 = arith.addf %87, %88 : vector<2x128xf32>
    %cst_36 = arith.constant 5.000000e-01 : f32
    %90 = vector.broadcast %cst_36 : f32 to vector<2x128xf32>
    %91 = arith.mulf %90, %89 : vector<2x128xf32>
    %c0_37 = arith.constant 0 : index
    %c128 = arith.constant 128 : index
    %92 = vector.load %arg9[%c0_37, %c128] : memref<2x256xf32, #tpu.memory_space<vmem>>, vector<2x128xf32>
    %93 = arith.mulf %81, %92 : vector<2x128xf32>
    %94 = arith.mulf %73, %83 : vector<2x128xf32>
    %95 = arith.addf %93, %94 : vector<2x128xf32>
    %96 = math.tanh %95 : vector<2x128xf32>
    %97 = arith.mulf %91, %96 : vector<2x128xf32>
    %98 = arith.index_cast %3 : i32 to index
    %c0_38 = arith.constant 0 : index
    %c0_39 = arith.constant 0 : index
    %99 = vector.load %arg5[%98, %c0_38, %c0_39] : memref<8x2x1xf32, #tpu.memory_space<vmem>>, vector<1x2x1xf32>
    %100 = vector.shape_cast %99 : vector<1x2x1xf32> to vector<2x1xf32>
    %101 = vector.broadcast %100 : vector<2x1xf32> to vector<2x128xf32>
    %102 = arith.mulf %95, %101 : vector<2x128xf32>
    %c0_40 = arith.constant 0 : index
    %c128_41 = arith.constant 128 : index
    %103 = vector.load %arg9[%c0_40, %c128_41] : memref<2x256xf32, #tpu.memory_space<vmem>>, vector<2x128xf32>
    tpu.vector_store %arg9[%c0_40, %c128_41], %102 {strides = array<i32>} : memref<2x256xf32, #tpu.memory_space<vmem>>, vector<2x128xf32>,
    %104 = vector.broadcast %100 : vector<2x1xf32> to vector<2x128xf32>
    %105 = arith.mulf %97, %104 : vector<2x128xf32>
    %c0_42 = arith.constant 0 : index
    %c128_43 = arith.constant 128 : index
    %106 = vector.load %arg8[%c0_42, %c128_43] : memref<2x256xf32, #tpu.memory_space<vmem>>, vector<2x128xf32>
    tpu.vector_store %arg8[%c0_42, %c128_43], %105 {strides = array<i32>} : memref<2x256xf32, #tpu.memory_space<vmem>>, vector<2x128xf32>,
    %107 = arith.truncf %105 : vector<2x128xf32> to vector<2x128xbf16>
    %108 = arith.index_cast %3 : i32 to index
    %c0_44 = arith.constant 0 : index
    %c0_45 = arith.constant 0 : index
    %109 = vector.load %arg7[%108, %c0_44, %c0_45] : memref<8x2x128xbf16, #tpu.memory_space<vmem>>, vector<1x2x128xbf16>
    %110 = vector.shape_cast %109 : vector<1x2x128xbf16> to vector<2x128xbf16>
    %111 = vector.shape_cast %107 : vector<2x128xbf16> to vector<1x2x128xbf16>
    tpu.vector_store %arg7[%108, %c0_44, %c0_45], %111 {strides = array<i32>} : memref<8x2x128xbf16, #tpu.memory_space<vmem>>, vector<1x2x128xbf16>,
    %c1_i32 = arith.constant 1 : i32
    %c7_i32_46 = arith.constant 7 : i32
    %112 = arith.subi %c7_i32_46, %c1_i32 : i32
    %c0_47 = arith.constant 0 : index
    %c0_48 = arith.constant 0 : index
    %113 = vector.load %arg8[%c0_47, %c0_48] : memref<2x256xf32, #tpu.memory_space<vmem>>, vector<2x256xf32>
    %114 = arith.truncf %113 : vector<2x256xf32> to vector<2x256xbf16>
    %c0_49 = arith.constant 0 : index
    %c0_50 = arith.constant 0 : index
    %115 = vector.load %arg3[%c0_49, %c0_50] : memref<256x1024xbf16, #tpu.memory_space<vmem>>, vector<256x1024xbf16>
    %cst_51 = arith.constant dense<0.000000e+00> : vector<2x1024xf32>
    %116 = tpu.matmul %114, %115, %cst_51 {dimension_numbers = #tpu.dot_dimension_numbers<[1], [0], [0], [1], [0, 0, 1, 1], [], []>} : vector<2x256xbf16>, vector<256x1024xbf16>, vector<2x1024xf32> -> vector<2x1024xf32>
    %117 = arith.index_cast %c1_i32 : i32 to index
    %c0_52 = arith.constant 0 : index
    %c0_53 = arith.constant 0 : index
    %118 = vector.load %arg1[%117, %c0_52, %c0_53] : memref<8x2x512xbf16, #tpu.memory_space<vmem>>, vector<1x2x512xbf16>
    %119 = vector.shape_cast %118 : vector<1x2x512xbf16> to vector<2x512xbf16>
    %120 = vector.extract_strided_slice %116 {offsets = [0, 0], sizes = [2, 512], strides = [1, 1]} : vector<2x1024xf32> to vector<2x512xf32>
    %121 = arith.extf %119 : vector<2x512xbf16> to vector<2x512xf32>
    %122 = arith.addf %121, %120 : vector<2x512xf32>
    %123 = vector.extract_strided_slice %122 {offsets = [0, 0], sizes = [2, 128], strides = [1, 1]} : vector<2x512xf32> to vector<2x128xf32>
    %cst_54 = arith.constant 5.000000e-01 : f32
    %124 = vector.broadcast %cst_54 : f32 to vector<2x128xf32>
    %125 = arith.mulf %124, %123 : vector<2x128xf32>
    %126 = math.tanh %125 : vector<2x128xf32>
    %cst_55 = arith.constant 1.000000e+00 : f32
    %127 = vector.broadcast %cst_55 : f32 to vector<2x128xf32>
    %128 = arith.addf %126, %127 : vector<2x128xf32>
    %cst_56 = arith.constant 5.000000e-01 : f32
    %129 = vector.broadcast %cst_56 : f32 to vector<2x128xf32>
    %130 = arith.mulf %129, %128 : vector<2x128xf32>
    %131 = vector.extract_strided_slice %122 {offsets = [0, 128], sizes = [2, 128], strides = [1, 1]} : vector<2x512xf32> to vector<2x128xf32>
    %cst_57 = arith.constant 5.000000e-01 : f32
    %132 = vector.broadcast %cst_57 : f32 to vector<2x128xf32>
    %133 = arith.mulf %132, %131 : vector<2x128xf32>
    %134 = math.tanh %133 : vector<2x128xf32>
    %cst_58 = arith.constant 1.000000e+00 : f32
    %135 = vector.broadcast %cst_58 : f32 to vector<2x128xf32>
    %136 = arith.addf %134, %135 : vector<2x128xf32>
    %cst_59 = arith.constant 5.000000e-01 : f32
    %137 = vector.broadcast %cst_59 : f32 to vector<2x128xf32>
    %138 = arith.mulf %137, %136 : vector<2x128xf32>
    %139 = vector.extract_strided_slice %122 {offsets = [0, 256], sizes = [2, 128], strides = [1, 1]} : vector<2x512xf32> to vector<2x128xf32>
    %140 = math.tanh %139 : vector<2x128xf32>
    %141 = vector.extract_strided_slice %122 {offsets = [0, 384], sizes = [2, 128], strides = [1, 1]} : vector<2x512xf32> to vector<2x128xf32>
    %cst_60 = arith.constant 5.000000e-01 : f32
    %142 = vector.broadcast %cst_60 : f32 to vector<2x128xf32>
    %143 = arith.mulf %142, %141 : vector<2x128xf32>
    %144 = math.tanh %143 : vector<2x128xf32>
    %cst_61 = arith.constant 1.000000e+00 : f32
    %145 = vector.broadcast %cst_61 : f32 to vector<2x128xf32>
    %146 = arith.addf %144, %145 : vector<2x128xf32>
    %cst_62 = arith.constant 5.000000e-01 : f32
    %147 = vector.broadcast %cst_62 : f32 to vector<2x128xf32>
    %148 = arith.mulf %147, %146 : vector<2x128xf32>
    %c0_63 = arith.constant 0 : index
    %c0_64 = arith.constant 0 : index
    %149 = vector.load %arg9[%c0_63, %c0_64] : memref<2x256xf32, #tpu.memory_space<vmem>>, vector<2x128xf32>
    %150 = arith.mulf %138, %149 : vector<2x128xf32>
    %151 = arith.mulf %130, %140 : vector<2x128xf32>
    %152 = arith.addf %150, %151 : vector<2x128xf32>
    %153 = math.tanh %152 : vector<2x128xf32>
    %154 = arith.mulf %148, %153 : vector<2x128xf32>
    %155 = arith.index_cast %c1_i32 : i32 to index
    %c0_65 = arith.constant 0 : index
    %c0_66 = arith.constant 0 : index
    %156 = vector.load %arg4[%155, %c0_65, %c0_66] : memref<8x2x1xf32, #tpu.memory_space<vmem>>, vector<1x2x1xf32>
    %157 = vector.shape_cast %156 : vector<1x2x1xf32> to vector<2x1xf32>
    %158 = vector.broadcast %157 : vector<2x1xf32> to vector<2x128xf32>
    %159 = arith.mulf %152, %158 : vector<2x128xf32>
    %c0_67 = arith.constant 0 : index
    %c0_68 = arith.constant 0 : index
    %160 = vector.load %arg9[%c0_67, %c0_68] : memref<2x256xf32, #tpu.memory_space<vmem>>, vector<2x128xf32>
    tpu.vector_store %arg9[%c0_67, %c0_68], %159 {strides = array<i32>} : memref<2x256xf32, #tpu.memory_space<vmem>>, vector<2x128xf32>,
    %161 = vector.broadcast %157 : vector<2x1xf32> to vector<2x128xf32>
    %162 = arith.mulf %154, %161 : vector<2x128xf32>
    %c0_69 = arith.constant 0 : index
    %c0_70 = arith.constant 0 : index
    %163 = vector.load %arg8[%c0_69, %c0_70] : memref<2x256xf32, #tpu.memory_space<vmem>>, vector<2x128xf32>
    tpu.vector_store %arg8[%c0_69, %c0_70], %162 {strides = array<i32>} : memref<2x256xf32, #tpu.memory_space<vmem>>, vector<2x128xf32>,
    %164 = arith.truncf %162 : vector<2x128xf32> to vector<2x128xbf16>
    %165 = arith.index_cast %c1_i32 : i32 to index
    %c0_71 = arith.constant 0 : index
    %c0_72 = arith.constant 0 : index
    %166 = vector.load %arg6[%165, %c0_71, %c0_72] : memref<8x2x128xbf16, #tpu.memory_space<vmem>>, vector<1x2x128xbf16>
    %167 = vector.shape_cast %166 : vector<1x2x128xbf16> to vector<2x128xbf16>
    %168 = vector.shape_cast %164 : vector<2x128xbf16> to vector<1x2x128xbf16>
    tpu.vector_store %arg6[%165, %c0_71, %c0_72], %168 {strides = array<i32>} : memref<8x2x128xbf16, #tpu.memory_space<vmem>>, vector<1x2x128xbf16>,
    %169 = arith.index_cast %112 : i32 to index
    %c0_73 = arith.constant 0 : index
    %c0_74 = arith.constant 0 : index
    %170 = vector.load %arg2[%169, %c0_73, %c0_74] : memref<8x2x512xbf16, #tpu.memory_space<vmem>>, vector<1x2x512xbf16>
    %171 = vector.shape_cast %170 : vector<1x2x512xbf16> to vector<2x512xbf16>
    %172 = vector.extract_strided_slice %116 {offsets = [0, 512], sizes = [2, 512], strides = [1, 1]} : vector<2x1024xf32> to vector<2x512xf32>
    %173 = arith.extf %171 : vector<2x512xbf16> to vector<2x512xf32>
    %174 = arith.addf %173, %172 : vector<2x512xf32>
    %175 = vector.extract_strided_slice %174 {offsets = [0, 0], sizes = [2, 128], strides = [1, 1]} : vector<2x512xf32> to vector<2x128xf32>
    %cst_75 = arith.constant 5.000000e-01 : f32
    %176 = vector.broadcast %cst_75 : f32 to vector<2x128xf32>
    %177 = arith.mulf %176, %175 : vector<2x128xf32>
    %178 = math.tanh %177 : vector<2x128xf32>
    %cst_76 = arith.constant 1.000000e+00 : f32
    %179 = vector.broadcast %cst_76 : f32 to vector<2x128xf32>
    %180 = arith.addf %178, %179 : vector<2x128xf32>
    %cst_77 = arith.constant 5.000000e-01 : f32
    %181 = vector.broadcast %cst_77 : f32 to vector<2x128xf32>
    %182 = arith.mulf %181, %180 : vector<2x128xf32>
    %183 = vector.extract_strided_slice %174 {offsets = [0, 128], sizes = [2, 128], strides = [1, 1]} : vector<2x512xf32> to vector<2x128xf32>
    %cst_78 = arith.constant 5.000000e-01 : f32
    %184 = vector.broadcast %cst_78 : f32 to vector<2x128xf32>
    %185 = arith.mulf %184, %183 : vector<2x128xf32>
    %186 = math.tanh %185 : vector<2x128xf32>
    %cst_79 = arith.constant 1.000000e+00 : f32
    %187 = vector.broadcast %cst_79 : f32 to vector<2x128xf32>
    %188 = arith.addf %186, %187 : vector<2x128xf32>
    %cst_80 = arith.constant 5.000000e-01 : f32
    %189 = vector.broadcast %cst_80 : f32 to vector<2x128xf32>
    %190 = arith.mulf %189, %188 : vector<2x128xf32>
    %191 = vector.extract_strided_slice %174 {offsets = [0, 256], sizes = [2, 128], strides = [1, 1]} : vector<2x512xf32> to vector<2x128xf32>
    %192 = math.tanh %191 : vector<2x128xf32>
    %193 = vector.extract_strided_slice %174 {offsets = [0, 384], sizes = [2, 128], strides = [1, 1]} : vector<2x512xf32> to vector<2x128xf32>
    %cst_81 = arith.constant 5.000000e-01 : f32
    %194 = vector.broadcast %cst_81 : f32 to vector<2x128xf32>
    %195 = arith.mulf %194, %193 : vector<2x128xf32>
    %196 = math.tanh %195 : vector<2x128xf32>
    %cst_82 = arith.constant 1.000000e+00 : f32
    %197 = vector.broadcast %cst_82 : f32 to vector<2x128xf32>
    %198 = arith.addf %196, %197 : vector<2x128xf32>
    %cst_83 = arith.constant 5.000000e-01 : f32
    %199 = vector.broadcast %cst_83 : f32 to vector<2x128xf32>
    %200 = arith.mulf %199, %198 : vector<2x128xf32>
    %c0_84 = arith.constant 0 : index
    %c128_85 = arith.constant 128 : index
    %201 = vector.load %arg9[%c0_84, %c128_85] : memref<2x256xf32, #tpu.memory_space<vmem>>, vector<2x128xf32>
    %202 = arith.mulf %190, %201 : vector<2x128xf32>
    %203 = arith.mulf %182, %192 : vector<2x128xf32>
    %204 = arith.addf %202, %203 : vector<2x128xf32>
    %205 = math.tanh %204 : vector<2x128xf32>
    %206 = arith.mulf %200, %205 : vector<2x128xf32>
    %207 = arith.index_cast %112 : i32 to index
    %c0_86 = arith.constant 0 : index
    %c0_87 = arith.constant 0 : index
    %208 = vector.load %arg5[%207, %c0_86, %c0_87] : memref<8x2x1xf32, #tpu.memory_space<vmem>>, vector<1x2x1xf32>
    %209 = vector.shape_cast %208 : vector<1x2x1xf32> to vector<2x1xf32>
    %210 = vector.broadcast %209 : vector<2x1xf32> to vector<2x128xf32>
    %211 = arith.mulf %204, %210 : vector<2x128xf32>
    %c0_88 = arith.constant 0 : index
    %c128_89 = arith.constant 128 : index
    %212 = vector.load %arg9[%c0_88, %c128_89] : memref<2x256xf32, #tpu.memory_space<vmem>>, vector<2x128xf32>
    tpu.vector_store %arg9[%c0_88, %c128_89], %211 {strides = array<i32>} : memref<2x256xf32, #tpu.memory_space<vmem>>, vector<2x128xf32>,
    %213 = vector.broadcast %209 : vector<2x1xf32> to vector<2x128xf32>
    %214 = arith.mulf %206, %213 : vector<2x128xf32>
    %c0_90 = arith.constant 0 : index
    %c128_91 = arith.constant 128 : index
    %215 = vector.load %arg8[%c0_90, %c128_91] : memref<2x256xf32, #tpu.memory_space<vmem>>, vector<2x128xf32>
    tpu.vector_store %arg8[%c0_90, %c128_91], %214 {strides = array<i32>} : memref<2x256xf32, #tpu.memory_space<vmem>>, vector<2x128xf32>,
    %216 = arith.truncf %214 : vector<2x128xf32> to vector<2x128xbf16>
    %217 = arith.index_cast %112 : i32 to index
    %c0_92 = arith.constant 0 : index
    %c0_93 = arith.constant 0 : index
    %218 = vector.load %arg7[%217, %c0_92, %c0_93] : memref<8x2x128xbf16, #tpu.memory_space<vmem>>, vector<1x2x128xbf16>
    %219 = vector.shape_cast %218 : vector<1x2x128xbf16> to vector<2x128xbf16>
    %220 = vector.shape_cast %216 : vector<2x128xbf16> to vector<1x2x128xbf16>
    tpu.vector_store %arg7[%217, %c0_92, %c0_93], %220 {strides = array<i32>} : memref<8x2x128xbf16, #tpu.memory_space<vmem>>, vector<1x2x128xbf16>,
    %c2_i32 = arith.constant 2 : i32
    %c7_i32_94 = arith.constant 7 : i32
    %221 = arith.subi %c7_i32_94, %c2_i32 : i32
    %c0_95 = arith.constant 0 : index
    %c0_96 = arith.constant 0 : index
    %222 = vector.load %arg8[%c0_95, %c0_96] : memref<2x256xf32, #tpu.memory_space<vmem>>, vector<2x256xf32>
    %223 = arith.truncf %222 : vector<2x256xf32> to vector<2x256xbf16>
    %c0_97 = arith.constant 0 : index
    %c0_98 = arith.constant 0 : index
    %224 = vector.load %arg3[%c0_97, %c0_98] : memref<256x1024xbf16, #tpu.memory_space<vmem>>, vector<256x1024xbf16>
    %cst_99 = arith.constant dense<0.000000e+00> : vector<2x1024xf32>
    %225 = tpu.matmul %223, %224, %cst_99 {dimension_numbers = #tpu.dot_dimension_numbers<[1], [0], [0], [1], [0, 0, 1, 1], [], []>} : vector<2x256xbf16>, vector<256x1024xbf16>, vector<2x1024xf32> -> vector<2x1024xf32>
    %226 = arith.index_cast %c2_i32 : i32 to index
    %c0_100 = arith.constant 0 : index
    %c0_101 = arith.constant 0 : index
    %227 = vector.load %arg1[%226, %c0_100, %c0_101] : memref<8x2x512xbf16, #tpu.memory_space<vmem>>, vector<1x2x512xbf16>
    %228 = vector.shape_cast %227 : vector<1x2x512xbf16> to vector<2x512xbf16>
    %229 = vector.extract_strided_slice %225 {offsets = [0, 0], sizes = [2, 512], strides = [1, 1]} : vector<2x1024xf32> to vector<2x512xf32>
    %230 = arith.extf %228 : vector<2x512xbf16> to vector<2x512xf32>
    %231 = arith.addf %230, %229 : vector<2x512xf32>
    %232 = vector.extract_strided_slice %231 {offsets = [0, 0], sizes = [2, 128], strides = [1, 1]} : vector<2x512xf32> to vector<2x128xf32>
    %cst_102 = arith.constant 5.000000e-01 : f32
    %233 = vector.broadcast %cst_102 : f32 to vector<2x128xf32>
    %234 = arith.mulf %233, %232 : vector<2x128xf32>
    %235 = math.tanh %234 : vector<2x128xf32>
    %cst_103 = arith.constant 1.000000e+00 : f32
    %236 = vector.broadcast %cst_103 : f32 to vector<2x128xf32>
    %237 = arith.addf %235, %236 : vector<2x128xf32>
    %cst_104 = arith.constant 5.000000e-01 : f32
    %238 = vector.broadcast %cst_104 : f32 to vector<2x128xf32>
    %239 = arith.mulf %238, %237 : vector<2x128xf32>
    %240 = vector.extract_strided_slice %231 {offsets = [0, 128], sizes = [2, 128], strides = [1, 1]} : vector<2x512xf32> to vector<2x128xf32>
    %cst_105 = arith.constant 5.000000e-01 : f32
    %241 = vector.broadcast %cst_105 : f32 to vector<2x128xf32>
    %242 = arith.mulf %241, %240 : vector<2x128xf32>
    %243 = math.tanh %242 : vector<2x128xf32>
    %cst_106 = arith.constant 1.000000e+00 : f32
    %244 = vector.broadcast %cst_106 : f32 to vector<2x128xf32>
    %245 = arith.addf %243, %244 : vector<2x128xf32>
    %cst_107 = arith.constant 5.000000e-01 : f32
    %246 = vector.broadcast %cst_107 : f32 to vector<2x128xf32>
    %247 = arith.mulf %246, %245 : vector<2x128xf32>
    %248 = vector.extract_strided_slice %231 {offsets = [0, 256], sizes = [2, 128], strides = [1, 1]} : vector<2x512xf32> to vector<2x128xf32>
    %249 = math.tanh %248 : vector<2x128xf32>
    %250 = vector.extract_strided_slice %231 {offsets = [0, 384], sizes = [2, 128], strides = [1, 1]} : vector<2x512xf32> to vector<2x128xf32>
    %cst_108 = arith.constant 5.000000e-01 : f32
    %251 = vector.broadcast %cst_108 : f32 to vector<2x128xf32>
    %252 = arith.mulf %251, %250 : vector<2x128xf32>
    %253 = math.tanh %252 : vector<2x128xf32>
    %cst_109 = arith.constant 1.000000e+00 : f32
    %254 = vector.broadcast %cst_109 : f32 to vector<2x128xf32>
    %255 = arith.addf %253, %254 : vector<2x128xf32>
    %cst_110 = arith.constant 5.000000e-01 : f32
    %256 = vector.broadcast %cst_110 : f32 to vector<2x128xf32>
    %257 = arith.mulf %256, %255 : vector<2x128xf32>
    %c0_111 = arith.constant 0 : index
    %c0_112 = arith.constant 0 : index
    %258 = vector.load %arg9[%c0_111, %c0_112] : memref<2x256xf32, #tpu.memory_space<vmem>>, vector<2x128xf32>
    %259 = arith.mulf %247, %258 : vector<2x128xf32>
    %260 = arith.mulf %239, %249 : vector<2x128xf32>
    %261 = arith.addf %259, %260 : vector<2x128xf32>
    %262 = math.tanh %261 : vector<2x128xf32>
    %263 = arith.mulf %257, %262 : vector<2x128xf32>
    %264 = arith.index_cast %c2_i32 : i32 to index
    %c0_113 = arith.constant 0 : index
    %c0_114 = arith.constant 0 : index
    %265 = vector.load %arg4[%264, %c0_113, %c0_114] : memref<8x2x1xf32, #tpu.memory_space<vmem>>, vector<1x2x1xf32>
    %266 = vector.shape_cast %265 : vector<1x2x1xf32> to vector<2x1xf32>
    %267 = vector.broadcast %266 : vector<2x1xf32> to vector<2x128xf32>
    %268 = arith.mulf %261, %267 : vector<2x128xf32>
    %c0_115 = arith.constant 0 : index
    %c0_116 = arith.constant 0 : index
    %269 = vector.load %arg9[%c0_115, %c0_116] : memref<2x256xf32, #tpu.memory_space<vmem>>, vector<2x128xf32>
    tpu.vector_store %arg9[%c0_115, %c0_116], %268 {strides = array<i32>} : memref<2x256xf32, #tpu.memory_space<vmem>>, vector<2x128xf32>,
    %270 = vector.broadcast %266 : vector<2x1xf32> to vector<2x128xf32>
    %271 = arith.mulf %263, %270 : vector<2x128xf32>
    %c0_117 = arith.constant 0 : index
    %c0_118 = arith.constant 0 : index
    %272 = vector.load %arg8[%c0_117, %c0_118] : memref<2x256xf32, #tpu.memory_space<vmem>>, vector<2x128xf32>
    tpu.vector_store %arg8[%c0_117, %c0_118], %271 {strides = array<i32>} : memref<2x256xf32, #tpu.memory_space<vmem>>, vector<2x128xf32>,
    %273 = arith.truncf %271 : vector<2x128xf32> to vector<2x128xbf16>
    %274 = arith.index_cast %c2_i32 : i32 to index
    %c0_119 = arith.constant 0 : index
    %c0_120 = arith.constant 0 : index
    %275 = vector.load %arg6[%274, %c0_119, %c0_120] : memref<8x2x128xbf16, #tpu.memory_space<vmem>>, vector<1x2x128xbf16>
    %276 = vector.shape_cast %275 : vector<1x2x128xbf16> to vector<2x128xbf16>
    %277 = vector.shape_cast %273 : vector<2x128xbf16> to vector<1x2x128xbf16>
    tpu.vector_store %arg6[%274, %c0_119, %c0_120], %277 {strides = array<i32>} : memref<8x2x128xbf16, #tpu.memory_space<vmem>>, vector<1x2x128xbf16>,
    %278 = arith.index_cast %221 : i32 to index
    %c0_121 = arith.constant 0 : index
    %c0_122 = arith.constant 0 : index
    %279 = vector.load %arg2[%278, %c0_121, %c0_122] : memref<8x2x512xbf16, #tpu.memory_space<vmem>>, vector<1x2x512xbf16>
    %280 = vector.shape_cast %279 : vector<1x2x512xbf16> to vector<2x512xbf16>
    %281 = vector.extract_strided_slice %225 {offsets = [0, 512], sizes = [2, 512], strides = [1, 1]} : vector<2x1024xf32> to vector<2x512xf32>
    %282 = arith.extf %280 : vector<2x512xbf16> to vector<2x512xf32>
    %283 = arith.addf %282, %281 : vector<2x512xf32>
    %284 = vector.extract_strided_slice %283 {offsets = [0, 0], sizes = [2, 128], strides = [1, 1]} : vector<2x512xf32> to vector<2x128xf32>
    %cst_123 = arith.constant 5.000000e-01 : f32
    %285 = vector.broadcast %cst_123 : f32 to vector<2x128xf32>
    %286 = arith.mulf %285, %284 : vector<2x128xf32>
    %287 = math.tanh %286 : vector<2x128xf32>
    %cst_124 = arith.constant 1.000000e+00 : f32
    %288 = vector.broadcast %cst_124 : f32 to vector<2x128xf32>
    %289 = arith.addf %287, %288 : vector<2x128xf32>
    %cst_125 = arith.constant 5.000000e-01 : f32
    %290 = vector.broadcast %cst_125 : f32 to vector<2x128xf32>
    %291 = arith.mulf %290, %289 : vector<2x128xf32>
    %292 = vector.extract_strided_slice %283 {offsets = [0, 128], sizes = [2, 128], strides = [1, 1]} : vector<2x512xf32> to vector<2x128xf32>
    %cst_126 = arith.constant 5.000000e-01 : f32
    %293 = vector.broadcast %cst_126 : f32 to vector<2x128xf32>
    %294 = arith.mulf %293, %292 : vector<2x128xf32>
    %295 = math.tanh %294 : vector<2x128xf32>
    %cst_127 = arith.constant 1.000000e+00 : f32
    %296 = vector.broadcast %cst_127 : f32 to vector<2x128xf32>
    %297 = arith.addf %295, %296 : vector<2x128xf32>
    %cst_128 = arith.constant 5.000000e-01 : f32
    %298 = vector.broadcast %cst_128 : f32 to vector<2x128xf32>
    %299 = arith.mulf %298, %297 : vector<2x128xf32>
    %300 = vector.extract_strided_slice %283 {offsets = [0, 256], sizes = [2, 128], strides = [1, 1]} : vector<2x512xf32> to vector<2x128xf32>
    %301 = math.tanh %300 : vector<2x128xf32>
    %302 = vector.extract_strided_slice %283 {offsets = [0, 384], sizes = [2, 128], strides = [1, 1]} : vector<2x512xf32> to vector<2x128xf32>
    %cst_129 = arith.constant 5.000000e-01 : f32
    %303 = vector.broadcast %cst_129 : f32 to vector<2x128xf32>
    %304 = arith.mulf %303, %302 : vector<2x128xf32>
    %305 = math.tanh %304 : vector<2x128xf32>
    %cst_130 = arith.constant 1.000000e+00 : f32
    %306 = vector.broadcast %cst_130 : f32 to vector<2x128xf32>
    %307 = arith.addf %305, %306 : vector<2x128xf32>
    %cst_131 = arith.constant 5.000000e-01 : f32
    %308 = vector.broadcast %cst_131 : f32 to vector<2x128xf32>
    %309 = arith.mulf %308, %307 : vector<2x128xf32>
    %c0_132 = arith.constant 0 : index
    %c128_133 = arith.constant 128 : index
    %310 = vector.load %arg9[%c0_132, %c128_133] : memref<2x256xf32, #tpu.memory_space<vmem>>, vector<2x128xf32>
    %311 = arith.mulf %299, %310 : vector<2x128xf32>
    %312 = arith.mulf %291, %301 : vector<2x128xf32>
    %313 = arith.addf %311, %312 : vector<2x128xf32>
    %314 = math.tanh %313 : vector<2x128xf32>
    %315 = arith.mulf %309, %314 : vector<2x128xf32>
    %316 = arith.index_cast %221 : i32 to index
    %c0_134 = arith.constant 0 : index
    %c0_135 = arith.constant 0 : index
    %317 = vector.load %arg5[%316, %c0_134, %c0_135] : memref<8x2x1xf32, #tpu.memory_space<vmem>>, vector<1x2x1xf32>
    %318 = vector.shape_cast %317 : vector<1x2x1xf32> to vector<2x1xf32>
    %319 = vector.broadcast %318 : vector<2x1xf32> to vector<2x128xf32>
    %320 = arith.mulf %313, %319 : vector<2x128xf32>
    %c0_136 = arith.constant 0 : index
    %c128_137 = arith.constant 128 : index
    %321 = vector.load %arg9[%c0_136, %c128_137] : memref<2x256xf32, #tpu.memory_space<vmem>>, vector<2x128xf32>
    tpu.vector_store %arg9[%c0_136, %c128_137], %320 {strides = array<i32>} : memref<2x256xf32, #tpu.memory_space<vmem>>, vector<2x128xf32>,
    %322 = vector.broadcast %318 : vector<2x1xf32> to vector<2x128xf32>
    %323 = arith.mulf %315, %322 : vector<2x128xf32>
    %c0_138 = arith.constant 0 : index
    %c128_139 = arith.constant 128 : index
    %324 = vector.load %arg8[%c0_138, %c128_139] : memref<2x256xf32, #tpu.memory_space<vmem>>, vector<2x128xf32>
    tpu.vector_store %arg8[%c0_138, %c128_139], %323 {strides = array<i32>} : memref<2x256xf32, #tpu.memory_space<vmem>>, vector<2x128xf32>,
    %325 = arith.truncf %323 : vector<2x128xf32> to vector<2x128xbf16>
    %326 = arith.index_cast %221 : i32 to index
    %c0_140 = arith.constant 0 : index
    %c0_141 = arith.constant 0 : index
    %327 = vector.load %arg7[%326, %c0_140, %c0_141] : memref<8x2x128xbf16, #tpu.memory_space<vmem>>, vector<1x2x128xbf16>
    %328 = vector.shape_cast %327 : vector<1x2x128xbf16> to vector<2x128xbf16>
    %329 = vector.shape_cast %325 : vector<2x128xbf16> to vector<1x2x128xbf16>
    tpu.vector_store %arg7[%326, %c0_140, %c0_141], %329 {strides = array<i32>} : memref<8x2x128xbf16, #tpu.memory_space<vmem>>, vector<1x2x128xbf16>,
    %c3_i32 = arith.constant 3 : i32
    %c7_i32_142 = arith.constant 7 : i32
    %330 = arith.subi %c7_i32_142, %c3_i32 : i32
    %c0_143 = arith.constant 0 : index
    %c0_144 = arith.constant 0 : index
    %331 = vector.load %arg8[%c0_143, %c0_144] : memref<2x256xf32, #tpu.memory_space<vmem>>, vector<2x256xf32>
    %332 = arith.truncf %331 : vector<2x256xf32> to vector<2x256xbf16>
    %c0_145 = arith.constant 0 : index
    %c0_146 = arith.constant 0 : index
    %333 = vector.load %arg3[%c0_145, %c0_146] : memref<256x1024xbf16, #tpu.memory_space<vmem>>, vector<256x1024xbf16>
    %cst_147 = arith.constant dense<0.000000e+00> : vector<2x1024xf32>
    %334 = tpu.matmul %332, %333, %cst_147 {dimension_numbers = #tpu.dot_dimension_numbers<[1], [0], [0], [1], [0, 0, 1, 1], [], []>} : vector<2x256xbf16>, vector<256x1024xbf16>, vector<2x1024xf32> -> vector<2x1024xf32>
    %335 = arith.index_cast %c3_i32 : i32 to index
    %c0_148 = arith.constant 0 : index
    %c0_149 = arith.constant 0 : index
    %336 = vector.load %arg1[%335, %c0_148, %c0_149] : memref<8x2x512xbf16, #tpu.memory_space<vmem>>, vector<1x2x512xbf16>
    %337 = vector.shape_cast %336 : vector<1x2x512xbf16> to vector<2x512xbf16>
    %338 = vector.extract_strided_slice %334 {offsets = [0, 0], sizes = [2, 512], strides = [1, 1]} : vector<2x1024xf32> to vector<2x512xf32>
    %339 = arith.extf %337 : vector<2x512xbf16> to vector<2x512xf32>
    %340 = arith.addf %339, %338 : vector<2x512xf32>
    %341 = vector.extract_strided_slice %340 {offsets = [0, 0], sizes = [2, 128], strides = [1, 1]} : vector<2x512xf32> to vector<2x128xf32>
    %cst_150 = arith.constant 5.000000e-01 : f32
    %342 = vector.broadcast %cst_150 : f32 to vector<2x128xf32>
    %343 = arith.mulf %342, %341 : vector<2x128xf32>
    %344 = math.tanh %343 : vector<2x128xf32>
    %cst_151 = arith.constant 1.000000e+00 : f32
    %345 = vector.broadcast %cst_151 : f32 to vector<2x128xf32>
    %346 = arith.addf %344, %345 : vector<2x128xf32>
    %cst_152 = arith.constant 5.000000e-01 : f32
    %347 = vector.broadcast %cst_152 : f32 to vector<2x128xf32>
    %348 = arith.mulf %347, %346 : vector<2x128xf32>
    %349 = vector.extract_strided_slice %340 {offsets = [0, 128], sizes = [2, 128], strides = [1, 1]} : vector<2x512xf32> to vector<2x128xf32>
    %cst_153 = arith.constant 5.000000e-01 : f32
    %350 = vector.broadcast %cst_153 : f32 to vector<2x128xf32>
    %351 = arith.mulf %350, %349 : vector<2x128xf32>
    %352 = math.tanh %351 : vector<2x128xf32>
    %cst_154 = arith.constant 1.000000e+00 : f32
    %353 = vector.broadcast %cst_154 : f32 to vector<2x128xf32>
    %354 = arith.addf %352, %353 : vector<2x128xf32>
    %cst_155 = arith.constant 5.000000e-01 : f32
    %355 = vector.broadcast %cst_155 : f32 to vector<2x128xf32>
    %356 = arith.mulf %355, %354 : vector<2x128xf32>
    %357 = vector.extract_strided_slice %340 {offsets = [0, 256], sizes = [2, 128], strides = [1, 1]} : vector<2x512xf32> to vector<2x128xf32>
    %358 = math.tanh %357 : vector<2x128xf32>
    %359 = vector.extract_strided_slice %340 {offsets = [0, 384], sizes = [2, 128], strides = [1, 1]} : vector<2x512xf32> to vector<2x128xf32>
    %cst_156 = arith.constant 5.000000e-01 : f32
    %360 = vector.broadcast %cst_156 : f32 to vector<2x128xf32>
    %361 = arith.mulf %360, %359 : vector<2x128xf32>
    %362 = math.tanh %361 : vector<2x128xf32>
    %cst_157 = arith.constant 1.000000e+00 : f32
    %363 = vector.broadcast %cst_157 : f32 to vector<2x128xf32>
    %364 = arith.addf %362, %363 : vector<2x128xf32>
    %cst_158 = arith.constant 5.000000e-01 : f32
    %365 = vector.broadcast %cst_158 : f32 to vector<2x128xf32>
    %366 = arith.mulf %365, %364 : vector<2x128xf32>
    %c0_159 = arith.constant 0 : index
    %c0_160 = arith.constant 0 : index
    %367 = vector.load %arg9[%c0_159, %c0_160] : memref<2x256xf32, #tpu.memory_space<vmem>>, vector<2x128xf32>
    %368 = arith.mulf %356, %367 : vector<2x128xf32>
    %369 = arith.mulf %348, %358 : vector<2x128xf32>
    %370 = arith.addf %368, %369 : vector<2x128xf32>
    %371 = math.tanh %370 : vector<2x128xf32>
    %372 = arith.mulf %366, %371 : vector<2x128xf32>
    %373 = arith.index_cast %c3_i32 : i32 to index
    %c0_161 = arith.constant 0 : index
    %c0_162 = arith.constant 0 : index
    %374 = vector.load %arg4[%373, %c0_161, %c0_162] : memref<8x2x1xf32, #tpu.memory_space<vmem>>, vector<1x2x1xf32>
    %375 = vector.shape_cast %374 : vector<1x2x1xf32> to vector<2x1xf32>
    %376 = vector.broadcast %375 : vector<2x1xf32> to vector<2x128xf32>
    %377 = arith.mulf %370, %376 : vector<2x128xf32>
    %c0_163 = arith.constant 0 : index
    %c0_164 = arith.constant 0 : index
    %378 = vector.load %arg9[%c0_163, %c0_164] : memref<2x256xf32, #tpu.memory_space<vmem>>, vector<2x128xf32>
    tpu.vector_store %arg9[%c0_163, %c0_164], %377 {strides = array<i32>} : memref<2x256xf32, #tpu.memory_space<vmem>>, vector<2x128xf32>,
    %379 = vector.broadcast %375 : vector<2x1xf32> to vector<2x128xf32>
    %380 = arith.mulf %372, %379 : vector<2x128xf32>
    %c0_165 = arith.constant 0 : index
    %c0_166 = arith.constant 0 : index
    %381 = vector.load %arg8[%c0_165, %c0_166] : memref<2x256xf32, #tpu.memory_space<vmem>>, vector<2x128xf32>
    tpu.vector_store %arg8[%c0_165, %c0_166], %380 {strides = array<i32>} : memref<2x256xf32, #tpu.memory_space<vmem>>, vector<2x128xf32>,
    %382 = arith.truncf %380 : vector<2x128xf32> to vector<2x128xbf16>
    %383 = arith.index_cast %c3_i32 : i32 to index
    %c0_167 = arith.constant 0 : index
    %c0_168 = arith.constant 0 : index
    %384 = vector.load %arg6[%383, %c0_167, %c0_168] : memref<8x2x128xbf16, #tpu.memory_space<vmem>>, vector<1x2x128xbf16>
    %385 = vector.shape_cast %384 : vector<1x2x128xbf16> to vector<2x128xbf16>
    %386 = vector.shape_cast %382 : vector<2x128xbf16> to vector<1x2x128xbf16>
    tpu.vector_store %arg6[%383, %c0_167, %c0_168], %386 {strides = array<i32>} : memref<8x2x128xbf16, #tpu.memory_space<vmem>>, vector<1x2x128xbf16>,
    %387 = arith.index_cast %330 : i32 to index
    %c0_169 = arith.constant 0 : index
    %c0_170 = arith.constant 0 : index
    %388 = vector.load %arg2[%387, %c0_169, %c0_170] : memref<8x2x512xbf16, #tpu.memory_space<vmem>>, vector<1x2x512xbf16>
    %389 = vector.shape_cast %388 : vector<1x2x512xbf16> to vector<2x512xbf16>
    %390 = vector.extract_strided_slice %334 {offsets = [0, 512], sizes = [2, 512], strides = [1, 1]} : vector<2x1024xf32> to vector<2x512xf32>
    %391 = arith.extf %389 : vector<2x512xbf16> to vector<2x512xf32>
    %392 = arith.addf %391, %390 : vector<2x512xf32>
    %393 = vector.extract_strided_slice %392 {offsets = [0, 0], sizes = [2, 128], strides = [1, 1]} : vector<2x512xf32> to vector<2x128xf32>
    %cst_171 = arith.constant 5.000000e-01 : f32
    %394 = vector.broadcast %cst_171 : f32 to vector<2x128xf32>
    %395 = arith.mulf %394, %393 : vector<2x128xf32>
    %396 = math.tanh %395 : vector<2x128xf32>
    %cst_172 = arith.constant 1.000000e+00 : f32
    %397 = vector.broadcast %cst_172 : f32 to vector<2x128xf32>
    %398 = arith.addf %396, %397 : vector<2x128xf32>
    %cst_173 = arith.constant 5.000000e-01 : f32
    %399 = vector.broadcast %cst_173 : f32 to vector<2x128xf32>
    %400 = arith.mulf %399, %398 : vector<2x128xf32>
    %401 = vector.extract_strided_slice %392 {offsets = [0, 128], sizes = [2, 128], strides = [1, 1]} : vector<2x512xf32> to vector<2x128xf32>
    %cst_174 = arith.constant 5.000000e-01 : f32
    %402 = vector.broadcast %cst_174 : f32 to vector<2x128xf32>
    %403 = arith.mulf %402, %401 : vector<2x128xf32>
    %404 = math.tanh %403 : vector<2x128xf32>
    %cst_175 = arith.constant 1.000000e+00 : f32
    %405 = vector.broadcast %cst_175 : f32 to vector<2x128xf32>
    %406 = arith.addf %404, %405 : vector<2x128xf32>
    %cst_176 = arith.constant 5.000000e-01 : f32
    %407 = vector.broadcast %cst_176 : f32 to vector<2x128xf32>
    %408 = arith.mulf %407, %406 : vector<2x128xf32>
    %409 = vector.extract_strided_slice %392 {offsets = [0, 256], sizes = [2, 128], strides = [1, 1]} : vector<2x512xf32> to vector<2x128xf32>
    %410 = math.tanh %409 : vector<2x128xf32>
    %411 = vector.extract_strided_slice %392 {offsets = [0, 384], sizes = [2, 128], strides = [1, 1]} : vector<2x512xf32> to vector<2x128xf32>
    %cst_177 = arith.constant 5.000000e-01 : f32
    %412 = vector.broadcast %cst_177 : f32 to vector<2x128xf32>
    %413 = arith.mulf %412, %411 : vector<2x128xf32>
    %414 = math.tanh %413 : vector<2x128xf32>
    %cst_178 = arith.constant 1.000000e+00 : f32
    %415 = vector.broadcast %cst_178 : f32 to vector<2x128xf32>
    %416 = arith.addf %414, %415 : vector<2x128xf32>
    %cst_179 = arith.constant 5.000000e-01 : f32
    %417 = vector.broadcast %cst_179 : f32 to vector<2x128xf32>
    %418 = arith.mulf %417, %416 : vector<2x128xf32>
    %c0_180 = arith.constant 0 : index
    %c128_181 = arith.constant 128 : index
    %419 = vector.load %arg9[%c0_180, %c128_181] : memref<2x256xf32, #tpu.memory_space<vmem>>, vector<2x128xf32>
    %420 = arith.mulf %408, %419 : vector<2x128xf32>
    %421 = arith.mulf %400, %410 : vector<2x128xf32>
    %422 = arith.addf %420, %421 : vector<2x128xf32>
    %423 = math.tanh %422 : vector<2x128xf32>
    %424 = arith.mulf %418, %423 : vector<2x128xf32>
    %425 = arith.index_cast %330 : i32 to index
    %c0_182 = arith.constant 0 : index
    %c0_183 = arith.constant 0 : index
    %426 = vector.load %arg5[%425, %c0_182, %c0_183] : memref<8x2x1xf32, #tpu.memory_space<vmem>>, vector<1x2x1xf32>
    %427 = vector.shape_cast %426 : vector<1x2x1xf32> to vector<2x1xf32>
    %428 = vector.broadcast %427 : vector<2x1xf32> to vector<2x128xf32>
    %429 = arith.mulf %422, %428 : vector<2x128xf32>
    %c0_184 = arith.constant 0 : index
    %c128_185 = arith.constant 128 : index
    %430 = vector.load %arg9[%c0_184, %c128_185] : memref<2x256xf32, #tpu.memory_space<vmem>>, vector<2x128xf32>
    tpu.vector_store %arg9[%c0_184, %c128_185], %429 {strides = array<i32>} : memref<2x256xf32, #tpu.memory_space<vmem>>, vector<2x128xf32>,
    %431 = vector.broadcast %427 : vector<2x1xf32> to vector<2x128xf32>
    %432 = arith.mulf %424, %431 : vector<2x128xf32>
    %c0_186 = arith.constant 0 : index
    %c128_187 = arith.constant 128 : index
    %433 = vector.load %arg8[%c0_186, %c128_187] : memref<2x256xf32, #tpu.memory_space<vmem>>, vector<2x128xf32>
    tpu.vector_store %arg8[%c0_186, %c128_187], %432 {strides = array<i32>} : memref<2x256xf32, #tpu.memory_space<vmem>>, vector<2x128xf32>,
    %434 = arith.truncf %432 : vector<2x128xf32> to vector<2x128xbf16>
    %435 = arith.index_cast %330 : i32 to index
    %c0_188 = arith.constant 0 : index
    %c0_189 = arith.constant 0 : index
    %436 = vector.load %arg7[%435, %c0_188, %c0_189] : memref<8x2x128xbf16, #tpu.memory_space<vmem>>, vector<1x2x128xbf16>
    %437 = vector.shape_cast %436 : vector<1x2x128xbf16> to vector<2x128xbf16>
    %438 = vector.shape_cast %434 : vector<2x128xbf16> to vector<1x2x128xbf16>
    tpu.vector_store %arg7[%435, %c0_188, %c0_189], %438 {strides = array<i32>} : memref<8x2x128xbf16, #tpu.memory_space<vmem>>, vector<1x2x128xbf16>,
    %c4_i32 = arith.constant 4 : i32
    %c7_i32_190 = arith.constant 7 : i32
    %439 = arith.subi %c7_i32_190, %c4_i32 : i32
    %c0_191 = arith.constant 0 : index
    %c0_192 = arith.constant 0 : index
    %440 = vector.load %arg8[%c0_191, %c0_192] : memref<2x256xf32, #tpu.memory_space<vmem>>, vector<2x256xf32>
    %441 = arith.truncf %440 : vector<2x256xf32> to vector<2x256xbf16>
    %c0_193 = arith.constant 0 : index
    %c0_194 = arith.constant 0 : index
    %442 = vector.load %arg3[%c0_193, %c0_194] : memref<256x1024xbf16, #tpu.memory_space<vmem>>, vector<256x1024xbf16>
    %cst_195 = arith.constant dense<0.000000e+00> : vector<2x1024xf32>
    %443 = tpu.matmul %441, %442, %cst_195 {dimension_numbers = #tpu.dot_dimension_numbers<[1], [0], [0], [1], [0, 0, 1, 1], [], []>} : vector<2x256xbf16>, vector<256x1024xbf16>, vector<2x1024xf32> -> vector<2x1024xf32>
    %444 = arith.index_cast %c4_i32 : i32 to index
    %c0_196 = arith.constant 0 : index
    %c0_197 = arith.constant 0 : index
    %445 = vector.load %arg1[%444, %c0_196, %c0_197] : memref<8x2x512xbf16, #tpu.memory_space<vmem>>, vector<1x2x512xbf16>
    %446 = vector.shape_cast %445 : vector<1x2x512xbf16> to vector<2x512xbf16>
    %447 = vector.extract_strided_slice %443 {offsets = [0, 0], sizes = [2, 512], strides = [1, 1]} : vector<2x1024xf32> to vector<2x512xf32>
    %448 = arith.extf %446 : vector<2x512xbf16> to vector<2x512xf32>
    %449 = arith.addf %448, %447 : vector<2x512xf32>
    %450 = vector.extract_strided_slice %449 {offsets = [0, 0], sizes = [2, 128], strides = [1, 1]} : vector<2x512xf32> to vector<2x128xf32>
    %cst_198 = arith.constant 5.000000e-01 : f32
    %451 = vector.broadcast %cst_198 : f32 to vector<2x128xf32>
    %452 = arith.mulf %451, %450 : vector<2x128xf32>
    %453 = math.tanh %452 : vector<2x128xf32>
    %cst_199 = arith.constant 1.000000e+00 : f32
    %454 = vector.broadcast %cst_199 : f32 to vector<2x128xf32>
    %455 = arith.addf %453, %454 : vector<2x128xf32>
    %cst_200 = arith.constant 5.000000e-01 : f32
    %456 = vector.broadcast %cst_200 : f32 to vector<2x128xf32>
    %457 = arith.mulf %456, %455 : vector<2x128xf32>
    %458 = vector.extract_strided_slice %449 {offsets = [0, 128], sizes = [2, 128], strides = [1, 1]} : vector<2x512xf32> to vector<2x128xf32>
    %cst_201 = arith.constant 5.000000e-01 : f32
    %459 = vector.broadcast %cst_201 : f32 to vector<2x128xf32>
    %460 = arith.mulf %459, %458 : vector<2x128xf32>
    %461 = math.tanh %460 : vector<2x128xf32>
    %cst_202 = arith.constant 1.000000e+00 : f32
    %462 = vector.broadcast %cst_202 : f32 to vector<2x128xf32>
    %463 = arith.addf %461, %462 : vector<2x128xf32>
    %cst_203 = arith.constant 5.000000e-01 : f32
    %464 = vector.broadcast %cst_203 : f32 to vector<2x128xf32>
    %465 = arith.mulf %464, %463 : vector<2x128xf32>
    %466 = vector.extract_strided_slice %449 {offsets = [0, 256], sizes = [2, 128], strides = [1, 1]} : vector<2x512xf32> to vector<2x128xf32>
    %467 = math.tanh %466 : vector<2x128xf32>
    %468 = vector.extract_strided_slice %449 {offsets = [0, 384], sizes = [2, 128], strides = [1, 1]} : vector<2x512xf32> to vector<2x128xf32>
    %cst_204 = arith.constant 5.000000e-01 : f32
    %469 = vector.broadcast %cst_204 : f32 to vector<2x128xf32>
    %470 = arith.mulf %469, %468 : vector<2x128xf32>
    %471 = math.tanh %470 : vector<2x128xf32>
    %cst_205 = arith.constant 1.000000e+00 : f32
    %472 = vector.broadcast %cst_205 : f32 to vector<2x128xf32>
    %473 = arith.addf %471, %472 : vector<2x128xf32>
    %cst_206 = arith.constant 5.000000e-01 : f32
    %474 = vector.broadcast %cst_206 : f32 to vector<2x128xf32>
    %475 = arith.mulf %474, %473 : vector<2x128xf32>
    %c0_207 = arith.constant 0 : index
    %c0_208 = arith.constant 0 : index
    %476 = vector.load %arg9[%c0_207, %c0_208] : memref<2x256xf32, #tpu.memory_space<vmem>>, vector<2x128xf32>
    %477 = arith.mulf %465, %476 : vector<2x128xf32>
    %478 = arith.mulf %457, %467 : vector<2x128xf32>
    %479 = arith.addf %477, %478 : vector<2x128xf32>
    %480 = math.tanh %479 : vector<2x128xf32>
    %481 = arith.mulf %475, %480 : vector<2x128xf32>
    %482 = arith.index_cast %c4_i32 : i32 to index
    %c0_209 = arith.constant 0 : index
    %c0_210 = arith.constant 0 : index
    %483 = vector.load %arg4[%482, %c0_209, %c0_210] : memref<8x2x1xf32, #tpu.memory_space<vmem>>, vector<1x2x1xf32>
    %484 = vector.shape_cast %483 : vector<1x2x1xf32> to vector<2x1xf32>
    %485 = vector.broadcast %484 : vector<2x1xf32> to vector<2x128xf32>
    %486 = arith.mulf %479, %485 : vector<2x128xf32>
    %c0_211 = arith.constant 0 : index
    %c0_212 = arith.constant 0 : index
    %487 = vector.load %arg9[%c0_211, %c0_212] : memref<2x256xf32, #tpu.memory_space<vmem>>, vector<2x128xf32>
    tpu.vector_store %arg9[%c0_211, %c0_212], %486 {strides = array<i32>} : memref<2x256xf32, #tpu.memory_space<vmem>>, vector<2x128xf32>,
    %488 = vector.broadcast %484 : vector<2x1xf32> to vector<2x128xf32>
    %489 = arith.mulf %481, %488 : vector<2x128xf32>
    %c0_213 = arith.constant 0 : index
    %c0_214 = arith.constant 0 : index
    %490 = vector.load %arg8[%c0_213, %c0_214] : memref<2x256xf32, #tpu.memory_space<vmem>>, vector<2x128xf32>
    tpu.vector_store %arg8[%c0_213, %c0_214], %489 {strides = array<i32>} : memref<2x256xf32, #tpu.memory_space<vmem>>, vector<2x128xf32>,
    %491 = arith.truncf %489 : vector<2x128xf32> to vector<2x128xbf16>
    %492 = arith.index_cast %c4_i32 : i32 to index
    %c0_215 = arith.constant 0 : index
    %c0_216 = arith.constant 0 : index
    %493 = vector.load %arg6[%492, %c0_215, %c0_216] : memref<8x2x128xbf16, #tpu.memory_space<vmem>>, vector<1x2x128xbf16>
    %494 = vector.shape_cast %493 : vector<1x2x128xbf16> to vector<2x128xbf16>
    %495 = vector.shape_cast %491 : vector<2x128xbf16> to vector<1x2x128xbf16>
    tpu.vector_store %arg6[%492, %c0_215, %c0_216], %495 {strides = array<i32>} : memref<8x2x128xbf16, #tpu.memory_space<vmem>>, vector<1x2x128xbf16>,
    %496 = arith.index_cast %439 : i32 to index
    %c0_217 = arith.constant 0 : index
    %c0_218 = arith.constant 0 : index
    %497 = vector.load %arg2[%496, %c0_217, %c0_218] : memref<8x2x512xbf16, #tpu.memory_space<vmem>>, vector<1x2x512xbf16>
    %498 = vector.shape_cast %497 : vector<1x2x512xbf16> to vector<2x512xbf16>
    %499 = vector.extract_strided_slice %443 {offsets = [0, 512], sizes = [2, 512], strides = [1, 1]} : vector<2x1024xf32> to vector<2x512xf32>
    %500 = arith.extf %498 : vector<2x512xbf16> to vector<2x512xf32>
    %501 = arith.addf %500, %499 : vector<2x512xf32>
    %502 = vector.extract_strided_slice %501 {offsets = [0, 0], sizes = [2, 128], strides = [1, 1]} : vector<2x512xf32> to vector<2x128xf32>
    %cst_219 = arith.constant 5.000000e-01 : f32
    %503 = vector.broadcast %cst_219 : f32 to vector<2x128xf32>
    %504 = arith.mulf %503, %502 : vector<2x128xf32>
    %505 = math.tanh %504 : vector<2x128xf32>
    %cst_220 = arith.constant 1.000000e+00 : f32
    %506 = vector.broadcast %cst_220 : f32 to vector<2x128xf32>
    %507 = arith.addf %505, %506 : vector<2x128xf32>
    %cst_221 = arith.constant 5.000000e-01 : f32
    %508 = vector.broadcast %cst_221 : f32 to vector<2x128xf32>
    %509 = arith.mulf %508, %507 : vector<2x128xf32>
    %510 = vector.extract_strided_slice %501 {offsets = [0, 128], sizes = [2, 128], strides = [1, 1]} : vector<2x512xf32> to vector<2x128xf32>
    %cst_222 = arith.constant 5.000000e-01 : f32
    %511 = vector.broadcast %cst_222 : f32 to vector<2x128xf32>
    %512 = arith.mulf %511, %510 : vector<2x128xf32>
    %513 = math.tanh %512 : vector<2x128xf32>
    %cst_223 = arith.constant 1.000000e+00 : f32
    %514 = vector.broadcast %cst_223 : f32 to vector<2x128xf32>
    %515 = arith.addf %513, %514 : vector<2x128xf32>
    %cst_224 = arith.constant 5.000000e-01 : f32
    %516 = vector.broadcast %cst_224 : f32 to vector<2x128xf32>
    %517 = arith.mulf %516, %515 : vector<2x128xf32>
    %518 = vector.extract_strided_slice %501 {offsets = [0, 256], sizes = [2, 128], strides = [1, 1]} : vector<2x512xf32> to vector<2x128xf32>
    %519 = math.tanh %518 : vector<2x128xf32>
    %520 = vector.extract_strided_slice %501 {offsets = [0, 384], sizes = [2, 128], strides = [1, 1]} : vector<2x512xf32> to vector<2x128xf32>
    %cst_225 = arith.constant 5.000000e-01 : f32
    %521 = vector.broadcast %cst_225 : f32 to vector<2x128xf32>
    %522 = arith.mulf %521, %520 : vector<2x128xf32>
    %523 = math.tanh %522 : vector<2x128xf32>
    %cst_226 = arith.constant 1.000000e+00 : f32
    %524 = vector.broadcast %cst_226 : f32 to vector<2x128xf32>
    %525 = arith.addf %523, %524 : vector<2x128xf32>
    %cst_227 = arith.constant 5.000000e-01 : f32
    %526 = vector.broadcast %cst_227 : f32 to vector<2x128xf32>
    %527 = arith.mulf %526, %525 : vector<2x128xf32>
    %c0_228 = arith.constant 0 : index
    %c128_229 = arith.constant 128 : index
    %528 = vector.load %arg9[%c0_228, %c128_229] : memref<2x256xf32, #tpu.memory_space<vmem>>, vector<2x128xf32>
    %529 = arith.mulf %517, %528 : vector<2x128xf32>
    %530 = arith.mulf %509, %519 : vector<2x128xf32>
    %531 = arith.addf %529, %530 : vector<2x128xf32>
    %532 = math.tanh %531 : vector<2x128xf32>
    %533 = arith.mulf %527, %532 : vector<2x128xf32>
    %534 = arith.index_cast %439 : i32 to index
    %c0_230 = arith.constant 0 : index
    %c0_231 = arith.constant 0 : index
    %535 = vector.load %arg5[%534, %c0_230, %c0_231] : memref<8x2x1xf32, #tpu.memory_space<vmem>>, vector<1x2x1xf32>
    %536 = vector.shape_cast %535 : vector<1x2x1xf32> to vector<2x1xf32>
    %537 = vector.broadcast %536 : vector<2x1xf32> to vector<2x128xf32>
    %538 = arith.mulf %531, %537 : vector<2x128xf32>
    %c0_232 = arith.constant 0 : index
    %c128_233 = arith.constant 128 : index
    %539 = vector.load %arg9[%c0_232, %c128_233] : memref<2x256xf32, #tpu.memory_space<vmem>>, vector<2x128xf32>
    tpu.vector_store %arg9[%c0_232, %c128_233], %538 {strides = array<i32>} : memref<2x256xf32, #tpu.memory_space<vmem>>, vector<2x128xf32>,
    %540 = vector.broadcast %536 : vector<2x1xf32> to vector<2x128xf32>
    %541 = arith.mulf %533, %540 : vector<2x128xf32>
    %c0_234 = arith.constant 0 : index
    %c128_235 = arith.constant 128 : index
    %542 = vector.load %arg8[%c0_234, %c128_235] : memref<2x256xf32, #tpu.memory_space<vmem>>, vector<2x128xf32>
    tpu.vector_store %arg8[%c0_234, %c128_235], %541 {strides = array<i32>} : memref<2x256xf32, #tpu.memory_space<vmem>>, vector<2x128xf32>,
    %543 = arith.truncf %541 : vector<2x128xf32> to vector<2x128xbf16>
    %544 = arith.index_cast %439 : i32 to index
    %c0_236 = arith.constant 0 : index
    %c0_237 = arith.constant 0 : index
    %545 = vector.load %arg7[%544, %c0_236, %c0_237] : memref<8x2x128xbf16, #tpu.memory_space<vmem>>, vector<1x2x128xbf16>
    %546 = vector.shape_cast %545 : vector<1x2x128xbf16> to vector<2x128xbf16>
    %547 = vector.shape_cast %543 : vector<2x128xbf16> to vector<1x2x128xbf16>
    tpu.vector_store %arg7[%544, %c0_236, %c0_237], %547 {strides = array<i32>} : memref<8x2x128xbf16, #tpu.memory_space<vmem>>, vector<1x2x128xbf16>,
    %c5_i32 = arith.constant 5 : i32
    %c7_i32_238 = arith.constant 7 : i32
    %548 = arith.subi %c7_i32_238, %c5_i32 : i32
    %c0_239 = arith.constant 0 : index
    %c0_240 = arith.constant 0 : index
    %549 = vector.load %arg8[%c0_239, %c0_240] : memref<2x256xf32, #tpu.memory_space<vmem>>, vector<2x256xf32>
    %550 = arith.truncf %549 : vector<2x256xf32> to vector<2x256xbf16>
    %c0_241 = arith.constant 0 : index
    %c0_242 = arith.constant 0 : index
    %551 = vector.load %arg3[%c0_241, %c0_242] : memref<256x1024xbf16, #tpu.memory_space<vmem>>, vector<256x1024xbf16>
    %cst_243 = arith.constant dense<0.000000e+00> : vector<2x1024xf32>
    %552 = tpu.matmul %550, %551, %cst_243 {dimension_numbers = #tpu.dot_dimension_numbers<[1], [0], [0], [1], [0, 0, 1, 1], [], []>} : vector<2x256xbf16>, vector<256x1024xbf16>, vector<2x1024xf32> -> vector<2x1024xf32>
    %553 = arith.index_cast %c5_i32 : i32 to index
    %c0_244 = arith.constant 0 : index
    %c0_245 = arith.constant 0 : index
    %554 = vector.load %arg1[%553, %c0_244, %c0_245] : memref<8x2x512xbf16, #tpu.memory_space<vmem>>, vector<1x2x512xbf16>
    %555 = vector.shape_cast %554 : vector<1x2x512xbf16> to vector<2x512xbf16>
    %556 = vector.extract_strided_slice %552 {offsets = [0, 0], sizes = [2, 512], strides = [1, 1]} : vector<2x1024xf32> to vector<2x512xf32>
    %557 = arith.extf %555 : vector<2x512xbf16> to vector<2x512xf32>
    %558 = arith.addf %557, %556 : vector<2x512xf32>
    %559 = vector.extract_strided_slice %558 {offsets = [0, 0], sizes = [2, 128], strides = [1, 1]} : vector<2x512xf32> to vector<2x128xf32>
    %cst_246 = arith.constant 5.000000e-01 : f32
    %560 = vector.broadcast %cst_246 : f32 to vector<2x128xf32>
    %561 = arith.mulf %560, %559 : vector<2x128xf32>
    %562 = math.tanh %561 : vector<2x128xf32>
    %cst_247 = arith.constant 1.000000e+00 : f32
    %563 = vector.broadcast %cst_247 : f32 to vector<2x128xf32>
    %564 = arith.addf %562, %563 : vector<2x128xf32>
    %cst_248 = arith.constant 5.000000e-01 : f32
    %565 = vector.broadcast %cst_248 : f32 to vector<2x128xf32>
    %566 = arith.mulf %565, %564 : vector<2x128xf32>
    %567 = vector.extract_strided_slice %558 {offsets = [0, 128], sizes = [2, 128], strides = [1, 1]} : vector<2x512xf32> to vector<2x128xf32>
    %cst_249 = arith.constant 5.000000e-01 : f32
    %568 = vector.broadcast %cst_249 : f32 to vector<2x128xf32>
    %569 = arith.mulf %568, %567 : vector<2x128xf32>
    %570 = math.tanh %569 : vector<2x128xf32>
    %cst_250 = arith.constant 1.000000e+00 : f32
    %571 = vector.broadcast %cst_250 : f32 to vector<2x128xf32>
    %572 = arith.addf %570, %571 : vector<2x128xf32>
    %cst_251 = arith.constant 5.000000e-01 : f32
    %573 = vector.broadcast %cst_251 : f32 to vector<2x128xf32>
    %574 = arith.mulf %573, %572 : vector<2x128xf32>
    %575 = vector.extract_strided_slice %558 {offsets = [0, 256], sizes = [2, 128], strides = [1, 1]} : vector<2x512xf32> to vector<2x128xf32>
    %576 = math.tanh %575 : vector<2x128xf32>
    %577 = vector.extract_strided_slice %558 {offsets = [0, 384], sizes = [2, 128], strides = [1, 1]} : vector<2x512xf32> to vector<2x128xf32>
    %cst_252 = arith.constant 5.000000e-01 : f32
    %578 = vector.broadcast %cst_252 : f32 to vector<2x128xf32>
    %579 = arith.mulf %578, %577 : vector<2x128xf32>
    %580 = math.tanh %579 : vector<2x128xf32>
    %cst_253 = arith.constant 1.000000e+00 : f32
    %581 = vector.broadcast %cst_253 : f32 to vector<2x128xf32>
    %582 = arith.addf %580, %581 : vector<2x128xf32>
    %cst_254 = arith.constant 5.000000e-01 : f32
    %583 = vector.broadcast %cst_254 : f32 to vector<2x128xf32>
    %584 = arith.mulf %583, %582 : vector<2x128xf32>
    %c0_255 = arith.constant 0 : index
    %c0_256 = arith.constant 0 : index
    %585 = vector.load %arg9[%c0_255, %c0_256] : memref<2x256xf32, #tpu.memory_space<vmem>>, vector<2x128xf32>
    %586 = arith.mulf %574, %585 : vector<2x128xf32>
    %587 = arith.mulf %566, %576 : vector<2x128xf32>
    %588 = arith.addf %586, %587 : vector<2x128xf32>
    %589 = math.tanh %588 : vector<2x128xf32>
    %590 = arith.mulf %584, %589 : vector<2x128xf32>
    %591 = arith.index_cast %c5_i32 : i32 to index
    %c0_257 = arith.constant 0 : index
    %c0_258 = arith.constant 0 : index
    %592 = vector.load %arg4[%591, %c0_257, %c0_258] : memref<8x2x1xf32, #tpu.memory_space<vmem>>, vector<1x2x1xf32>
    %593 = vector.shape_cast %592 : vector<1x2x1xf32> to vector<2x1xf32>
    %594 = vector.broadcast %593 : vector<2x1xf32> to vector<2x128xf32>
    %595 = arith.mulf %588, %594 : vector<2x128xf32>
    %c0_259 = arith.constant 0 : index
    %c0_260 = arith.constant 0 : index
    %596 = vector.load %arg9[%c0_259, %c0_260] : memref<2x256xf32, #tpu.memory_space<vmem>>, vector<2x128xf32>
    tpu.vector_store %arg9[%c0_259, %c0_260], %595 {strides = array<i32>} : memref<2x256xf32, #tpu.memory_space<vmem>>, vector<2x128xf32>,
    %597 = vector.broadcast %593 : vector<2x1xf32> to vector<2x128xf32>
    %598 = arith.mulf %590, %597 : vector<2x128xf32>
    %c0_261 = arith.constant 0 : index
    %c0_262 = arith.constant 0 : index
    %599 = vector.load %arg8[%c0_261, %c0_262] : memref<2x256xf32, #tpu.memory_space<vmem>>, vector<2x128xf32>
    tpu.vector_store %arg8[%c0_261, %c0_262], %598 {strides = array<i32>} : memref<2x256xf32, #tpu.memory_space<vmem>>, vector<2x128xf32>,
    %600 = arith.truncf %598 : vector<2x128xf32> to vector<2x128xbf16>
    %601 = arith.index_cast %c5_i32 : i32 to index
    %c0_263 = arith.constant 0 : index
    %c0_264 = arith.constant 0 : index
    %602 = vector.load %arg6[%601, %c0_263, %c0_264] : memref<8x2x128xbf16, #tpu.memory_space<vmem>>, vector<1x2x128xbf16>
    %603 = vector.shape_cast %602 : vector<1x2x128xbf16> to vector<2x128xbf16>
    %604 = vector.shape_cast %600 : vector<2x128xbf16> to vector<1x2x128xbf16>
    tpu.vector_store %arg6[%601, %c0_263, %c0_264], %604 {strides = array<i32>} : memref<8x2x128xbf16, #tpu.memory_space<vmem>>, vector<1x2x128xbf16>,
    %605 = arith.index_cast %548 : i32 to index
    %c0_265 = arith.constant 0 : index
    %c0_266 = arith.constant 0 : index
    %606 = vector.load %arg2[%605, %c0_265, %c0_266] : memref<8x2x512xbf16, #tpu.memory_space<vmem>>, vector<1x2x512xbf16>
    %607 = vector.shape_cast %606 : vector<1x2x512xbf16> to vector<2x512xbf16>
    %608 = vector.extract_strided_slice %552 {offsets = [0, 512], sizes = [2, 512], strides = [1, 1]} : vector<2x1024xf32> to vector<2x512xf32>
    %609 = arith.extf %607 : vector<2x512xbf16> to vector<2x512xf32>
    %610 = arith.addf %609, %608 : vector<2x512xf32>
    %611 = vector.extract_strided_slice %610 {offsets = [0, 0], sizes = [2, 128], strides = [1, 1]} : vector<2x512xf32> to vector<2x128xf32>
    %cst_267 = arith.constant 5.000000e-01 : f32
    %612 = vector.broadcast %cst_267 : f32 to vector<2x128xf32>
    %613 = arith.mulf %612, %611 : vector<2x128xf32>
    %614 = math.tanh %613 : vector<2x128xf32>
    %cst_268 = arith.constant 1.000000e+00 : f32
    %615 = vector.broadcast %cst_268 : f32 to vector<2x128xf32>
    %616 = arith.addf %614, %615 : vector<2x128xf32>
    %cst_269 = arith.constant 5.000000e-01 : f32
    %617 = vector.broadcast %cst_269 : f32 to vector<2x128xf32>
    %618 = arith.mulf %617, %616 : vector<2x128xf32>
    %619 = vector.extract_strided_slice %610 {offsets = [0, 128], sizes = [2, 128], strides = [1, 1]} : vector<2x512xf32> to vector<2x128xf32>
    %cst_270 = arith.constant 5.000000e-01 : f32
    %620 = vector.broadcast %cst_270 : f32 to vector<2x128xf32>
    %621 = arith.mulf %620, %619 : vector<2x128xf32>
    %622 = math.tanh %621 : vector<2x128xf32>
    %cst_271 = arith.constant 1.000000e+00 : f32
    %623 = vector.broadcast %cst_271 : f32 to vector<2x128xf32>
    %624 = arith.addf %622, %623 : vector<2x128xf32>
    %cst_272 = arith.constant 5.000000e-01 : f32
    %625 = vector.broadcast %cst_272 : f32 to vector<2x128xf32>
    %626 = arith.mulf %625, %624 : vector<2x128xf32>
    %627 = vector.extract_strided_slice %610 {offsets = [0, 256], sizes = [2, 128], strides = [1, 1]} : vector<2x512xf32> to vector<2x128xf32>
    %628 = math.tanh %627 : vector<2x128xf32>
    %629 = vector.extract_strided_slice %610 {offsets = [0, 384], sizes = [2, 128], strides = [1, 1]} : vector<2x512xf32> to vector<2x128xf32>
    %cst_273 = arith.constant 5.000000e-01 : f32
    %630 = vector.broadcast %cst_273 : f32 to vector<2x128xf32>
    %631 = arith.mulf %630, %629 : vector<2x128xf32>
    %632 = math.tanh %631 : vector<2x128xf32>
    %cst_274 = arith.constant 1.000000e+00 : f32
    %633 = vector.broadcast %cst_274 : f32 to vector<2x128xf32>
    %634 = arith.addf %632, %633 : vector<2x128xf32>
    %cst_275 = arith.constant 5.000000e-01 : f32
    %635 = vector.broadcast %cst_275 : f32 to vector<2x128xf32>
    %636 = arith.mulf %635, %634 : vector<2x128xf32>
    %c0_276 = arith.constant 0 : index
    %c128_277 = arith.constant 128 : index
    %637 = vector.load %arg9[%c0_276, %c128_277] : memref<2x256xf32, #tpu.memory_space<vmem>>, vector<2x128xf32>
    %638 = arith.mulf %626, %637 : vector<2x128xf32>
    %639 = arith.mulf %618, %628 : vector<2x128xf32>
    %640 = arith.addf %638, %639 : vector<2x128xf32>
    %641 = math.tanh %640 : vector<2x128xf32>
    %642 = arith.mulf %636, %641 : vector<2x128xf32>
    %643 = arith.index_cast %548 : i32 to index
    %c0_278 = arith.constant 0 : index
    %c0_279 = arith.constant 0 : index
    %644 = vector.load %arg5[%643, %c0_278, %c0_279] : memref<8x2x1xf32, #tpu.memory_space<vmem>>, vector<1x2x1xf32>
    %645 = vector.shape_cast %644 : vector<1x2x1xf32> to vector<2x1xf32>
    %646 = vector.broadcast %645 : vector<2x1xf32> to vector<2x128xf32>
    %647 = arith.mulf %640, %646 : vector<2x128xf32>
    %c0_280 = arith.constant 0 : index
    %c128_281 = arith.constant 128 : index
    %648 = vector.load %arg9[%c0_280, %c128_281] : memref<2x256xf32, #tpu.memory_space<vmem>>, vector<2x128xf32>
    tpu.vector_store %arg9[%c0_280, %c128_281], %647 {strides = array<i32>} : memref<2x256xf32, #tpu.memory_space<vmem>>, vector<2x128xf32>,
    %649 = vector.broadcast %645 : vector<2x1xf32> to vector<2x128xf32>
    %650 = arith.mulf %642, %649 : vector<2x128xf32>
    %c0_282 = arith.constant 0 : index
    %c128_283 = arith.constant 128 : index
    %651 = vector.load %arg8[%c0_282, %c128_283] : memref<2x256xf32, #tpu.memory_space<vmem>>, vector<2x128xf32>
    tpu.vector_store %arg8[%c0_282, %c128_283], %650 {strides = array<i32>} : memref<2x256xf32, #tpu.memory_space<vmem>>, vector<2x128xf32>,
    %652 = arith.truncf %650 : vector<2x128xf32> to vector<2x128xbf16>
    %653 = arith.index_cast %548 : i32 to index
    %c0_284 = arith.constant 0 : index
    %c0_285 = arith.constant 0 : index
    %654 = vector.load %arg7[%653, %c0_284, %c0_285] : memref<8x2x128xbf16, #tpu.memory_space<vmem>>, vector<1x2x128xbf16>
    %655 = vector.shape_cast %654 : vector<1x2x128xbf16> to vector<2x128xbf16>
    %656 = vector.shape_cast %652 : vector<2x128xbf16> to vector<1x2x128xbf16>
    tpu.vector_store %arg7[%653, %c0_284, %c0_285], %656 {strides = array<i32>} : memref<8x2x128xbf16, #tpu.memory_space<vmem>>, vector<1x2x128xbf16>,
    %c6_i32 = arith.constant 6 : i32
    %c7_i32_286 = arith.constant 7 : i32
    %657 = arith.subi %c7_i32_286, %c6_i32 : i32
    %c0_287 = arith.constant 0 : index
    %c0_288 = arith.constant 0 : index
    %658 = vector.load %arg8[%c0_287, %c0_288] : memref<2x256xf32, #tpu.memory_space<vmem>>, vector<2x256xf32>
    %659 = arith.truncf %658 : vector<2x256xf32> to vector<2x256xbf16>
    %c0_289 = arith.constant 0 : index
    %c0_290 = arith.constant 0 : index
    %660 = vector.load %arg3[%c0_289, %c0_290] : memref<256x1024xbf16, #tpu.memory_space<vmem>>, vector<256x1024xbf16>
    %cst_291 = arith.constant dense<0.000000e+00> : vector<2x1024xf32>
    %661 = tpu.matmul %659, %660, %cst_291 {dimension_numbers = #tpu.dot_dimension_numbers<[1], [0], [0], [1], [0, 0, 1, 1], [], []>} : vector<2x256xbf16>, vector<256x1024xbf16>, vector<2x1024xf32> -> vector<2x1024xf32>
    %662 = arith.index_cast %c6_i32 : i32 to index
    %c0_292 = arith.constant 0 : index
    %c0_293 = arith.constant 0 : index
    %663 = vector.load %arg1[%662, %c0_292, %c0_293] : memref<8x2x512xbf16, #tpu.memory_space<vmem>>, vector<1x2x512xbf16>
    %664 = vector.shape_cast %663 : vector<1x2x512xbf16> to vector<2x512xbf16>
    %665 = vector.extract_strided_slice %661 {offsets = [0, 0], sizes = [2, 512], strides = [1, 1]} : vector<2x1024xf32> to vector<2x512xf32>
    %666 = arith.extf %664 : vector<2x512xbf16> to vector<2x512xf32>
    %667 = arith.addf %666, %665 : vector<2x512xf32>
    %668 = vector.extract_strided_slice %667 {offsets = [0, 0], sizes = [2, 128], strides = [1, 1]} : vector<2x512xf32> to vector<2x128xf32>
    %cst_294 = arith.constant 5.000000e-01 : f32
    %669 = vector.broadcast %cst_294 : f32 to vector<2x128xf32>
    %670 = arith.mulf %669, %668 : vector<2x128xf32>
    %671 = math.tanh %670 : vector<2x128xf32>
    %cst_295 = arith.constant 1.000000e+00 : f32
    %672 = vector.broadcast %cst_295 : f32 to vector<2x128xf32>
    %673 = arith.addf %671, %672 : vector<2x128xf32>
    %cst_296 = arith.constant 5.000000e-01 : f32
    %674 = vector.broadcast %cst_296 : f32 to vector<2x128xf32>
    %675 = arith.mulf %674, %673 : vector<2x128xf32>
    %676 = vector.extract_strided_slice %667 {offsets = [0, 128], sizes = [2, 128], strides = [1, 1]} : vector<2x512xf32> to vector<2x128xf32>
    %cst_297 = arith.constant 5.000000e-01 : f32
    %677 = vector.broadcast %cst_297 : f32 to vector<2x128xf32>
    %678 = arith.mulf %677, %676 : vector<2x128xf32>
    %679 = math.tanh %678 : vector<2x128xf32>
    %cst_298 = arith.constant 1.000000e+00 : f32
    %680 = vector.broadcast %cst_298 : f32 to vector<2x128xf32>
    %681 = arith.addf %679, %680 : vector<2x128xf32>
    %cst_299 = arith.constant 5.000000e-01 : f32
    %682 = vector.broadcast %cst_299 : f32 to vector<2x128xf32>
    %683 = arith.mulf %682, %681 : vector<2x128xf32>
    %684 = vector.extract_strided_slice %667 {offsets = [0, 256], sizes = [2, 128], strides = [1, 1]} : vector<2x512xf32> to vector<2x128xf32>
    %685 = math.tanh %684 : vector<2x128xf32>
    %686 = vector.extract_strided_slice %667 {offsets = [0, 384], sizes = [2, 128], strides = [1, 1]} : vector<2x512xf32> to vector<2x128xf32>
    %cst_300 = arith.constant 5.000000e-01 : f32
    %687 = vector.broadcast %cst_300 : f32 to vector<2x128xf32>
    %688 = arith.mulf %687, %686 : vector<2x128xf32>
    %689 = math.tanh %688 : vector<2x128xf32>
    %cst_301 = arith.constant 1.000000e+00 : f32
    %690 = vector.broadcast %cst_301 : f32 to vector<2x128xf32>
    %691 = arith.addf %689, %690 : vector<2x128xf32>
    %cst_302 = arith.constant 5.000000e-01 : f32
    %692 = vector.broadcast %cst_302 : f32 to vector<2x128xf32>
    %693 = arith.mulf %692, %691 : vector<2x128xf32>
    %c0_303 = arith.constant 0 : index
    %c0_304 = arith.constant 0 : index
    %694 = vector.load %arg9[%c0_303, %c0_304] : memref<2x256xf32, #tpu.memory_space<vmem>>, vector<2x128xf32>
    %695 = arith.mulf %683, %694 : vector<2x128xf32>
    %696 = arith.mulf %675, %685 : vector<2x128xf32>
    %697 = arith.addf %695, %696 : vector<2x128xf32>
    %698 = math.tanh %697 : vector<2x128xf32>
    %699 = arith.mulf %693, %698 : vector<2x128xf32>
    %700 = arith.index_cast %c6_i32 : i32 to index
    %c0_305 = arith.constant 0 : index
    %c0_306 = arith.constant 0 : index
    %701 = vector.load %arg4[%700, %c0_305, %c0_306] : memref<8x2x1xf32, #tpu.memory_space<vmem>>, vector<1x2x1xf32>
    %702 = vector.shape_cast %701 : vector<1x2x1xf32> to vector<2x1xf32>
    %703 = vector.broadcast %702 : vector<2x1xf32> to vector<2x128xf32>
    %704 = arith.mulf %697, %703 : vector<2x128xf32>
    %c0_307 = arith.constant 0 : index
    %c0_308 = arith.constant 0 : index
    %705 = vector.load %arg9[%c0_307, %c0_308] : memref<2x256xf32, #tpu.memory_space<vmem>>, vector<2x128xf32>
    tpu.vector_store %arg9[%c0_307, %c0_308], %704 {strides = array<i32>} : memref<2x256xf32, #tpu.memory_space<vmem>>, vector<2x128xf32>,
    %706 = vector.broadcast %702 : vector<2x1xf32> to vector<2x128xf32>
    %707 = arith.mulf %699, %706 : vector<2x128xf32>
    %c0_309 = arith.constant 0 : index
    %c0_310 = arith.constant 0 : index
    %708 = vector.load %arg8[%c0_309, %c0_310] : memref<2x256xf32, #tpu.memory_space<vmem>>, vector<2x128xf32>
    tpu.vector_store %arg8[%c0_309, %c0_310], %707 {strides = array<i32>} : memref<2x256xf32, #tpu.memory_space<vmem>>, vector<2x128xf32>,
    %709 = arith.truncf %707 : vector<2x128xf32> to vector<2x128xbf16>
    %710 = arith.index_cast %c6_i32 : i32 to index
    %c0_311 = arith.constant 0 : index
    %c0_312 = arith.constant 0 : index
    %711 = vector.load %arg6[%710, %c0_311, %c0_312] : memref<8x2x128xbf16, #tpu.memory_space<vmem>>, vector<1x2x128xbf16>
    %712 = vector.shape_cast %711 : vector<1x2x128xbf16> to vector<2x128xbf16>
    %713 = vector.shape_cast %709 : vector<2x128xbf16> to vector<1x2x128xbf16>
    tpu.vector_store %arg6[%710, %c0_311, %c0_312], %713 {strides = array<i32>} : memref<8x2x128xbf16, #tpu.memory_space<vmem>>, vector<1x2x128xbf16>,
    %714 = arith.index_cast %657 : i32 to index
    %c0_313 = arith.constant 0 : index
    %c0_314 = arith.constant 0 : index
    %715 = vector.load %arg2[%714, %c0_313, %c0_314] : memref<8x2x512xbf16, #tpu.memory_space<vmem>>, vector<1x2x512xbf16>
    %716 = vector.shape_cast %715 : vector<1x2x512xbf16> to vector<2x512xbf16>
    %717 = vector.extract_strided_slice %661 {offsets = [0, 512], sizes = [2, 512], strides = [1, 1]} : vector<2x1024xf32> to vector<2x512xf32>
    %718 = arith.extf %716 : vector<2x512xbf16> to vector<2x512xf32>
    %719 = arith.addf %718, %717 : vector<2x512xf32>
    %720 = vector.extract_strided_slice %719 {offsets = [0, 0], sizes = [2, 128], strides = [1, 1]} : vector<2x512xf32> to vector<2x128xf32>
    %cst_315 = arith.constant 5.000000e-01 : f32
    %721 = vector.broadcast %cst_315 : f32 to vector<2x128xf32>
    %722 = arith.mulf %721, %720 : vector<2x128xf32>
    %723 = math.tanh %722 : vector<2x128xf32>
    %cst_316 = arith.constant 1.000000e+00 : f32
    %724 = vector.broadcast %cst_316 : f32 to vector<2x128xf32>
    %725 = arith.addf %723, %724 : vector<2x128xf32>
    %cst_317 = arith.constant 5.000000e-01 : f32
    %726 = vector.broadcast %cst_317 : f32 to vector<2x128xf32>
    %727 = arith.mulf %726, %725 : vector<2x128xf32>
    %728 = vector.extract_strided_slice %719 {offsets = [0, 128], sizes = [2, 128], strides = [1, 1]} : vector<2x512xf32> to vector<2x128xf32>
    %cst_318 = arith.constant 5.000000e-01 : f32
    %729 = vector.broadcast %cst_318 : f32 to vector<2x128xf32>
    %730 = arith.mulf %729, %728 : vector<2x128xf32>
    %731 = math.tanh %730 : vector<2x128xf32>
    %cst_319 = arith.constant 1.000000e+00 : f32
    %732 = vector.broadcast %cst_319 : f32 to vector<2x128xf32>
    %733 = arith.addf %731, %732 : vector<2x128xf32>
    %cst_320 = arith.constant 5.000000e-01 : f32
    %734 = vector.broadcast %cst_320 : f32 to vector<2x128xf32>
    %735 = arith.mulf %734, %733 : vector<2x128xf32>
    %736 = vector.extract_strided_slice %719 {offsets = [0, 256], sizes = [2, 128], strides = [1, 1]} : vector<2x512xf32> to vector<2x128xf32>
    %737 = math.tanh %736 : vector<2x128xf32>
    %738 = vector.extract_strided_slice %719 {offsets = [0, 384], sizes = [2, 128], strides = [1, 1]} : vector<2x512xf32> to vector<2x128xf32>
    %cst_321 = arith.constant 5.000000e-01 : f32
    %739 = vector.broadcast %cst_321 : f32 to vector<2x128xf32>
    %740 = arith.mulf %739, %738 : vector<2x128xf32>
    %741 = math.tanh %740 : vector<2x128xf32>
    %cst_322 = arith.constant 1.000000e+00 : f32
    %742 = vector.broadcast %cst_322 : f32 to vector<2x128xf32>
    %743 = arith.addf %741, %742 : vector<2x128xf32>
    %cst_323 = arith.constant 5.000000e-01 : f32
    %744 = vector.broadcast %cst_323 : f32 to vector<2x128xf32>
    %745 = arith.mulf %744, %743 : vector<2x128xf32>
    %c0_324 = arith.constant 0 : index
    %c128_325 = arith.constant 128 : index
    %746 = vector.load %arg9[%c0_324, %c128_325] : memref<2x256xf32, #tpu.memory_space<vmem>>, vector<2x128xf32>
    %747 = arith.mulf %735, %746 : vector<2x128xf32>
    %748 = arith.mulf %727, %737 : vector<2x128xf32>
    %749 = arith.addf %747, %748 : vector<2x128xf32>
    %750 = math.tanh %749 : vector<2x128xf32>
    %751 = arith.mulf %745, %750 : vector<2x128xf32>
    %752 = arith.index_cast %657 : i32 to index
    %c0_326 = arith.constant 0 : index
    %c0_327 = arith.constant 0 : index
    %753 = vector.load %arg5[%752, %c0_326, %c0_327] : memref<8x2x1xf32, #tpu.memory_space<vmem>>, vector<1x2x1xf32>
    %754 = vector.shape_cast %753 : vector<1x2x1xf32> to vector<2x1xf32>
    %755 = vector.broadcast %754 : vector<2x1xf32> to vector<2x128xf32>
    %756 = arith.mulf %749, %755 : vector<2x128xf32>
    %c0_328 = arith.constant 0 : index
    %c128_329 = arith.constant 128 : index
    %757 = vector.load %arg9[%c0_328, %c128_329] : memref<2x256xf32, #tpu.memory_space<vmem>>, vector<2x128xf32>
    tpu.vector_store %arg9[%c0_328, %c128_329], %756 {strides = array<i32>} : memref<2x256xf32, #tpu.memory_space<vmem>>, vector<2x128xf32>,
    %758 = vector.broadcast %754 : vector<2x1xf32> to vector<2x128xf32>
    %759 = arith.mulf %751, %758 : vector<2x128xf32>
    %c0_330 = arith.constant 0 : index
    %c128_331 = arith.constant 128 : index
    %760 = vector.load %arg8[%c0_330, %c128_331] : memref<2x256xf32, #tpu.memory_space<vmem>>, vector<2x128xf32>
    tpu.vector_store %arg8[%c0_330, %c128_331], %759 {strides = array<i32>} : memref<2x256xf32, #tpu.memory_space<vmem>>, vector<2x128xf32>,
    %761 = arith.truncf %759 : vector<2x128xf32> to vector<2x128xbf16>
    %762 = arith.index_cast %657 : i32 to index
    %c0_332 = arith.constant 0 : index
    %c0_333 = arith.constant 0 : index
    %763 = vector.load %arg7[%762, %c0_332, %c0_333] : memref<8x2x128xbf16, #tpu.memory_space<vmem>>, vector<1x2x128xbf16>
    %764 = vector.shape_cast %763 : vector<1x2x128xbf16> to vector<2x128xbf16>
    %765 = vector.shape_cast %761 : vector<2x128xbf16> to vector<1x2x128xbf16>
    tpu.vector_store %arg7[%762, %c0_332, %c0_333], %765 {strides = array<i32>} : memref<8x2x128xbf16, #tpu.memory_space<vmem>>, vector<1x2x128xbf16>,
    %c7_i32_334 = arith.constant 7 : i32
    %c7_i32_335 = arith.constant 7 : i32
    %766 = arith.subi %c7_i32_335, %c7_i32_334 : i32
    %c0_336 = arith.constant 0 : index
    %c0_337 = arith.constant 0 : index
    %767 = vector.load %arg8[%c0_336, %c0_337] : memref<2x256xf32, #tpu.memory_space<vmem>>, vector<2x256xf32>
    %768 = arith.truncf %767 : vector<2x256xf32> to vector<2x256xbf16>
    %c0_338 = arith.constant 0 : index
    %c0_339 = arith.constant 0 : index
    %769 = vector.load %arg3[%c0_338, %c0_339] : memref<256x1024xbf16, #tpu.memory_space<vmem>>, vector<256x1024xbf16>
    %cst_340 = arith.constant dense<0.000000e+00> : vector<2x1024xf32>
    %770 = tpu.matmul %768, %769, %cst_340 {dimension_numbers = #tpu.dot_dimension_numbers<[1], [0], [0], [1], [0, 0, 1, 1], [], []>} : vector<2x256xbf16>, vector<256x1024xbf16>, vector<2x1024xf32> -> vector<2x1024xf32>
    %771 = arith.index_cast %c7_i32_334 : i32 to index
    %c0_341 = arith.constant 0 : index
    %c0_342 = arith.constant 0 : index
    %772 = vector.load %arg1[%771, %c0_341, %c0_342] : memref<8x2x512xbf16, #tpu.memory_space<vmem>>, vector<1x2x512xbf16>
    %773 = vector.shape_cast %772 : vector<1x2x512xbf16> to vector<2x512xbf16>
    %774 = vector.extract_strided_slice %770 {offsets = [0, 0], sizes = [2, 512], strides = [1, 1]} : vector<2x1024xf32> to vector<2x512xf32>
    %775 = arith.extf %773 : vector<2x512xbf16> to vector<2x512xf32>
    %776 = arith.addf %775, %774 : vector<2x512xf32>
    %777 = vector.extract_strided_slice %776 {offsets = [0, 0], sizes = [2, 128], strides = [1, 1]} : vector<2x512xf32> to vector<2x128xf32>
    %cst_343 = arith.constant 5.000000e-01 : f32
    %778 = vector.broadcast %cst_343 : f32 to vector<2x128xf32>
    %779 = arith.mulf %778, %777 : vector<2x128xf32>
    %780 = math.tanh %779 : vector<2x128xf32>
    %cst_344 = arith.constant 1.000000e+00 : f32
    %781 = vector.broadcast %cst_344 : f32 to vector<2x128xf32>
    %782 = arith.addf %780, %781 : vector<2x128xf32>
    %cst_345 = arith.constant 5.000000e-01 : f32
    %783 = vector.broadcast %cst_345 : f32 to vector<2x128xf32>
    %784 = arith.mulf %783, %782 : vector<2x128xf32>
    %785 = vector.extract_strided_slice %776 {offsets = [0, 128], sizes = [2, 128], strides = [1, 1]} : vector<2x512xf32> to vector<2x128xf32>
    %cst_346 = arith.constant 5.000000e-01 : f32
    %786 = vector.broadcast %cst_346 : f32 to vector<2x128xf32>
    %787 = arith.mulf %786, %785 : vector<2x128xf32>
    %788 = math.tanh %787 : vector<2x128xf32>
    %cst_347 = arith.constant 1.000000e+00 : f32
    %789 = vector.broadcast %cst_347 : f32 to vector<2x128xf32>
    %790 = arith.addf %788, %789 : vector<2x128xf32>
    %cst_348 = arith.constant 5.000000e-01 : f32
    %791 = vector.broadcast %cst_348 : f32 to vector<2x128xf32>
    %792 = arith.mulf %791, %790 : vector<2x128xf32>
    %793 = vector.extract_strided_slice %776 {offsets = [0, 256], sizes = [2, 128], strides = [1, 1]} : vector<2x512xf32> to vector<2x128xf32>
    %794 = math.tanh %793 : vector<2x128xf32>
    %795 = vector.extract_strided_slice %776 {offsets = [0, 384], sizes = [2, 128], strides = [1, 1]} : vector<2x512xf32> to vector<2x128xf32>
    %cst_349 = arith.constant 5.000000e-01 : f32
    %796 = vector.broadcast %cst_349 : f32 to vector<2x128xf32>
    %797 = arith.mulf %796, %795 : vector<2x128xf32>
    %798 = math.tanh %797 : vector<2x128xf32>
    %cst_350 = arith.constant 1.000000e+00 : f32
    %799 = vector.broadcast %cst_350 : f32 to vector<2x128xf32>
    %800 = arith.addf %798, %799 : vector<2x128xf32>
    %cst_351 = arith.constant 5.000000e-01 : f32
    %801 = vector.broadcast %cst_351 : f32 to vector<2x128xf32>
    %802 = arith.mulf %801, %800 : vector<2x128xf32>
    %c0_352 = arith.constant 0 : index
    %c0_353 = arith.constant 0 : index
    %803 = vector.load %arg9[%c0_352, %c0_353] : memref<2x256xf32, #tpu.memory_space<vmem>>, vector<2x128xf32>
    %804 = arith.mulf %792, %803 : vector<2x128xf32>
    %805 = arith.mulf %784, %794 : vector<2x128xf32>
    %806 = arith.addf %804, %805 : vector<2x128xf32>
    %807 = math.tanh %806 : vector<2x128xf32>
    %808 = arith.mulf %802, %807 : vector<2x128xf32>
    %809 = arith.index_cast %c7_i32_334 : i32 to index
    %c0_354 = arith.constant 0 : index
    %c0_355 = arith.constant 0 : index
    %810 = vector.load %arg4[%809, %c0_354, %c0_355] : memref<8x2x1xf32, #tpu.memory_space<vmem>>, vector<1x2x1xf32>
    %811 = vector.shape_cast %810 : vector<1x2x1xf32> to vector<2x1xf32>
    %812 = vector.broadcast %811 : vector<2x1xf32> to vector<2x128xf32>
    %813 = arith.mulf %806, %812 : vector<2x128xf32>
    %c0_356 = arith.constant 0 : index
    %c0_357 = arith.constant 0 : index
    %814 = vector.load %arg9[%c0_356, %c0_357] : memref<2x256xf32, #tpu.memory_space<vmem>>, vector<2x128xf32>
    tpu.vector_store %arg9[%c0_356, %c0_357], %813 {strides = array<i32>} : memref<2x256xf32, #tpu.memory_space<vmem>>, vector<2x128xf32>,
    %815 = vector.broadcast %811 : vector<2x1xf32> to vector<2x128xf32>
    %816 = arith.mulf %808, %815 : vector<2x128xf32>
    %c0_358 = arith.constant 0 : index
    %c0_359 = arith.constant 0 : index
    %817 = vector.load %arg8[%c0_358, %c0_359] : memref<2x256xf32, #tpu.memory_space<vmem>>, vector<2x128xf32>
    tpu.vector_store %arg8[%c0_358, %c0_359], %816 {strides = array<i32>} : memref<2x256xf32, #tpu.memory_space<vmem>>, vector<2x128xf32>,
    %818 = arith.truncf %816 : vector<2x128xf32> to vector<2x128xbf16>
    %819 = arith.index_cast %c7_i32_334 : i32 to index
    %c0_360 = arith.constant 0 : index
    %c0_361 = arith.constant 0 : index
    %820 = vector.load %arg6[%819, %c0_360, %c0_361] : memref<8x2x128xbf16, #tpu.memory_space<vmem>>, vector<1x2x128xbf16>
    %821 = vector.shape_cast %820 : vector<1x2x128xbf16> to vector<2x128xbf16>
    %822 = vector.shape_cast %818 : vector<2x128xbf16> to vector<1x2x128xbf16>
    tpu.vector_store %arg6[%819, %c0_360, %c0_361], %822 {strides = array<i32>} : memref<8x2x128xbf16, #tpu.memory_space<vmem>>, vector<1x2x128xbf16>,
    %823 = arith.index_cast %766 : i32 to index
    %c0_362 = arith.constant 0 : index
    %c0_363 = arith.constant 0 : index
    %824 = vector.load %arg2[%823, %c0_362, %c0_363] : memref<8x2x512xbf16, #tpu.memory_space<vmem>>, vector<1x2x512xbf16>
    %825 = vector.shape_cast %824 : vector<1x2x512xbf16> to vector<2x512xbf16>
    %826 = vector.extract_strided_slice %770 {offsets = [0, 512], sizes = [2, 512], strides = [1, 1]} : vector<2x1024xf32> to vector<2x512xf32>
    %827 = arith.extf %825 : vector<2x512xbf16> to vector<2x512xf32>
    %828 = arith.addf %827, %826 : vector<2x512xf32>
    %829 = vector.extract_strided_slice %828 {offsets = [0, 0], sizes = [2, 128], strides = [1, 1]} : vector<2x512xf32> to vector<2x128xf32>
    %cst_364 = arith.constant 5.000000e-01 : f32
    %830 = vector.broadcast %cst_364 : f32 to vector<2x128xf32>
    %831 = arith.mulf %830, %829 : vector<2x128xf32>
    %832 = math.tanh %831 : vector<2x128xf32>
    %cst_365 = arith.constant 1.000000e+00 : f32
    %833 = vector.broadcast %cst_365 : f32 to vector<2x128xf32>
    %834 = arith.addf %832, %833 : vector<2x128xf32>
    %cst_366 = arith.constant 5.000000e-01 : f32
    %835 = vector.broadcast %cst_366 : f32 to vector<2x128xf32>
    %836 = arith.mulf %835, %834 : vector<2x128xf32>
    %837 = vector.extract_strided_slice %828 {offsets = [0, 128], sizes = [2, 128], strides = [1, 1]} : vector<2x512xf32> to vector<2x128xf32>
    %cst_367 = arith.constant 5.000000e-01 : f32
    %838 = vector.broadcast %cst_367 : f32 to vector<2x128xf32>
    %839 = arith.mulf %838, %837 : vector<2x128xf32>
    %840 = math.tanh %839 : vector<2x128xf32>
    %cst_368 = arith.constant 1.000000e+00 : f32
    %841 = vector.broadcast %cst_368 : f32 to vector<2x128xf32>
    %842 = arith.addf %840, %841 : vector<2x128xf32>
    %cst_369 = arith.constant 5.000000e-01 : f32
    %843 = vector.broadcast %cst_369 : f32 to vector<2x128xf32>
    %844 = arith.mulf %843, %842 : vector<2x128xf32>
    %845 = vector.extract_strided_slice %828 {offsets = [0, 256], sizes = [2, 128], strides = [1, 1]} : vector<2x512xf32> to vector<2x128xf32>
    %846 = math.tanh %845 : vector<2x128xf32>
    %847 = vector.extract_strided_slice %828 {offsets = [0, 384], sizes = [2, 128], strides = [1, 1]} : vector<2x512xf32> to vector<2x128xf32>
    %cst_370 = arith.constant 5.000000e-01 : f32
    %848 = vector.broadcast %cst_370 : f32 to vector<2x128xf32>
    %849 = arith.mulf %848, %847 : vector<2x128xf32>
    %850 = math.tanh %849 : vector<2x128xf32>
    %cst_371 = arith.constant 1.000000e+00 : f32
    %851 = vector.broadcast %cst_371 : f32 to vector<2x128xf32>
    %852 = arith.addf %850, %851 : vector<2x128xf32>
    %cst_372 = arith.constant 5.000000e-01 : f32
    %853 = vector.broadcast %cst_372 : f32 to vector<2x128xf32>
    %854 = arith.mulf %853, %852 : vector<2x128xf32>
    %c0_373 = arith.constant 0 : index
    %c128_374 = arith.constant 128 : index
    %855 = vector.load %arg9[%c0_373, %c128_374] : memref<2x256xf32, #tpu.memory_space<vmem>>, vector<2x128xf32>
    %856 = arith.mulf %844, %855 : vector<2x128xf32>
    %857 = arith.mulf %836, %846 : vector<2x128xf32>
    %858 = arith.addf %856, %857 : vector<2x128xf32>
    %859 = math.tanh %858 : vector<2x128xf32>
    %860 = arith.mulf %854, %859 : vector<2x128xf32>
    %861 = arith.index_cast %766 : i32 to index
    %c0_375 = arith.constant 0 : index
    %c0_376 = arith.constant 0 : index
    %862 = vector.load %arg5[%861, %c0_375, %c0_376] : memref<8x2x1xf32, #tpu.memory_space<vmem>>, vector<1x2x1xf32>
    %863 = vector.shape_cast %862 : vector<1x2x1xf32> to vector<2x1xf32>
    %864 = vector.broadcast %863 : vector<2x1xf32> to vector<2x128xf32>
    %865 = arith.mulf %858, %864 : vector<2x128xf32>
    %c0_377 = arith.constant 0 : index
    %c128_378 = arith.constant 128 : index
    %866 = vector.load %arg9[%c0_377, %c128_378] : memref<2x256xf32, #tpu.memory_space<vmem>>, vector<2x128xf32>
    tpu.vector_store %arg9[%c0_377, %c128_378], %865 {strides = array<i32>} : memref<2x256xf32, #tpu.memory_space<vmem>>, vector<2x128xf32>,
    %867 = vector.broadcast %863 : vector<2x1xf32> to vector<2x128xf32>
    %868 = arith.mulf %860, %867 : vector<2x128xf32>
    %c0_379 = arith.constant 0 : index
    %c128_380 = arith.constant 128 : index
    %869 = vector.load %arg8[%c0_379, %c128_380] : memref<2x256xf32, #tpu.memory_space<vmem>>, vector<2x128xf32>
    tpu.vector_store %arg8[%c0_379, %c128_380], %868 {strides = array<i32>} : memref<2x256xf32, #tpu.memory_space<vmem>>, vector<2x128xf32>,
    %870 = arith.truncf %868 : vector<2x128xf32> to vector<2x128xbf16>
    %871 = arith.index_cast %766 : i32 to index
    %c0_381 = arith.constant 0 : index
    %c0_382 = arith.constant 0 : index
    %872 = vector.load %arg7[%871, %c0_381, %c0_382] : memref<8x2x128xbf16, #tpu.memory_space<vmem>>, vector<1x2x128xbf16>
    %873 = vector.shape_cast %872 : vector<1x2x128xbf16> to vector<2x128xbf16>
    %874 = vector.shape_cast %870 : vector<2x128xbf16> to vector<1x2x128xbf16>
    tpu.vector_store %arg7[%871, %c0_381, %c0_382], %874 {strides = array<i32>} : memref<8x2x128xbf16, #tpu.memory_space<vmem>>, vector<1x2x128xbf16>,
    %c8_i32 = arith.constant 8 : i32
    return
  }
  func.func @transform_0(%arg0: i32) -> (i32, i32, i32) {
    %c0_i32 = arith.constant 0 : i32
    %c0_i32_0 = arith.constant 0 : i32
    %c0_i32_1 = arith.constant 0 : i32
    return %arg0, %c0_i32, %c0_i32_0 : i32, i32, i32
  }
  func.func @transform_1(%arg0: i32) -> (i32, i32, i32) {
    %c0_i32 = arith.constant 0 : i32
    %0 = arith.subi %c0_i32, %arg0 : i32
    %c0_i32_0 = arith.constant 0 : i32
    %c1_i32 = arith.constant 1 : i32
    %c0_i32_1 = arith.constant 0 : i32
    return %0, %c0_i32_0, %c1_i32 : i32, i32, i32
  }
  func.func @transform_2(%arg0: i32) -> (i32, i32) {
    %c0_i32 = arith.constant 0 : i32
    %c0_i32_0 = arith.constant 0 : i32
    %c0_i32_1 = arith.constant 0 : i32
    return %c0_i32, %c0_i32_0 : i32, i32
  }
  func.func @transform_3(%arg0: i32) -> (i32, i32, i32) {
    %c0_i32 = arith.constant 0 : i32
    %c0_i32_0 = arith.constant 0 : i32
    %c0_i32_1 = arith.constant 0 : i32
    return %arg0, %c0_i32, %c0_i32_0 : i32, i32, i32
  }
  func.func @transform_4(%arg0: i32) -> (i32, i32, i32) {
    %c0_i32 = arith.constant 0 : i32
    %0 = arith.subi %c0_i32, %arg0 : i32
    %c0_i32_0 = arith.constant 0 : i32
    %c0_i32_1 = arith.constant 0 : i32
    %c0_i32_2 = arith.constant 0 : i32
    return %0, %c0_i32_0, %c0_i32_1 : i32, i32, i32
  }
  func.func @transform_5(%arg0: i32) -> (i32, i32, i32) {
    %c0_i32 = arith.constant 0 : i32
    %c0_i32_0 = arith.constant 0 : i32
    %c0_i32_1 = arith.constant 0 : i32
    return %arg0, %c0_i32, %c0_i32_0 : i32, i32, i32
  }
  func.func @transform_6(%arg0: i32) -> (i32, i32, i32) {
    %c0_i32 = arith.constant 0 : i32
    %0 = arith.subi %c0_i32, %arg0 : i32
    %c0_i32_0 = arith.constant 0 : i32
    %c0_i32_1 = arith.constant 0 : i32
    %c0_i32_2 = arith.constant 0 : i32
    return %0, %c0_i32_0, %c0_i32_1 : i32, i32, i32
  }
}

</mosaic_0001>

<llo_original>
// kernel: cws_forward.4
$region0: #{cws_forward.4}
  #allocation0 [shape = 'u32[]', space=smem, size = 0x4, offset = 0x4, fixed_abs, tag = 'smem constant byte address 0x4 - core index']
  #allocation1 [shape = 'u32[144,128]{1,0:T(1,128)}', space=vmem, size = 0x12000, scoped, tag = 'internal scratch']
  %s0 = inlined_call_operand.vmem [shape: bf16[16,40], index: 0, kind: input, shape index: {}]
  %s1 = inlined_call_operand.vmem [shape: bf16[40,1024], index: 1, kind: input, shape index: {}]
  %s2 = inlined_call_operand.vmem [shape: f32[1,1024], index: 2, kind: input, shape index: {}]
  %s3 = inlined_call_operand.vmem [shape: bf16[16,1024], index: 3, kind: output, shape index: {}]
  %s4 = sld [smem:[#allocation0]]
  $region22: #{cws_forward.4} parent=0
    _
  %s6 = ssub.s32 1, %s4
  %s7 = scalar_select 0, %s6, %s4
  // Predicated region
  $region2: #{cws_forward.4} parent=0 // pred_check
    _
  $region3: #{cws_forward.4} parent=0 // pred_check_branch
    %9 = sbr.rel (0) target = $region5
  $region4: #{cws_forward.4} parent=0 // pred_region
    _
  $region5: #{cws_forward.4} parent=0 // pred_fallthru
    _
  // Predicated region
  $region6: #{cws_forward.4} parent=0 // pred_check
    _
  $region7: #{cws_forward.4} parent=0 // pred_check_branch
    %11 = sbr.rel (0) target = $region9
  $region8: #{cws_forward.4} parent=0 // pred_region
    _
  $region9: #{cws_forward.4} parent=0 // pred_fallthru
    _
  // Predicated region
  $region10: #{cws_forward.4} parent=0 // pred_check
    _
  $region11: #{cws_forward.4} parent=0 // pred_check_branch
    %13 = sbr.rel (0) target = $region13
  $region12: #{cws_forward.4} parent=0 // pred_region
    _
  $region13: #{cws_forward.4} parent=0 // pred_fallthru
    _
  %v15 = vld [vmem:[%s0] sm:$0xf]
  %v16 = vld [vmem:[%s0 + $0x4] sm:$0xf]
  %v17 = vld [vmem:[%s1] sm:$0xff]
  %v18 = vld [vmem:[%s1 + $0x8] sm:$0xff]
  %v19 = vld [vmem:[%s1 + $0x10] sm:$0xff]
  %v20 = vld [vmem:[%s1 + $0x18] sm:$0xff]
  %v21 = vld [vmem:[%s1 + $0x20] sm:$0xff]
  %v22 = vld [vmem:[%s1 + $0x28] sm:$0xff]
  %v23 = vld [vmem:[%s1 + $0x30] sm:$0xff]
  %v24 = vld [vmem:[%s1 + $0x38] sm:$0xff]
  %v25 = vld [vmem:[%s1 + $0x40] sm:$0xff]
  %v26 = vld [vmem:[%s1 + $0x48] sm:$0xff]
  %v27 = vld [vmem:[%s1 + $0x50] sm:$0xff]
  %v28 = vld [vmem:[%s1 + $0x58] sm:$0xff]
  %v29 = vld [vmem:[%s1 + $0x60] sm:$0xff]
  %v30 = vld [vmem:[%s1 + $0x68] sm:$0xff]
  %v31 = vld [vmem:[%s1 + $0x70] sm:$0xff]
  %v32 = vld [vmem:[%s1 + $0x78] sm:$0xff]
  %v33 = vld [vmem:[%s1 + $0x80] sm:$0xff]
  %v34 = vld [vmem:[%s1 + $0x88] sm:$0xff]
  %v35 = vld [vmem:[%s1 + $0x90] sm:$0xff]
  %v36 = vld [vmem:[%s1 + $0x98] sm:$0xff]
  %v37 = vld [vmem:[%s2] sm:$0xff]
  %v39 = vlaneseq
  %v40 = vshrl.u32 %v39, 7
  %v41 = vsub.s32 0, %v40
  %v42 = vrot.slane %v37, %v41
  %v43 = vlaneseq
  %v44 = vshrl.u32 %v43, 7
  %v45 = vsub.s32 1, %v44
  %v46 = vrot.slane %v37, %v45
  %v47 = vlaneseq
  %v48 = vshrl.u32 %v47, 7
  %v49 = vsub.s32 2, %v48
  %v50 = vrot.slane %v37, %v49
  %v51 = vlaneseq
  %v52 = vshrl.u32 %v51, 7
  %v53 = vsub.s32 3, %v52
  %v54 = vrot.slane %v37, %v53
  %v55 = vlaneseq
  %v56 = vshrl.u32 %v55, 7
  %v57 = vsub.s32 4, %v56
  %v58 = vrot.slane %v37, %v57
  %v59 = vlaneseq
  %v60 = vshrl.u32 %v59, 7
  %v61 = vsub.s32 5, %v60
  %v62 = vrot.slane %v37, %v61
  %v63 = vlaneseq
  %v64 = vshrl.u32 %v63, 7
  %v65 = vsub.s32 6, %v64
  %v66 = vrot.slane %v37, %v65
  %v67 = vlaneseq
  %v68 = vshrl.u32 %v67, 7
  %v69 = vsub.s32 7, %v68
  %v70 = vrot.slane %v37, %v69
  %v81 = vunpack.c.l.b16 %v15
  %v82 = vunpack.c.l.b16 %v16
  %v83 = vpack.c.b16 %v82, %v81
  %v104 = vunpack.c.l.b16 %v17
  %v105 = vunpack.c.h.b16 %v17
  %v106 = vunpack.c.l.b16 %v18
  %v107 = vunpack.c.h.b16 %v18
  %v108 = vunpack.c.l.b16 %v19
  %v109 = vunpack.c.h.b16 %v19
  %v110 = vunpack.c.l.b16 %v20
  %v111 = vunpack.c.h.b16 %v20
  %v112 = vunpack.c.l.b16 %v21
  %v113 = vunpack.c.h.b16 %v21
  %v114 = vunpack.c.l.b16 %v22
  %v115 = vunpack.c.h.b16 %v22
  %v116 = vunpack.c.l.b16 %v23
  %v117 = vunpack.c.h.b16 %v23
  %v118 = vunpack.c.l.b16 %v24
  %v119 = vunpack.c.h.b16 %v24
  %v120 = vunpack.c.l.b16 %v25
  %v121 = vunpack.c.h.b16 %v25
  %v122 = vunpack.c.l.b16 %v26
  %v123 = vunpack.c.h.b16 %v26
  %v124 = vunpack.c.l.b16 %v27
  %v125 = vunpack.c.h.b16 %v27
  %v126 = vunpack.c.l.b16 %v28
  %v127 = vunpack.c.h.b16 %v28
  %v128 = vunpack.c.l.b16 %v29
  %v129 = vunpack.c.h.b16 %v29
  %v130 = vunpack.c.l.b16 %v30
  %v131 = vunpack.c.h.b16 %v30
  %v132 = vunpack.c.l.b16 %v31
  %v133 = vunpack.c.h.b16 %v31
  %v134 = vunpack.c.l.b16 %v32
  %v135 = vunpack.c.h.b16 %v32
  %v136 = vunpack.c.l.b16 %v33
  %v137 = vunpack.c.h.b16 %v33
  %v138 = vunpack.c.l.b16 %v34
  %v139 = vunpack.c.h.b16 %v34
  %v140 = vunpack.c.l.b16 %v35
  %v141 = vunpack.c.h.b16 %v35
  %v142 = vunpack.c.l.b16 %v36
  %v143 = vunpack.c.h.b16 %v36
  %v144 = vpack.c.b16 %v112, %v104
  %v145 = vpack.c.b16 %v113, %v105
  %v146 = vpack.c.b16 %v114, %v106
  %v147 = vpack.c.b16 %v115, %v107
  %v148 = vpack.c.b16 %v116, %v108
  %v149 = vpack.c.b16 %v117, %v109
  %v150 = vpack.c.b16 %v118, %v110
  %v151 = vpack.c.b16 %v119, %v111
  %v152 = vpack.c.b16 %v128, %v120
  %v153 = vpack.c.b16 %v129, %v121
  %v154 = vpack.c.b16 %v130, %v122
  %v155 = vpack.c.b16 %v131, %v123
  %v156 = vpack.c.b16 %v132, %v124
  %v157 = vpack.c.b16 %v133, %v125
  %v158 = vpack.c.b16 %v134, %v126
  %v159 = vpack.c.b16 %v135, %v127
  %v160 = vpack.c.b16 %v136, %v136
  %v161 = vpack.c.b16 %v137, %v137
  %v162 = vpack.c.b16 %v138, %v138
  %v163 = vpack.c.b16 %v139, %v139
  %v164 = vpack.c.b16 %v140, %v140
  %v165 = vpack.c.b16 %v141, %v141
  %v166 = vpack.c.b16 %v142, %v142
  %v167 = vpack.c.b16 %v143, %v143
  %vm184 = vcmask 326656
  %v186 = vsel %vm184, %v83, 0
  %vm188 = vcmask 1043456
  %v190 = vsel %vm188, %v160, 0
  %v193 = vsel %vm188, %v161, 0
  %v196 = vsel %vm188, %v162, 0
  %v199 = vsel %vm188, %v163, 0
  %v202 = vsel %vm188, %v164, 0
  %v205 = vsel %vm188, %v165, 0
  %v208 = vsel %vm188, %v166, 0
  %v211 = vsel %vm188, %v167, 0
  %213 = vmatprep.subr.bf16.mxu0 %v145
  %214 = vmatpush1.bf16.msra.mxu0 %v144
  %215 = vmatprep.subr.bf16.mxu0 %v153
  %216 = vmatpush1.bf16.msra.mxu0 %v152
  %217 = vmatprep.subr.bf16.mxu0 %v193
  %218 = vmatpush1.bf16.msra.mxu0 %v190
  %219 = vmatprep.subr.bf16.mxu0 0
  %220 = vmatpush1.bf16.msra.mxu0 0
  %221 = vmatprep.subr.bf16.mxu0 0
  %222 = vmatpush1.bf16.msra.mxu0 0
  %223 = vmatprep.subr.bf16.mxu0 0
  %224 = vmatpush1.bf16.msra.mxu0 0
  %225 = vmatprep.subr.bf16.mxu0 0
  %226 = vmatpush1.bf16.msra.mxu0 0
  %227 = vmatprep.subr.bf16.mxu0 0
  %228 = vmatpush1.bf16.msra.mxu0 0
  %229 = vmatprep.subr.bf16.mxu0 0
  %230 = vmatpush1.bf16.msra.mxu0 0
  %231 = vmatprep.subr.bf16.mxu0 0
  %232 = vmatpush1.bf16.msra.mxu0 0
  %233 = vmatprep.subr.bf16.mxu0 0
  %234 = vmatpush1.bf16.msra.mxu0 0
  %235 = vmatprep.subr.bf16.mxu0 0
  %236 = vmatpush1.bf16.msra.mxu0 0
  %237 = vmatprep.subr.bf16.mxu0 0
  %238 = vmatpush1.bf16.msra.mxu0 0
  %239 = vmatprep.subr.bf16.mxu0 0
  %240 = vmatpush1.bf16.msra.mxu0 0
  %241 = vmatprep.subr.bf16.mxu0 0
  %242 = vmatpush1.bf16.msra.mxu0 0
  %243 = vmatprep.subr.bf16.mxu0 0
  %244 = vmatpush1.bf16.msra.mxu0 0
  %245 = vmatprep.mubr.bf16.mxu0 0
  %246 = vmatmul.mubr.bf16.gmra.mrb[0].mxu0 %v186
  %v247 = vpop.f32.mrb[0].mxu0
  %v248 = vadd.f32 %v42, %v247
  %v249 = vpop.f32.mrb[0].mxu0
  %v250 = vadd.f32 %v46, %v249
  %v251 = vpop.f32.mrb[0].mxu0
  %v252 = vadd.f32 %v42, %v251
  %v253 = vpop.f32.mrb[0].mxu0
  %v254 = vadd.f32 %v46, %v253
  %255 = vdwg.mxu0
  %256 = vmatprep.subr.bf16.mxu0 %v147
  %257 = vmatpush1.bf16.msra.mxu0 %v146
  %258 = vmatprep.subr.bf16.mxu0 %v155
  %259 = vmatpush1.bf16.msra.mxu0 %v154
  %260 = vmatprep.subr.bf16.mxu0 %v199
  %261 = vmatpush1.bf16.msra.mxu0 %v196
  %262 = vmatprep.subr.bf16.mxu0 0
  %263 = vmatpush1.bf16.msra.mxu0 0
  %264 = vmatprep.subr.bf16.mxu0 0
  %265 = vmatpush1.bf16.msra.mxu0 0
  %266 = vmatprep.subr.bf16.mxu0 0
  %267 = vmatpush1.bf16.msra.mxu0 0
  %268 = vmatprep.subr.bf16.mxu0 0
  %269 = vmatpush1.bf16.msra.mxu0 0
  %270 = vmatprep.subr.bf16.mxu0 0
  %271 = vmatpush1.bf16.msra.mxu0 0
  %272 = vmatprep.subr.bf16.mxu0 0
  %273 = vmatpush1.bf16.msra.mxu0 0
  %274 = vmatprep.subr.bf16.mxu0 0
  %275 = vmatpush1.bf16.msra.mxu0 0
  %276 = vmatprep.subr.bf16.mxu0 0
  %277 = vmatpush1.bf16.msra.mxu0 0
  %278 = vmatprep.subr.bf16.mxu0 0
  %279 = vmatpush1.bf16.msra.mxu0 0
  %280 = vmatprep.subr.bf16.mxu0 0
  %281 = vmatpush1.bf16.msra.mxu0 0
  %282 = vmatprep.subr.bf16.mxu0 0
  %283 = vmatpush1.bf16.msra.mxu0 0
  %284 = vmatprep.subr.bf16.mxu0 0
  %285 = vmatpush1.bf16.msra.mxu0 0
  %286 = vmatprep.subr.bf16.mxu0 0
  %287 = vmatpush1.bf16.msra.mxu0 0
  %288 = vmatprep.mubr.bf16.mxu0 0
  %289 = vmatmul.mubr.bf16.gmra.mrb[0].mxu0 %v186
  %v290 = vpop.f32.mrb[0].mxu0
  %v291 = vadd.f32 %v50, %v290
  %v292 = vpop.f32.mrb[0].mxu0
  %v293 = vadd.f32 %v54, %v292
  %v294 = vpop.f32.mrb[0].mxu0
  %v295 = vadd.f32 %v50, %v294
  %v296 = vpop.f32.mrb[0].mxu0
  %v297 = vadd.f32 %v54, %v296
  %298 = vdwg.mxu0
  %299 = vmatprep.subr.bf16.mxu0 %v149
  %300 = vmatpush1.bf16.msra.mxu0 %v148
  %301 = vmatprep.subr.bf16.mxu0 %v157
  %302 = vmatpush1.bf16.msra.mxu0 %v156
  %303 = vmatprep.subr.bf16.mxu0 %v205
  %304 = vmatpush1.bf16.msra.mxu0 %v202
  %305 = vmatprep.subr.bf16.mxu0 0
  %306 = vmatpush1.bf16.msra.mxu0 0
  %307 = vmatprep.subr.bf16.mxu0 0
  %308 = vmatpush1.bf16.msra.mxu0 0
  %309 = vmatprep.subr.bf16.mxu0 0
  %310 = vmatpush1.bf16.msra.mxu0 0
  %311 = vmatprep.subr.bf16.mxu0 0
  %312 = vmatpush1.bf16.msra.mxu0 0
  %313 = vmatprep.subr.bf16.mxu0 0
  %314 = vmatpush1.bf16.msra.mxu0 0
  %315 = vmatprep.subr.bf16.mxu0 0
  %316 = vmatpush1.bf16.msra.mxu0 0
  %317 = vmatprep.subr.bf16.mxu0 0
  %318 = vmatpush1.bf16.msra.mxu0 0
  %319 = vmatprep.subr.bf16.mxu0 0
  %320 = vmatpush1.bf16.msra.mxu0 0
  %321 = vmatprep.subr.bf16.mxu0 0
  %322 = vmatpush1.bf16.msra.mxu0 0
  %323 = vmatprep.subr.bf16.mxu0 0
  %324 = vmatpush1.bf16.msra.mxu0 0
  %325 = vmatprep.subr.bf16.mxu0 0
  %326 = vmatpush1.bf16.msra.mxu0 0
  %327 = vmatprep.subr.bf16.mxu0 0
  %328 = vmatpush1.bf16.msra.mxu0 0
  %329 = vmatprep.subr.bf16.mxu0 0
  %330 = vmatpush1.bf16.msra.mxu0 0
  %331 = vmatprep.mubr.bf16.mxu0 0
  %332 = vmatmul.mubr.bf16.gmra.mrb[0].mxu0 %v186
  %v333 = vpop.f32.mrb[0].mxu0
  %v334 = vadd.f32 %v58, %v333
  %v335 = vpop.f32.mrb[0].mxu0
  %v336 = vadd.f32 %v62, %v335
  %v337 = vpop.f32.mrb[0].mxu0
  %v338 = vadd.f32 %v58, %v337
  %v339 = vpop.f32.mrb[0].mxu0
  %v340 = vadd.f32 %v62, %v339
  %341 = vdwg.mxu0
  %342 = vmatprep.subr.bf16.mxu0 %v151
  %343 = vmatpush1.bf16.msra.mxu0 %v150
  %344 = vmatprep.subr.bf16.mxu0 %v159
  %345 = vmatpush1.bf16.msra.mxu0 %v158
  %346 = vmatprep.subr.bf16.mxu0 %v211
  %347 = vmatpush1.bf16.msra.mxu0 %v208
  %348 = vmatprep.subr.bf16.mxu0 0
  %349 = vmatpush1.bf16.msra.mxu0 0
  %350 = vmatprep.subr.bf16.mxu0 0
  %351 = vmatpush1.bf16.msra.mxu0 0
  %352 = vmatprep.subr.bf16.mxu0 0
  %353 = vmatpush1.bf16.msra.mxu0 0
  %354 = vmatprep.subr.bf16.mxu0 0
  %355 = vmatpush1.bf16.msra.mxu0 0
  %356 = vmatprep.subr.bf16.mxu0 0
  %357 = vmatpush1.bf16.msra.mxu0 0
  %358 = vmatprep.subr.bf16.mxu0 0
  %359 = vmatpush1.bf16.msra.mxu0 0
  %360 = vmatprep.subr.bf16.mxu0 0
  %361 = vmatpush1.bf16.msra.mxu0 0
  %362 = vmatprep.subr.bf16.mxu0 0
  %363 = vmatpush1.bf16.msra.mxu0 0
  %364 = vmatprep.subr.bf16.mxu0 0
  %365 = vmatpush1.bf16.msra.mxu0 0
  %366 = vmatprep.subr.bf16.mxu0 0
  %367 = vmatpush1.bf16.msra.mxu0 0
  %368 = vmatprep.subr.bf16.mxu0 0
  %369 = vmatpush1.bf16.msra.mxu0 0
  %370 = vmatprep.subr.bf16.mxu0 0
  %371 = vmatpush1.bf16.msra.mxu0 0
  %372 = vmatprep.subr.bf16.mxu0 0
  %373 = vmatpush1.bf16.msra.mxu0 0
  %374 = vmatprep.mubr.bf16.mxu0 0
  %375 = vmatmul.mubr.bf16.gmra.mrb[0].mxu0 %v186
  %v376 = vpop.f32.mrb[0].mxu0
  %v377 = vadd.f32 %v66, %v376
  %v378 = vpop.f32.mrb[0].mxu0
  %v379 = vadd.f32 %v70, %v378
  %v380 = vpop.f32.mrb[0].mxu0
  %v381 = vadd.f32 %v66, %v380
  %v382 = vpop.f32.mrb[0].mxu0
  %v383 = vadd.f32 %v70, %v382
  %384 = vdwg.mxu0
  %v385 = vpack.c.bf16 %v252, %v248
  %v386 = vpack.c.bf16 %v254, %v250
  %v387 = vpack.c.bf16 %v295, %v291
  %v388 = vpack.c.bf16 %v297, %v293
  %v389 = vpack.c.bf16 %v338, %v334
  %v390 = vpack.c.bf16 %v340, %v336
  %v391 = vpack.c.bf16 %v381, %v377
  %v392 = vpack.c.bf16 %v383, %v379
  %v401 = vunpack.c.l.b16 %v385
  %v402 = vunpack.c.l.b16 %v386
  %v403 = vunpack.c.l.b16 %v387
  %v404 = vunpack.c.l.b16 %v388
  %v405 = vunpack.c.l.b16 %v389
  %v406 = vunpack.c.l.b16 %v390
  %v407 = vunpack.c.l.b16 %v391
  %v408 = vunpack.c.l.b16 %v392
  %v409 = vunpack.c.h.b16 %v385
  %v410 = vunpack.c.h.b16 %v386
  %v411 = vunpack.c.h.b16 %v387
  %v412 = vunpack.c.h.b16 %v388
  %v413 = vunpack.c.h.b16 %v389
  %v414 = vunpack.c.h.b16 %v390
  %v415 = vunpack.c.h.b16 %v391
  %v416 = vunpack.c.h.b16 %v392
  %v417 = vpack.c.b16 %v402, %v401
  %v418 = vpack.c.b16 %v404, %v403
  %v419 = vpack.c.b16 %v406, %v405
  %v420 = vpack.c.b16 %v408, %v407
  %v421 = vpack.c.b16 %v410, %v409
  %v422 = vpack.c.b16 %v412, %v411
  %v423 = vpack.c.b16 %v414, %v413
  %v424 = vpack.c.b16 %v416, %v415
  %433 = vst [vmem:[%s3] sm:$0xff] %v417
  %434 = vst [vmem:[%s3 + $0x8] sm:$0xff] %v418
  %435 = vst [vmem:[%s3 + $0x10] sm:$0xff] %v419
  %436 = vst [vmem:[%s3 + $0x18] sm:$0xff] %v420
  %437 = vst [vmem:[%s3 + $0x20] sm:$0xff] %v421
  %438 = vst [vmem:[%s3 + $0x28] sm:$0xff] %v422
  %439 = vst [vmem:[%s3 + $0x30] sm:$0xff] %v423
  %440 = vst [vmem:[%s3 + $0x38] sm:$0xff] %v424
  // Predicated region
  $region14: #{cws_forward.4} parent=0 // pred_check
    _
  $region15: #{cws_forward.4} parent=0 // pred_check_branch
    %442 = sbr.rel (0) target = $region17
  $region16: #{cws_forward.4} parent=0 // pred_region
    _
  $region17: #{cws_forward.4} parent=0 // pred_fallthru
    _
  // Predicated region
  $region18: #{cws_forward.4} parent=0 // pred_check
    _
  $region19: #{cws_forward.4} parent=0 // pred_check_branch
    %444 = sbr.rel (0) target = $region21
  $region20: #{cws_forward.4} parent=0 // pred_region
    _
  $region21: #{cws_forward.4} parent=0 // pred_fallthru
    _

// kernel: cws_forward.6
$region0: #{cws_forward.6}
  #allocation0 [shape = 'u32[]', space=smem, size = 0x4, offset = 0x4, fixed_abs, tag = 'smem constant byte address 0x4 - core index']
  #allocation1 [shape = 'u32[144,128]{1,0:T(1,128)}', space=vmem, size = 0x12000, scoped, tag = 'internal scratch']
  %s0 = inlined_call_operand.vmem [shape: bf16[16,128], index: 0, kind: input, shape index: {}]
  %s1 = inlined_call_operand.vmem [shape: bf16[16,128], index: 1, kind: input, shape index: {}]
  %s2 = inlined_call_operand.vmem [shape: bf16[128,128], index: 2, kind: input, shape index: {}]
  %s3 = inlined_call_operand.vmem [shape: bf16[128,128], index: 3, kind: input, shape index: {}]
  %s4 = inlined_call_operand.vmem [shape: f32[1,128], index: 4, kind: input, shape index: {}]
  %s5 = inlined_call_operand.vmem [shape: f32[16,128], index: 5, kind: output, shape index: {}]
  %s6 = sld [smem:[#allocation0]]
  $region30: #{cws_forward.6} parent=0
    _
  %s8 = ssub.s32 1, %s6
  %s9 = scalar_select 0, %s8, %s6
  // Predicated region
  $region2: #{cws_forward.6} parent=0 // pred_check
    _
  $region3: #{cws_forward.6} parent=0 // pred_check_branch
    %11 = sbr.rel (0) target = $region5
  $region4: #{cws_forward.6} parent=0 // pred_region
    _
  $region5: #{cws_forward.6} parent=0 // pred_fallthru
    _
  // Predicated region
  $region6: #{cws_forward.6} parent=0 // pred_check
    _
  $region7: #{cws_forward.6} parent=0 // pred_check_branch
    %13 = sbr.rel (0) target = $region9
  $region8: #{cws_forward.6} parent=0 // pred_region
    _
  $region9: #{cws_forward.6} parent=0 // pred_fallthru
    _
  // Predicated region
  $region10: #{cws_forward.6} parent=0 // pred_check
    _
  $region11: #{cws_forward.6} parent=0 // pred_check_branch
    %15 = sbr.rel (0) target = $region13
  $region12: #{cws_forward.6} parent=0 // pred_region
    _
  $region13: #{cws_forward.6} parent=0 // pred_fallthru
    _
  // Predicated region
  $region14: #{cws_forward.6} parent=0 // pred_check
    _
  $region15: #{cws_forward.6} parent=0 // pred_check_branch
    %17 = sbr.rel (0) target = $region17
  $region16: #{cws_forward.6} parent=0 // pred_region
    _
  $region17: #{cws_forward.6} parent=0 // pred_fallthru
    _
  // Predicated region
  $region18: #{cws_forward.6} parent=0 // pred_check
    _
  $region19: #{cws_forward.6} parent=0 // pred_check_branch
    %19 = sbr.rel (0) target = $region21
  $region20: #{cws_forward.6} parent=0 // pred_region
    _
  $region21: #{cws_forward.6} parent=0 // pred_fallthru
    _
  %v21 = vld [vmem:[%s0] sm:$0xf]
  %v22 = vld [vmem:[%s0 + $0x4] sm:$0xf]
  %v23 = vld [vmem:[%s2] sm:$0xf]
  %v24 = vld [vmem:[%s2 + $0x4] sm:$0xf]
  %v25 = vld [vmem:[%s2 + $0x8] sm:$0xf]
  %v26 = vld [vmem:[%s2 + $0xc] sm:$0xf]
  %v27 = vld [vmem:[%s2 + $0x10] sm:$0xf]
  %v28 = vld [vmem:[%s2 + $0x14] sm:$0xf]
  %v29 = vld [vmem:[%s2 + $0x18] sm:$0xf]
  %v30 = vld [vmem:[%s2 + $0x1c] sm:$0xf]
  %v31 = vld [vmem:[%s2 + $0x20] sm:$0xf]
  %v32 = vld [vmem:[%s2 + $0x24] sm:$0xf]
  %v33 = vld [vmem:[%s2 + $0x28] sm:$0xf]
  %v34 = vld [vmem:[%s2 + $0x2c] sm:$0xf]
  %v35 = vld [vmem:[%s2 + $0x30] sm:$0xf]
  %v36 = vld [vmem:[%s2 + $0x34] sm:$0xf]
  %v37 = vld [vmem:[%s2 + $0x38] sm:$0xf]
  %v38 = vld [vmem:[%s2 + $0x3c] sm:$0xf]
  %v39 = vld [vmem:[%s1] sm:$0xf]
  %v40 = vld [vmem:[%s1 + $0x4] sm:$0xf]
  %v41 = vld [vmem:[%s3] sm:$0xf]
  %v42 = vld [vmem:[%s3 + $0x4] sm:$0xf]
  %v43 = vld [vmem:[%s3 + $0x8] sm:$0xf]
  %v44 = vld [vmem:[%s3 + $0xc] sm:$0xf]
  %v45 = vld [vmem:[%s3 + $0x10] sm:$0xf]
  %v46 = vld [vmem:[%s3 + $0x14] sm:$0xf]
  %v47 = vld [vmem:[%s3 + $0x18] sm:$0xf]
  %v48 = vld [vmem:[%s3 + $0x1c] sm:$0xf]
  %v49 = vld [vmem:[%s3 + $0x20] sm:$0xf]
  %v50 = vld [vmem:[%s3 + $0x24] sm:$0xf]
  %v51 = vld [vmem:[%s3 + $0x28] sm:$0xf]
  %v52 = vld [vmem:[%s3 + $0x2c] sm:$0xf]
  %v53 = vld [vmem:[%s3 + $0x30] sm:$0xf]
  %v54 = vld [vmem:[%s3 + $0x34] sm:$0xf]
  %v55 = vld [vmem:[%s3 + $0x38] sm:$0xf]
  %v56 = vld [vmem:[%s3 + $0x3c] sm:$0xf]
  %v59 = vunpack.c.l.b16 %v39
  %v60 = vunpack.c.l.b16 %v40
  %v61 = vpack.c.b16 %v60, %v59
  %v79 = vunpack.c.l.b16 %v41
  %v80 = vunpack.c.l.b16 %v42
  %v81 = vunpack.c.l.b16 %v43
  %v82 = vunpack.c.l.b16 %v44
  %v83 = vunpack.c.l.b16 %v45
  %v84 = vunpack.c.l.b16 %v46
  %v85 = vunpack.c.l.b16 %v47
  %v86 = vunpack.c.l.b16 %v48
  %v87 = vunpack.c.l.b16 %v49
  %v88 = vunpack.c.l.b16 %v50
  %v89 = vunpack.c.l.b16 %v51
  %v90 = vunpack.c.l.b16 %v52
  %v91 = vunpack.c.l.b16 %v53
  %v92 = vunpack.c.l.b16 %v54
  %v93 = vunpack.c.l.b16 %v55
  %v94 = vunpack.c.l.b16 %v56
  %v95 = vpack.c.b16 %v80, %v79
  %v96 = vpack.c.b16 %v82, %v81
  %v97 = vpack.c.b16 %v84, %v83
  %v98 = vpack.c.b16 %v86, %v85
  %v99 = vpack.c.b16 %v88, %v87
  %v100 = vpack.c.b16 %v90, %v89
  %v101 = vpack.c.b16 %v92, %v91
  %v102 = vpack.c.b16 %v94, %v93
  %111 = vmatprep.subr.bf16.mxu0 0
  %112 = vmatpush1.bf16.msra.mxu0 %v95
  %113 = vmatprep.subr.bf16.mxu0 0
  %114 = vmatpush1.bf16.msra.mxu0 %v96
  %115 = vmatprep.subr.bf16.mxu0 0
  %116 = vmatpush1.bf16.msra.mxu0 %v97
  %117 = vmatprep.subr.bf16.mxu0 0
  %118 = vmatpush1.bf16.msra.mxu0 %v98
  %119 = vmatprep.subr.bf16.mxu0 0
  %120 = vmatpush1.bf16.msra.mxu0 %v99
  %121 = vmatprep.subr.bf16.mxu0 0
  %122 = vmatpush1.bf16.msra.mxu0 %v100
  %123 = vmatprep.subr.bf16.mxu0 0
  %124 = vmatpush1.bf16.msra.mxu0 %v101
  %125 = vmatprep.subr.bf16.mxu0 0
  %126 = vmatpush1.bf16.msra.mxu0 %v102
  %127 = vmatprep.subr.bf16.mxu0 0
  %128 = vmatpush1.bf16.msra.mxu0 0
  %129 = vmatprep.subr.bf16.mxu0 0
  %130 = vmatpush1.bf16.msra.mxu0 0
  %131 = vmatprep.subr.bf16.mxu0 0
  %132 = vmatpush1.bf16.msra.mxu0 0
  %133 = vmatprep.subr.bf16.mxu0 0
  %134 = vmatpush1.bf16.msra.mxu0 0
  %135 = vmatprep.subr.bf16.mxu0 0
  %136 = vmatpush1.bf16.msra.mxu0 0
  %137 = vmatprep.subr.bf16.mxu0 0
  %138 = vmatpush1.bf16.msra.mxu0 0
  %139 = vmatprep.subr.bf16.mxu0 0
  %140 = vmatpush1.bf16.msra.mxu0 0
  %141 = vmatprep.subr.bf16.mxu0 0
  %142 = vmatpush1.bf16.msra.mxu0 0
  %143 = vmatprep.mubr.bf16.mxu0 0
  %144 = vmatmul.mubr.bf16.gmra.mrb[0].mxu0 %v61
  %v145 = vpop.f32.mrb[0].mxu0
  %v146 = vadd.f32 0.0, %v145
  %v147 = vpop.f32.mrb[0].mxu0
  %v148 = vpop.f32.mrb[0].mxu0
  %v149 = vadd.f32 0.0, %v148
  %v150 = vpop.f32.mrb[0].mxu0
  %151 = vdwg.mxu0
  %v154 = vunpack.c.l.b16 %v21
  %v155 = vunpack.c.l.b16 %v22
  %v156 = vpack.c.b16 %v155, %v154
  %v174 = vunpack.c.l.b16 %v23
  %v175 = vunpack.c.l.b16 %v24
  %v176 = vunpack.c.l.b16 %v25
  %v177 = vunpack.c.l.b16 %v26
  %v178 = vunpack.c.l.b16 %v27
  %v179 = vunpack.c.l.b16 %v28
  %v180 = vunpack.c.l.b16 %v29
  %v181 = vunpack.c.l.b16 %v30
  %v182 = vunpack.c.l.b16 %v31
  %v183 = vunpack.c.l.b16 %v32
  %v184 = vunpack.c.l.b16 %v33
  %v185 = vunpack.c.l.b16 %v34
  %v186 = vunpack.c.l.b16 %v35
  %v187 = vunpack.c.l.b16 %v36
  %v188 = vunpack.c.l.b16 %v37
  %v189 = vunpack.c.l.b16 %v38
  %v190 = vpack.c.b16 %v175, %v174
  %v191 = vpack.c.b16 %v177, %v176
  %v192 = vpack.c.b16 %v179, %v178
  %v193 = vpack.c.b16 %v181, %v180
  %v194 = vpack.c.b16 %v183, %v182
  %v195 = vpack.c.b16 %v185, %v184
  %v196 = vpack.c.b16 %v187, %v186
  %v197 = vpack.c.b16 %v189, %v188
  %206 = vmatprep.subr.bf16.mxu0 0
  %207 = vmatpush1.bf16.msra.mxu0 %v190
  %208 = vmatprep.subr.bf16.mxu0 0
  %209 = vmatpush1.bf16.msra.mxu0 %v191
  %210 = vmatprep.subr.bf16.mxu0 0
  %211 = vmatpush1.bf16.msra.mxu0 %v192
  %212 = vmatprep.subr.bf16.mxu0 0
  %213 = vmatpush1.bf16.msra.mxu0 %v193
  %214 = vmatprep.subr.bf16.mxu0 0
  %215 = vmatpush1.bf16.msra.mxu0 %v194
  %216 = vmatprep.subr.bf16.mxu0 0
  %217 = vmatpush1.bf16.msra.mxu0 %v195
  %218 = vmatprep.subr.bf16.mxu0 0
  %219 = vmatpush1.bf16.msra.mxu0 %v196
  %220 = vmatprep.subr.bf16.mxu0 0
  %221 = vmatpush1.bf16.msra.mxu0 %v197
  %222 = vmatprep.subr.bf16.mxu0 0
  %223 = vmatpush1.bf16.msra.mxu0 0
  %224 = vmatprep.subr.bf16.mxu0 0
  %225 = vmatpush1.bf16.msra.mxu0 0
  %226 = vmatprep.subr.bf16.mxu0 0
  %227 = vmatpush1.bf16.msra.mxu0 0
  %228 = vmatprep.subr.bf16.mxu0 0
  %229 = vmatpush1.bf16.msra.mxu0 0
  %230 = vmatprep.subr.bf16.mxu0 0
  %231 = vmatpush1.bf16.msra.mxu0 0
  %232 = vmatprep.subr.bf16.mxu0 0
  %233 = vmatpush1.bf16.msra.mxu0 0
  %234 = vmatprep.subr.bf16.mxu0 0
  %235 = vmatpush1.bf16.msra.mxu0 0
  %236 = vmatprep.subr.bf16.mxu0 0
  %237 = vmatpush1.bf16.msra.mxu0 0
  %238 = vmatprep.mubr.bf16.mxu0 0
  %239 = vmatmul.mubr.bf16.gmra.mrb[0].mxu0 %v156
  %v240 = vpop.f32.mrb[0].mxu0
  %v241 = vadd.f32 %v146, %v240
  %v242 = vpop.f32.mrb[0].mxu0
  %v243 = vpop.f32.mrb[0].mxu0
  %v244 = vadd.f32 %v149, %v243
  %v245 = vpop.f32.mrb[0].mxu0
  %246 = vdwg.mxu0
  %v247 = vld [vmem:[%s4] sm:$0x1]
  %v249 = vlaneseq
  %v250 = vshrl.u32 %v249, 7
  %v251 = vsub.s32 0, %v250
  %v252 = vrot.slane %v247, %v251
  %v254 = vadd.f32 %v241, %v252
  %v255 = vadd.f32 %v244, %v252
  %256 = vst [vmem:[%s5] sm:$0xff] %v254
  %257 = vst [vmem:[%s5 + $0x8] sm:$0xff] %v255
  // Predicated region
  $region22: #{cws_forward.6} parent=0 // pred_check
    _
  $region23: #{cws_forward.6} parent=0 // pred_check_branch
    %259 = sbr.rel (0) target = $region25
  $region24: #{cws_forward.6} parent=0 // pred_region
    _
  $region25: #{cws_forward.6} parent=0 // pred_fallthru
    _
  // Predicated region
  $region26: #{cws_forward.6} parent=0 // pred_check
    _
  $region27: #{cws_forward.6} parent=0 // pred_check_branch
    %261 = sbr.rel (0) target = $region29
  $region28: #{cws_forward.6} parent=0 // pred_region
    _
  $region29: #{cws_forward.6} parent=0 // pred_fallthru
    _

// kernel: custom-call.8
$region0: #{custom-call.8}
  %s0 = inlined_call_operand.vmem [shape: s32[7,2], index: 0, kind: output, shape index: {}]

// kernel: cws_forward.7
$region0: #{cws_forward.7}
  #allocation0 [shape = 'u32[]', space=smem, size = 0x4, offset = 0x4, fixed_abs, tag = 'smem constant byte address 0x4 - core index']
  #allocation1 [shape = 'u32[144,128]{1,0:T(1,128)}', space=vmem, size = 0x12000, scoped, tag = 'internal scratch']
  #allocation2 [shape = 'f32[2,128]{1,0:T(2,128)}', space=vmem, size = 0x400, scoped, tag = 'scratch operand']
  %s0 = inlined_call_operand.vmem [shape: f32[8,2,128], index: 0, kind: input, shape index: {}]
  %s1 = inlined_call_operand.vmem [shape: f32[8,128], index: 1, kind: input, shape index: {}]
  %s2 = inlined_call_operand.vmem [shape: f32[8,2,1], index: 2, kind: input, shape index: {}]
  %s3 = inlined_call_operand.vmem [shape: s32[8,2,8], index: 3, kind: output, shape index: {0}]
  %s4 = inlined_call_operand.vmem [shape: f32[2,128], index: 4, kind: output, shape index: {1}]
  %5 = xla_tuple %s3, %s4
  %s6 = sld [smem:[#allocation0]]
  $region38: #{cws_forward.7} parent=0
    _
  %s8 = ssub.s32 1, %s6
  %s9 = scalar_select 0, %s8, %s6
  // Predicated region
  $region2: #{cws_forward.7} parent=0 // pred_check
    _
  $region3: #{cws_forward.7} parent=0 // pred_check_branch
    %11 = sbr.rel (0) target = $region5
  $region4: #{cws_forward.7} parent=0 // pred_region
    _
  $region5: #{cws_forward.7} parent=0 // pred_fallthru
    _
  // Predicated region
  $region6: #{cws_forward.7} parent=0 // pred_check
    _
  $region7: #{cws_forward.7} parent=0 // pred_check_branch
    %13 = sbr.rel (0) target = $region9
  $region8: #{cws_forward.7} parent=0 // pred_region
    _
  $region9: #{cws_forward.7} parent=0 // pred_fallthru
    _
  // Predicated region
  $region10: #{cws_forward.7} parent=0 // pred_check
    _
  $region11: #{cws_forward.7} parent=0 // pred_check_branch
    %15 = sbr.rel (0) target = $region13
  $region12: #{cws_forward.7} parent=0 // pred_region
    _
  $region13: #{cws_forward.7} parent=0 // pred_fallthru
    _
  %v16 = vld [vmem:[%s1] sm:$0xff]
  %p17 = scmp.eq.s32.totalorder 0, 0
  // Predicated region
  $region14: #{cws_forward.7} parent=0 // pred_check
    %p18 = pneg %p17
  $region15: #{cws_forward.7} parent=0 // pred_check_branch
    %20 = sbr.rel (%p18) target = $region17
  $region16: #{cws_forward.7} parent=0 // pred_region
    %v21 = vlaneseq
    %v22 = vand.u32 %v21, 127
    %vm23 = vcmp.eq.s32.totalorder %v22, 4
    %v24 = vsel %vm23, 0.0, -1e+09
    %25 = vst [vmem:[#allocation2] sm:$0x3] %v24
  $region17: #{cws_forward.7} parent=0 // pred_fallthru
    _
  %v26 = vlaneseq
  %v27 = vand.u32 %v26, 127
  %v28 = vld [vmem:[%s0] sm:$0x3]
  %v29 = vld [vmem:[%s2] sm:$0x3]
  %v30 = vlaneseq
  %v31 = vshrl.u32 %v30, 7
  %v32 = vsub.s32 0, %v31
  %v33 = vrot.slane %v28, %v32
  %35 = vbcast.lane.b32.xlu0 %v33, 256
  %v36 = vpop.permute.xlu0 %35
  %v37 = vlaneseq
  %v38 = vshrl.u32 %v37, 7
  %v39 = vsub.s32 1, %v38
  %v40 = vrot.slane %v28, %v39
  %42 = vbcast.lane.b32.xlu0 %v40, 256
  %v43 = vpop.permute.xlu0 %42
  %v44 = vld [vmem:[#allocation2] sm:$0x3]
  %v47 = vunpack.c.l.s4 1966171168
  %v48 = vunpack.c.0.s8 %v47
  %v49 = vlaneseq
  %v50 = vshrl.u32 %v49, 7
  %v51 = vsub.s32 %v48, %v50
  %v52 = vrot.slane %v44, %v51
  %v53 = vcombine.high %v52, %v52
  %v55 = vunpack.c.l.s4 1966171168
  %v56 = vunpack.c.0.s8 %v55
  %v57 = vlaneseq
  %v58 = vshrl.u32 %v57, 7
  %v59 = vsub.s32 %v56, %v58
  %v60 = vrot.slane %v52, %v59
  %v62 = vunpack.c.l.s4 1966171168
  %v63 = vunpack.c.0.s8 %v62
  %v64 = vlaneseq
  %v65 = vshrl.u32 %v64, 7
  %v66 = vsub.s32 %v63, %v65
  %v67 = vrot.slane %v53, %v66
  %v68 = vlaneseq
  %v69 = vshrl.u32 %v68, 7
  %v70 = vsub.s32 0, %v69
  %v71 = vrot.slane %v60, %v70
  %v72 = vlaneseq
  %v73 = vshrl.u32 %v72, 7
  %v74 = vsub.s32 0, %v73
  %v75 = vrot.slane %v67, %v74
  %v78 = vadd.f32 %v71, %v16
  %v79 = vadd.f32 %v75, %v16
  %v80 = vadd.f32 %v78, %v36
  %v81 = vadd.f32 %v79, %v43
  %82 = vmax.xlane.f32.xlu0 %v80
  %v83 = vpop.xlane.xlu0 %82
  %84 = vmax.xlane.f32.xlu0 %v81
  %v85 = vpop.xlane.xlu0 %84
  %86 = vmax.index.xlane.f32.xlu0 %v80
  %v87 = vpop.xlane.xlu0 %86
  %88 = vmax.index.xlane.f32.xlu0 %v81
  %v89 = vpop.xlane.xlu0 %88
  %vm90 = vcmp.gt.f32.partialorder %v29, 0.0
  %v91 = vsel %vm90, 1, 0
  %92 = vset.pattern.permute.xlu0 0
  %93 = vperm.xlu0 %92, %v91
  %v94 = vpop.permute.xlu0 %93
  %vm95 = vcmp.eq.s32.totalorder %v94, 1
  %v98 = vlaneseq
  %v99 = vshrl.u32 %v98, 7
  %v100 = vsub.s32 %v27, %v99
  %v101 = vrot.slane %v83, %v100
  %v102 = vlaneseq
  %v103 = vshrl.u32 %v102, 7
  %v104 = vsub.s32 %v27, %v103
  %v105 = vrot.slane %v85, %v104
  %vm106 = vcmask 1041409
  %v107 = vsel %vm106, %v105, %v101
  %v109 = vsel %vm95, %v107, %v44
  %vm110 = vcmask 58368
  %111 = vst.msk [vmem:[#allocation2] sm:$0x3] %vm110, %v109
  %v112 = vlaneseq
  %v113 = vshrl.u32 %v112, 7
  %v114 = vsub.s32 %v27, %v113
  %v115 = vrot.slane %v87, %v114
  %v116 = vlaneseq
  %v117 = vshrl.u32 %v116, 7
  %v118 = vsub.s32 %v27, %v117
  %v119 = vrot.slane %v89, %v118
  %v120 = vsel %vm106, %v119, %v115
  %v121 = vsel %vm95, %v120, %v27
  %122 = vst.msk [vmem:[%s3] sm:$0x3] %vm110, %v121
  %s123 = scalar_lea.vmem %s0, 2
  %v124 = vld [vmem:[%s123] sm:$0x3]
  %s125 = scalar_lea.vmem %s2, 2
  %v126 = vld [vmem:[%s125] sm:$0x3]
  %v127 = vlaneseq
  %v128 = vshrl.u32 %v127, 7
  %v129 = vsub.s32 0, %v128
  %v130 = vrot.slane %v124, %v129
  %132 = vbcast.lane.b32.xlu0 %v130, 256
  %v133 = vpop.permute.xlu0 %132
  %v134 = vlaneseq
  %v135 = vshrl.u32 %v134, 7
  %v136 = vsub.s32 1, %v135
  %v137 = vrot.slane %v124, %v136
  %139 = vbcast.lane.b32.xlu0 %v137, 256
  %v140 = vpop.permute.xlu0 %139
  %v141 = vld [vmem:[#allocation2] sm:$0x3]
  %v144 = vunpack.c.l.s4 1966171168
  %v145 = vunpack.c.0.s8 %v144
  %v146 = vlaneseq
  %v147 = vshrl.u32 %v146, 7
  %v148 = vsub.s32 %v145, %v147
  %v149 = vrot.slane %v141, %v148
  %v150 = vcombine.high %v149, %v149
  %v152 = vunpack.c.l.s4 1966171168
  %v153 = vunpack.c.0.s8 %v152
  %v154 = vlaneseq
  %v155 = vshrl.u32 %v154, 7
  %v156 = vsub.s32 %v153, %v155
  %v157 = vrot.slane %v149, %v156
  %v159 = vunpack.c.l.s4 1966171168
  %v160 = vunpack.c.0.s8 %v159
  %v161 = vlaneseq
  %v162 = vshrl.u32 %v161, 7
  %v163 = vsub.s32 %v160, %v162
  %v164 = vrot.slane %v150, %v163
  %v165 = vlaneseq
  %v166 = vshrl.u32 %v165, 7
  %v167 = vsub.s32 0, %v166
  %v168 = vrot.slane %v157, %v167
  %v169 = vlaneseq
  %v170 = vshrl.u32 %v169, 7
  %v171 = vsub.s32 0, %v170
  %v172 = vrot.slane %v164, %v171
  %v175 = vadd.f32 %v168, %v16
  %v176 = vadd.f32 %v172, %v16
  %v177 = vadd.f32 %v175, %v133
  %v178 = vadd.f32 %v176, %v140
  %179 = vmax.xlane.f32.xlu0 %v177
  %v180 = vpop.xlane.xlu0 %179
  %181 = vmax.xlane.f32.xlu0 %v178
  %v182 = vpop.xlane.xlu0 %181
  %183 = vmax.index.xlane.f32.xlu0 %v177
  %v184 = vpop.xlane.xlu0 %183
  %185 = vmax.index.xlane.f32.xlu0 %v178
  %v186 = vpop.xlane.xlu0 %185
  %vm187 = vcmp.gt.f32.partialorder %v126, 0.0
  %v188 = vsel %vm187, 1, 0
  %189 = vset.pattern.permute.xlu0 0
  %190 = vperm.xlu0 %189, %v188
  %v191 = vpop.permute.xlu0 %190
  %vm192 = vcmp.eq.s32.totalorder %v191, 1
  %v195 = vlaneseq
  %v196 = vshrl.u32 %v195, 7
  %v197 = vsub.s32 %v27, %v196
  %v198 = vrot.slane %v180, %v197
  %v199 = vlaneseq
  %v200 = vshrl.u32 %v199, 7
  %v201 = vsub.s32 %v27, %v200
  %v202 = vrot.slane %v182, %v201
  %v203 = vsel %vm106, %v202, %v198
  %v205 = vsel %vm192, %v203, %v141
  %206 = vst.msk [vmem:[#allocation2] sm:$0x3] %vm110, %v205
  %v207 = vlaneseq
  %v208 = vshrl.u32 %v207, 7
  %v209 = vsub.s32 %v27, %v208
  %v210 = vrot.slane %v184, %v209
  %v211 = vlaneseq
  %v212 = vshrl.u32 %v211, 7
  %v213 = vsub.s32 %v27, %v212
  %v214 = vrot.slane %v186, %v213
  %v215 = vsel %vm106, %v214, %v210
  %v216 = vsel %vm192, %v215, %v27
  %s217 = scalar_lea.vmem %s3, 2
  %218 = vst.msk [vmem:[%s217] sm:$0x3] %vm110, %v216
  %s219 = scalar_lea.vmem %s0, 4
  %v220 = vld [vmem:[%s219] sm:$0x3]
  %s221 = scalar_lea.vmem %s2, 4
  %v222 = vld [vmem:[%s221] sm:$0x3]
  %v223 = vlaneseq
  %v224 = vshrl.u32 %v223, 7
  %v225 = vsub.s32 0, %v224
  %v226 = vrot.slane %v220, %v225
  %228 = vbcast.lane.b32.xlu0 %v226, 256
  %v229 = vpop.permute.xlu0 %228
  %v230 = vlaneseq
  %v231 = vshrl.u32 %v230, 7
  %v232 = vsub.s32 1, %v231
  %v233 = vrot.slane %v220, %v232
  %235 = vbcast.lane.b32.xlu0 %v233, 256
  %v236 = vpop.permute.xlu0 %235
  %v237 = vld [vmem:[#allocation2] sm:$0x3]
  %v240 = vunpack.c.l.s4 1966171168
  %v241 = vunpack.c.0.s8 %v240
  %v242 = vlaneseq
  %v243 = vshrl.u32 %v242, 7
  %v244 = vsub.s32 %v241, %v243
  %v245 = vrot.slane %v237, %v244
  %v246 = vcombine.high %v245, %v245
  %v248 = vunpack.c.l.s4 1966171168
  %v249 = vunpack.c.0.s8 %v248
  %v250 = vlaneseq
  %v251 = vshrl.u32 %v250, 7
  %v252 = vsub.s32 %v249, %v251
  %v253 = vrot.slane %v245, %v252
  %v255 = vunpack.c.l.s4 1966171168
  %v256 = vunpack.c.0.s8 %v255
  %v257 = vlaneseq
  %v258 = vshrl.u32 %v257, 7
  %v259 = vsub.s32 %v256, %v258
  %v260 = vrot.slane %v246, %v259
  %v261 = vlaneseq
  %v262 = vshrl.u32 %v261, 7
  %v263 = vsub.s32 0, %v262
  %v264 = vrot.slane %v253, %v263
  %v265 = vlaneseq
  %v266 = vshrl.u32 %v265, 7
  %v267 = vsub.s32 0, %v266
  %v268 = vrot.slane %v260, %v267
  %v271 = vadd.f32 %v264, %v16
  %v272 = vadd.f32 %v268, %v16
  %v273 = vadd.f32 %v271, %v229
  %v274 = vadd.f32 %v272, %v236
  %275 = vmax.xlane.f32.xlu0 %v273
  %v276 = vpop.xlane.xlu0 %275
  %277 = vmax.xlane.f32.xlu0 %v274
  %v278 = vpop.xlane.xlu0 %277
  %279 = vmax.index.xlane.f32.xlu0 %v273
  %v280 = vpop.xlane.xlu0 %279
  %281 = vmax.index.xlane.f32.xlu0 %v274
  %v282 = vpop.xlane.xlu0 %281
  %vm283 = vcmp.gt.f32.partialorder %v222, 0.0
  %v284 = vsel %vm283, 1, 0
  %285 = vset.pattern.permute.xlu0 0
  %286 = vperm.xlu0 %285, %v284
  %v287 = vpop.permute.xlu0 %286
  %vm288 = vcmp.eq.s32.totalorder %v287, 1
  %v291 = vlaneseq
  %v292 = vshrl.u32 %v291, 7
  %v293 = vsub.s32 %v27, %v292
  %v294 = vrot.slane %v276, %v293
  %v295 = vlaneseq
  %v296 = vshrl.u32 %v295, 7
  %v297 = vsub.s32 %v27, %v296
  %v298 = vrot.slane %v278, %v297
  %v299 = vsel %vm106, %v298, %v294
  %v301 = vsel %vm288, %v299, %v237
  %302 = vst.msk [vmem:[#allocation2] sm:$0x3] %vm110, %v301
  %v303 = vlaneseq
  %v304 = vshrl.u32 %v303, 7
  %v305 = vsub.s32 %v27, %v304
  %v306 = vrot.slane %v280, %v305
  %v307 = vlaneseq
  %v308 = vshrl.u32 %v307, 7
  %v309 = vsub.s32 %v27, %v308
  %v310 = vrot.slane %v282, %v309
  %v311 = vsel %vm106, %v310, %v306
  %v312 = vsel %vm288, %v311, %v27
  %s313 = scalar_lea.vmem %s3, 4
  %314 = vst.msk [vmem:[%s313] sm:$0x3] %vm110, %v312
  %s315 = scalar_lea.vmem %s0, 6
  %v316 = vld [vmem:[%s315] sm:$0x3]
  %s317 = scalar_lea.vmem %s2, 6
  %v318 = vld [vmem:[%s317] sm:$0x3]
  %v319 = vlaneseq
  %v320 = vshrl.u32 %v319, 7
  %v321 = vsub.s32 0, %v320
  %v322 = vrot.slane %v316, %v321
  %324 = vbcast.lane.b32.xlu0 %v322, 256
  %v325 = vpop.permute.xlu0 %324
  %v326 = vlaneseq
  %v327 = vshrl.u32 %v326, 7
  %v328 = vsub.s32 1, %v327
  %v329 = vrot.slane %v316, %v328
  %331 = vbcast.lane.b32.xlu0 %v329, 256
  %v332 = vpop.permute.xlu0 %331
  %v333 = vld [vmem:[#allocation2] sm:$0x3]
  %v336 = vunpack.c.l.s4 1966171168
  %v337 = vunpack.c.0.s8 %v336
  %v338 = vlaneseq
  %v339 = vshrl.u32 %v338, 7
  %v340 = vsub.s32 %v337, %v339
  %v341 = vrot.slane %v333, %v340
  %v342 = vcombine.high %v341, %v341
  %v344 = vunpack.c.l.s4 1966171168
  %v345 = vunpack.c.0.s8 %v344
  %v346 = vlaneseq
  %v347 = vshrl.u32 %v346, 7
  %v348 = vsub.s32 %v345, %v347
  %v349 = vrot.slane %v341, %v348
  %v351 = vunpack.c.l.s4 1966171168
  %v352 = vunpack.c.0.s8 %v351
  %v353 = vlaneseq
  %v354 = vshrl.u32 %v353, 7
  %v355 = vsub.s32 %v352, %v354
  %v356 = vrot.slane %v342, %v355
  %v357 = vlaneseq
  %v358 = vshrl.u32 %v357, 7
  %v359 = vsub.s32 0, %v358
  %v360 = vrot.slane %v349, %v359
  %v361 = vlaneseq
  %v362 = vshrl.u32 %v361, 7
  %v363 = vsub.s32 0, %v362
  %v364 = vrot.slane %v356, %v363
  %v367 = vadd.f32 %v360, %v16
  %v368 = vadd.f32 %v364, %v16
  %v369 = vadd.f32 %v367, %v325
  %v370 = vadd.f32 %v368, %v332
  %371 = vmax.xlane.f32.xlu0 %v369
  %v372 = vpop.xlane.xlu0 %371
  %373 = vmax.xlane.f32.xlu0 %v370
  %v374 = vpop.xlane.xlu0 %373
  %375 = vmax.index.xlane.f32.xlu0 %v369
  %v376 = vpop.xlane.xlu0 %375
  %377 = vmax.index.xlane.f32.xlu0 %v370
  %v378 = vpop.xlane.xlu0 %377
  %vm379 = vcmp.gt.f32.partialorder %v318, 0.0
  %v380 = vsel %vm379, 1, 0
  %381 = vset.pattern.permute.xlu0 0
  %382 = vperm.xlu0 %381, %v380
  %v383 = vpop.permute.xlu0 %382
  %vm384 = vcmp.eq.s32.totalorder %v383, 1
  %v387 = vlaneseq
  %v388 = vshrl.u32 %v387, 7
  %v389 = vsub.s32 %v27, %v388
  %v390 = vrot.slane %v372, %v389
  %v391 = vlaneseq
  %v392 = vshrl.u32 %v391, 7
  %v393 = vsub.s32 %v27, %v392
  %v394 = vrot.slane %v374, %v393
  %v395 = vsel %vm106, %v394, %v390
  %v397 = vsel %vm384, %v395, %v333
  %398 = vst.msk [vmem:[#allocation2] sm:$0x3] %vm110, %v397
  %v399 = vlaneseq
  %v400 = vshrl.u32 %v399, 7
  %v401 = vsub.s32 %v27, %v400
  %v402 = vrot.slane %v376, %v401
  %v403 = vlaneseq
  %v404 = vshrl.u32 %v403, 7
  %v405 = vsub.s32 %v27, %v404
  %v406 = vrot.slane %v378, %v405
  %v407 = vsel %vm106, %v406, %v402
  %v408 = vsel %vm384, %v407, %v27
  %s409 = scalar_lea.vmem %s3, 6
  %410 = vst.msk [vmem:[%s409] sm:$0x3] %vm110, %v408
  %s411 = scalar_lea.vmem %s0, 8
  %v412 = vld [vmem:[%s411] sm:$0x3]
  %s413 = scalar_lea.vmem %s2, 8
  %v414 = vld [vmem:[%s413] sm:$0x3]
  %v415 = vlaneseq
  %v416 = vshrl.u32 %v415, 7
  %v417 = vsub.s32 0, %v416
  %v418 = vrot.slane %v412, %v417
  %420 = vbcast.lane.b32.xlu0 %v418, 256
  %v421 = vpop.permute.xlu0 %420
  %v422 = vlaneseq
  %v423 = vshrl.u32 %v422, 7
  %v424 = vsub.s32 1, %v423
  %v425 = vrot.slane %v412, %v424
  %427 = vbcast.lane.b32.xlu0 %v425, 256
  %v428 = vpop.permute.xlu0 %427
  %v429 = vld [vmem:[#allocation2] sm:$0x3]
  %v432 = vunpack.c.l.s4 1966171168
  %v433 = vunpack.c.0.s8 %v432
  %v434 = vlaneseq
  %v435 = vshrl.u32 %v434, 7
  %v436 = vsub.s32 %v433, %v435
  %v437 = vrot.slane %v429, %v436
  %v438 = vcombine.high %v437, %v437
  %v440 = vunpack.c.l.s4 1966171168
  %v441 = vunpack.c.0.s8 %v440
  %v442 = vlaneseq
  %v443 = vshrl.u32 %v442, 7
  %v444 = vsub.s32 %v441, %v443
  %v445 = vrot.slane %v437, %v444
  %v447 = vunpack.c.l.s4 1966171168
  %v448 = vunpack.c.0.s8 %v447
  %v449 = vlaneseq
  %v450 = vshrl.u32 %v449, 7
  %v451 = vsub.s32 %v448, %v450
  %v452 = vrot.slane %v438, %v451
  %v453 = vlaneseq
  %v454 = vshrl.u32 %v453, 7
  %v455 = vsub.s32 0, %v454
  %v456 = vrot.slane %v445, %v455
  %v457 = vlaneseq
  %v458 = vshrl.u32 %v457, 7
  %v459 = vsub.s32 0, %v458
  %v460 = vrot.slane %v452, %v459
  %v463 = vadd.f32 %v456, %v16
  %v464 = vadd.f32 %v460, %v16
  %v465 = vadd.f32 %v463, %v421
  %v466 = vadd.f32 %v464, %v428
  %467 = vmax.xlane.f32.xlu0 %v465
  %v468 = vpop.xlane.xlu0 %467
  %469 = vmax.xlane.f32.xlu0 %v466
  %v470 = vpop.xlane.xlu0 %469
  %471 = vmax.index.xlane.f32.xlu0 %v465
  %v472 = vpop.xlane.xlu0 %471
  %473 = vmax.index.xlane.f32.xlu0 %v466
  %v474 = vpop.xlane.xlu0 %473
  %vm475 = vcmp.gt.f32.partialorder %v414, 0.0
  %v476 = vsel %vm475, 1, 0
  %477 = vset.pattern.permute.xlu0 0
  %478 = vperm.xlu0 %477, %v476
  %v479 = vpop.permute.xlu0 %478
  %vm480 = vcmp.eq.s32.totalorder %v479, 1
  %v483 = vlaneseq
  %v484 = vshrl.u32 %v483, 7
  %v485 = vsub.s32 %v27, %v484
  %v486 = vrot.slane %v468, %v485
  %v487 = vlaneseq
  %v488 = vshrl.u32 %v487, 7
  %v489 = vsub.s32 %v27, %v488
  %v490 = vrot.slane %v470, %v489
  %v491 = vsel %vm106, %v490, %v486
  %v493 = vsel %vm480, %v491, %v429
  %494 = vst.msk [vmem:[#allocation2] sm:$0x3] %vm110, %v493
  %v495 = vlaneseq
  %v496 = vshrl.u32 %v495, 7
  %v497 = vsub.s32 %v27, %v496
  %v498 = vrot.slane %v472, %v497
  %v499 = vlaneseq
  %v500 = vshrl.u32 %v499, 7
  %v501 = vsub.s32 %v27, %v500
  %v502 = vrot.slane %v474, %v501
  %v503 = vsel %vm106, %v502, %v498
  %v504 = vsel %vm480, %v503, %v27
  %s505 = scalar_lea.vmem %s3, 8
  %506 = vst.msk [vmem:[%s505] sm:$0x3] %vm110, %v504
  %s507 = scalar_lea.vmem %s0, 10
  %v508 = vld [vmem:[%s507] sm:$0x3]
  %s509 = scalar_lea.vmem %s2, 10
  %v510 = vld [vmem:[%s509] sm:$0x3]
  %v511 = vlaneseq
  %v512 = vshrl.u32 %v511, 7
  %v513 = vsub.s32 0, %v512
  %v514 = vrot.slane %v508, %v513
  %516 = vbcast.lane.b32.xlu0 %v514, 256
  %v517 = vpop.permute.xlu0 %516
  %v518 = vlaneseq
  %v519 = vshrl.u32 %v518, 7
  %v520 = vsub.s32 1, %v519
  %v521 = vrot.slane %v508, %v520
  %523 = vbcast.lane.b32.xlu0 %v521, 256
  %v524 = vpop.permute.xlu0 %523
  %v525 = vld [vmem:[#allocation2] sm:$0x3]
  %v528 = vunpack.c.l.s4 1966171168
  %v529 = vunpack.c.0.s8 %v528
  %v530 = vlaneseq
  %v531 = vshrl.u32 %v530, 7
  %v532 = vsub.s32 %v529, %v531
  %v533 = vrot.slane %v525, %v532
  %v534 = vcombine.high %v533, %v533
  %v536 = vunpack.c.l.s4 1966171168
  %v537 = vunpack.c.0.s8 %v536
  %v538 = vlaneseq
  %v539 = vshrl.u32 %v538, 7
  %v540 = vsub.s32 %v537, %v539
  %v541 = vrot.slane %v533, %v540
  %v543 = vunpack.c.l.s4 1966171168
  %v544 = vunpack.c.0.s8 %v543
  %v545 = vlaneseq
  %v546 = vshrl.u32 %v545, 7
  %v547 = vsub.s32 %v544, %v546
  %v548 = vrot.slane %v534, %v547
  %v549 = vlaneseq
  %v550 = vshrl.u32 %v549, 7
  %v551 = vsub.s32 0, %v550
  %v552 = vrot.slane %v541, %v551
  %v553 = vlaneseq
  %v554 = vshrl.u32 %v553, 7
  %v555 = vsub.s32 0, %v554
  %v556 = vrot.slane %v548, %v555
  %v559 = vadd.f32 %v552, %v16
  %v560 = vadd.f32 %v556, %v16
  %v561 = vadd.f32 %v559, %v517
  %v562 = vadd.f32 %v560, %v524
  %563 = vmax.xlane.f32.xlu0 %v561
  %v564 = vpop.xlane.xlu0 %563
  %565 = vmax.xlane.f32.xlu0 %v562
  %v566 = vpop.xlane.xlu0 %565
  %567 = vmax.index.xlane.f32.xlu0 %v561
  %v568 = vpop.xlane.xlu0 %567
  %569 = vmax.index.xlane.f32.xlu0 %v562
  %v570 = vpop.xlane.xlu0 %569
  %vm571 = vcmp.gt.f32.partialorder %v510, 0.0
  %v572 = vsel %vm571, 1, 0
  %573 = vset.pattern.permute.xlu0 0
  %574 = vperm.xlu0 %573, %v572
  %v575 = vpop.permute.xlu0 %574
  %vm576 = vcmp.eq.s32.totalorder %v575, 1
  %v579 = vlaneseq
  %v580 = vshrl.u32 %v579, 7
  %v581 = vsub.s32 %v27, %v580
  %v582 = vrot.slane %v564, %v581
  %v583 = vlaneseq
  %v584 = vshrl.u32 %v583, 7
  %v585 = vsub.s32 %v27, %v584
  %v586 = vrot.slane %v566, %v585
  %v587 = vsel %vm106, %v586, %v582
  %v589 = vsel %vm576, %v587, %v525
  %590 = vst.msk [vmem:[#allocation2] sm:$0x3] %vm110, %v589
  %v591 = vlaneseq
  %v592 = vshrl.u32 %v591, 7
  %v593 = vsub.s32 %v27, %v592
  %v594 = vrot.slane %v568, %v593
  %v595 = vlaneseq
  %v596 = vshrl.u32 %v595, 7
  %v597 = vsub.s32 %v27, %v596
  %v598 = vrot.slane %v570, %v597
  %v599 = vsel %vm106, %v598, %v594
  %v600 = vsel %vm576, %v599, %v27
  %s601 = scalar_lea.vmem %s3, 10
  %602 = vst.msk [vmem:[%s601] sm:$0x3] %vm110, %v600
  %s603 = scalar_lea.vmem %s0, 12
  %v604 = vld [vmem:[%s603] sm:$0x3]
  %s605 = scalar_lea.vmem %s2, 12
  %v606 = vld [vmem:[%s605] sm:$0x3]
  %v607 = vlaneseq
  %v608 = vshrl.u32 %v607, 7
  %v609 = vsub.s32 0, %v608
  %v610 = vrot.slane %v604, %v609
  %612 = vbcast.lane.b32.xlu0 %v610, 256
  %v613 = vpop.permute.xlu0 %612
  %v614 = vlaneseq
  %v615 = vshrl.u32 %v614, 7
  %v616 = vsub.s32 1, %v615
  %v617 = vrot.slane %v604, %v616
  %619 = vbcast.lane.b32.xlu0 %v617, 256
  %v620 = vpop.permute.xlu0 %619
  %v621 = vld [vmem:[#allocation2] sm:$0x3]
  %v624 = vunpack.c.l.s4 1966171168
  %v625 = vunpack.c.0.s8 %v624
  %v626 = vlaneseq
  %v627 = vshrl.u32 %v626, 7
  %v628 = vsub.s32 %v625, %v627
  %v629 = vrot.slane %v621, %v628
  %v630 = vcombine.high %v629, %v629
  %v632 = vunpack.c.l.s4 1966171168
  %v633 = vunpack.c.0.s8 %v632
  %v634 = vlaneseq
  %v635 = vshrl.u32 %v634, 7
  %v636 = vsub.s32 %v633, %v635
  %v637 = vrot.slane %v629, %v636
  %v639 = vunpack.c.l.s4 1966171168
  %v640 = vunpack.c.0.s8 %v639
  %v641 = vlaneseq
  %v642 = vshrl.u32 %v641, 7
  %v643 = vsub.s32 %v640, %v642
  %v644 = vrot.slane %v630, %v643
  %v645 = vlaneseq
  %v646 = vshrl.u32 %v645, 7
  %v647 = vsub.s32 0, %v646
  %v648 = vrot.slane %v637, %v647
  %v649 = vlaneseq
  %v650 = vshrl.u32 %v649, 7
  %v651 = vsub.s32 0, %v650
  %v652 = vrot.slane %v644, %v651
  %v655 = vadd.f32 %v648, %v16
  %v656 = vadd.f32 %v652, %v16
  %v657 = vadd.f32 %v655, %v613
  %v658 = vadd.f32 %v656, %v620
  %659 = vmax.xlane.f32.xlu0 %v657
  %v660 = vpop.xlane.xlu0 %659
  %661 = vmax.xlane.f32.xlu0 %v658
  %v662 = vpop.xlane.xlu0 %661
  %663 = vmax.index.xlane.f32.xlu0 %v657
  %v664 = vpop.xlane.xlu0 %663
  %665 = vmax.index.xlane.f32.xlu0 %v658
  %v666 = vpop.xlane.xlu0 %665
  %vm667 = vcmp.gt.f32.partialorder %v606, 0.0
  %v668 = vsel %vm667, 1, 0
  %669 = vset.pattern.permute.xlu0 0
  %670 = vperm.xlu0 %669, %v668
  %v671 = vpop.permute.xlu0 %670
  %vm672 = vcmp.eq.s32.totalorder %v671, 1
  %v675 = vlaneseq
  %v676 = vshrl.u32 %v675, 7
  %v677 = vsub.s32 %v27, %v676
  %v678 = vrot.slane %v660, %v677
  %v679 = vlaneseq
  %v680 = vshrl.u32 %v679, 7
  %v681 = vsub.s32 %v27, %v680
  %v682 = vrot.slane %v662, %v681
  %v683 = vsel %vm106, %v682, %v678
  %v685 = vsel %vm672, %v683, %v621
  %686 = vst.msk [vmem:[#allocation2] sm:$0x3] %vm110, %v685
  %v687 = vlaneseq
  %v688 = vshrl.u32 %v687, 7
  %v689 = vsub.s32 %v27, %v688
  %v690 = vrot.slane %v664, %v689
  %v691 = vlaneseq
  %v692 = vshrl.u32 %v691, 7
  %v693 = vsub.s32 %v27, %v692
  %v694 = vrot.slane %v666, %v693
  %v695 = vsel %vm106, %v694, %v690
  %v696 = vsel %vm672, %v695, %v27
  %s697 = scalar_lea.vmem %s3, 12
  %698 = vst.msk [vmem:[%s697] sm:$0x3] %vm110, %v696
  %s699 = scalar_lea.vmem %s0, 14
  %v700 = vld [vmem:[%s699] sm:$0x3]
  %s701 = scalar_lea.vmem %s2, 14
  %v702 = vld [vmem:[%s701] sm:$0x3]
  %v703 = vlaneseq
  %v704 = vshrl.u32 %v703, 7
  %v705 = vsub.s32 0, %v704
  %v706 = vrot.slane %v700, %v705
  %708 = vbcast.lane.b32.xlu0 %v706, 256
  %v709 = vpop.permute.xlu0 %708
  %v710 = vlaneseq
  %v711 = vshrl.u32 %v710, 7
  %v712 = vsub.s32 1, %v711
  %v713 = vrot.slane %v700, %v712
  %715 = vbcast.lane.b32.xlu0 %v713, 256
  %v716 = vpop.permute.xlu0 %715
  %v717 = vld [vmem:[#allocation2] sm:$0x3]
  %v720 = vunpack.c.l.s4 1966171168
  %v721 = vunpack.c.0.s8 %v720
  %v722 = vlaneseq
  %v723 = vshrl.u32 %v722, 7
  %v724 = vsub.s32 %v721, %v723
  %v725 = vrot.slane %v717, %v724
  %v726 = vcombine.high %v725, %v725
  %v728 = vunpack.c.l.s4 1966171168
  %v729 = vunpack.c.0.s8 %v728
  %v730 = vlaneseq
  %v731 = vshrl.u32 %v730, 7
  %v732 = vsub.s32 %v729, %v731
  %v733 = vrot.slane %v725, %v732
  %v735 = vunpack.c.l.s4 1966171168
  %v736 = vunpack.c.0.s8 %v735
  %v737 = vlaneseq
  %v738 = vshrl.u32 %v737, 7
  %v739 = vsub.s32 %v736, %v738
  %v740 = vrot.slane %v726, %v739
  %v741 = vlaneseq
  %v742 = vshrl.u32 %v741, 7
  %v743 = vsub.s32 0, %v742
  %v744 = vrot.slane %v733, %v743
  %v745 = vlaneseq
  %v746 = vshrl.u32 %v745, 7
  %v747 = vsub.s32 0, %v746
  %v748 = vrot.slane %v740, %v747
  %v751 = vadd.f32 %v744, %v16
  %v752 = vadd.f32 %v748, %v16
  %v753 = vadd.f32 %v751, %v709
  %v754 = vadd.f32 %v752, %v716
  %755 = vmax.xlane.f32.xlu0 %v753
  %v756 = vpop.xlane.xlu0 %755
  %757 = vmax.xlane.f32.xlu0 %v754
  %v758 = vpop.xlane.xlu0 %757
  %759 = vmax.index.xlane.f32.xlu0 %v753
  %v760 = vpop.xlane.xlu0 %759
  %761 = vmax.index.xlane.f32.xlu0 %v754
  %v762 = vpop.xlane.xlu0 %761
  %vm763 = vcmp.gt.f32.partialorder %v702, 0.0
  %v764 = vsel %vm763, 1, 0
  %765 = vset.pattern.permute.xlu0 0
  %766 = vperm.xlu0 %765, %v764
  %v767 = vpop.permute.xlu0 %766
  %vm768 = vcmp.eq.s32.totalorder %v767, 1
  %v771 = vlaneseq
  %v772 = vshrl.u32 %v771, 7
  %v773 = vsub.s32 %v27, %v772
  %v774 = vrot.slane %v756, %v773
  %v775 = vlaneseq
  %v776 = vshrl.u32 %v775, 7
  %v777 = vsub.s32 %v27, %v776
  %v778 = vrot.slane %v758, %v777
  %v779 = vsel %vm106, %v778, %v774
  %v781 = vsel %vm768, %v779, %v717
  %782 = vst.msk [vmem:[#allocation2] sm:$0x3] %vm110, %v781
  %v783 = vlaneseq
  %v784 = vshrl.u32 %v783, 7
  %v785 = vsub.s32 %v27, %v784
  %v786 = vrot.slane %v760, %v785
  %v787 = vlaneseq
  %v788 = vshrl.u32 %v787, 7
  %v789 = vsub.s32 %v27, %v788
  %v790 = vrot.slane %v762, %v789
  %v791 = vsel %vm106, %v790, %v786
  %v792 = vsel %vm768, %v791, %v27
  %s793 = scalar_lea.vmem %s3, 14
  %794 = vst.msk [vmem:[%s793] sm:$0x3] %vm110, %v792
  // Predicated region
  $region18: #{cws_forward.7} parent=0 // pred_check
    %p795 = pneg %p17
  $region19: #{cws_forward.7} parent=0 // pred_check_branch
    %797 = sbr.rel (%p795) target = $region21
  $region20: #{cws_forward.7} parent=0 // pred_region
    %v798 = vld [vmem:[#allocation2] sm:$0x3]
    %799 = vst [vmem:[%s4] sm:$0x3] %v798
  $region21: #{cws_forward.7} parent=0 // pred_fallthru
    _
  // Predicated region
  $region22: #{cws_forward.7} parent=0 // pred_check
    _
  $region23: #{cws_forward.7} parent=0 // pred_check_branch
    %801 = sbr.rel (0) target = $region25
  $region24: #{cws_forward.7} parent=0 // pred_region
    _
  $region25: #{cws_forward.7} parent=0 // pred_fallthru
    _
  // Predicated region
  $region26: #{cws_forward.7} parent=0 // pred_check
    _
  $region27: #{cws_forward.7} parent=0 // pred_check_branch
    %803 = sbr.rel (0) target = $region29
  $region28: #{cws_forward.7} parent=0 // pred_region
    _
  $region29: #{cws_forward.7} parent=0 // pred_fallthru
    _
  // Predicated region
  $region30: #{cws_forward.7} parent=0 // pred_check
    _
  $region31: #{cws_forward.7} parent=0 // pred_check_branch
    %805 = sbr.rel (0) target = $region33
  $region32: #{cws_forward.7} parent=0 // pred_region
    _
  $region33: #{cws_forward.7} parent=0 // pred_fallthru
    _
  // Predicated region
  $region34: #{cws_forward.7} parent=0 // pred_check
    _
  $region35: #{cws_forward.7} parent=0 // pred_check_branch
    %807 = sbr.rel (0) target = $region37
  $region36: #{cws_forward.7} parent=0 // pred_region
    _
  $region37: #{cws_forward.7} parent=0 // pred_fallthru
    _

// kernel: cws_forward.5
$region0: #{cws_forward.5}
  #allocation0 [shape = 'u32[]', space=smem, size = 0x4, offset = 0x4, fixed_abs, tag = 'smem constant byte address 0x4 - core index']
  #allocation1 [shape = 'u32[144,128]{1,0:T(1,128)}', space=vmem, size = 0x12000, scoped, tag = 'internal scratch']
  #allocation2 [shape = 'f32[2,256]{1,0:T(2,128)}', space=vmem, size = 0x800, scoped, tag = 'scratch operand']
  #allocation3 [shape = 'f32[2,256]{1,0:T(2,128)}', space=vmem, size = 0x800, scoped, tag = 'scratch operand']
  %s0 = inlined_call_operand.vmem [shape: bf16[8,2,1024], index: 0, kind: input, shape index: {}, may-alias: {0,1}]
  %s1 = inlined_call_operand.vmem [shape: bf16[8,2,1024], index: 1, kind: input, shape index: {}, may-alias: {0,1}]
  %s2 = inlined_call_operand.vmem [shape: bf16[256,1024], index: 2, kind: input, shape index: {}]
  %s3 = inlined_call_operand.vmem [shape: f32[8,2,1], index: 3, kind: input, shape index: {}, may-alias: {3,4}]
  %s4 = inlined_call_operand.vmem [shape: f32[8,2,1], index: 4, kind: input, shape index: {}, may-alias: {3,4}]
  %s5 = inlined_call_operand.vmem [shape: bf16[8,2,128], index: 5, kind: output, shape index: {0}]
  %s6 = inlined_call_operand.vmem [shape: bf16[8,2,128], index: 6, kind: output, shape index: {1}]
  %7 = xla_tuple %s5, %s6
  %s8 = sld [smem:[#allocation0]]
  $region124: #{cws_forward.5} parent=0
    _
  %s10 = ssub.s32 1, %s8
  %s11 = scalar_select 0, %s10, %s8
  $region1: #{cws_forward.5} parent=0
    #allocation4 [shape = 'u8[16384]{0}', space=vmem, size = 0x4000, scoped, tag = 'input window, operand 0, single buffered']
    #allocation5 [shape = 'u8[16384]{0}', space=vmem, size = 0x4000, scoped, tag = 'input window, operand 1, single buffered']
    // Predicated region
    $region2: #{cws_forward.5} parent=1 // pred_check
      _
    $region3: #{cws_forward.5} parent=1 // pred_check_branch
      %13 = sbr.rel (0) target = $region5
    $region4: #{cws_forward.5} parent=1 // pred_region
      // Predicated region
      $region6: #{cws_forward.5} parent=4 // pred_check
        _
      $region7: #{cws_forward.5} parent=4 // pred_check_branch
        %15 = sbr.rel (0) target = $region9
      $region8: #{cws_forward.5} parent=4 // pred_region
        // Predicated region
        $region10: #{cws_forward.5} parent=8 // pred_check
          _
        $region11: #{cws_forward.5} parent=8 // pred_check_branch
          %17 = sbr.rel target = $region13
        $region12: #{cws_forward.5} parent=8 // pred_region
          // Predicated region
          $region25: #{cws_forward.5} parent=12 // pred_check
            _
          $region26: #{cws_forward.5} parent=12 // pred_check_branch
            %46 = sbr.rel (0) target = $region28
          $region27: #{cws_forward.5} parent=12 // pred_region
            loop: start=0, step=1, limit=1
            $region29: #{cws_forward.5} parent=27 // loop_pre_header
              _
            $region30: #{cws_forward.5} parent=27 // loop_header
              %s48 = sphi 0, %s52
              %p49 = scmp.ge.s32.totalorder %s48, 1
              %s53 = sphi %s0, %s0
              %s54 = sphi [#allocation4], [#allocation4]
            $region31: #{cws_forward.5} parent=27 // loop_header_branch
              %51 = sbr.rel (%p49) target = $region35
            $region32: #{cws_forward.5} parent=27 // loop_body
              _
            $region33: #{cws_forward.5} parent=27 // loop_footer
              %s52 = sadd.s32 1, %s48
            $region34: #{cws_forward.5} parent=27 // loop_footer_branch
              %47 = sbr.rel target = $region30
            $region35: #{cws_forward.5} parent=27 // loop_exit
              _
            loop: start=0, step=1, limit=1
            $region36: #{cws_forward.5} parent=27 // loop_pre_header
              _
            $region37: #{cws_forward.5} parent=27 // loop_header
              %s57 = sphi 0, %s61
              %p58 = scmp.ge.s32.totalorder %s57, 1
              %s62 = sphi %s0, %s0
              %s63 = sphi [#allocation4], [#allocation4]
            $region38: #{cws_forward.5} parent=27 // loop_header_branch
              %60 = sbr.rel (%p58) target = $region42
            $region39: #{cws_forward.5} parent=27 // loop_body
              %v64 = vld [vmem:[%s62] sm:$0xf]
              %65 = vst [vmem:[%s63] sm:$0xf] %v64
              %v66 = vld [vmem:[%s62 + $0x8] sm:$0xf]
              %67 = vst [vmem:[%s63 + $0x4] sm:$0xf] %v66
              %v68 = vld [vmem:[%s62 + $0x10] sm:$0xf]
              %69 = vst [vmem:[%s63 + $0x8] sm:$0xf] %v68
              %v70 = vld [vmem:[%s62 + $0x18] sm:$0xf]
              %71 = vst [vmem:[%s63 + $0xc] sm:$0xf] %v70
              %v72 = vld [vmem:[%s62 + $0x20] sm:$0xf]
              %73 = vst [vmem:[%s63 + $0x10] sm:$0xf] %v72
              %v74 = vld [vmem:[%s62 + $0x28] sm:$0xf]
              %75 = vst [vmem:[%s63 + $0x14] sm:$0xf] %v74
              %v76 = vld [vmem:[%s62 + $0x30] sm:$0xf]
              %77 = vst [vmem:[%s63 + $0x18] sm:$0xf] %v76
              %v78 = vld [vmem:[%s62 + $0x38] sm:$0xf]
              %79 = vst [vmem:[%s63 + $0x1c] sm:$0xf] %v78
            $region40: #{cws_forward.5} parent=27 // loop_footer
              %s61 = sadd.s32 1, %s57
            $region41: #{cws_forward.5} parent=27 // loop_footer_branch
              %56 = sbr.rel target = $region37
            $region42: #{cws_forward.5} parent=27 // loop_exit
              _
          $region28: #{cws_forward.5} parent=12 // pred_fallthru
            _
        $region13: #{cws_forward.5} parent=8 // pred_fallthru
          _
        // Predicated region
        $region14: #{cws_forward.5} parent=8 // pred_check
          _
        $region15: #{cws_forward.5} parent=8 // pred_check_branch
          %19 = sbr.rel (0) target = $region17
        $region16: #{cws_forward.5} parent=8 // pred_region
          loop: start=0, step=1, limit=1
          $region18: #{cws_forward.5} parent=16 // loop_pre_header
            _
          $region19: #{cws_forward.5} parent=16 // loop_header
            %s22 = sphi 0, %s26
            %p23 = scmp.ge.s32.totalorder %s22, 1
            %s27 = sphi %s0, %s0
            %s28 = sphi [#allocation4], [#allocation4]
          $region20: #{cws_forward.5} parent=16 // loop_header_branch
            %25 = sbr.rel (%p23) target = $region24
          $region21: #{cws_forward.5} parent=16 // loop_body
            %v29 = vld [vmem:[%s27] sm:$0xf]
            %30 = vst [vmem:[%s28] sm:$0xf] %v29
            %v31 = vld [vmem:[%s27 + $0x8] sm:$0xf]
            %32 = vst [vmem:[%s28 + $0x4] sm:$0xf] %v31
            %v33 = vld [vmem:[%s27 + $0x10] sm:$0xf]
            %34 = vst [vmem:[%s28 + $0x8] sm:$0xf] %v33
            %v35 = vld [vmem:[%s27 + $0x18] sm:$0xf]
            %36 = vst [vmem:[%s28 + $0xc] sm:$0xf] %v35
            %v37 = vld [vmem:[%s27 + $0x20] sm:$0xf]
            %38 = vst [vmem:[%s28 + $0x10] sm:$0xf] %v37
            %v39 = vld [vmem:[%s27 + $0x28] sm:$0xf]
            %40 = vst [vmem:[%s28 + $0x14] sm:$0xf] %v39
            %v41 = vld [vmem:[%s27 + $0x30] sm:$0xf]
            %42 = vst [vmem:[%s28 + $0x18] sm:$0xf] %v41
            %v43 = vld [vmem:[%s27 + $0x38] sm:$0xf]
            %44 = vst [vmem:[%s28 + $0x1c] sm:$0xf] %v43
          $region22: #{cws_forward.5} parent=16 // loop_footer
            %s26 = sadd.s32 1, %s22
          $region23: #{cws_forward.5} parent=16 // loop_footer_branch
            %21 = sbr.rel target = $region19
          $region24: #{cws_forward.5} parent=16 // loop_exit
            _
        $region17: #{cws_forward.5} parent=8 // pred_fallthru
          _
      $region9: #{cws_forward.5} parent=4 // pred_fallthru
        _
      %80 = vnop
    $region5: #{cws_forward.5} parent=1 // pred_fallthru
      _
    // Predicated region
    $region43: #{cws_forward.5} parent=1 // pred_check
      _
    $region44: #{cws_forward.5} parent=1 // pred_check_branch
      %82 = sbr.rel (0) target = $region46
    $region45: #{cws_forward.5} parent=1 // pred_region
      %s83 = ssub.s32 0, 0
      %s84 = smul.u32 8, %s83
      %s85 = smul.addr %s84, 8
      %s86 = sadd.s32 4, %s85
      %s87 = scalar_lea.vmem %s1, %s86
      // Predicated region
      $region47: #{cws_forward.5} parent=45 // pred_check
        _
      $region48: #{cws_forward.5} parent=45 // pred_check_branch
        %89 = sbr.rel (0) target = $region50
      $region49: #{cws_forward.5} parent=45 // pred_region
        // Predicated region
        $region51: #{cws_forward.5} parent=49 // pred_check
          _
        $region52: #{cws_forward.5} parent=49 // pred_check_branch
          %91 = sbr.rel target = $region54
        $region53: #{cws_forward.5} parent=49 // pred_region
          // Predicated region
          $region66: #{cws_forward.5} parent=53 // pred_check
            _
          $region67: #{cws_forward.5} parent=53 // pred_check_branch
            %120 = sbr.rel (0) target = $region69
          $region68: #{cws_forward.5} parent=53 // pred_region
            loop: start=0, step=1, limit=1
            $region70: #{cws_forward.5} parent=68 // loop_pre_header
              _
            $region71: #{cws_forward.5} parent=68 // loop_header
              %s122 = sphi 0, %s126
              %p123 = scmp.ge.s32.totalorder %s122, 1
              %s127 = sphi %s87, %s87
              %s128 = sphi [#allocation5], [#allocation5]
            $region72: #{cws_forward.5} parent=68 // loop_header_branch
              %125 = sbr.rel (%p123) target = $region76
            $region73: #{cws_forward.5} parent=68 // loop_body
              _
            $region74: #{cws_forward.5} parent=68 // loop_footer
              %s126 = sadd.s32 1, %s122
            $region75: #{cws_forward.5} parent=68 // loop_footer_branch
              %121 = sbr.rel target = $region71
            $region76: #{cws_forward.5} parent=68 // loop_exit
              _
            loop: start=0, step=1, limit=1
            $region77: #{cws_forward.5} parent=68 // loop_pre_header
              _
            $region78: #{cws_forward.5} parent=68 // loop_header
              %s131 = sphi 0, %s135
              %p132 = scmp.ge.s32.totalorder %s131, 1
              %s136 = sphi %s87, %s87
              %s137 = sphi [#allocation5], [#allocation5]
            $region79: #{cws_forward.5} parent=68 // loop_header_branch
              %134 = sbr.rel (%p132) target = $region83
            $region80: #{cws_forward.5} parent=68 // loop_body
              %v138 = vld [vmem:[%s136] sm:$0xf]
              %139 = vst [vmem:[%s137] sm:$0xf] %v138
              %v140 = vld [vmem:[%s136 + $0x8] sm:$0xf]
              %141 = vst [vmem:[%s137 + $0x4] sm:$0xf] %v140
              %v142 = vld [vmem:[%s136 + $0x10] sm:$0xf]
              %143 = vst [vmem:[%s137 + $0x8] sm:$0xf] %v142
              %v144 = vld [vmem:[%s136 + $0x18] sm:$0xf]
              %145 = vst [vmem:[%s137 + $0xc] sm:$0xf] %v144
              %v146 = vld [vmem:[%s136 + $0x20] sm:$0xf]
              %147 = vst [vmem:[%s137 + $0x10] sm:$0xf] %v146
              %v148 = vld [vmem:[%s136 + $0x28] sm:$0xf]
              %149 = vst [vmem:[%s137 + $0x14] sm:$0xf] %v148
              %v150 = vld [vmem:[%s136 + $0x30] sm:$0xf]
              %151 = vst [vmem:[%s137 + $0x18] sm:$0xf] %v150
              %v152 = vld [vmem:[%s136 + $0x38] sm:$0xf]
              %153 = vst [vmem:[%s137 + $0x1c] sm:$0xf] %v152
            $region81: #{cws_forward.5} parent=68 // loop_footer
              %s135 = sadd.s32 1, %s131
            $region82: #{cws_forward.5} parent=68 // loop_footer_branch
              %130 = sbr.rel target = $region78
            $region83: #{cws_forward.5} parent=68 // loop_exit
              _
          $region69: #{cws_forward.5} parent=53 // pred_fallthru
            _
        $region54: #{cws_forward.5} parent=49 // pred_fallthru
          _
        // Predicated region
        $region55: #{cws_forward.5} parent=49 // pred_check
          _
        $region56: #{cws_forward.5} parent=49 // pred_check_branch
          %93 = sbr.rel (0) target = $region58
        $region57: #{cws_forward.5} parent=49 // pred_region
          loop: start=0, step=1, limit=1
          $region59: #{cws_forward.5} parent=57 // loop_pre_header
            _
          $region60: #{cws_forward.5} parent=57 // loop_header
            %s96 = sphi 0, %s100
            %p97 = scmp.ge.s32.totalorder %s96, 1
            %s101 = sphi %s87, %s87
            %s102 = sphi [#allocation5], [#allocation5]
          $region61: #{cws_forward.5} parent=57 // loop_header_branch
            %99 = sbr.rel (%p97) target = $region65
          $region62: #{cws_forward.5} parent=57 // loop_body
            %v103 = vld [vmem:[%s101] sm:$0xf]
            %104 = vst [vmem:[%s102] sm:$0xf] %v103
            %v105 = vld [vmem:[%s101 + $0x8] sm:$0xf]
            %106 = vst [vmem:[%s102 + $0x4] sm:$0xf] %v105
            %v107 = vld [vmem:[%s101 + $0x10] sm:$0xf]
            %108 = vst [vmem:[%s102 + $0x8] sm:$0xf] %v107
            %v109 = vld [vmem:[%s101 + $0x18] sm:$0xf]
            %110 = vst [vmem:[%s102 + $0xc] sm:$0xf] %v109
            %v111 = vld [vmem:[%s101 + $0x20] sm:$0xf]
            %112 = vst [vmem:[%s102 + $0x10] sm:$0xf] %v111
            %v113 = vld [vmem:[%s101 + $0x28] sm:$0xf]
            %114 = vst [vmem:[%s102 + $0x14] sm:$0xf] %v113
            %v115 = vld [vmem:[%s101 + $0x30] sm:$0xf]
            %116 = vst [vmem:[%s102 + $0x18] sm:$0xf] %v115
            %v117 = vld [vmem:[%s101 + $0x38] sm:$0xf]
            %118 = vst [vmem:[%s102 + $0x1c] sm:$0xf] %v117
          $region63: #{cws_forward.5} parent=57 // loop_footer
            %s100 = sadd.s32 1, %s96
          $region64: #{cws_forward.5} parent=57 // loop_footer_branch
            %95 = sbr.rel target = $region60
          $region65: #{cws_forward.5} parent=57 // loop_exit
            _
        $region58: #{cws_forward.5} parent=49 // pred_fallthru
          _
      $region50: #{cws_forward.5} parent=45 // pred_fallthru
        _
      %154 = vnop
    $region46: #{cws_forward.5} parent=1 // pred_fallthru
      _
    // Predicated region
    $region84: #{cws_forward.5} parent=1 // pred_check
      _
    $region85: #{cws_forward.5} parent=1 // pred_check_branch
      %156 = sbr.rel (0) target = $region87
    $region86: #{cws_forward.5} parent=1 // pred_region
      _
    $region87: #{cws_forward.5} parent=1 // pred_fallthru
      _
    // Predicated region
    $region88: #{cws_forward.5} parent=1 // pred_check
      _
    $region89: #{cws_forward.5} parent=1 // pred_check_branch
      %158 = sbr.rel (0) target = $region91
    $region90: #{cws_forward.5} parent=1 // pred_region
      _
    $region91: #{cws_forward.5} parent=1 // pred_fallthru
      _
    // Predicated region
    $region92: #{cws_forward.5} parent=1 // pred_check
      _
    $region93: #{cws_forward.5} parent=1 // pred_check_branch
      %160 = sbr.rel (0) target = $region95
    $region94: #{cws_forward.5} parent=1 // pred_region
      %s161 = ssub.s32 0, 0
      %s162 = smul.u32 8, %s161
      %p163 = scmp.lt.s32.totalorder %s162, 7
      %s164 = scalar_select %p163, %s162, 7
      %s165 = smul.addr %s164, 2
      %s166 = scalar_lea.vmem %s4, %s165
      %s167 = ssub.s32 0, 0
      %s168 = smul.u32 8, %s167
    $region95: #{cws_forward.5} parent=1 // pred_fallthru
      _
    // Predicated region
    $region96: #{cws_forward.5} parent=1 // pred_check
      _
    $region97: #{cws_forward.5} parent=1 // pred_check_branch
      %170 = sbr.rel (0) target = $region99
    $region98: #{cws_forward.5} parent=1 // pred_region
      _
    $region99: #{cws_forward.5} parent=1 // pred_fallthru
      _
    // Predicated region
    $region100: #{cws_forward.5} parent=1 // pred_check
      _
    $region101: #{cws_forward.5} parent=1 // pred_check_branch
      %172 = sbr.rel (0) target = $region103
    $region102: #{cws_forward.5} parent=1 // pred_region
      _
    $region103: #{cws_forward.5} parent=1 // pred_fallthru
      _
    %s173 = ssub.s32 0, 0
    %s174 = smul.u32 8, %s173
    %p175 = scmp.lt.s32.totalorder %s174, 7
    %s176 = scalar_select %p175, %s174, 7
    %s177 = smul.addr %s176, 2
    %s178 = scalar_lea.vmem %s4, %s177
    %s179 = ssub.s32 0, 0
    %s180 = smul.u32 8, %s179
    %p181 = scmp.lt.s32.totalorder %s180, 7
    %s182 = scalar_select %p181, %s180, 7
    %s183 = scalar_lea.vmem %s6, %s182
    %s184 = ssub.s32 0, 0
    %s185 = smul.u32 8, %s184
    %s186 = ssub.s32 0, 0
    %s187 = smul.u32 8, %s186
    %p188 = scmp.lt.s32.totalorder %s187, 7
    %s189 = scalar_select %p188, %s187, 7
    %s190 = smul.addr %s189, 2
    %s191 = scalar_lea.vmem %s4, %s190
    %s192 = ssub.s32 0, 0
    %s193 = smul.u32 8, %s192
    %s194 = ssub.s32 0, 0
    %s195 = smul.u32 8, %s194
    %p196 = scmp.lt.s32.totalorder %s195, 7
    %s197 = scalar_select %p196, %s195, 7
    %s198 = scalar_lea.vmem %s6, %s197
    %s199 = ssub.s32 0, 0
    %s200 = smul.u32 8, %s199
    %p201 = scmp.eq.s32.totalorder 0, 0
    // Predicated region
    $region104: #{cws_forward.5} parent=1 // pred_check
      %p202 = pneg %p201
    $region105: #{cws_forward.5} parent=1 // pred_check_branch
      %204 = sbr.rel (%p202) target = $region107
    $region106: #{cws_forward.5} parent=1 // pred_region
      %205 = vst [vmem:[#allocation2] sm:$0xf] 0.0
      %206 = vst [vmem:[#allocation3] sm:$0xf] 0.0
    $region107: #{cws_forward.5} parent=1 // pred_fallthru
      _
    %v207 = vld [vmem:[#allocation2] sm:$0xf]
    %v210 = vunpack.c.l.s4 1983009808
    %v211 = vunpack.c.0.s8 %v210
    %v212 = vlaneseq
    %v213 = vshrl.u32 %v212, 7
    %v214 = vsub.s32 %v211, %v213
    %v215 = vrot.slane %v207, %v214
    %v216 = vcombine.high %v215, %v215
    %v219 = vpack.c.bf16 %v215, %v215
    %v220 = vpack.c.bf16 %v216, %v216
    %v221 = vld [vmem:[%s2] sm:$0xff]
    %v222 = vld [vmem:[%s2 + $0x8] sm:$0xff]
    %v223 = vld [vmem:[%s2 + $0x10] sm:$0xff]
    %v224 = vld [vmem:[%s2 + $0x18] sm:$0xff]
    %v225 = vld [vmem:[%s2 + $0x20] sm:$0xff]
    %v226 = vld [vmem:[%s2 + $0x28] sm:$0xff]
    %v227 = vld [vmem:[%s2 + $0x30] sm:$0xff]
    %v228 = vld [vmem:[%s2 + $0x38] sm:$0xff]
    %v229 = vld [vmem:[%s2 + $0x40] sm:$0xff]
    %v230 = vld [vmem:[%s2 + $0x48] sm:$0xff]
    %v231 = vld [vmem:[%s2 + $0x50] sm:$0xff]
    %v232 = vld [vmem:[%s2 + $0x58] sm:$0xff]
    %v233 = vld [vmem:[%s2 + $0x60] sm:$0xff]
    %v234 = vld [vmem:[%s2 + $0x68] sm:$0xff]
    %v235 = vld [vmem:[%s2 + $0x70] sm:$0xff]
    %v236 = vld [vmem:[%s2 + $0x78] sm:$0xff]
    %v237 = vld [vmem:[%s2 + $0x80] sm:$0xff]
    %v238 = vld [vmem:[%s2 + $0x88] sm:$0xff]
    %v239 = vld [vmem:[%s2 + $0x90] sm:$0xff]
    %v240 = vld [vmem:[%s2 + $0x98] sm:$0xff]
    %v241 = vld [vmem:[%s2 + $0xa0] sm:$0xff]
    %v242 = vld [vmem:[%s2 + $0xa8] sm:$0xff]
    %v243 = vld [vmem:[%s2 + $0xb0] sm:$0xff]
    %v244 = vld [vmem:[%s2 + $0xb8] sm:$0xff]
    %v245 = vld [vmem:[%s2 + $0xc0] sm:$0xff]
    %v246 = vld [vmem:[%s2 + $0xc8] sm:$0xff]
    %v247 = vld [vmem:[%s2 + $0xd0] sm:$0xff]
    %v248 = vld [vmem:[%s2 + $0xd8] sm:$0xff]
    %v249 = vld [vmem:[%s2 + $0xe0] sm:$0xff]
    %v250 = vld [vmem:[%s2 + $0xe8] sm:$0xff]
    %v251 = vld [vmem:[%s2 + $0xf0] sm:$0xff]
    %v252 = vld [vmem:[%s2 + $0xf8] sm:$0xff]
    %v253 = vld [vmem:[%s2 + $0x100] sm:$0xff]
    %v254 = vld [vmem:[%s2 + $0x108] sm:$0xff]
    %v255 = vld [vmem:[%s2 + $0x110] sm:$0xff]
    %v256 = vld [vmem:[%s2 + $0x118] sm:$0xff]
    %v257 = vld [vmem:[%s2 + $0x120] sm:$0xff]
    %v258 = vld [vmem:[%s2 + $0x128] sm:$0xff]
    %v259 = vld [vmem:[%s2 + $0x130] sm:$0xff]
    %v260 = vld [vmem:[%s2 + $0x138] sm:$0xff]
    %v261 = vld [vmem:[%s2 + $0x140] sm:$0xff]
    %v262 = vld [vmem:[%s2 + $0x148] sm:$0xff]
    %v263 = vld [vmem:[%s2 + $0x150] sm:$0xff]
    %v264 = vld [vmem:[%s2 + $0x158] sm:$0xff]
    %v265 = vld [vmem:[%s2 + $0x160] sm:$0xff]
    %v266 = vld [vmem:[%s2 + $0x168] sm:$0xff]
    %v267 = vld [vmem:[%s2 + $0x170] sm:$0xff]
    %v268 = vld [vmem:[%s2 + $0x178] sm:$0xff]
    %v269 = vld [vmem:[%s2 + $0x180] sm:$0xff]
    %v270 = vld [vmem:[%s2 + $0x188] sm:$0xff]
    %v271 = vld [vmem:[%s2 + $0x190] sm:$0xff]
    %v272 = vld [vmem:[%s2 + $0x198] sm:$0xff]
    %v273 = vld [vmem:[%s2 + $0x1a0] sm:$0xff]
    %v274 = vld [vmem:[%s2 + $0x1a8] sm:$0xff]
    %v275 = vld [vmem:[%s2 + $0x1b0] sm:$0xff]
    %v276 = vld [vmem:[%s2 + $0x1b8] sm:$0xff]
    %v277 = vld [vmem:[%s2 + $0x1c0] sm:$0xff]
    %v278 = vld [vmem:[%s2 + $0x1c8] sm:$0xff]
    %v279 = vld [vmem:[%s2 + $0x1d0] sm:$0xff]
    %v280 = vld [vmem:[%s2 + $0x1d8] sm:$0xff]
    %v281 = vld [vmem:[%s2 + $0x1e0] sm:$0xff]
    %v282 = vld [vmem:[%s2 + $0x1e8] sm:$0xff]
    %v283 = vld [vmem:[%s2 + $0x1f0] sm:$0xff]
    %v284 = vld [vmem:[%s2 + $0x1f8] sm:$0xff]
    %v285 = vld [vmem:[%s2 + $0x200] sm:$0xff]
    %v286 = vld [vmem:[%s2 + $0x208] sm:$0xff]
    %v287 = vld [vmem:[%s2 + $0x210] sm:$0xff]
    %v288 = vld [vmem:[%s2 + $0x218] sm:$0xff]
    %v289 = vld [vmem:[%s2 + $0x220] sm:$0xff]
    %v290 = vld [vmem:[%s2 + $0x228] sm:$0xff]
    %v291 = vld [vmem:[%s2 + $0x230] sm:$0xff]
    %v292 = vld [vmem:[%s2 + $0x238] sm:$0xff]
    %v293 = vld [vmem:[%s2 + $0x240] sm:$0xff]
    %v294 = vld [vmem:[%s2 + $0x248] sm:$0xff]
    %v295 = vld [vmem:[%s2 + $0x250] sm:$0xff]
    %v296 = vld [vmem:[%s2 + $0x258] sm:$0xff]
    %v297 = vld [vmem:[%s2 + $0x260] sm:$0xff]
    %v298 = vld [vmem:[%s2 + $0x268] sm:$0xff]
    %v299 = vld [vmem:[%s2 + $0x270] sm:$0xff]
    %v300 = vld [vmem:[%s2 + $0x278] sm:$0xff]
    %v301 = vld [vmem:[%s2 + $0x280] sm:$0xff]
    %v302 = vld [vmem:[%s2 + $0x288] sm:$0xff]
    %v303 = vld [vmem:[%s2 + $0x290] sm:$0xff]
    %v304 = vld [vmem:[%s2 + $0x298] sm:$0xff]
    %v305 = vld [vmem:[%s2 + $0x2a0] sm:$0xff]
    %v306 = vld [vmem:[%s2 + $0x2a8] sm:$0xff]
    %v307 = vld [vmem:[%s2 + $0x2b0] sm:$0xff]
    %v308 = vld [vmem:[%s2 + $0x2b8] sm:$0xff]
    %v309 = vld [vmem:[%s2 + $0x2c0] sm:$0xff]
    %v310 = vld [vmem:[%s2 + $0x2c8] sm:$0xff]
    %v311 = vld [vmem:[%s2 + $0x2d0] sm:$0xff]
    %v312 = vld [vmem:[%s2 + $0x2d8] sm:$0xff]
    %v313 = vld [vmem:[%s2 + $0x2e0] sm:$0xff]
    %v314 = vld [vmem:[%s2 + $0x2e8] sm:$0xff]
    %v315 = vld [vmem:[%s2 + $0x2f0] sm:$0xff]
    %v316 = vld [vmem:[%s2 + $0x2f8] sm:$0xff]
    %v317 = vld [vmem:[%s2 + $0x300] sm:$0xff]
    %v318 = vld [vmem:[%s2 + $0x308] sm:$0xff]
    %v319 = vld [vmem:[%s2 + $0x310] sm:$0xff]
    %v320 = vld [vmem:[%s2 + $0x318] sm:$0xff]
    %v321 = vld [vmem:[%s2 + $0x320] sm:$0xff]
    %v322 = vld [vmem:[%s2 + $0x328] sm:$0xff]
    %v323 = vld [vmem:[%s2 + $0x330] sm:$0xff]
    %v324 = vld [vmem:[%s2 + $0x338] sm:$0xff]
    %v325 = vld [vmem:[%s2 + $0x340] sm:$0xff]
    %v326 = vld [vmem:[%s2 + $0x348] sm:$0xff]
    %v327 = vld [vmem:[%s2 + $0x350] sm:$0xff]
    %v328 = vld [vmem:[%s2 + $0x358] sm:$0xff]
    %v329 = vld [vmem:[%s2 + $0x360] sm:$0xff]
    %v330 = vld [vmem:[%s2 + $0x368] sm:$0xff]
    %v331 = vld [vmem:[%s2 + $0x370] sm:$0xff]
    %v332 = vld [vmem:[%s2 + $0x378] sm:$0xff]
    %v333 = vld [vmem:[%s2 + $0x380] sm:$0xff]
    %v334 = vld [vmem:[%s2 + $0x388] sm:$0xff]
    %v335 = vld [vmem:[%s2 + $0x390] sm:$0xff]
    %v336 = vld [vmem:[%s2 + $0x398] sm:$0xff]
    %v337 = vld [vmem:[%s2 + $0x3a0] sm:$0xff]
    %v338 = vld [vmem:[%s2 + $0x3a8] sm:$0xff]
    %v339 = vld [vmem:[%s2 + $0x3b0] sm:$0xff]
    %v340 = vld [vmem:[%s2 + $0x3b8] sm:$0xff]
    %v341 = vld [vmem:[%s2 + $0x3c0] sm:$0xff]
    %v342 = vld [vmem:[%s2 + $0x3c8] sm:$0xff]
    %v343 = vld [vmem:[%s2 + $0x3d0] sm:$0xff]
    %v344 = vld [vmem:[%s2 + $0x3d8] sm:$0xff]
    %v345 = vld [vmem:[%s2 + $0x3e0] sm:$0xff]
    %v346 = vld [vmem:[%s2 + $0x3e8] sm:$0xff]
    %v347 = vld [vmem:[%s2 + $0x3f0] sm:$0xff]
    %v348 = vld [vmem:[%s2 + $0x3f8] sm:$0xff]
    %v477 = vunpack.c.l.b16 %v221
    %v478 = vunpack.c.h.b16 %v221
    %v479 = vunpack.c.l.b16 %v222
    %v480 = vunpack.c.h.b16 %v222
    %v481 = vunpack.c.l.b16 %v223
    %v482 = vunpack.c.h.b16 %v223
    %v483 = vunpack.c.l.b16 %v224
    %v484 = vunpack.c.h.b16 %v224
    %v485 = vunpack.c.l.b16 %v225
    %v486 = vunpack.c.h.b16 %v225
    %v487 = vunpack.c.l.b16 %v226
    %v488 = vunpack.c.h.b16 %v226
    %v489 = vunpack.c.l.b16 %v227
    %v490 = vunpack.c.h.b16 %v227
    %v491 = vunpack.c.l.b16 %v228
    %v492 = vunpack.c.h.b16 %v228
    %v493 = vunpack.c.l.b16 %v229
    %v494 = vunpack.c.h.b16 %v229
    %v495 = vunpack.c.l.b16 %v230
    %v496 = vunpack.c.h.b16 %v230
    %v497 = vunpack.c.l.b16 %v231
    %v498 = vunpack.c.h.b16 %v231
    %v499 = vunpack.c.l.b16 %v232
    %v500 = vunpack.c.h.b16 %v232
    %v501 = vunpack.c.l.b16 %v233
    %v502 = vunpack.c.h.b16 %v233
    %v503 = vunpack.c.l.b16 %v234
    %v504 = vunpack.c.h.b16 %v234
    %v505 = vunpack.c.l.b16 %v235
    %v506 = vunpack.c.h.b16 %v235
    %v507 = vunpack.c.l.b16 %v236
    %v508 = vunpack.c.h.b16 %v236
    %v509 = vunpack.c.l.b16 %v237
    %v510 = vunpack.c.h.b16 %v237
    %v511 = vunpack.c.l.b16 %v238
    %v512 = vunpack.c.h.b16 %v238
    %v513 = vunpack.c.l.b16 %v239
    %v514 = vunpack.c.h.b16 %v239
    %v515 = vunpack.c.l.b16 %v240
    %v516 = vunpack.c.h.b16 %v240
    %v517 = vunpack.c.l.b16 %v241
    %v518 = vunpack.c.h.b16 %v241
    %v519 = vunpack.c.l.b16 %v242
    %v520 = vunpack.c.h.b16 %v242
    %v521 = vunpack.c.l.b16 %v243
    %v522 = vunpack.c.h.b16 %v243
    %v523 = vunpack.c.l.b16 %v244
    %v524 = vunpack.c.h.b16 %v244
    %v525 = vunpack.c.l.b16 %v245
    %v526 = vunpack.c.h.b16 %v245
    %v527 = vunpack.c.l.b16 %v246
    %v528 = vunpack.c.h.b16 %v246
    %v529 = vunpack.c.l.b16 %v247
    %v530 = vunpack.c.h.b16 %v247
    %v531 = vunpack.c.l.b16 %v248
    %v532 = vunpack.c.h.b16 %v248
    %v533 = vunpack.c.l.b16 %v249
    %v534 = vunpack.c.h.b16 %v249
    %v535 = vunpack.c.l.b16 %v250
    %v536 = vunpack.c.h.b16 %v250
    %v537 = vunpack.c.l.b16 %v251
    %v538 = vunpack.c.h.b16 %v251
    %v539 = vunpack.c.l.b16 %v252
    %v540 = vunpack.c.h.b16 %v252
    %v541 = vunpack.c.l.b16 %v253
    %v542 = vunpack.c.h.b16 %v253
    %v543 = vunpack.c.l.b16 %v254
    %v544 = vunpack.c.h.b16 %v254
    %v545 = vunpack.c.l.b16 %v255
    %v546 = vunpack.c.h.b16 %v255
    %v547 = vunpack.c.l.b16 %v256
    %v548 = vunpack.c.h.b16 %v256
    %v549 = vunpack.c.l.b16 %v257
    %v550 = vunpack.c.h.b16 %v257
    %v551 = vunpack.c.l.b16 %v258
    %v552 = vunpack.c.h.b16 %v258
    %v553 = vunpack.c.l.b16 %v259
    %v554 = vunpack.c.h.b16 %v259
    %v555 = vunpack.c.l.b16 %v260
    %v556 = vunpack.c.h.b16 %v260
    %v557 = vunpack.c.l.b16 %v261
    %v558 = vunpack.c.h.b16 %v261
    %v559 = vunpack.c.l.b16 %v262
    %v560 = vunpack.c.h.b16 %v262
    %v561 = vunpack.c.l.b16 %v263
    %v562 = vunpack.c.h.b16 %v263
    %v563 = vunpack.c.l.b16 %v264
    %v564 = vunpack.c.h.b16 %v264
    %v565 = vunpack.c.l.b16 %v265
    %v566 = vunpack.c.h.b16 %v265
    %v567 = vunpack.c.l.b16 %v266
    %v568 = vunpack.c.h.b16 %v266
    %v569 = vunpack.c.l.b16 %v267
    %v570 = vunpack.c.h.b16 %v267
    %v571 = vunpack.c.l.b16 %v268
    %v572 = vunpack.c.h.b16 %v268
    %v573 = vunpack.c.l.b16 %v269
    %v574 = vunpack.c.h.b16 %v269
    %v575 = vunpack.c.l.b16 %v270
    %v576 = vunpack.c.h.b16 %v270
    %v577 = vunpack.c.l.b16 %v271
    %v578 = vunpack.c.h.b16 %v271
    %v579 = vunpack.c.l.b16 %v272
    %v580 = vunpack.c.h.b16 %v272
    %v581 = vunpack.c.l.b16 %v273
    %v582 = vunpack.c.h.b16 %v273
    %v583 = vunpack.c.l.b16 %v274
    %v584 = vunpack.c.h.b16 %v274
    %v585 = vunpack.c.l.b16 %v275
    %v586 = vunpack.c.h.b16 %v275
    %v587 = vunpack.c.l.b16 %v276
    %v588 = vunpack.c.h.b16 %v276
    %v589 = vunpack.c.l.b16 %v277
    %v590 = vunpack.c.h.b16 %v277
    %v591 = vunpack.c.l.b16 %v278
    %v592 = vunpack.c.h.b16 %v278
    %v593 = vunpack.c.l.b16 %v279
    %v594 = vunpack.c.h.b16 %v279
    %v595 = vunpack.c.l.b16 %v280
    %v596 = vunpack.c.h.b16 %v280
    %v597 = vunpack.c.l.b16 %v281
    %v598 = vunpack.c.h.b16 %v281
    %v599 = vunpack.c.l.b16 %v282
    %v600 = vunpack.c.h.b16 %v282
    %v601 = vunpack.c.l.b16 %v283
    %v602 = vunpack.c.h.b16 %v283
    %v603 = vunpack.c.l.b16 %v284
    %v604 = vunpack.c.h.b16 %v284
    %v605 = vunpack.c.l.b16 %v285
    %v606 = vunpack.c.h.b16 %v285
    %v607 = vunpack.c.l.b16 %v286
    %v608 = vunpack.c.h.b16 %v286
    %v609 = vunpack.c.l.b16 %v287
    %v610 = vunpack.c.h.b16 %v287
    %v611 = vunpack.c.l.b16 %v288
    %v612 = vunpack.c.h.b16 %v288
    %v613 = vunpack.c.l.b16 %v289
    %v614 = vunpack.c.h.b16 %v289
    %v615 = vunpack.c.l.b16 %v290
    %v616 = vunpack.c.h.b16 %v290
    %v617 = vunpack.c.l.b16 %v291
    %v618 = vunpack.c.h.b16 %v291
    %v619 = vunpack.c.l.b16 %v292
    %v620 = vunpack.c.h.b16 %v292
    %v621 = vunpack.c.l.b16 %v293
    %v622 = vunpack.c.h.b16 %v293
    %v623 = vunpack.c.l.b16 %v294
    %v624 = vunpack.c.h.b16 %v294
    %v625 = vunpack.c.l.b16 %v295
    %v626 = vunpack.c.h.b16 %v295
    %v627 = vunpack.c.l.b16 %v296
    %v628 = vunpack.c.h.b16 %v296
    %v629 = vunpack.c.l.b16 %v297
    %v630 = vunpack.c.h.b16 %v297
    %v631 = vunpack.c.l.b16 %v298
    %v632 = vunpack.c.h.b16 %v298
    %v633 = vunpack.c.l.b16 %v299
    %v634 = vunpack.c.h.b16 %v299
    %v635 = vunpack.c.l.b16 %v300
    %v636 = vunpack.c.h.b16 %v300
    %v637 = vunpack.c.l.b16 %v301
    %v638 = vunpack.c.h.b16 %v301
    %v639 = vunpack.c.l.b16 %v302
    %v640 = vunpack.c.h.b16 %v302
    %v641 = vunpack.c.l.b16 %v303
    %v642 = vunpack.c.h.b16 %v303
    %v643 = vunpack.c.l.b16 %v304
    %v644 = vunpack.c.h.b16 %v304
    %v645 = vunpack.c.l.b16 %v305
    %v646 = vunpack.c.h.b16 %v305
    %v647 = vunpack.c.l.b16 %v306
    %v648 = vunpack.c.h.b16 %v306
    %v649 = vunpack.c.l.b16 %v307
    %v650 = vunpack.c.h.b16 %v307
    %v651 = vunpack.c.l.b16 %v308
    %v652 = vunpack.c.h.b16 %v308
    %v653 = vunpack.c.l.b16 %v309
    %v654 = vunpack.c.h.b16 %v309
    %v655 = vunpack.c.l.b16 %v310
    %v656 = vunpack.c.h.b16 %v310
    %v657 = vunpack.c.l.b16 %v311
    %v658 = vunpack.c.h.b16 %v311
    %v659 = vunpack.c.l.b16 %v312
    %v660 = vunpack.c.h.b16 %v312
    %v661 = vunpack.c.l.b16 %v313
    %v662 = vunpack.c.h.b16 %v313
    %v663 = vunpack.c.l.b16 %v314
    %v664 = vunpack.c.h.b16 %v314
    %v665 = vunpack.c.l.b16 %v315
    %v666 = vunpack.c.h.b16 %v315
    %v667 = vunpack.c.l.b16 %v316
    %v668 = vunpack.c.h.b16 %v316
    %v669 = vunpack.c.l.b16 %v317
    %v670 = vunpack.c.h.b16 %v317
    %v671 = vunpack.c.l.b16 %v318
    %v672 = vunpack.c.h.b16 %v318
    %v673 = vunpack.c.l.b16 %v319
    %v674 = vunpack.c.h.b16 %v319
    %v675 = vunpack.c.l.b16 %v320
    %v676 = vunpack.c.h.b16 %v320
    %v677 = vunpack.c.l.b16 %v321
    %v678 = vunpack.c.h.b16 %v321
    %v679 = vunpack.c.l.b16 %v322
    %v680 = vunpack.c.h.b16 %v322
    %v681 = vunpack.c.l.b16 %v323
    %v682 = vunpack.c.h.b16 %v323
    %v683 = vunpack.c.l.b16 %v324
    %v684 = vunpack.c.h.b16 %v324
    %v685 = vunpack.c.l.b16 %v325
    %v686 = vunpack.c.h.b16 %v325
    %v687 = vunpack.c.l.b16 %v326
    %v688 = vunpack.c.h.b16 %v326
    %v689 = vunpack.c.l.b16 %v327
    %v690 = vunpack.c.h.b16 %v327
    %v691 = vunpack.c.l.b16 %v328
    %v692 = vunpack.c.h.b16 %v328
    %v693 = vunpack.c.l.b16 %v329
    %v694 = vunpack.c.h.b16 %v329
    %v695 = vunpack.c.l.b16 %v330
    %v696 = vunpack.c.h.b16 %v330
    %v697 = vunpack.c.l.b16 %v331
    %v698 = vunpack.c.h.b16 %v331
    %v699 = vunpack.c.l.b16 %v332
    %v700 = vunpack.c.h.b16 %v332
    %v701 = vunpack.c.l.b16 %v333
    %v702 = vunpack.c.h.b16 %v333
    %v703 = vunpack.c.l.b16 %v334
    %v704 = vunpack.c.h.b16 %v334
    %v705 = vunpack.c.l.b16 %v335
    %v706 = vunpack.c.h.b16 %v335
    %v707 = vunpack.c.l.b16 %v336
    %v708 = vunpack.c.h.b16 %v336
    %v709 = vunpack.c.l.b16 %v337
    %v710 = vunpack.c.h.b16 %v337
    %v711 = vunpack.c.l.b16 %v338
    %v712 = vunpack.c.h.b16 %v338
    %v713 = vunpack.c.l.b16 %v339
    %v714 = vunpack.c.h.b16 %v339
    %v715 = vunpack.c.l.b16 %v340
    %v716 = vunpack.c.h.b16 %v340
    %v717 = vunpack.c.l.b16 %v341
    %v718 = vunpack.c.h.b16 %v341
    %v719 = vunpack.c.l.b16 %v342
    %v720 = vunpack.c.h.b16 %v342
    %v721 = vunpack.c.l.b16 %v343
    %v722 = vunpack.c.h.b16 %v343
    %v723 = vunpack.c.l.b16 %v344
    %v724 = vunpack.c.h.b16 %v344
    %v725 = vunpack.c.l.b16 %v345
    %v726 = vunpack.c.h.b16 %v345
    %v727 = vunpack.c.l.b16 %v346
    %v728 = vunpack.c.h.b16 %v346
    %v729 = vunpack.c.l.b16 %v347
    %v730 = vunpack.c.h.b16 %v347
    %v731 = vunpack.c.l.b16 %v348
    %v732 = vunpack.c.h.b16 %v348
    %v733 = vpack.c.b16 %v485, %v477
    %v734 = vpack.c.b16 %v486, %v478
    %v735 = vpack.c.b16 %v487, %v479
    %v736 = vpack.c.b16 %v488, %v480
    %v737 = vpack.c.b16 %v489, %v481
    %v738 = vpack.c.b16 %v490, %v482
    %v739 = vpack.c.b16 %v491, %v483
    %v740 = vpack.c.b16 %v492, %v484
    %v741 = vpack.c.b16 %v501, %v493
    %v742 = vpack.c.b16 %v502, %v494
    %v743 = vpack.c.b16 %v503, %v495
    %v744 = vpack.c.b16 %v504, %v496
    %v745 = vpack.c.b16 %v505, %v497
    %v746 = vpack.c.b16 %v506, %v498
    %v747 = vpack.c.b16 %v507, %v499
    %v748 = vpack.c.b16 %v508, %v500
    %v749 = vpack.c.b16 %v517, %v509
    %v750 = vpack.c.b16 %v518, %v510
    %v751 = vpack.c.b16 %v519, %v511
    %v752 = vpack.c.b16 %v520, %v512
    %v753 = vpack.c.b16 %v521, %v513
    %v754 = vpack.c.b16 %v522, %v514
    %v755 = vpack.c.b16 %v523, %v515
    %v756 = vpack.c.b16 %v524, %v516
    %v757 = vpack.c.b16 %v533, %v525
    %v758 = vpack.c.b16 %v534, %v526
    %v759 = vpack.c.b16 %v535, %v527
    %v760 = vpack.c.b16 %v536, %v528
    %v761 = vpack.c.b16 %v537, %v529
    %v762 = vpack.c.b16 %v538, %v530
    %v763 = vpack.c.b16 %v539, %v531
    %v764 = vpack.c.b16 %v540, %v532
    %v765 = vpack.c.b16 %v549, %v541
    %v766 = vpack.c.b16 %v550, %v542
    %v767 = vpack.c.b16 %v551, %v543
    %v768 = vpack.c.b16 %v552, %v544
    %v769 = vpack.c.b16 %v553, %v545
    %v770 = vpack.c.b16 %v554, %v546
    %v771 = vpack.c.b16 %v555, %v547
    %v772 = vpack.c.b16 %v556, %v548
    %v773 = vpack.c.b16 %v565, %v557
    %v774 = vpack.c.b16 %v566, %v558
    %v775 = vpack.c.b16 %v567, %v559
    %v776 = vpack.c.b16 %v568, %v560
    %v777 = vpack.c.b16 %v569, %v561
    %v778 = vpack.c.b16 %v570, %v562
    %v779 = vpack.c.b16 %v571, %v563
    %v780 = vpack.c.b16 %v572, %v564
    %v781 = vpack.c.b16 %v581, %v573
    %v782 = vpack.c.b16 %v582, %v574
    %v783 = vpack.c.b16 %v583, %v575
    %v784 = vpack.c.b16 %v584, %v576
    %v785 = vpack.c.b16 %v585, %v577
    %v786 = vpack.c.b16 %v586, %v578
    %v787 = vpack.c.b16 %v587, %v579
    %v788 = vpack.c.b16 %v588, %v580
    %v789 = vpack.c.b16 %v597, %v589
    %v790 = vpack.c.b16 %v598, %v590
    %v791 = vpack.c.b16 %v599, %v591
    %v792 = vpack.c.b16 %v600, %v592
    %v793 = vpack.c.b16 %v601, %v593
    %v794 = vpack.c.b16 %v602, %v594
    %v795 = vpack.c.b16 %v603, %v595
    %v796 = vpack.c.b16 %v604, %v596
    %v797 = vpack.c.b16 %v613, %v605
    %v798 = vpack.c.b16 %v614, %v606
    %v799 = vpack.c.b16 %v615, %v607
    %v800 = vpack.c.b16 %v616, %v608
    %v801 = vpack.c.b16 %v617, %v609
    %v802 = vpack.c.b16 %v618, %v610
    %v803 = vpack.c.b16 %v619, %v611
    %v804 = vpack.c.b16 %v620, %v612
    %v805 = vpack.c.b16 %v629, %v621
    %v806 = vpack.c.b16 %v630, %v622
    %v807 = vpack.c.b16 %v631, %v623
    %v808 = vpack.c.b16 %v632, %v624
    %v809 = vpack.c.b16 %v633, %v625
    %v810 = vpack.c.b16 %v634, %v626
    %v811 = vpack.c.b16 %v635, %v627
    %v812 = vpack.c.b16 %v636, %v628
    %v813 = vpack.c.b16 %v645, %v637
    %v814 = vpack.c.b16 %v646, %v638
    %v815 = vpack.c.b16 %v647, %v639
    %v816 = vpack.c.b16 %v648, %v640
    %v817 = vpack.c.b16 %v649, %v641
    %v818 = vpack.c.b16 %v650, %v642
    %v819 = vpack.c.b16 %v651, %v643
    %v820 = vpack.c.b16 %v652, %v644
    %v821 = vpack.c.b16 %v661, %v653
    %v822 = vpack.c.b16 %v662, %v654
    %v823 = vpack.c.b16 %v663, %v655
    %v824 = vpack.c.b16 %v664, %v656
    %v825 = vpack.c.b16 %v665, %v657
    %v826 = vpack.c.b16 %v666, %v658
    %v827 = vpack.c.b16 %v667, %v659
    %v828 = vpack.c.b16 %v668, %v660
    %v829 = vpack.c.b16 %v677, %v669
    %v830 = vpack.c.b16 %v678, %v670
    %v831 = vpack.c.b16 %v679, %v671
    %v832 = vpack.c.b16 %v680, %v672
    %v833 = vpack.c.b16 %v681, %v673
    %v834 = vpack.c.b16 %v682, %v674
    %v835 = vpack.c.b16 %v683, %v675
    %v836 = vpack.c.b16 %v684, %v676
    %v837 = vpack.c.b16 %v693, %v685
    %v838 = vpack.c.b16 %v694, %v686
    %v839 = vpack.c.b16 %v695, %v687
    %v840 = vpack.c.b16 %v696, %v688
    %v841 = vpack.c.b16 %v697, %v689
    %v842 = vpack.c.b16 %v698, %v690
    %v843 = vpack.c.b16 %v699, %v691
    %v844 = vpack.c.b16 %v700, %v692
    %v845 = vpack.c.b16 %v709, %v701
    %v846 = vpack.c.b16 %v710, %v702
    %v847 = vpack.c.b16 %v711, %v703
    %v848 = vpack.c.b16 %v712, %v704
    %v849 = vpack.c.b16 %v713, %v705
    %v850 = vpack.c.b16 %v714, %v706
    %v851 = vpack.c.b16 %v715, %v707
    %v852 = vpack.c.b16 %v716, %v708
    %v853 = vpack.c.b16 %v725, %v717
    %v854 = vpack.c.b16 %v726, %v718
    %v855 = vpack.c.b16 %v727, %v719
    %v856 = vpack.c.b16 %v728, %v720
    %v857 = vpack.c.b16 %v729, %v721
    %v858 = vpack.c.b16 %v730, %v722
    %v859 = vpack.c.b16 %v731, %v723
    %v860 = vpack.c.b16 %v732, %v724
    %989 = vmatprep.subr.bf16.mxu0 %v734
    %990 = vmatpush1.bf16.msra.mxu0 %v733
    %991 = vmatprep.subr.bf16.mxu0 %v742
    %992 = vmatpush1.bf16.msra.mxu0 %v741
    %993 = vmatprep.subr.bf16.mxu0 %v750
    %994 = vmatpush1.bf16.msra.mxu0 %v749
    %995 = vmatprep.subr.bf16.mxu0 %v758
    %996 = vmatpush1.bf16.msra.mxu0 %v757
    %997 = vmatprep.subr.bf16.mxu0 %v766
    %998 = vmatpush1.bf16.msra.mxu0 %v765
    %999 = vmatprep.subr.bf16.mxu0 %v774
    %1000 = vmatpush1.bf16.msra.mxu0 %v773
    %1001 = vmatprep.subr.bf16.mxu0 %v782
    %1002 = vmatpush1.bf16.msra.mxu0 %v781
    %1003 = vmatprep.subr.bf16.mxu0 %v790
    %1004 = vmatpush1.bf16.msra.mxu0 %v789
    %1005 = vmatprep.subr.bf16.mxu0 %v798
    %1006 = vmatpush1.bf16.msra.mxu0 %v797
    %1007 = vmatprep.subr.bf16.mxu0 %v806
    %1008 = vmatpush1.bf16.msra.mxu0 %v805
    %1009 = vmatprep.subr.bf16.mxu0 %v814
    %1010 = vmatpush1.bf16.msra.mxu0 %v813
    %1011 = vmatprep.subr.bf16.mxu0 %v822
    %1012 = vmatpush1.bf16.msra.mxu0 %v821
    %1013 = vmatprep.subr.bf16.mxu0 %v830
    %1014 = vmatpush1.bf16.msra.mxu0 %v829
    %1015 = vmatprep.subr.bf16.mxu0 %v838
    %1016 = vmatpush1.bf16.msra.mxu0 %v837
    %1017 = vmatprep.subr.bf16.mxu0 %v846
    %1018 = vmatpush1.bf16.msra.mxu0 %v845
    %1019 = vmatprep.subr.bf16.mxu0 %v854
    %1020 = vmatpush1.bf16.msra.mxu0 %v853
    %1021 = vmatprep.mubr.bf16.mxu0 %v220
    %1022 = vmatmul.mubr.bf16.gmra.mrb[0].mxu0 %v219
    %v1023 = vpop.f32.mrb[0].mxu0
    %v1024 = vadd.f32 0.0, %v1023
    %v1025 = vpop.f32.mrb[0].mxu0
    %v1026 = vadd.f32 0.0, %v1025
    %v1027 = vpop.f32.mrb[0].mxu0
    %v1028 = vpop.f32.mrb[0].mxu0
    %1029 = vdwg.mxu0
    %1030 = vmatprep.subr.bf16.mxu0 %v736
    %1031 = vmatpush1.bf16.msra.mxu0 %v735
    %1032 = vmatprep.subr.bf16.mxu0 %v744
    %1033 = vmatpush1.bf16.msra.mxu0 %v743
    %1034 = vmatprep.subr.bf16.mxu0 %v752
    %1035 = vmatpush1.bf16.msra.mxu0 %v751
    %1036 = vmatprep.subr.bf16.mxu0 %v760
    %1037 = vmatpush1.bf16.msra.mxu0 %v759
    %1038 = vmatprep.subr.bf16.mxu0 %v768
    %1039 = vmatpush1.bf16.msra.mxu0 %v767
    %1040 = vmatprep.subr.bf16.mxu0 %v776
    %1041 = vmatpush1.bf16.msra.mxu0 %v775
    %1042 = vmatprep.subr.bf16.mxu0 %v784
    %1043 = vmatpush1.bf16.msra.mxu0 %v783
    %1044 = vmatprep.subr.bf16.mxu0 %v792
    %1045 = vmatpush1.bf16.msra.mxu0 %v791
    %1046 = vmatprep.subr.bf16.mxu0 %v800
    %1047 = vmatpush1.bf16.msra.mxu0 %v799
    %1048 = vmatprep.subr.bf16.mxu0 %v808
    %1049 = vmatpush1.bf16.msra.mxu0 %v807
    %1050 = vmatprep.subr.bf16.mxu0 %v816
    %1051 = vmatpush1.bf16.msra.mxu0 %v815
    %1052 = vmatprep.subr.bf16.mxu0 %v824
    %1053 = vmatpush1.bf16.msra.mxu0 %v823
    %1054 = vmatprep.subr.bf16.mxu0 %v832
    %1055 = vmatpush1.bf16.msra.mxu0 %v831
    %1056 = vmatprep.subr.bf16.mxu0 %v840
    %1057 = vmatpush1.bf16.msra.mxu0 %v839
    %1058 = vmatprep.subr.bf16.mxu0 %v848
    %1059 = vmatpush1.bf16.msra.mxu0 %v847
    %1060 = vmatprep.subr.bf16.mxu0 %v856
    %1061 = vmatpush1.bf16.msra.mxu0 %v855
    %1062 = vmatprep.mubr.bf16.mxu0 %v220
    %1063 = vmatmul.mubr.bf16.gmra.mrb[0].mxu0 %v219
    %v1064 = vpop.f32.mrb[0].mxu0
    %v1065 = vadd.f32 0.0, %v1064
    %v1066 = vpop.f32.mrb[0].mxu0
    %v1067 = vadd.f32 0.0, %v1066
    %v1068 = vpop.f32.mrb[0].mxu0
    %v1069 = vpop.f32.mrb[0].mxu0
    %1070 = vdwg.mxu0
    %1071 = vmatprep.subr.bf16.mxu0 %v738
    %1072 = vmatpush1.bf16.msra.mxu0 %v737
    %1073 = vmatprep.subr.bf16.mxu0 %v746
    %1074 = vmatpush1.bf16.msra.mxu0 %v745
    %1075 = vmatprep.subr.bf16.mxu0 %v754
    %1076 = vmatpush1.bf16.msra.mxu0 %v753
    %1077 = vmatprep.subr.bf16.mxu0 %v762
    %1078 = vmatpush1.bf16.msra.mxu0 %v761
    %1079 = vmatprep.subr.bf16.mxu0 %v770
    %1080 = vmatpush1.bf16.msra.mxu0 %v769
    %1081 = vmatprep.subr.bf16.mxu0 %v778
    %1082 = vmatpush1.bf16.msra.mxu0 %v777
    %1083 = vmatprep.subr.bf16.mxu0 %v786
    %1084 = vmatpush1.bf16.msra.mxu0 %v785
    %1085 = vmatprep.subr.bf16.mxu0 %v794
    %1086 = vmatpush1.bf16.msra.mxu0 %v793
    %1087 = vmatprep.subr.bf16.mxu0 %v802
    %1088 = vmatpush1.bf16.msra.mxu0 %v801
    %1089 = vmatprep.subr.bf16.mxu0 %v810
    %1090 = vmatpush1.bf16.msra.mxu0 %v809
    %1091 = vmatprep.subr.bf16.mxu0 %v818
    %1092 = vmatpush1.bf16.msra.mxu0 %v817
    %1093 = vmatprep.subr.bf16.mxu0 %v826
    %1094 = vmatpush1.bf16.msra.mxu0 %v825
    %1095 = vmatprep.subr.bf16.mxu0 %v834
    %1096 = vmatpush1.bf16.msra.mxu0 %v833
    %1097 = vmatprep.subr.bf16.mxu0 %v842
    %1098 = vmatpush1.bf16.msra.mxu0 %v841
    %1099 = vmatprep.subr.bf16.mxu0 %v850
    %1100 = vmatpush1.bf16.msra.mxu0 %v849
    %1101 = vmatprep.subr.bf16.mxu0 %v858
    %1102 = vmatpush1.bf16.msra.mxu0 %v857
    %1103 = vmatprep.mubr.bf16.mxu0 %v220
    %1104 = vmatmul.mubr.bf16.gmra.mrb[0].mxu0 %v219
    %v1105 = vpop.f32.mrb[0].mxu0
    %v1106 = vadd.f32 0.0, %v1105
    %v1107 = vpop.f32.mrb[0].mxu0
    %v1108 = vadd.f32 0.0, %v1107
    %v1109 = vpop.f32.mrb[0].mxu0
    %v1110 = vpop.f32.mrb[0].mxu0
    %1111 = vdwg.mxu0
    %1112 = vmatprep.subr.bf16.mxu0 %v740
    %1113 = vmatpush1.bf16.msra.mxu0 %v739
    %1114 = vmatprep.subr.bf16.mxu0 %v748
    %1115 = vmatpush1.bf16.msra.mxu0 %v747
    %1116 = vmatprep.subr.bf16.mxu0 %v756
    %1117 = vmatpush1.bf16.msra.mxu0 %v755
    %1118 = vmatprep.subr.bf16.mxu0 %v764
    %1119 = vmatpush1.bf16.msra.mxu0 %v763
    %1120 = vmatprep.subr.bf16.mxu0 %v772
    %1121 = vmatpush1.bf16.msra.mxu0 %v771
    %1122 = vmatprep.subr.bf16.mxu0 %v780
    %1123 = vmatpush1.bf16.msra.mxu0 %v779
    %1124 = vmatprep.subr.bf16.mxu0 %v788
    %1125 = vmatpush1.bf16.msra.mxu0 %v787
    %1126 = vmatprep.subr.bf16.mxu0 %v796
    %1127 = vmatpush1.bf16.msra.mxu0 %v795
    %1128 = vmatprep.subr.bf16.mxu0 %v804
    %1129 = vmatpush1.bf16.msra.mxu0 %v803
    %1130 = vmatprep.subr.bf16.mxu0 %v812
    %1131 = vmatpush1.bf16.msra.mxu0 %v811
    %1132 = vmatprep.subr.bf16.mxu0 %v820
    %1133 = vmatpush1.bf16.msra.mxu0 %v819
    %1134 = vmatprep.subr.bf16.mxu0 %v828
    %1135 = vmatpush1.bf16.msra.mxu0 %v827
    %1136 = vmatprep.subr.bf16.mxu0 %v836
    %1137 = vmatpush1.bf16.msra.mxu0 %v835
    %1138 = vmatprep.subr.bf16.mxu0 %v844
    %1139 = vmatpush1.bf16.msra.mxu0 %v843
    %1140 = vmatprep.subr.bf16.mxu0 %v852
    %1141 = vmatpush1.bf16.msra.mxu0 %v851
    %1142 = vmatprep.subr.bf16.mxu0 %v860
    %1143 = vmatpush1.bf16.msra.mxu0 %v859
    %1144 = vmatprep.mubr.bf16.mxu0 %v220
    %1145 = vmatmul.mubr.bf16.gmra.mrb[0].mxu0 %v219
    %v1146 = vpop.f32.mrb[0].mxu0
    %v1147 = vadd.f32 0.0, %v1146
    %v1148 = vpop.f32.mrb[0].mxu0
    %v1149 = vadd.f32 0.0, %v1148
    %v1150 = vpop.f32.mrb[0].mxu0
    %v1151 = vpop.f32.mrb[0].mxu0
    %1152 = vdwg.mxu0
    %v1153 = vld [vmem:[#allocation4] sm:$0xf]
    %v1154 = vunpack.c.l.bf16 %v1153
    %v1159 = vcombine.low %v1024, %v1026
    %v1160 = vcombine.low %v1065, %v1067
    %v1162 = vunpack.c.l.s4 1983009808
    %v1163 = vunpack.c.0.s8 %v1162
    %v1164 = vlaneseq
    %v1165 = vshrl.u32 %v1164, 7
    %v1166 = vsub.s32 %v1163, %v1165
    %v1167 = vrot.slane %v1159, %v1166
    %v1169 = vunpack.c.l.s4 1983009808
    %v1170 = vunpack.c.0.s8 %v1169
    %v1171 = vlaneseq
    %v1172 = vshrl.u32 %v1171, 7
    %v1173 = vsub.s32 %v1170, %v1172
    %v1174 = vrot.slane %v1160, %v1173
    %v1175 = vcombine.low %v1167, %v1174
    %v1177 = vadd.f32 %v1154, %v1175
    %v1178 = vmul.f32 %v1177, 0.5
    %v1179 = vtanh.pop %v1178
    %v1180 = vadd.f32 %v1179, 1.0
    %v1181 = vmul.f32 %v1180, 0.5
    %v1183 = vrot.slane %v1177, 2
    %v1185 = vmul.f32 %v1183, 0.5
    %v1186 = vtanh.pop %v1185
    %v1187 = vadd.f32 %v1186, 1.0
    %v1188 = vmul.f32 %v1187, 0.5
    %v1189 = vrot.slane %v1177, 4
    %v1191 = vtanh.pop %v1189
    %v1192 = vrot.slane %v1177, 6
    %v1194 = vmul.f32 %v1192, 0.5
    %v1195 = vtanh.pop %v1194
    %v1196 = vadd.f32 %v1195, 1.0
    %v1197 = vmul.f32 %v1196, 0.5
    %v1198 = vld [vmem:[#allocation3] sm:$0x3]
    %v1199 = vmul.f32 %v1188, %v1198
    %v1200 = vmul.f32 %v1181, %v1191
    %v1201 = vadd.f32 %v1199, %v1200
    %v1202 = vtanh.pop %v1201
    %v1203 = vmul.f32 %v1197, %v1202
    %v1204 = vld [vmem:[%s3] sm:$0x3]
    %1206 = vset.pattern.permute.xlu0 0
    %1207 = vperm.xlu0 %1206, %v1204
    %v1208 = vpop.permute.xlu0 %1207
    %v1210 = vmul.f32 %v1201, %v1208
    %1211 = vst [vmem:[#allocation3] sm:$0x3] %v1210
    %v1212 = vmul.f32 %v1203, %v1208
    %1213 = vst [vmem:[#allocation2] sm:$0x3] %v1212
    %v1214 = vpack.c.bf16 %v1212, %v1212
    %1215 = vst [vmem:[%s5] sm:$0x1] %v1214
    %s1216 = scalar_lea.vmem [#allocation5], 28
    %v1217 = vld [vmem:[%s1216] sm:$0xf]
    %v1218 = vunpack.c.l.bf16 %v1217
    %v1223 = vcombine.low %v1106, %v1108
    %v1224 = vcombine.low %v1147, %v1149
    %v1226 = vunpack.c.l.s4 1983009808
    %v1227 = vunpack.c.0.s8 %v1226
    %v1228 = vlaneseq
    %v1229 = vshrl.u32 %v1228, 7
    %v1230 = vsub.s32 %v1227, %v1229
    %v1231 = vrot.slane %v1223, %v1230
    %v1233 = vunpack.c.l.s4 1983009808
    %v1234 = vunpack.c.0.s8 %v1233
    %v1235 = vlaneseq
    %v1236 = vshrl.u32 %v1235, 7
    %v1237 = vsub.s32 %v1234, %v1236
    %v1238 = vrot.slane %v1224, %v1237
    %v1239 = vcombine.low %v1231, %v1238
    %v1241 = vadd.f32 %v1218, %v1239
    %v1242 = vmul.f32 %v1241, 0.5
    %v1243 = vtanh.pop %v1242
    %v1244 = vadd.f32 %v1243, 1.0
    %v1245 = vmul.f32 %v1244, 0.5
    %v1247 = vrot.slane %v1241, 2
    %v1249 = vmul.f32 %v1247, 0.5
    %v1250 = vtanh.pop %v1249
    %v1251 = vadd.f32 %v1250, 1.0
    %v1252 = vmul.f32 %v1251, 0.5
    %v1253 = vrot.slane %v1241, 4
    %v1255 = vtanh.pop %v1253
    %v1256 = vrot.slane %v1241, 6
    %v1258 = vmul.f32 %v1256, 0.5
    %v1259 = vtanh.pop %v1258
    %v1260 = vadd.f32 %v1259, 1.0
    %v1261 = vmul.f32 %v1260, 0.5
    %v1262 = vld [vmem:[#allocation3 + $0x2] sm:$0x3]
    %v1263 = vmul.f32 %v1252, %v1262
    %v1264 = vmul.f32 %v1245, %v1255
    %v1265 = vadd.f32 %v1263, %v1264
    %v1266 = vtanh.pop %v1265
    %v1267 = vmul.f32 %v1261, %v1266
    %s1268 = scalar_lea.vmem %s191, 14
    %v1269 = vld [vmem:[%s1268] sm:$0x3]
    %1271 = vset.pattern.permute.xlu0 0
    %1272 = vperm.xlu0 %1271, %v1269
    %v1273 = vpop.permute.xlu0 %1272
    %v1275 = vmul.f32 %v1265, %v1273
    %1276 = vst [vmem:[#allocation3 + $0x2] sm:$0x3] %v1275
    %v1277 = vmul.f32 %v1267, %v1273
    %1278 = vst [vmem:[#allocation2 + $0x2] sm:$0x3] %v1277
    %v1279 = vpack.c.bf16 %v1277, %v1277
    %s1280 = scalar_lea.vmem %s198, 7
    %1281 = vst [vmem:[%s1280] sm:$0x1] %v1279
    %v1282 = vld [vmem:[#allocation2] sm:$0xf]
    %v1285 = vunpack.c.l.s4 1983009808
    %v1286 = vunpack.c.0.s8 %v1285
    %v1287 = vlaneseq
    %v1288 = vshrl.u32 %v1287, 7
    %v1289 = vsub.s32 %v1286, %v1288
    %v1290 = vrot.slane %v1282, %v1289
    %v1291 = vcombine.high %v1290, %v1290
    %v1294 = vpack.c.bf16 %v1290, %v1290
    %v1295 = vpack.c.bf16 %v1291, %v1291
    %v1296 = vld [vmem:[%s2] sm:$0xff]
    %v1297 = vld [vmem:[%s2 + $0x8] sm:$0xff]
    %v1298 = vld [vmem:[%s2 + $0x10] sm:$0xff]
    %v1299 = vld [vmem:[%s2 + $0x18] sm:$0xff]
    %v1300 = vld [vmem:[%s2 + $0x20] sm:$0xff]
    %v1301 = vld [vmem:[%s2 + $0x28] sm:$0xff]
    %v1302 = vld [vmem:[%s2 + $0x30] sm:$0xff]
    %v1303 = vld [vmem:[%s2 + $0x38] sm:$0xff]
    %v1304 = vld [vmem:[%s2 + $0x40] sm:$0xff]
    %v1305 = vld [vmem:[%s2 + $0x48] sm:$0xff]
    %v1306 = vld [vmem:[%s2 + $0x50] sm:$0xff]
    %v1307 = vld [vmem:[%s2 + $0x58] sm:$0xff]
    %v1308 = vld [vmem:[%s2 + $0x60] sm:$0xff]
    %v1309 = vld [vmem:[%s2 + $0x68] sm:$0xff]
    %v1310 = vld [vmem:[%s2 + $0x70] sm:$0xff]
    %v1311 = vld [vmem:[%s2 + $0x78] sm:$0xff]
    %v1312 = vld [vmem:[%s2 + $0x80] sm:$0xff]
    %v1313 = vld [vmem:[%s2 + $0x88] sm:$0xff]
    %v1314 = vld [vmem:[%s2 + $0x90] sm:$0xff]
    %v1315 = vld [vmem:[%s2 + $0x98] sm:$0xff]
    %v1316 = vld [vmem:[%s2 + $0xa0] sm:$0xff]
    %v1317 = vld [vmem:[%s2 + $0xa8] sm:$0xff]
    %v1318 = vld [vmem:[%s2 + $0xb0] sm:$0xff]
    %v1319 = vld [vmem:[%s2 + $0xb8] sm:$0xff]
    %v1320 = vld [vmem:[%s2 + $0xc0] sm:$0xff]
    %v1321 = vld [vmem:[%s2 + $0xc8] sm:$0xff]
    %v1322 = vld [vmem:[%s2 + $0xd0] sm:$0xff]
    %v1323 = vld [vmem:[%s2 + $0xd8] sm:$0xff]
    %v1324 = vld [vmem:[%s2 + $0xe0] sm:$0xff]
    %v1325 = vld [vmem:[%s2 + $0xe8] sm:$0xff]
    %v1326 = vld [vmem:[%s2 + $0xf0] sm:$0xff]
    %v1327 = vld [vmem:[%s2 + $0xf8] sm:$0xff]
    %v1328 = vld [vmem:[%s2 + $0x100] sm:$0xff]
    %v1329 = vld [vmem:[%s2 + $0x108] sm:$0xff]
    %v1330 = vld [vmem:[%s2 + $0x110] sm:$0xff]
    %v1331 = vld [vmem:[%s2 + $0x118] sm:$0xff]
    %v1332 = vld [vmem:[%s2 + $0x120] sm:$0xff]
    %v1333 = vld [vmem:[%s2 + $0x128] sm:$0xff]
    %v1334 = vld [vmem:[%s2 + $0x130] sm:$0xff]
    %v1335 = vld [vmem:[%s2 + $0x138] sm:$0xff]
    %v1336 = vld [vmem:[%s2 + $0x140] sm:$0xff]
    %v1337 = vld [vmem:[%s2 + $0x148] sm:$0xff]
    %v1338 = vld [vmem:[%s2 + $0x150] sm:$0xff]
    %v1339 = vld [vmem:[%s2 + $0x158] sm:$0xff]
    %v1340 = vld [vmem:[%s2 + $0x160] sm:$0xff]
    %v1341 = vld [vmem:[%s2 + $0x168] sm:$0xff]
    %v1342 = vld [vmem:[%s2 + $0x170] sm:$0xff]
    %v1343 = vld [vmem:[%s2 + $0x178] sm:$0xff]
    %v1344 = vld [vmem:[%s2 + $0x180] sm:$0xff]
    %v1345 = vld [vmem:[%s2 + $0x188] sm:$0xff]
    %v1346 = vld [vmem:[%s2 + $0x190] sm:$0xff]
    %v1347 = vld [vmem:[%s2 + $0x198] sm:$0xff]
    %v1348 = vld [vmem:[%s2 + $0x1a0] sm:$0xff]
    %v1349 = vld [vmem:[%s2 + $0x1a8] sm:$0xff]
    %v1350 = vld [vmem:[%s2 + $0x1b0] sm:$0xff]
    %v1351 = vld [vmem:[%s2 + $0x1b8] sm:$0xff]
    %v1352 = vld [vmem:[%s2 + $0x1c0] sm:$0xff]
    %v1353 = vld [vmem:[%s2 + $0x1c8] sm:$0xff]
    %v1354 = vld [vmem:[%s2 + $0x1d0] sm:$0xff]
    %v1355 = vld [vmem:[%s2 + $0x1d8] sm:$0xff]
    %v1356 = vld [vmem:[%s2 + $0x1e0] sm:$0xff]
    %v1357 = vld [vmem:[%s2 + $0x1e8] sm:$0xff]
    %v1358 = vld [vmem:[%s2 + $0x1f0] sm:$0xff]
    %v1359 = vld [vmem:[%s2 + $0x1f8] sm:$0xff]
    %v1360 = vld [vmem:[%s2 + $0x200] sm:$0xff]
    %v1361 = vld [vmem:[%s2 + $0x208] sm:$0xff]
    %v1362 = vld [vmem:[%s2 + $0x210] sm:$0xff]
    %v1363 = vld [vmem:[%s2 + $0x218] sm:$0xff]
    %v1364 = vld [vmem:[%s2 + $0x220] sm:$0xff]
    %v1365 = vld [vmem:[%s2 + $0x228] sm:$0xff]
    %v1366 = vld [vmem:[%s2 + $0x230] sm:$0xff]
    %v1367 = vld [vmem:[%s2 + $0x238] sm:$0xff]
    %v1368 = vld [vmem:[%s2 + $0x240] sm:$0xff]
    %v1369 = vld [vmem:[%s2 + $0x248] sm:$0xff]
    %v1370 = vld [vmem:[%s2 + $0x250] sm:$0xff]
    %v1371 = vld [vmem:[%s2 + $0x258] sm:$0xff]
    %v1372 = vld [vmem:[%s2 + $0x260] sm:$0xff]
    %v1373 = vld [vmem:[%s2 + $0x268] sm:$0xff]
    %v1374 = vld [vmem:[%s2 + $0x270] sm:$0xff]
    %v1375 = vld [vmem:[%s2 + $0x278] sm:$0xff]
    %v1376 = vld [vmem:[%s2 + $0x280] sm:$0xff]
    %v1377 = vld [vmem:[%s2 + $0x288] sm:$0xff]
    %v1378 = vld [vmem:[%s2 + $0x290] sm:$0xff]
    %v1379 = vld [vmem:[%s2 + $0x298] sm:$0xff]
    %v1380 = vld [vmem:[%s2 + $0x2a0] sm:$0xff]
    %v1381 = vld [vmem:[%s2 + $0x2a8] sm:$0xff]
    %v1382 = vld [vmem:[%s2 + $0x2b0] sm:$0xff]
    %v1383 = vld [vmem:[%s2 + $0x2b8] sm:$0xff]
    %v1384 = vld [vmem:[%s2 + $0x2c0] sm:$0xff]
    %v1385 = vld [vmem:[%s2 + $0x2c8] sm:$0xff]
    %v1386 = vld [vmem:[%s2 + $0x2d0] sm:$0xff]
    %v1387 = vld [vmem:[%s2 + $0x2d8] sm:$0xff]
    %v1388 = vld [vmem:[%s2 + $0x2e0] sm:$0xff]
    %v1389 = vld [vmem:[%s2 + $0x2e8] sm:$0xff]
    %v1390 = vld [vmem:[%s2 + $0x2f0] sm:$0xff]
    %v1391 = vld [vmem:[%s2 + $0x2f8] sm:$0xff]
    %v1392 = vld [vmem:[%s2 + $0x300] sm:$0xff]
    %v1393 = vld [vmem:[%s2 + $0x308] sm:$0xff]
    %v1394 = vld [vmem:[%s2 + $0x310] sm:$0xff]
    %v1395 = vld [vmem:[%s2 + $0x318] sm:$0xff]
    %v1396 = vld [vmem:[%s2 + $0x320] sm:$0xff]
    %v1397 = vld [vmem:[%s2 + $0x328] sm:$0xff]
    %v1398 = vld [vmem:[%s2 + $0x330] sm:$0xff]
    %v1399 = vld [vmem:[%s2 + $0x338] sm:$0xff]
    %v1400 = vld [vmem:[%s2 + $0x340] sm:$0xff]
    %v1401 = vld [vmem:[%s2 + $0x348] sm:$0xff]
    %v1402 = vld [vmem:[%s2 + $0x350] sm:$0xff]
    %v1403 = vld [vmem:[%s2 + $0x358] sm:$0xff]
    %v1404 = vld [vmem:[%s2 + $0x360] sm:$0xff]
    %v1405 = vld [vmem:[%s2 + $0x368] sm:$0xff]
    %v1406 = vld [vmem:[%s2 + $0x370] sm:$0xff]
    %v1407 = vld [vmem:[%s2 + $0x378] sm:$0xff]
    %v1408 = vld [vmem:[%s2 + $0x380] sm:$0xff]
    %v1409 = vld [vmem:[%s2 + $0x388] sm:$0xff]
    %v1410 = vld [vmem:[%s2 + $0x390] sm:$0xff]
    %v1411 = vld [vmem:[%s2 + $0x398] sm:$0xff]
    %v1412 = vld [vmem:[%s2 + $0x3a0] sm:$0xff]
    %v1413 = vld [vmem:[%s2 + $0x3a8] sm:$0xff]
    %v1414 = vld [vmem:[%s2 + $0x3b0] sm:$0xff]
    %v1415 = vld [vmem:[%s2 + $0x3b8] sm:$0xff]
    %v1416 = vld [vmem:[%s2 + $0x3c0] sm:$0xff]
    %v1417 = vld [vmem:[%s2 + $0x3c8] sm:$0xff]
    %v1418 = vld [vmem:[%s2 + $0x3d0] sm:$0xff]
    %v1419 = vld [vmem:[%s2 + $0x3d8] sm:$0xff]
    %v1420 = vld [vmem:[%s2 + $0x3e0] sm:$0xff]
    %v1421 = vld [vmem:[%s2 + $0x3e8] sm:$0xff]
    %v1422 = vld [vmem:[%s2 + $0x3f0] sm:$0xff]
    %v1423 = vld [vmem:[%s2 + $0x3f8] sm:$0xff]
    %v1552 = vunpack.c.l.b16 %v1296
    %v1553 = vunpack.c.h.b16 %v1296
    %v1554 = vunpack.c.l.b16 %v1297
    %v1555 = vunpack.c.h.b16 %v1297
    %v1556 = vunpack.c.l.b16 %v1298
    %v1557 = vunpack.c.h.b16 %v1298
    %v1558 = vunpack.c.l.b16 %v1299
    %v1559 = vunpack.c.h.b16 %v1299
    %v1560 = vunpack.c.l.b16 %v1300
    %v1561 = vunpack.c.h.b16 %v1300
    %v1562 = vunpack.c.l.b16 %v1301
    %v1563 = vunpack.c.h.b16 %v1301
    %v1564 = vunpack.c.l.b16 %v1302
    %v1565 = vunpack.c.h.b16 %v1302
    %v1566 = vunpack.c.l.b16 %v1303
    %v1567 = vunpack.c.h.b16 %v1303
    %v1568 = vunpack.c.l.b16 %v1304
    %v1569 = vunpack.c.h.b16 %v1304
    %v1570 = vunpack.c.l.b16 %v1305
    %v1571 = vunpack.c.h.b16 %v1305
    %v1572 = vunpack.c.l.b16 %v1306
    %v1573 = vunpack.c.h.b16 %v1306
    %v1574 = vunpack.c.l.b16 %v1307
    %v1575 = vunpack.c.h.b16 %v1307
    %v1576 = vunpack.c.l.b16 %v1308
    %v1577 = vunpack.c.h.b16 %v1308
    %v1578 = vunpack.c.l.b16 %v1309
    %v1579 = vunpack.c.h.b16 %v1309
    %v1580 = vunpack.c.l.b16 %v1310
    %v1581 = vunpack.c.h.b16 %v1310
    %v1582 = vunpack.c.l.b16 %v1311
    %v1583 = vunpack.c.h.b16 %v1311
    %v1584 = vunpack.c.l.b16 %v1312
    %v1585 = vunpack.c.h.b16 %v1312
    %v1586 = vunpack.c.l.b16 %v1313
    %v1587 = vunpack.c.h.b16 %v1313
    %v1588 = vunpack.c.l.b16 %v1314
    %v1589 = vunpack.c.h.b16 %v1314
    %v1590 = vunpack.c.l.b16 %v1315
    %v1591 = vunpack.c.h.b16 %v1315
    %v1592 = vunpack.c.l.b16 %v1316
    %v1593 = vunpack.c.h.b16 %v1316
    %v1594 = vunpack.c.l.b16 %v1317
    %v1595 = vunpack.c.h.b16 %v1317
    %v1596 = vunpack.c.l.b16 %v1318
    %v1597 = vunpack.c.h.b16 %v1318
    %v1598 = vunpack.c.l.b16 %v1319
    %v1599 = vunpack.c.h.b16 %v1319
    %v1600 = vunpack.c.l.b16 %v1320
    %v1601 = vunpack.c.h.b16 %v1320
    %v1602 = vunpack.c.l.b16 %v1321
    %v1603 = vunpack.c.h.b16 %v1321
    %v1604 = vunpack.c.l.b16 %v1322
    %v1605 = vunpack.c.h.b16 %v1322
    %v1606 = vunpack.c.l.b16 %v1323
    %v1607 = vunpack.c.h.b16 %v1323
    %v1608 = vunpack.c.l.b16 %v1324
    %v1609 = vunpack.c.h.b16 %v1324
    %v1610 = vunpack.c.l.b16 %v1325
    %v1611 = vunpack.c.h.b16 %v1325
    %v1612 = vunpack.c.l.b16 %v1326
    %v1613 = vunpack.c.h.b16 %v1326
    %v1614 = vunpack.c.l.b16 %v1327
    %v1615 = vunpack.c.h.b16 %v1327
    %v1616 = vunpack.c.l.b16 %v1328
    %v1617 = vunpack.c.h.b16 %v1328
    %v1618 = vunpack.c.l.b16 %v1329
    %v1619 = vunpack.c.h.b16 %v1329
    %v1620 = vunpack.c.l.b16 %v1330
    %v1621 = vunpack.c.h.b16 %v1330
    %v1622 = vunpack.c.l.b16 %v1331
    %v1623 = vunpack.c.h.b16 %v1331
    %v1624 = vunpack.c.l.b16 %v1332
    %v1625 = vunpack.c.h.b16 %v1332
    %v1626 = vunpack.c.l.b16 %v1333
    %v1627 = vunpack.c.h.b16 %v1333
    %v1628 = vunpack.c.l.b16 %v1334
    %v1629 = vunpack.c.h.b16 %v1334
    %v1630 = vunpack.c.l.b16 %v1335
    %v1631 = vunpack.c.h.b16 %v1335
    %v1632 = vunpack.c.l.b16 %v1336
    %v1633 = vunpack.c.h.b16 %v1336
    %v1634 = vunpack.c.l.b16 %v1337
    %v1635 = vunpack.c.h.b16 %v1337
    %v1636 = vunpack.c.l.b16 %v1338
    %v1637 = vunpack.c.h.b16 %v1338
    %v1638 = vunpack.c.l.b16 %v1339
    %v1639 = vunpack.c.h.b16 %v1339
    %v1640 = vunpack.c.l.b16 %v1340
    %v1641 = vunpack.c.h.b16 %v1340
    %v1642 = vunpack.c.l.b16 %v1341
    %v1643 = vunpack.c.h.b16 %v1341
    %v1644 = vunpack.c.l.b16 %v1342
    %v1645 = vunpack.c.h.b16 %v1342
    %v1646 = vunpack.c.l.b16 %v1343
    %v1647 = vunpack.c.h.b16 %v1343
    %v1648 = vunpack.c.l.b16 %v1344
    %v1649 = vunpack.c.h.b16 %v1344
    %v1650 = vunpack.c.l.b16 %v1345
    %v1651 = vunpack.c.h.b16 %v1345
    %v1652 = vunpack.c.l.b16 %v1346
    %v1653 = vunpack.c.h.b16 %v1346
    %v1654 = vunpack.c.l.b16 %v1347
    %v1655 = vunpack.c.h.b16 %v1347
    %v1656 = vunpack.c.l.b16 %v1348
    %v1657 = vunpack.c.h.b16 %v1348
    %v1658 = vunpack.c.l.b16 %v1349
    %v1659 = vunpack.c.h.b16 %v1349
    %v1660 = vunpack.c.l.b16 %v1350
    %v1661 = vunpack.c.h.b16 %v1350
    %v1662 = vunpack.c.l.b16 %v1351
    %v1663 = vunpack.c.h.b16 %v1351
    %v1664 = vunpack.c.l.b16 %v1352
    %v1665 = vunpack.c.h.b16 %v1352
    %v1666 = vunpack.c.l.b16 %v1353
    %v1667 = vunpack.c.h.b16 %v1353
    %v1668 = vunpack.c.l.b16 %v1354
    %v1669 = vunpack.c.h.b16 %v1354
    %v1670 = vunpack.c.l.b16 %v1355
    %v1671 = vunpack.c.h.b16 %v1355
    %v1672 = vunpack.c.l.b16 %v1356
    %v1673 = vunpack.c.h.b16 %v1356
    %v1674 = vunpack.c.l.b16 %v1357
    %v1675 = vunpack.c.h.b16 %v1357
    %v1676 = vunpack.c.l.b16 %v1358
    %v1677 = vunpack.c.h.b16 %v1358
    %v1678 = vunpack.c.l.b16 %v1359
    %v1679 = vunpack.c.h.b16 %v1359
    %v1680 = vunpack.c.l.b16 %v1360
    %v1681 = vunpack.c.h.b16 %v1360
    %v1682 = vunpack.c.l.b16 %v1361
    %v1683 = vunpack.c.h.b16 %v1361
    %v1684 = vunpack.c.l.b16 %v1362
    %v1685 = vunpack.c.h.b16 %v1362
    %v1686 = vunpack.c.l.b16 %v1363
    %v1687 = vunpack.c.h.b16 %v1363
    %v1688 = vunpack.c.l.b16 %v1364
    %v1689 = vunpack.c.h.b16 %v1364
    %v1690 = vunpack.c.l.b16 %v1365
    %v1691 = vunpack.c.h.b16 %v1365
    %v1692 = vunpack.c.l.b16 %v1366
    %v1693 = vunpack.c.h.b16 %v1366
    %v1694 = vunpack.c.l.b16 %v1367
    %v1695 = vunpack.c.h.b16 %v1367
    %v1696 = vunpack.c.l.b16 %v1368
    %v1697 = vunpack.c.h.b16 %v1368
    %v1698 = vunpack.c.l.b16 %v1369
    %v1699 = vunpack.c.h.b16 %v1369
    %v1700 = vunpack.c.l.b16 %v1370
    %v1701 = vunpack.c.h.b16 %v1370
    %v1702 = vunpack.c.l.b16 %v1371
    %v1703 = vunpack.c.h.b16 %v1371
    %v1704 = vunpack.c.l.b16 %v1372
    %v1705 = vunpack.c.h.b16 %v1372
    %v1706 = vunpack.c.l.b16 %v1373
    %v1707 = vunpack.c.h.b16 %v1373
    %v1708 = vunpack.c.l.b16 %v1374
    %v1709 = vunpack.c.h.b16 %v1374
    %v1710 = vunpack.c.l.b16 %v1375
    %v1711 = vunpack.c.h.b16 %v1375
    %v1712 = vunpack.c.l.b16 %v1376
    %v1713 = vunpack.c.h.b16 %v1376
    %v1714 = vunpack.c.l.b16 %v1377
    %v1715 = vunpack.c.h.b16 %v1377
    %v1716 = vunpack.c.l.b16 %v1378
    %v1717 = vunpack.c.h.b16 %v1378
    %v1718 = vunpack.c.l.b16 %v1379
    %v1719 = vunpack.c.h.b16 %v1379
    %v1720 = vunpack.c.l.b16 %v1380
    %v1721 = vunpack.c.h.b16 %v1380
    %v1722 = vunpack.c.l.b16 %v1381
    %v1723 = vunpack.c.h.b16 %v1381
    %v1724 = vunpack.c.l.b16 %v1382
    %v1725 = vunpack.c.h.b16 %v1382
    %v1726 = vunpack.c.l.b16 %v1383
    %v1727 = vunpack.c.h.b16 %v1383
    %v1728 = vunpack.c.l.b16 %v1384
    %v1729 = vunpack.c.h.b16 %v1384
    %v1730 = vunpack.c.l.b16 %v1385
    %v1731 = vunpack.c.h.b16 %v1385
    %v1732 = vunpack.c.l.b16 %v1386
    %v1733 = vunpack.c.h.b16 %v1386
    %v1734 = vunpack.c.l.b16 %v1387
    %v1735 = vunpack.c.h.b16 %v1387
    %v1736 = vunpack.c.l.b16 %v1388
    %v1737 = vunpack.c.h.b16 %v1388
    %v1738 = vunpack.c.l.b16 %v1389
    %v1739 = vunpack.c.h.b16 %v1389
    %v1740 = vunpack.c.l.b16 %v1390
    %v1741 = vunpack.c.h.b16 %v1390
    %v1742 = vunpack.c.l.b16 %v1391
    %v1743 = vunpack.c.h.b16 %v1391
    %v1744 = vunpack.c.l.b16 %v1392
    %v1745 = vunpack.c.h.b16 %v1392
    %v1746 = vunpack.c.l.b16 %v1393
    %v1747 = vunpack.c.h.b16 %v1393
    %v1748 = vunpack.c.l.b16 %v1394
    %v1749 = vunpack.c.h.b16 %v1394
    %v1750 = vunpack.c.l.b16 %v1395
    %v1751 = vunpack.c.h.b16 %v1395
    %v1752 = vunpack.c.l.b16 %v1396
    %v1753 = vunpack.c.h.b16 %v1396
    %v1754 = vunpack.c.l.b16 %v1397
    %v1755 = vunpack.c.h.b16 %v1397
    %v1756 = vunpack.c.l.b16 %v1398
    %v1757 = vunpack.c.h.b16 %v1398
    %v1758 = vunpack.c.l.b16 %v1399
    %v1759 = vunpack.c.h.b16 %v1399
    %v1760 = vunpack.c.l.b16 %v1400
    %v1761 = vunpack.c.h.b16 %v1400
    %v1762 = vunpack.c.l.b16 %v1401
    %v1763 = vunpack.c.h.b16 %v1401
    %v1764 = vunpack.c.l.b16 %v1402
    %v1765 = vunpack.c.h.b16 %v1402
    %v1766 = vunpack.c.l.b16 %v1403
    %v1767 = vunpack.c.h.b16 %v1403
    %v1768 = vunpack.c.l.b16 %v1404
    %v1769 = vunpack.c.h.b16 %v1404
    %v1770 = vunpack.c.l.b16 %v1405
    %v1771 = vunpack.c.h.b16 %v1405
    %v1772 = vunpack.c.l.b16 %v1406
    %v1773 = vunpack.c.h.b16 %v1406
    %v1774 = vunpack.c.l.b16 %v1407
    %v1775 = vunpack.c.h.b16 %v1407
    %v1776 = vunpack.c.l.b16 %v1408
    %v1777 = vunpack.c.h.b16 %v1408
    %v1778 = vunpack.c.l.b16 %v1409
    %v1779 = vunpack.c.h.b16 %v1409
    %v1780 = vunpack.c.l.b16 %v1410
    %v1781 = vunpack.c.h.b16 %v1410
    %v1782 = vunpack.c.l.b16 %v1411
    %v1783 = vunpack.c.h.b16 %v1411
    %v1784 = vunpack.c.l.b16 %v1412
    %v1785 = vunpack.c.h.b16 %v1412
    %v1786 = vunpack.c.l.b16 %v1413
    %v1787 = vunpack.c.h.b16 %v1413
    %v1788 = vunpack.c.l.b16 %v1414
    %v1789 = vunpack.c.h.b16 %v1414
    %v1790 = vunpack.c.l.b16 %v1415
    %v1791 = vunpack.c.h.b16 %v1415
    %v1792 = vunpack.c.l.b16 %v1416
    %v1793 = vunpack.c.h.b16 %v1416
    %v1794 = vunpack.c.l.b16 %v1417
    %v1795 = vunpack.c.h.b16 %v1417
    %v1796 = vunpack.c.l.b16 %v1418
    %v1797 = vunpack.c.h.b16 %v1418
    %v1798 = vunpack.c.l.b16 %v1419
    %v1799 = vunpack.c.h.b16 %v1419
    %v1800 = vunpack.c.l.b16 %v1420
    %v1801 = vunpack.c.h.b16 %v1420
    %v1802 = vunpack.c.l.b16 %v1421
    %v1803 = vunpack.c.h.b16 %v1421
    %v1804 = vunpack.c.l.b16 %v1422
    %v1805 = vunpack.c.h.b16 %v1422
    %v1806 = vunpack.c.l.b16 %v1423
    %v1807 = vunpack.c.h.b16 %v1423
    %v1808 = vpack.c.b16 %v1560, %v1552
    %v1809 = vpack.c.b16 %v1561, %v1553
    %v1810 = vpack.c.b16 %v1562, %v1554
    %v1811 = vpack.c.b16 %v1563, %v1555
    %v1812 = vpack.c.b16 %v1564, %v1556
    %v1813 = vpack.c.b16 %v1565, %v1557
    %v1814 = vpack.c.b16 %v1566, %v1558
    %v1815 = vpack.c.b16 %v1567, %v1559
    %v1816 = vpack.c.b16 %v1576, %v1568
    %v1817 = vpack.c.b16 %v1577, %v1569
    %v1818 = vpack.c.b16 %v1578, %v1570
    %v1819 = vpack.c.b16 %v1579, %v1571
    %v1820 = vpack.c.b16 %v1580, %v1572
    %v1821 = vpack.c.b16 %v1581, %v1573
    %v1822 = vpack.c.b16 %v1582, %v1574
    %v1823 = vpack.c.b16 %v1583, %v1575
    %v1824 = vpack.c.b16 %v1592, %v1584
    %v1825 = vpack.c.b16 %v1593, %v1585
    %v1826 = vpack.c.b16 %v1594, %v1586
    %v1827 = vpack.c.b16 %v1595, %v1587
    %v1828 = vpack.c.b16 %v1596, %v1588
    %v1829 = vpack.c.b16 %v1597, %v1589
    %v1830 = vpack.c.b16 %v1598, %v1590
    %v1831 = vpack.c.b16 %v1599, %v1591
    %v1832 = vpack.c.b16 %v1608, %v1600
    %v1833 = vpack.c.b16 %v1609, %v1601
    %v1834 = vpack.c.b16 %v1610, %v1602
    %v1835 = vpack.c.b16 %v1611, %v1603
    %v1836 = vpack.c.b16 %v1612, %v1604
    %v1837 = vpack.c.b16 %v1613, %v1605
    %v1838 = vpack.c.b16 %v1614, %v1606
    %v1839 = vpack.c.b16 %v1615, %v1607
    %v1840 = vpack.c.b16 %v1624, %v1616
    %v1841 = vpack.c.b16 %v1625, %v1617
    %v1842 = vpack.c.b16 %v1626, %v1618
    %v1843 = vpack.c.b16 %v1627, %v1619
    %v1844 = vpack.c.b16 %v1628, %v1620
    %v1845 = vpack.c.b16 %v1629, %v1621
    %v1846 = vpack.c.b16 %v1630, %v1622
    %v1847 = vpack.c.b16 %v1631, %v1623
    %v1848 = vpack.c.b16 %v1640, %v1632
    %v1849 = vpack.c.b16 %v1641, %v1633
    %v1850 = vpack.c.b16 %v1642, %v1634
    %v1851 = vpack.c.b16 %v1643, %v1635
    %v1852 = vpack.c.b16 %v1644, %v1636
    %v1853 = vpack.c.b16 %v1645, %v1637
    %v1854 = vpack.c.b16 %v1646, %v1638
    %v1855 = vpack.c.b16 %v1647, %v1639
    %v1856 = vpack.c.b16 %v1656, %v1648
    %v1857 = vpack.c.b16 %v1657, %v1649
    %v1858 = vpack.c.b16 %v1658, %v1650
    %v1859 = vpack.c.b16 %v1659, %v1651
    %v1860 = vpack.c.b16 %v1660, %v1652
    %v1861 = vpack.c.b16 %v1661, %v1653
    %v1862 = vpack.c.b16 %v1662, %v1654
    %v1863 = vpack.c.b16 %v1663, %v1655
    %v1864 = vpack.c.b16 %v1672, %v1664
    %v1865 = vpack.c.b16 %v1673, %v1665
    %v1866 = vpack.c.b16 %v1674, %v1666
    %v1867 = vpack.c.b16 %v1675, %v1667
    %v1868 = vpack.c.b16 %v1676, %v1668
    %v1869 = vpack.c.b16 %v1677, %v1669
    %v1870 = vpack.c.b16 %v1678, %v1670
    %v1871 = vpack.c.b16 %v1679, %v1671
    %v1872 = vpack.c.b16 %v1688, %v1680
    %v1873 = vpack.c.b16 %v1689, %v1681
    %v1874 = vpack.c.b16 %v1690, %v1682
    %v1875 = vpack.c.b16 %v1691, %v1683
    %v1876 = vpack.c.b16 %v1692, %v1684
    %v1877 = vpack.c.b16 %v1693, %v1685
    %v1878 = vpack.c.b16 %v1694, %v1686
    %v1879 = vpack.c.b16 %v1695, %v1687
    %v1880 = vpack.c.b16 %v1704, %v1696
    %v1881 = vpack.c.b16 %v1705, %v1697
    %v1882 = vpack.c.b16 %v1706, %v1698
    %v1883 = vpack.c.b16 %v1707, %v1699
    %v1884 = vpack.c.b16 %v1708, %v1700
    %v1885 = vpack.c.b16 %v1709, %v1701
    %v1886 = vpack.c.b16 %v1710, %v1702
    %v1887 = vpack.c.b16 %v1711, %v1703
    %v1888 = vpack.c.b16 %v1720, %v1712
    %v1889 = vpack.c.b16 %v1721, %v1713
    %v1890 = vpack.c.b16 %v1722, %v1714
    %v1891 = vpack.c.b16 %v1723, %v1715
    %v1892 = vpack.c.b16 %v1724, %v1716
    %v1893 = vpack.c.b16 %v1725, %v1717
    %v1894 = vpack.c.b16 %v1726, %v1718
    %v1895 = vpack.c.b16 %v1727, %v1719
    %v1896 = vpack.c.b16 %v1736, %v1728
    %v1897 = vpack.c.b16 %v1737, %v1729
    %v1898 = vpack.c.b16 %v1738, %v1730
    %v1899 = vpack.c.b16 %v1739, %v1731
    %v1900 = vpack.c.b16 %v1740, %v1732
    %v1901 = vpack.c.b16 %v1741, %v1733
    %v1902 = vpack.c.b16 %v1742, %v1734
    %v1903 = vpack.c.b16 %v1743, %v1735
    %v1904 = vpack.c.b16 %v1752, %v1744
    %v1905 = vpack.c.b16 %v1753, %v1745
    %v1906 = vpack.c.b16 %v1754, %v1746
    %v1907 = vpack.c.b16 %v1755, %v1747
    %v1908 = vpack.c.b16 %v1756, %v1748
    %v1909 = vpack.c.b16 %v1757, %v1749
    %v1910 = vpack.c.b16 %v1758, %v1750
    %v1911 = vpack.c.b16 %v1759, %v1751
    %v1912 = vpack.c.b16 %v1768, %v1760
    %v1913 = vpack.c.b16 %v1769, %v1761
    %v1914 = vpack.c.b16 %v1770, %v1762
    %v1915 = vpack.c.b16 %v1771, %v1763
    %v1916 = vpack.c.b16 %v1772, %v1764
    %v1917 = vpack.c.b16 %v1773, %v1765
    %v1918 = vpack.c.b16 %v1774, %v1766
    %v1919 = vpack.c.b16 %v1775, %v1767
    %v1920 = vpack.c.b16 %v1784, %v1776
    %v1921 = vpack.c.b16 %v1785, %v1777
    %v1922 = vpack.c.b16 %v1786, %v1778
    %v1923 = vpack.c.b16 %v1787, %v1779
    %v1924 = vpack.c.b16 %v1788, %v1780
    %v1925 = vpack.c.b16 %v1789, %v1781
    %v1926 = vpack.c.b16 %v1790, %v1782
    %v1927 = vpack.c.b16 %v1791, %v1783
    %v1928 = vpack.c.b16 %v1800, %v1792
    %v1929 = vpack.c.b16 %v1801, %v1793
    %v1930 = vpack.c.b16 %v1802, %v1794
    %v1931 = vpack.c.b16 %v1803, %v1795
    %v1932 = vpack.c.b16 %v1804, %v1796
    %v1933 = vpack.c.b16 %v1805, %v1797
    %v1934 = vpack.c.b16 %v1806, %v1798
    %v1935 = vpack.c.b16 %v1807, %v1799
    %2064 = vmatprep.subr.bf16.mxu0 %v1809
    %2065 = vmatpush1.bf16.msra.mxu0 %v1808
    %2066 = vmatprep.subr.bf16.mxu0 %v1817
    %2067 = vmatpush1.bf16.msra.mxu0 %v1816
    %2068 = vmatprep.subr.bf16.mxu0 %v1825
    %2069 = vmatpush1.bf16.msra.mxu0 %v1824
    %2070 = vmatprep.subr.bf16.mxu0 %v1833
    %2071 = vmatpush1.bf16.msra.mxu0 %v1832
    %2072 = vmatprep.subr.bf16.mxu0 %v1841
    %2073 = vmatpush1.bf16.msra.mxu0 %v1840
    %2074 = vmatprep.subr.bf16.mxu0 %v1849
    %2075 = vmatpush1.bf16.msra.mxu0 %v1848
    %2076 = vmatprep.subr.bf16.mxu0 %v1857
    %2077 = vmatpush1.bf16.msra.mxu0 %v1856
    %2078 = vmatprep.subr.bf16.mxu0 %v1865
    %2079 = vmatpush1.bf16.msra.mxu0 %v1864
    %2080 = vmatprep.subr.bf16.mxu0 %v1873
    %2081 = vmatpush1.bf16.msra.mxu0 %v1872
    %2082 = vmatprep.subr.bf16.mxu0 %v1881
    %2083 = vmatpush1.bf16.msra.mxu0 %v1880
    %2084 = vmatprep.subr.bf16.mxu0 %v1889
    %2085 = vmatpush1.bf16.msra.mxu0 %v1888
    %2086 = vmatprep.subr.bf16.mxu0 %v1897
    %2087 = vmatpush1.bf16.msra.mxu0 %v1896
    %2088 = vmatprep.subr.bf16.mxu0 %v1905
    %2089 = vmatpush1.bf16.msra.mxu0 %v1904
    %2090 = vmatprep.subr.bf16.mxu0 %v1913
    %2091 = vmatpush1.bf16.msra.mxu0 %v1912
    %2092 = vmatprep.subr.bf16.mxu0 %v1921
    %2093 = vmatpush1.bf16.msra.mxu0 %v1920
    %2094 = vmatprep.subr.bf16.mxu0 %v1929
    %2095 = vmatpush1.bf16.msra.mxu0 %v1928
    %2096 = vmatprep.mubr.bf16.mxu0 %v1295
    %2097 = vmatmul.mubr.bf16.gmra.mrb[0].mxu0 %v1294
    %v2098 = vpop.f32.mrb[0].mxu0
    %v2099 = vadd.f32 0.0, %v2098
    %v2100 = vpop.f32.mrb[0].mxu0
    %v2101 = vadd.f32 0.0, %v2100
    %v2102 = vpop.f32.mrb[0].mxu0
    %v2103 = vpop.f32.mrb[0].mxu0
    %2104 = vdwg.mxu0
    %2105 = vmatprep.subr.bf16.mxu0 %v1811
    %2106 = vmatpush1.bf16.msra.mxu0 %v1810
    %2107 = vmatprep.subr.bf16.mxu0 %v1819
    %2108 = vmatpush1.bf16.msra.mxu0 %v1818
    %2109 = vmatprep.subr.bf16.mxu0 %v1827
    %2110 = vmatpush1.bf16.msra.mxu0 %v1826
    %2111 = vmatprep.subr.bf16.mxu0 %v1835
    %2112 = vmatpush1.bf16.msra.mxu0 %v1834
    %2113 = vmatprep.subr.bf16.mxu0 %v1843
    %2114 = vmatpush1.bf16.msra.mxu0 %v1842
    %2115 = vmatprep.subr.bf16.mxu0 %v1851
    %2116 = vmatpush1.bf16.msra.mxu0 %v1850
    %2117 = vmatprep.subr.bf16.mxu0 %v1859
    %2118 = vmatpush1.bf16.msra.mxu0 %v1858
    %2119 = vmatprep.subr.bf16.mxu0 %v1867
    %2120 = vmatpush1.bf16.msra.mxu0 %v1866
    %2121 = vmatprep.subr.bf16.mxu0 %v1875
    %2122 = vmatpush1.bf16.msra.mxu0 %v1874
    %2123 = vmatprep.subr.bf16.mxu0 %v1883
    %2124 = vmatpush1.bf16.msra.mxu0 %v1882
    %2125 = vmatprep.subr.bf16.mxu0 %v1891
    %2126 = vmatpush1.bf16.msra.mxu0 %v1890
    %2127 = vmatprep.subr.bf16.mxu0 %v1899
    %2128 = vmatpush1.bf16.msra.mxu0 %v1898
    %2129 = vmatprep.subr.bf16.mxu0 %v1907
    %2130 = vmatpush1.bf16.msra.mxu0 %v1906
    %2131 = vmatprep.subr.bf16.mxu0 %v1915
    %2132 = vmatpush1.bf16.msra.mxu0 %v1914
    %2133 = vmatprep.subr.bf16.mxu0 %v1923
    %2134 = vmatpush1.bf16.msra.mxu0 %v1922
    %2135 = vmatprep.subr.bf16.mxu0 %v1931
    %2136 = vmatpush1.bf16.msra.mxu0 %v1930
    %2137 = vmatprep.mubr.bf16.mxu0 %v1295
    %2138 = vmatmul.mubr.bf16.gmra.mrb[0].mxu0 %v1294
    %v2139 = vpop.f32.mrb[0].mxu0
    %v2140 = vadd.f32 0.0, %v2139
    %v2141 = vpop.f32.mrb[0].mxu0
    %v2142 = vadd.f32 0.0, %v2141
    %v2143 = vpop.f32.mrb[0].mxu0
    %v2144 = vpop.f32.mrb[0].mxu0
    %2145 = vdwg.mxu0
    %2146 = vmatprep.subr.bf16.mxu0 %v1813
    %2147 = vmatpush1.bf16.msra.mxu0 %v1812
    %2148 = vmatprep.subr.bf16.mxu0 %v1821
    %2149 = vmatpush1.bf16.msra.mxu0 %v1820
    %2150 = vmatprep.subr.bf16.mxu0 %v1829
    %2151 = vmatpush1.bf16.msra.mxu0 %v1828
    %2152 = vmatprep.subr.bf16.mxu0 %v1837
    %2153 = vmatpush1.bf16.msra.mxu0 %v1836
    %2154 = vmatprep.subr.bf16.mxu0 %v1845
    %2155 = vmatpush1.bf16.msra.mxu0 %v1844
    %2156 = vmatprep.subr.bf16.mxu0 %v1853
    %2157 = vmatpush1.bf16.msra.mxu0 %v1852
    %2158 = vmatprep.subr.bf16.mxu0 %v1861
    %2159 = vmatpush1.bf16.msra.mxu0 %v1860
    %2160 = vmatprep.subr.bf16.mxu0 %v1869
    %2161 = vmatpush1.bf16.msra.mxu0 %v1868
    %2162 = vmatprep.subr.bf16.mxu0 %v1877
    %2163 = vmatpush1.bf16.msra.mxu0 %v1876
    %2164 = vmatprep.subr.bf16.mxu0 %v1885
    %2165 = vmatpush1.bf16.msra.mxu0 %v1884
    %2166 = vmatprep.subr.bf16.mxu0 %v1893
    %2167 = vmatpush1.bf16.msra.mxu0 %v1892
    %2168 = vmatprep.subr.bf16.mxu0 %v1901
    %2169 = vmatpush1.bf16.msra.mxu0 %v1900
    %2170 = vmatprep.subr.bf16.mxu0 %v1909
    %2171 = vmatpush1.bf16.msra.mxu0 %v1908
    %2172 = vmatprep.subr.bf16.mxu0 %v1917
    %2173 = vmatpush1.bf16.msra.mxu0 %v1916
    %2174 = vmatprep.subr.bf16.mxu0 %v1925
    %2175 = vmatpush1.bf16.msra.mxu0 %v1924
    %2176 = vmatprep.subr.bf16.mxu0 %v1933
    %2177 = vmatpush1.bf16.msra.mxu0 %v1932
    %2178 = vmatprep.mubr.bf16.mxu0 %v1295
    %2179 = vmatmul.mubr.bf16.gmra.mrb[0].mxu0 %v1294
    %v2180 = vpop.f32.mrb[0].mxu0
    %v2181 = vadd.f32 0.0, %v2180
    %v2182 = vpop.f32.mrb[0].mxu0
    %v2183 = vadd.f32 0.0, %v2182
    %v2184 = vpop.f32.mrb[0].mxu0
    %v2185 = vpop.f32.mrb[0].mxu0
    %2186 = vdwg.mxu0
    %2187 = vmatprep.subr.bf16.mxu0 %v1815
    %2188 = vmatpush1.bf16.msra.mxu0 %v1814
    %2189 = vmatprep.subr.bf16.mxu0 %v1823
    %2190 = vmatpush1.bf16.msra.mxu0 %v1822
    %2191 = vmatprep.subr.bf16.mxu0 %v1831
    %2192 = vmatpush1.bf16.msra.mxu0 %v1830
    %2193 = vmatprep.subr.bf16.mxu0 %v1839
    %2194 = vmatpush1.bf16.msra.mxu0 %v1838
    %2195 = vmatprep.subr.bf16.mxu0 %v1847
    %2196 = vmatpush1.bf16.msra.mxu0 %v1846
    %2197 = vmatprep.subr.bf16.mxu0 %v1855
    %2198 = vmatpush1.bf16.msra.mxu0 %v1854
    %2199 = vmatprep.subr.bf16.mxu0 %v1863
    %2200 = vmatpush1.bf16.msra.mxu0 %v1862
    %2201 = vmatprep.subr.bf16.mxu0 %v1871
    %2202 = vmatpush1.bf16.msra.mxu0 %v1870
    %2203 = vmatprep.subr.bf16.mxu0 %v1879
    %2204 = vmatpush1.bf16.msra.mxu0 %v1878
    %2205 = vmatprep.subr.bf16.mxu0 %v1887
    %2206 = vmatpush1.bf16.msra.mxu0 %v1886
    %2207 = vmatprep.subr.bf16.mxu0 %v1895
    %2208 = vmatpush1.bf16.msra.mxu0 %v1894
    %2209 = vmatprep.subr.bf16.mxu0 %v1903
    %2210 = vmatpush1.bf16.msra.mxu0 %v1902
    %2211 = vmatprep.subr.bf16.mxu0 %v1911
    %2212 = vmatpush1.bf16.msra.mxu0 %v1910
    %2213 = vmatprep.subr.bf16.mxu0 %v1919
    %2214 = vmatpush1.bf16.msra.mxu0 %v1918
    %2215 = vmatprep.subr.bf16.mxu0 %v1927
    %2216 = vmatpush1.bf16.msra.mxu0 %v1926
    %2217 = vmatprep.subr.bf16.mxu0 %v1935
    %2218 = vmatpush1.bf16.msra.mxu0 %v1934
    %2219 = vmatprep.mubr.bf16.mxu0 %v1295
    %2220 = vmatmul.mubr.bf16.gmra.mrb[0].mxu0 %v1294
    %v2221 = vpop.f32.mrb[0].mxu0
    %v2222 = vadd.f32 0.0, %v2221
    %v2223 = vpop.f32.mrb[0].mxu0
    %v2224 = vadd.f32 0.0, %v2223
    %v2225 = vpop.f32.mrb[0].mxu0
    %v2226 = vpop.f32.mrb[0].mxu0
    %2227 = vdwg.mxu0
    %s2228 = scalar_lea.vmem [#allocation4], 4
    %v2229 = vld [vmem:[%s2228] sm:$0xf]
    %v2230 = vunpack.c.l.bf16 %v2229
    %v2235 = vcombine.low %v2099, %v2101
    %v2236 = vcombine.low %v2140, %v2142
    %v2238 = vunpack.c.l.s4 1983009808
    %v2239 = vunpack.c.0.s8 %v2238
    %v2240 = vlaneseq
    %v2241 = vshrl.u32 %v2240, 7
    %v2242 = vsub.s32 %v2239, %v2241
    %v2243 = vrot.slane %v2235, %v2242
    %v2245 = vunpack.c.l.s4 1983009808
    %v2246 = vunpack.c.0.s8 %v2245
    %v2247 = vlaneseq
    %v2248 = vshrl.u32 %v2247, 7
    %v2249 = vsub.s32 %v2246, %v2248
    %v2250 = vrot.slane %v2236, %v2249
    %v2251 = vcombine.low %v2243, %v2250
    %v2253 = vadd.f32 %v2230, %v2251
    %v2254 = vmul.f32 %v2253, 0.5
    %v2255 = vtanh.pop %v2254
    %v2256 = vadd.f32 %v2255, 1.0
    %v2257 = vmul.f32 %v2256, 0.5
    %v2259 = vrot.slane %v2253, 2
    %v2261 = vmul.f32 %v2259, 0.5
    %v2262 = vtanh.pop %v2261
    %v2263 = vadd.f32 %v2262, 1.0
    %v2264 = vmul.f32 %v2263, 0.5
    %v2265 = vrot.slane %v2253, 4
    %v2267 = vtanh.pop %v2265
    %v2268 = vrot.slane %v2253, 6
    %v2270 = vmul.f32 %v2268, 0.5
    %v2271 = vtanh.pop %v2270
    %v2272 = vadd.f32 %v2271, 1.0
    %v2273 = vmul.f32 %v2272, 0.5
    %v2274 = vld [vmem:[#allocation3] sm:$0x3]
    %v2275 = vmul.f32 %v2264, %v2274
    %v2276 = vmul.f32 %v2257, %v2267
    %v2277 = vadd.f32 %v2275, %v2276
    %v2278 = vtanh.pop %v2277
    %v2279 = vmul.f32 %v2273, %v2278
    %s2280 = scalar_lea.vmem %s3, 2
    %v2281 = vld [vmem:[%s2280] sm:$0x3]
    %2283 = vset.pattern.permute.xlu0 0
    %2284 = vperm.xlu0 %2283, %v2281
    %v2285 = vpop.permute.xlu0 %2284
    %v2287 = vmul.f32 %v2277, %v2285
    %2288 = vst [vmem:[#allocation3] sm:$0x3] %v2287
    %v2289 = vmul.f32 %v2279, %v2285
    %2290 = vst [vmem:[#allocation2] sm:$0x3] %v2289
    %v2291 = vpack.c.bf16 %v2289, %v2289
    %s2292 = scalar_lea.vmem %s5, 1
    %2293 = vst [vmem:[%s2292] sm:$0x1] %v2291
    %s2294 = scalar_lea.vmem [#allocation5], 24
    %v2295 = vld [vmem:[%s2294] sm:$0xf]
    %v2296 = vunpack.c.l.bf16 %v2295
    %v2301 = vcombine.low %v2181, %v2183
    %v2302 = vcombine.low %v2222, %v2224
    %v2304 = vunpack.c.l.s4 1983009808
    %v2305 = vunpack.c.0.s8 %v2304
    %v2306 = vlaneseq
    %v2307 = vshrl.u32 %v2306, 7
    %v2308 = vsub.s32 %v2305, %v2307
    %v2309 = vrot.slane %v2301, %v2308
    %v2311 = vunpack.c.l.s4 1983009808
    %v2312 = vunpack.c.0.s8 %v2311
    %v2313 = vlaneseq
    %v2314 = vshrl.u32 %v2313, 7
    %v2315 = vsub.s32 %v2312, %v2314
    %v2316 = vrot.slane %v2302, %v2315
    %v2317 = vcombine.low %v2309, %v2316
    %v2319 = vadd.f32 %v2296, %v2317
    %v2320 = vmul.f32 %v2319, 0.5
    %v2321 = vtanh.pop %v2320
    %v2322 = vadd.f32 %v2321, 1.0
    %v2323 = vmul.f32 %v2322, 0.5
    %v2325 = vrot.slane %v2319, 2
    %v2327 = vmul.f32 %v2325, 0.5
    %v2328 = vtanh.pop %v2327
    %v2329 = vadd.f32 %v2328, 1.0
    %v2330 = vmul.f32 %v2329, 0.5
    %v2331 = vrot.slane %v2319, 4
    %v2333 = vtanh.pop %v2331
    %v2334 = vrot.slane %v2319, 6
    %v2336 = vmul.f32 %v2334, 0.5
    %v2337 = vtanh.pop %v2336
    %v2338 = vadd.f32 %v2337, 1.0
    %v2339 = vmul.f32 %v2338, 0.5
    %v2340 = vld [vmem:[#allocation3 + $0x2] sm:$0x3]
    %v2341 = vmul.f32 %v2330, %v2340
    %v2342 = vmul.f32 %v2323, %v2333
    %v2343 = vadd.f32 %v2341, %v2342
    %v2344 = vtanh.pop %v2343
    %v2345 = vmul.f32 %v2339, %v2344
    %s2346 = scalar_lea.vmem %s191, 12
    %v2347 = vld [vmem:[%s2346] sm:$0x3]
    %2349 = vset.pattern.permute.xlu0 0
    %2350 = vperm.xlu0 %2349, %v2347
    %v2351 = vpop.permute.xlu0 %2350
    %v2353 = vmul.f32 %v2343, %v2351
    %2354 = vst [vmem:[#allocation3 + $0x2] sm:$0x3] %v2353
    %v2355 = vmul.f32 %v2345, %v2351
    %2356 = vst [vmem:[#allocation2 + $0x2] sm:$0x3] %v2355
    %v2357 = vpack.c.bf16 %v2355, %v2355
    %s2358 = scalar_lea.vmem %s198, 6
    %2359 = vst [vmem:[%s2358] sm:$0x1] %v2357
    %v2360 = vld [vmem:[#allocation2] sm:$0xf]
    %v2363 = vunpack.c.l.s4 1983009808
    %v2364 = vunpack.c.0.s8 %v2363
    %v2365 = vlaneseq
    %v2366 = vshrl.u32 %v2365, 7
    %v2367 = vsub.s32 %v2364, %v2366
    %v2368 = vrot.slane %v2360, %v2367
    %v2369 = vcombine.high %v2368, %v2368
    %v2372 = vpack.c.bf16 %v2368, %v2368
    %v2373 = vpack.c.bf16 %v2369, %v2369
    %v2374 = vld [vmem:[%s2] sm:$0xff]
    %v2375 = vld [vmem:[%s2 + $0x8] sm:$0xff]
    %v2376 = vld [vmem:[%s2 + $0x10] sm:$0xff]
    %v2377 = vld [vmem:[%s2 + $0x18] sm:$0xff]
    %v2378 = vld [vmem:[%s2 + $0x20] sm:$0xff]
    %v2379 = vld [vmem:[%s2 + $0x28] sm:$0xff]
    %v2380 = vld [vmem:[%s2 + $0x30] sm:$0xff]
    %v2381 = vld [vmem:[%s2 + $0x38] sm:$0xff]
    %v2382 = vld [vmem:[%s2 + $0x40] sm:$0xff]
    %v2383 = vld [vmem:[%s2 + $0x48] sm:$0xff]
    %v2384 = vld [vmem:[%s2 + $0x50] sm:$0xff]
    %v2385 = vld [vmem:[%s2 + $0x58] sm:$0xff]
    %v2386 = vld [vmem:[%s2 + $0x60] sm:$0xff]
    %v2387 = vld [vmem:[%s2 + $0x68] sm:$0xff]
    %v2388 = vld [vmem:[%s2 + $0x70] sm:$0xff]
    %v2389 = vld [vmem:[%s2 + $0x78] sm:$0xff]
    %v2390 = vld [vmem:[%s2 + $0x80] sm:$0xff]
    %v2391 = vld [vmem:[%s2 + $0x88] sm:$0xff]
    %v2392 = vld [vmem:[%s2 + $0x90] sm:$0xff]
    %v2393 = vld [vmem:[%s2 + $0x98] sm:$0xff]
    %v2394 = vld [vmem:[%s2 + $0xa0] sm:$0xff]
    %v2395 = vld [vmem:[%s2 + $0xa8] sm:$0xff]
    %v2396 = vld [vmem:[%s2 + $0xb0] sm:$0xff]
    %v2397 = vld [vmem:[%s2 + $0xb8] sm:$0xff]
    %v2398 = vld [vmem:[%s2 + $0xc0] sm:$0xff]
    %v2399 = vld [vmem:[%s2 + $0xc8] sm:$0xff]
    %v2400 = vld [vmem:[%s2 + $0xd0] sm:$0xff]
    %v2401 = vld [vmem:[%s2 + $0xd8] sm:$0xff]
    %v2402 = vld [vmem:[%s2 + $0xe0] sm:$0xff]
    %v2403 = vld [vmem:[%s2 + $0xe8] sm:$0xff]
    %v2404 = vld [vmem:[%s2 + $0xf0] sm:$0xff]
    %v2405 = vld [vmem:[%s2 + $0xf8] sm:$0xff]
    %v2406 = vld [vmem:[%s2 + $0x100] sm:$0xff]
    %v2407 = vld [vmem:[%s2 + $0x108] sm:$0xff]
    %v2408 = vld [vmem:[%s2 + $0x110] sm:$0xff]
    %v2409 = vld [vmem:[%s2 + $0x118] sm:$0xff]
    %v2410 = vld [vmem:[%s2 + $0x120] sm:$0xff]
    %v2411 = vld [vmem:[%s2 + $0x128] sm:$0xff]
    %v2412 = vld [vmem:[%s2 + $0x130] sm:$0xff]
    %v2413 = vld [vmem:[%s2 + $0x138] sm:$0xff]
    %v2414 = vld [vmem:[%s2 + $0x140] sm:$0xff]
    %v2415 = vld [vmem:[%s2 + $0x148] sm:$0xff]
    %v2416 = vld [vmem:[%s2 + $0x150] sm:$0xff]
    %v2417 = vld [vmem:[%s2 + $0x158] sm:$0xff]
    %v2418 = vld [vmem:[%s2 + $0x160] sm:$0xff]
    %v2419 = vld [vmem:[%s2 + $0x168] sm:$0xff]
    %v2420 = vld [vmem:[%s2 + $0x170] sm:$0xff]
    %v2421 = vld [vmem:[%s2 + $0x178] sm:$0xff]
    %v2422 = vld [vmem:[%s2 + $0x180] sm:$0xff]
    %v2423 = vld [vmem:[%s2 + $0x188] sm:$0xff]
    %v2424 = vld [vmem:[%s2 + $0x190] sm:$0xff]
    %v2425 = vld [vmem:[%s2 + $0x198] sm:$0xff]
    %v2426 = vld [vmem:[%s2 + $0x1a0] sm:$0xff]
    %v2427 = vld [vmem:[%s2 + $0x1a8] sm:$0xff]
    %v2428 = vld [vmem:[%s2 + $0x1b0] sm:$0xff]
    %v2429 = vld [vmem:[%s2 + $0x1b8] sm:$0xff]
    %v2430 = vld [vmem:[%s2 + $0x1c0] sm:$0xff]
    %v2431 = vld [vmem:[%s2 + $0x1c8] sm:$0xff]
    %v2432 = vld [vmem:[%s2 + $0x1d0] sm:$0xff]
    %v2433 = vld [vmem:[%s2 + $0x1d8] sm:$0xff]
    %v2434 = vld [vmem:[%s2 + $0x1e0] sm:$0xff]
    %v2435 = vld [vmem:[%s2 + $0x1e8] sm:$0xff]
    %v2436 = vld [vmem:[%s2 + $0x1f0] sm:$0xff]
    %v2437 = vld [vmem:[%s2 + $0x1f8] sm:$0xff]
    %v2438 = vld [vmem:[%s2 + $0x200] sm:$0xff]
    %v2439 = vld [vmem:[%s2 + $0x208] sm:$0xff]
    %v2440 = vld [vmem:[%s2 + $0x210] sm:$0xff]
    %v2441 = vld [vmem:[%s2 + $0x218] sm:$0xff]
    %v2442 = vld [vmem:[%s2 + $0x220] sm:$0xff]
    %v2443 = vld [vmem:[%s2 + $0x228] sm:$0xff]
    %v2444 = vld [vmem:[%s2 + $0x230] sm:$0xff]
    %v2445 = vld [vmem:[%s2 + $0x238] sm:$0xff]
    %v2446 = vld [vmem:[%s2 + $0x240] sm:$0xff]
    %v2447 = vld [vmem:[%s2 + $0x248] sm:$0xff]
    %v2448 = vld [vmem:[%s2 + $0x250] sm:$0xff]
    %v2449 = vld [vmem:[%s2 + $0x258] sm:$0xff]
    %v2450 = vld [vmem:[%s2 + $0x260] sm:$0xff]
    %v2451 = vld [vmem:[%s2 + $0x268] sm:$0xff]
    %v2452 = vld [vmem:[%s2 + $0x270] sm:$0xff]
    %v2453 = vld [vmem:[%s2 + $0x278] sm:$0xff]
    %v2454 = vld [vmem:[%s2 + $0x280] sm:$0xff]
    %v2455 = vld [vmem:[%s2 + $0x288] sm:$0xff]
    %v2456 = vld [vmem:[%s2 + $0x290] sm:$0xff]
    %v2457 = vld [vmem:[%s2 + $0x298] sm:$0xff]
    %v2458 = vld [vmem:[%s2 + $0x2a0] sm:$0xff]
    %v2459 = vld [vmem:[%s2 + $0x2a8] sm:$0xff]
    %v2460 = vld [vmem:[%s2 + $0x2b0] sm:$0xff]
    %v2461 = vld [vmem:[%s2 + $0x2b8] sm:$0xff]
    %v2462 = vld [vmem:[%s2 + $0x2c0] sm:$0xff]
    %v2463 = vld [vmem:[%s2 + $0x2c8] sm:$0xff]
    %v2464 = vld [vmem:[%s2 + $0x2d0] sm:$0xff]
    %v2465 = vld [vmem:[%s2 + $0x2d8] sm:$0xff]
    %v2466 = vld [vmem:[%s2 + $0x2e0] sm:$0xff]
    %v2467 = vld [vmem:[%s2 + $0x2e8] sm:$0xff]
    %v2468 = vld [vmem:[%s2 + $0x2f0] sm:$0xff]
    %v2469 = vld [vmem:[%s2 + $0x2f8] sm:$0xff]
    %v2470 = vld [vmem:[%s2 + $0x300] sm:$0xff]
    %v2471 = vld [vmem:[%s2 + $0x308] sm:$0xff]
    %v2472 = vld [vmem:[%s2 + $0x310] sm:$0xff]
    %v2473 = vld [vmem:[%s2 + $0x318] sm:$0xff]
    %v2474 = vld [vmem:[%s2 + $0x320] sm:$0xff]
    %v2475 = vld [vmem:[%s2 + $0x328] sm:$0xff]
    %v2476 = vld [vmem:[%s2 + $0x330] sm:$0xff]
    %v2477 = vld [vmem:[%s2 + $0x338] sm:$0xff]
    %v2478 = vld [vmem:[%s2 + $0x340] sm:$0xff]
    %v2479 = vld [vmem:[%s2 + $0x348] sm:$0xff]
    %v2480 = vld [vmem:[%s2 + $0x350] sm:$0xff]
    %v2481 = vld [vmem:[%s2 + $0x358] sm:$0xff]
    %v2482 = vld [vmem:[%s2 + $0x360] sm:$0xff]
    %v2483 = vld [vmem:[%s2 + $0x368] sm:$0xff]
    %v2484 = vld [vmem:[%s2 + $0x370] sm:$0xff]
    %v2485 = vld [vmem:[%s2 + $0x378] sm:$0xff]
    %v2486 = vld [vmem:[%s2 + $0x380] sm:$0xff]
    %v2487 = vld [vmem:[%s2 + $0x388] sm:$0xff]
    %v2488 = vld [vmem:[%s2 + $0x390] sm:$0xff]
    %v2489 = vld [vmem:[%s2 + $0x398] sm:$0xff]
    %v2490 = vld [vmem:[%s2 + $0x3a0] sm:$0xff]
    %v2491 = vld [vmem:[%s2 + $0x3a8] sm:$0xff]
    %v2492 = vld [vmem:[%s2 + $0x3b0] sm:$0xff]
    %v2493 = vld [vmem:[%s2 + $0x3b8] sm:$0xff]
    %v2494 = vld [vmem:[%s2 + $0x3c0] sm:$0xff]
    %v2495 = vld [vmem:[%s2 + $0x3c8] sm:$0xff]
    %v2496 = vld [vmem:[%s2 + $0x3d0] sm:$0xff]
    %v2497 = vld [vmem:[%s2 + $0x3d8] sm:$0xff]
    %v2498 = vld [vmem:[%s2 + $0x3e0] sm:$0xff]
    %v2499 = vld [vmem:[%s2 + $0x3e8] sm:$0xff]
    %v2500 = vld [vmem:[%s2 + $0x3f0] sm:$0xff]
    %v2501 = vld [vmem:[%s2 + $0x3f8] sm:$0xff]
    %v2630 = vunpack.c.l.b16 %v2374
    %v2631 = vunpack.c.h.b16 %v2374
    %v2632 = vunpack.c.l.b16 %v2375
    %v2633 = vunpack.c.h.b16 %v2375
    %v2634 = vunpack.c.l.b16 %v2376
    %v2635 = vunpack.c.h.b16 %v2376
    %v2636 = vunpack.c.l.b16 %v2377
    %v2637 = vunpack.c.h.b16 %v2377
    %v2638 = vunpack.c.l.b16 %v2378
    %v2639 = vunpack.c.h.b16 %v2378
    %v2640 = vunpack.c.l.b16 %v2379
    %v2641 = vunpack.c.h.b16 %v2379
    %v2642 = vunpack.c.l.b16 %v2380
    %v2643 = vunpack.c.h.b16 %v2380
    %v2644 = vunpack.c.l.b16 %v2381
    %v2645 = vunpack.c.h.b16 %v2381
    %v2646 = vunpack.c.l.b16 %v2382
    %v2647 = vunpack.c.h.b16 %v2382
    %v2648 = vunpack.c.l.b16 %v2383
    %v2649 = vunpack.c.h.b16 %v2383
    %v2650 = vunpack.c.l.b16 %v2384
    %v2651 = vunpack.c.h.b16 %v2384
    %v2652 = vunpack.c.l.b16 %v2385
    %v2653 = vunpack.c.h.b16 %v2385
    %v2654 = vunpack.c.l.b16 %v2386
    %v2655 = vunpack.c.h.b16 %v2386
    %v2656 = vunpack.c.l.b16 %v2387
    %v2657 = vunpack.c.h.b16 %v2387
    %v2658 = vunpack.c.l.b16 %v2388
    %v2659 = vunpack.c.h.b16 %v2388
    %v2660 = vunpack.c.l.b16 %v2389
    %v2661 = vunpack.c.h.b16 %v2389
    %v2662 = vunpack.c.l.b16 %v2390
    %v2663 = vunpack.c.h.b16 %v2390
    %v2664 = vunpack.c.l.b16 %v2391
    %v2665 = vunpack.c.h.b16 %v2391
    %v2666 = vunpack.c.l.b16 %v2392
    %v2667 = vunpack.c.h.b16 %v2392
    %v2668 = vunpack.c.l.b16 %v2393
    %v2669 = vunpack.c.h.b16 %v2393
    %v2670 = vunpack.c.l.b16 %v2394
    %v2671 = vunpack.c.h.b16 %v2394
    %v2672 = vunpack.c.l.b16 %v2395
    %v2673 = vunpack.c.h.b16 %v2395
    %v2674 = vunpack.c.l.b16 %v2396
    %v2675 = vunpack.c.h.b16 %v2396
    %v2676 = vunpack.c.l.b16 %v2397
    %v2677 = vunpack.c.h.b16 %v2397
    %v2678 = vunpack.c.l.b16 %v2398
    %v2679 = vunpack.c.h.b16 %v2398
    %v2680 = vunpack.c.l.b16 %v2399
    %v2681 = vunpack.c.h.b16 %v2399
    %v2682 = vunpack.c.l.b16 %v2400
    %v2683 = vunpack.c.h.b16 %v2400
    %v2684 = vunpack.c.l.b16 %v2401
    %v2685 = vunpack.c.h.b16 %v2401
    %v2686 = vunpack.c.l.b16 %v2402
    %v2687 = vunpack.c.h.b16 %v2402
    %v2688 = vunpack.c.l.b16 %v2403
    %v2689 = vunpack.c.h.b16 %v2403
    %v2690 = vunpack.c.l.b16 %v2404
    %v2691 = vunpack.c.h.b16 %v2404
    %v2692 = vunpack.c.l.b16 %v2405
    %v2693 = vunpack.c.h.b16 %v2405
    %v2694 = vunpack.c.l.b16 %v2406
    %v2695 = vunpack.c.h.b16 %v2406
    %v2696 = vunpack.c.l.b16 %v2407
    %v2697 = vunpack.c.h.b16 %v2407
    %v2698 = vunpack.c.l.b16 %v2408
    %v2699 = vunpack.c.h.b16 %v2408
    %v2700 = vunpack.c.l.b16 %v2409
    %v2701 = vunpack.c.h.b16 %v2409
    %v2702 = vunpack.c.l.b16 %v2410
    %v2703 = vunpack.c.h.b16 %v2410
    %v2704 = vunpack.c.l.b16 %v2411
    %v2705 = vunpack.c.h.b16 %v2411
    %v2706 = vunpack.c.l.b16 %v2412
    %v2707 = vunpack.c.h.b16 %v2412
    %v2708 = vunpack.c.l.b16 %v2413
    %v2709 = vunpack.c.h.b16 %v2413
    %v2710 = vunpack.c.l.b16 %v2414
    %v2711 = vunpack.c.h.b16 %v2414
    %v2712 = vunpack.c.l.b16 %v2415
    %v2713 = vunpack.c.h.b16 %v2415
    %v2714 = vunpack.c.l.b16 %v2416
    %v2715 = vunpack.c.h.b16 %v2416
    %v2716 = vunpack.c.l.b16 %v2417
    %v2717 = vunpack.c.h.b16 %v2417
    %v2718 = vunpack.c.l.b16 %v2418
    %v2719 = vunpack.c.h.b16 %v2418
    %v2720 = vunpack.c.l.b16 %v2419
    %v2721 = vunpack.c.h.b16 %v2419
    %v2722 = vunpack.c.l.b16 %v2420
    %v2723 = vunpack.c.h.b16 %v2420
    %v2724 = vunpack.c.l.b16 %v2421
    %v2725 = vunpack.c.h.b16 %v2421
    %v2726 = vunpack.c.l.b16 %v2422
    %v2727 = vunpack.c.h.b16 %v2422
    %v2728 = vunpack.c.l.b16 %v2423
    %v2729 = vunpack.c.h.b16 %v2423
    %v2730 = vunpack.c.l.b16 %v2424
    %v2731 = vunpack.c.h.b16 %v2424
    %v2732 = vunpack.c.l.b16 %v2425
    %v2733 = vunpack.c.h.b16 %v2425
    %v2734 = vunpack.c.l.b16 %v2426
    %v2735 = vunpack.c.h.b16 %v2426
    %v2736 = vunpack.c.l.b16 %v2427
    %v2737 = vunpack.c.h.b16 %v2427
    %v2738 = vunpack.c.l.b16 %v2428
    %v2739 = vunpack.c.h.b16 %v2428
    %v2740 = vunpack.c.l.b16 %v2429
    %v2741 = vunpack.c.h.b16 %v2429
    %v2742 = vunpack.c.l.b16 %v2430
    %v2743 = vunpack.c.h.b16 %v2430
    %v2744 = vunpack.c.l.b16 %v2431
    %v2745 = vunpack.c.h.b16 %v2431
    %v2746 = vunpack.c.l.b16 %v2432
    %v2747 = vunpack.c.h.b16 %v2432
    %v2748 = vunpack.c.l.b16 %v2433
    %v2749 = vunpack.c.h.b16 %v2433
    %v2750 = vunpack.c.l.b16 %v2434
    %v2751 = vunpack.c.h.b16 %v2434
    %v2752 = vunpack.c.l.b16 %v2435
    %v2753 = vunpack.c.h.b16 %v2435
    %v2754 = vunpack.c.l.b16 %v2436
    %v2755 = vunpack.c.h.b16 %v2436
    %v2756 = vunpack.c.l.b16 %v2437
    %v2757 = vunpack.c.h.b16 %v2437
    %v2758 = vunpack.c.l.b16 %v2438
    %v2759 = vunpack.c.h.b16 %v2438
    %v2760 = vunpack.c.l.b16 %v2439
    %v2761 = vunpack.c.h.b16 %v2439
    %v2762 = vunpack.c.l.b16 %v2440
    %v2763 = vunpack.c.h.b16 %v2440
    %v2764 = vunpack.c.l.b16 %v2441
    %v2765 = vunpack.c.h.b16 %v2441
    %v2766 = vunpack.c.l.b16 %v2442
    %v2767 = vunpack.c.h.b16 %v2442
    %v2768 = vunpack.c.l.b16 %v2443
    %v2769 = vunpack.c.h.b16 %v2443
    %v2770 = vunpack.c.l.b16 %v2444
    %v2771 = vunpack.c.h.b16 %v2444
    %v2772 = vunpack.c.l.b16 %v2445
    %v2773 = vunpack.c.h.b16 %v2445
    %v2774 = vunpack.c.l.b16 %v2446
    %v2775 = vunpack.c.h.b16 %v2446
    %v2776 = vunpack.c.l.b16 %v2447
    %v2777 = vunpack.c.h.b16 %v2447
    %v2778 = vunpack.c.l.b16 %v2448
    %v2779 = vunpack.c.h.b16 %v2448
    %v2780 = vunpack.c.l.b16 %v2449
    %v2781 = vunpack.c.h.b16 %v2449
    %v2782 = vunpack.c.l.b16 %v2450
    %v2783 = vunpack.c.h.b16 %v2450
    %v2784 = vunpack.c.l.b16 %v2451
    %v2785 = vunpack.c.h.b16 %v2451
    %v2786 = vunpack.c.l.b16 %v2452
    %v2787 = vunpack.c.h.b16 %v2452
    %v2788 = vunpack.c.l.b16 %v2453
    %v2789 = vunpack.c.h.b16 %v2453
    %v2790 = vunpack.c.l.b16 %v2454
    %v2791 = vunpack.c.h.b16 %v2454
    %v2792 = vunpack.c.l.b16 %v2455
    %v2793 = vunpack.c.h.b16 %v2455
    %v2794 = vunpack.c.l.b16 %v2456
    %v2795 = vunpack.c.h.b16 %v2456
    %v2796 = vunpack.c.l.b16 %v2457
    %v2797 = vunpack.c.h.b16 %v2457
    %v2798 = vunpack.c.l.b16 %v2458
    %v2799 = vunpack.c.h.b16 %v2458
    %v2800 = vunpack.c.l.b16 %v2459
    %v2801 = vunpack.c.h.b16 %v2459
    %v2802 = vunpack.c.l.b16 %v2460
    %v2803 = vunpack.c.h.b16 %v2460
    %v2804 = vunpack.c.l.b16 %v2461
    %v2805 = vunpack.c.h.b16 %v2461
    %v2806 = vunpack.c.l.b16 %v2462
    %v2807 = vunpack.c.h.b16 %v2462
    %v2808 = vunpack.c.l.b16 %v2463
    %v2809 = vunpack.c.h.b16 %v2463
    %v2810 = vunpack.c.l.b16 %v2464
    %v2811 = vunpack.c.h.b16 %v2464
    %v2812 = vunpack.c.l.b16 %v2465
    %v2813 = vunpack.c.h.b16 %v2465
    %v2814 = vunpack.c.l.b16 %v2466
    %v2815 = vunpack.c.h.b16 %v2466
    %v2816 = vunpack.c.l.b16 %v2467
    %v2817 = vunpack.c.h.b16 %v2467
    %v2818 = vunpack.c.l.b16 %v2468
    %v2819 = vunpack.c.h.b16 %v2468
    %v2820 = vunpack.c.l.b16 %v2469
    %v2821 = vunpack.c.h.b16 %v2469
    %v2822 = vunpack.c.l.b16 %v2470
    %v2823 = vunpack.c.h.b16 %v2470
    %v2824 = vunpack.c.l.b16 %v2471
    %v2825 = vunpack.c.h.b16 %v2471
    %v2826 = vunpack.c.l.b16 %v2472
    %v2827 = vunpack.c.h.b16 %v2472
    %v2828 = vunpack.c.l.b16 %v2473
    %v2829 = vunpack.c.h.b16 %v2473
    %v2830 = vunpack.c.l.b16 %v2474
    %v2831 = vunpack.c.h.b16 %v2474
    %v2832 = vunpack.c.l.b16 %v2475
    %v2833 = vunpack.c.h.b16 %v2475
    %v2834 = vunpack.c.l.b16 %v2476
    %v2835 = vunpack.c.h.b16 %v2476
    %v2836 = vunpack.c.l.b16 %v2477
    %v2837 = vunpack.c.h.b16 %v2477
    %v2838 = vunpack.c.l.b16 %v2478
    %v2839 = vunpack.c.h.b16 %v2478
    %v2840 = vunpack.c.l.b16 %v2479
    %v2841 = vunpack.c.h.b16 %v2479
    %v2842 = vunpack.c.l.b16 %v2480
    %v2843 = vunpack.c.h.b16 %v2480
    %v2844 = vunpack.c.l.b16 %v2481
    %v2845 = vunpack.c.h.b16 %v2481
    %v2846 = vunpack.c.l.b16 %v2482
    %v2847 = vunpack.c.h.b16 %v2482
    %v2848 = vunpack.c.l.b16 %v2483
    %v2849 = vunpack.c.h.b16 %v2483
    %v2850 = vunpack.c.l.b16 %v2484
    %v2851 = vunpack.c.h.b16 %v2484
    %v2852 = vunpack.c.l.b16 %v2485
    %v2853 = vunpack.c.h.b16 %v2485
    %v2854 = vunpack.c.l.b16 %v2486
    %v2855 = vunpack.c.h.b16 %v2486
    %v2856 = vunpack.c.l.b16 %v2487
    %v2857 = vunpack.c.h.b16 %v2487
    %v2858 = vunpack.c.l.b16 %v2488
    %v2859 = vunpack.c.h.b16 %v2488
    %v2860 = vunpack.c.l.b16 %v2489
    %v2861 = vunpack.c.h.b16 %v2489
    %v2862 = vunpack.c.l.b16 %v2490
    %v2863 = vunpack.c.h.b16 %v2490
    %v2864 = vunpack.c.l.b16 %v2491
    %v2865 = vunpack.c.h.b16 %v2491
    %v2866 = vunpack.c.l.b16 %v2492
    %v2867 = vunpack.c.h.b16 %v2492
    %v2868 = vunpack.c.l.b16 %v2493
    %v2869 = vunpack.c.h.b16 %v2493
    %v2870 = vunpack.c.l.b16 %v2494
    %v2871 = vunpack.c.h.b16 %v2494
    %v2872 = vunpack.c.l.b16 %v2495
    %v2873 = vunpack.c.h.b16 %v2495
    %v2874 = vunpack.c.l.b16 %v2496
    %v2875 = vunpack.c.h.b16 %v2496
    %v2876 = vunpack.c.l.b16 %v2497
    %v2877 = vunpack.c.h.b16 %v2497
    %v2878 = vunpack.c.l.b16 %v2498
    %v2879 = vunpack.c.h.b16 %v2498
    %v2880 = vunpack.c.l.b16 %v2499
    %v2881 = vunpack.c.h.b16 %v2499
    %v2882 = vunpack.c.l.b16 %v2500
    %v2883 = vunpack.c.h.b16 %v2500
    %v2884 = vunpack.c.l.b16 %v2501
    %v2885 = vunpack.c.h.b16 %v2501
    %v2886 = vpack.c.b16 %v2638, %v2630
    %v2887 = vpack.c.b16 %v2639, %v2631
    %v2888 = vpack.c.b16 %v2640, %v2632
    %v2889 = vpack.c.b16 %v2641, %v2633
    %v2890 = vpack.c.b16 %v2642, %v2634
    %v2891 = vpack.c.b16 %v2643, %v2635
    %v2892 = vpack.c.b16 %v2644, %v2636
    %v2893 = vpack.c.b16 %v2645, %v2637
    %v2894 = vpack.c.b16 %v2654, %v2646
    %v2895 = vpack.c.b16 %v2655, %v2647
    %v2896 = vpack.c.b16 %v2656, %v2648
    %v2897 = vpack.c.b16 %v2657, %v2649
    %v2898 = vpack.c.b16 %v2658, %v2650
    %v2899 = vpack.c.b16 %v2659, %v2651
    %v2900 = vpack.c.b16 %v2660, %v2652
    %v2901 = vpack.c.b16 %v2661, %v2653
    %v2902 = vpack.c.b16 %v2670, %v2662
    %v2903 = vpack.c.b16 %v2671, %v2663
    %v2904 = vpack.c.b16 %v2672, %v2664
    %v2905 = vpack.c.b16 %v2673, %v2665
    %v2906 = vpack.c.b16 %v2674, %v2666
    %v2907 = vpack.c.b16 %v2675, %v2667
    %v2908 = vpack.c.b16 %v2676, %v2668
    %v2909 = vpack.c.b16 %v2677, %v2669
    %v2910 = vpack.c.b16 %v2686, %v2678
    %v2911 = vpack.c.b16 %v2687, %v2679
    %v2912 = vpack.c.b16 %v2688, %v2680
    %v2913 = vpack.c.b16 %v2689, %v2681
    %v2914 = vpack.c.b16 %v2690, %v2682
    %v2915 = vpack.c.b16 %v2691, %v2683
    %v2916 = vpack.c.b16 %v2692, %v2684
    %v2917 = vpack.c.b16 %v2693, %v2685
    %v2918 = vpack.c.b16 %v2702, %v2694
    %v2919 = vpack.c.b16 %v2703, %v2695
    %v2920 = vpack.c.b16 %v2704, %v2696
    %v2921 = vpack.c.b16 %v2705, %v2697
    %v2922 = vpack.c.b16 %v2706, %v2698
    %v2923 = vpack.c.b16 %v2707, %v2699
    %v2924 = vpack.c.b16 %v2708, %v2700
    %v2925 = vpack.c.b16 %v2709, %v2701
    %v2926 = vpack.c.b16 %v2718, %v2710
    %v2927 = vpack.c.b16 %v2719, %v2711
    %v2928 = vpack.c.b16 %v2720, %v2712
    %v2929 = vpack.c.b16 %v2721, %v2713
    %v2930 = vpack.c.b16 %v2722, %v2714
    %v2931 = vpack.c.b16 %v2723, %v2715
    %v2932 = vpack.c.b16 %v2724, %v2716
    %v2933 = vpack.c.b16 %v2725, %v2717
    %v2934 = vpack.c.b16 %v2734, %v2726
    %v2935 = vpack.c.b16 %v2735, %v2727
    %v2936 = vpack.c.b16 %v2736, %v2728
    %v2937 = vpack.c.b16 %v2737, %v2729
    %v2938 = vpack.c.b16 %v2738, %v2730
    %v2939 = vpack.c.b16 %v2739, %v2731
    %v2940 = vpack.c.b16 %v2740, %v2732
    %v2941 = vpack.c.b16 %v2741, %v2733
    %v2942 = vpack.c.b16 %v2750, %v2742
    %v2943 = vpack.c.b16 %v2751, %v2743
    %v2944 = vpack.c.b16 %v2752, %v2744
    %v2945 = vpack.c.b16 %v2753, %v2745
    %v2946 = vpack.c.b16 %v2754, %v2746
    %v2947 = vpack.c.b16 %v2755, %v2747
    %v2948 = vpack.c.b16 %v2756, %v2748
    %v2949 = vpack.c.b16 %v2757, %v2749
    %v2950 = vpack.c.b16 %v2766, %v2758
    %v2951 = vpack.c.b16 %v2767, %v2759
    %v2952 = vpack.c.b16 %v2768, %v2760
    %v2953 = vpack.c.b16 %v2769, %v2761
    %v2954 = vpack.c.b16 %v2770, %v2762
    %v2955 = vpack.c.b16 %v2771, %v2763
    %v2956 = vpack.c.b16 %v2772, %v2764
    %v2957 = vpack.c.b16 %v2773, %v2765
    %v2958 = vpack.c.b16 %v2782, %v2774
    %v2959 = vpack.c.b16 %v2783, %v2775
    %v2960 = vpack.c.b16 %v2784, %v2776
    %v2961 = vpack.c.b16 %v2785, %v2777
    %v2962 = vpack.c.b16 %v2786, %v2778
    %v2963 = vpack.c.b16 %v2787, %v2779
    %v2964 = vpack.c.b16 %v2788, %v2780
    %v2965 = vpack.c.b16 %v2789, %v2781
    %v2966 = vpack.c.b16 %v2798, %v2790
    %v2967 = vpack.c.b16 %v2799, %v2791
    %v2968 = vpack.c.b16 %v2800, %v2792
    %v2969 = vpack.c.b16 %v2801, %v2793
    %v2970 = vpack.c.b16 %v2802, %v2794
    %v2971 = vpack.c.b16 %v2803, %v2795
    %v2972 = vpack.c.b16 %v2804, %v2796
    %v2973 = vpack.c.b16 %v2805, %v2797
    %v2974 = vpack.c.b16 %v2814, %v2806
    %v2975 = vpack.c.b16 %v2815, %v2807
    %v2976 = vpack.c.b16 %v2816, %v2808
    %v2977 = vpack.c.b16 %v2817, %v2809
    %v2978 = vpack.c.b16 %v2818, %v2810
    %v2979 = vpack.c.b16 %v2819, %v2811
    %v2980 = vpack.c.b16 %v2820, %v2812
    %v2981 = vpack.c.b16 %v2821, %v2813
    %v2982 = vpack.c.b16 %v2830, %v2822
    %v2983 = vpack.c.b16 %v2831, %v2823
    %v2984 = vpack.c.b16 %v2832, %v2824
    %v2985 = vpack.c.b16 %v2833, %v2825
    %v2986 = vpack.c.b16 %v2834, %v2826
    %v2987 = vpack.c.b16 %v2835, %v2827
    %v2988 = vpack.c.b16 %v2836, %v2828
    %v2989 = vpack.c.b16 %v2837, %v2829
    %v2990 = vpack.c.b16 %v2846, %v2838
    %v2991 = vpack.c.b16 %v2847, %v2839
    %v2992 = vpack.c.b16 %v2848, %v2840
    %v2993 = vpack.c.b16 %v2849, %v2841
    %v2994 = vpack.c.b16 %v2850, %v2842
    %v2995 = vpack.c.b16 %v2851, %v2843
    %v2996 = vpack.c.b16 %v2852, %v2844
    %v2997 = vpack.c.b16 %v2853, %v2845
    %v2998 = vpack.c.b16 %v2862, %v2854
    %v2999 = vpack.c.b16 %v2863, %v2855
    %v3000 = vpack.c.b16 %v2864, %v2856
    %v3001 = vpack.c.b16 %v2865, %v2857
    %v3002 = vpack.c.b16 %v2866, %v2858
    %v3003 = vpack.c.b16 %v2867, %v2859
    %v3004 = vpack.c.b16 %v2868, %v2860
    %v3005 = vpack.c.b16 %v2869, %v2861
    %v3006 = vpack.c.b16 %v2878, %v2870
    %v3007 = vpack.c.b16 %v2879, %v2871
    %v3008 = vpack.c.b16 %v2880, %v2872
    %v3009 = vpack.c.b16 %v2881, %v2873
    %v3010 = vpack.c.b16 %v2882, %v2874
    %v3011 = vpack.c.b16 %v2883, %v2875
    %v3012 = vpack.c.b16 %v2884, %v2876
    %v3013 = vpack.c.b16 %v2885, %v2877
    %3142 = vmatprep.subr.bf16.mxu0 %v2887
    %3143 = vmatpush1.bf16.msra.mxu0 %v2886
    %3144 = vmatprep.subr.bf16.mxu0 %v2895
    %3145 = vmatpush1.bf16.msra.mxu0 %v2894
    %3146 = vmatprep.subr.bf16.mxu0 %v2903
    %3147 = vmatpush1.bf16.msra.mxu0 %v2902
    %3148 = vmatprep.subr.bf16.mxu0 %v2911
    %3149 = vmatpush1.bf16.msra.mxu0 %v2910
    %3150 = vmatprep.subr.bf16.mxu0 %v2919
    %3151 = vmatpush1.bf16.msra.mxu0 %v2918
    %3152 = vmatprep.subr.bf16.mxu0 %v2927
    %3153 = vmatpush1.bf16.msra.mxu0 %v2926
    %3154 = vmatprep.subr.bf16.mxu0 %v2935
    %3155 = vmatpush1.bf16.msra.mxu0 %v2934
    %3156 = vmatprep.subr.bf16.mxu0 %v2943
    %3157 = vmatpush1.bf16.msra.mxu0 %v2942
    %3158 = vmatprep.subr.bf16.mxu0 %v2951
    %3159 = vmatpush1.bf16.msra.mxu0 %v2950
    %3160 = vmatprep.subr.bf16.mxu0 %v2959
    %3161 = vmatpush1.bf16.msra.mxu0 %v2958
    %3162 = vmatprep.subr.bf16.mxu0 %v2967
    %3163 = vmatpush1.bf16.msra.mxu0 %v2966
    %3164 = vmatprep.subr.bf16.mxu0 %v2975
    %3165 = vmatpush1.bf16.msra.mxu0 %v2974
    %3166 = vmatprep.subr.bf16.mxu0 %v2983
    %3167 = vmatpush1.bf16.msra.mxu0 %v2982
    %3168 = vmatprep.subr.bf16.mxu0 %v2991
    %3169 = vmatpush1.bf16.msra.mxu0 %v2990
    %3170 = vmatprep.subr.bf16.mxu0 %v2999
    %3171 = vmatpush1.bf16.msra.mxu0 %v2998
    %3172 = vmatprep.subr.bf16.mxu0 %v3007
    %3173 = vmatpush1.bf16.msra.mxu0 %v3006
    %3174 = vmatprep.mubr.bf16.mxu0 %v2373
    %3175 = vmatmul.mubr.bf16.gmra.mrb[0].mxu0 %v2372
    %v3176 = vpop.f32.mrb[0].mxu0
    %v3177 = vadd.f32 0.0, %v3176
    %v3178 = vpop.f32.mrb[0].mxu0
    %v3179 = vadd.f32 0.0, %v3178
    %v3180 = vpop.f32.mrb[0].mxu0
    %v3181 = vpop.f32.mrb[0].mxu0
    %3182 = vdwg.mxu0
    %3183 = vmatprep.subr.bf16.mxu0 %v2889
    %3184 = vmatpush1.bf16.msra.mxu0 %v2888
    %3185 = vmatprep.subr.bf16.mxu0 %v2897
    %3186 = vmatpush1.bf16.msra.mxu0 %v2896
    %3187 = vmatprep.subr.bf16.mxu0 %v2905
    %3188 = vmatpush1.bf16.msra.mxu0 %v2904
    %3189 = vmatprep.subr.bf16.mxu0 %v2913
    %3190 = vmatpush1.bf16.msra.mxu0 %v2912
    %3191 = vmatprep.subr.bf16.mxu0 %v2921
    %3192 = vmatpush1.bf16.msra.mxu0 %v2920
    %3193 = vmatprep.subr.bf16.mxu0 %v2929
    %3194 = vmatpush1.bf16.msra.mxu0 %v2928
    %3195 = vmatprep.subr.bf16.mxu0 %v2937
    %3196 = vmatpush1.bf16.msra.mxu0 %v2936
    %3197 = vmatprep.subr.bf16.mxu0 %v2945
    %3198 = vmatpush1.bf16.msra.mxu0 %v2944
    %3199 = vmatprep.subr.bf16.mxu0 %v2953
    %3200 = vmatpush1.bf16.msra.mxu0 %v2952
    %3201 = vmatprep.subr.bf16.mxu0 %v2961
    %3202 = vmatpush1.bf16.msra.mxu0 %v2960
    %3203 = vmatprep.subr.bf16.mxu0 %v2969
    %3204 = vmatpush1.bf16.msra.mxu0 %v2968
    %3205 = vmatprep.subr.bf16.mxu0 %v2977
    %3206 = vmatpush1.bf16.msra.mxu0 %v2976
    %3207 = vmatprep.subr.bf16.mxu0 %v2985
    %3208 = vmatpush1.bf16.msra.mxu0 %v2984
    %3209 = vmatprep.subr.bf16.mxu0 %v2993
    %3210 = vmatpush1.bf16.msra.mxu0 %v2992
    %3211 = vmatprep.subr.bf16.mxu0 %v3001
    %3212 = vmatpush1.bf16.msra.mxu0 %v3000
    %3213 = vmatprep.subr.bf16.mxu0 %v3009
    %3214 = vmatpush1.bf16.msra.mxu0 %v3008
    %3215 = vmatprep.mubr.bf16.mxu0 %v2373
    %3216 = vmatmul.mubr.bf16.gmra.mrb[0].mxu0 %v2372
    %v3217 = vpop.f32.mrb[0].mxu0
    %v3218 = vadd.f32 0.0, %v3217
    %v3219 = vpop.f32.mrb[0].mxu0
    %v3220 = vadd.f32 0.0, %v3219
    %v3221 = vpop.f32.mrb[0].mxu0
    %v3222 = vpop.f32.mrb[0].mxu0
    %3223 = vdwg.mxu0
    %3224 = vmatprep.subr.bf16.mxu0 %v2891
    %3225 = vmatpush1.bf16.msra.mxu0 %v2890
    %3226 = vmatprep.subr.bf16.mxu0 %v2899
    %3227 = vmatpush1.bf16.msra.mxu0 %v2898
    %3228 = vmatprep.subr.bf16.mxu0 %v2907
    %3229 = vmatpush1.bf16.msra.mxu0 %v2906
    %3230 = vmatprep.subr.bf16.mxu0 %v2915
    %3231 = vmatpush1.bf16.msra.mxu0 %v2914
    %3232 = vmatprep.subr.bf16.mxu0 %v2923
    %3233 = vmatpush1.bf16.msra.mxu0 %v2922
    %3234 = vmatprep.subr.bf16.mxu0 %v2931
    %3235 = vmatpush1.bf16.msra.mxu0 %v2930
    %3236 = vmatprep.subr.bf16.mxu0 %v2939
    %3237 = vmatpush1.bf16.msra.mxu0 %v2938
    %3238 = vmatprep.subr.bf16.mxu0 %v2947
    %3239 = vmatpush1.bf16.msra.mxu0 %v2946
    %3240 = vmatprep.subr.bf16.mxu0 %v2955
    %3241 = vmatpush1.bf16.msra.mxu0 %v2954
    %3242 = vmatprep.subr.bf16.mxu0 %v2963
    %3243 = vmatpush1.bf16.msra.mxu0 %v2962
    %3244 = vmatprep.subr.bf16.mxu0 %v2971
    %3245 = vmatpush1.bf16.msra.mxu0 %v2970
    %3246 = vmatprep.subr.bf16.mxu0 %v2979
    %3247 = vmatpush1.bf16.msra.mxu0 %v2978
    %3248 = vmatprep.subr.bf16.mxu0 %v2987
    %3249 = vmatpush1.bf16.msra.mxu0 %v2986
    %3250 = vmatprep.subr.bf16.mxu0 %v2995
    %3251 = vmatpush1.bf16.msra.mxu0 %v2994
    %3252 = vmatprep.subr.bf16.mxu0 %v3003
    %3253 = vmatpush1.bf16.msra.mxu0 %v3002
    %3254 = vmatprep.subr.bf16.mxu0 %v3011
    %3255 = vmatpush1.bf16.msra.mxu0 %v3010
    %3256 = vmatprep.mubr.bf16.mxu0 %v2373
    %3257 = vmatmul.mubr.bf16.gmra.mrb[0].mxu0 %v2372
    %v3258 = vpop.f32.mrb[0].mxu0
    %v3259 = vadd.f32 0.0, %v3258
    %v3260 = vpop.f32.mrb[0].mxu0
    %v3261 = vadd.f32 0.0, %v3260
    %v3262 = vpop.f32.mrb[0].mxu0
    %v3263 = vpop.f32.mrb[0].mxu0
    %3264 = vdwg.mxu0
    %3265 = vmatprep.subr.bf16.mxu0 %v2893
    %3266 = vmatpush1.bf16.msra.mxu0 %v2892
    %3267 = vmatprep.subr.bf16.mxu0 %v2901
    %3268 = vmatpush1.bf16.msra.mxu0 %v2900
    %3269 = vmatprep.subr.bf16.mxu0 %v2909
    %3270 = vmatpush1.bf16.msra.mxu0 %v2908
    %3271 = vmatprep.subr.bf16.mxu0 %v2917
    %3272 = vmatpush1.bf16.msra.mxu0 %v2916
    %3273 = vmatprep.subr.bf16.mxu0 %v2925
    %3274 = vmatpush1.bf16.msra.mxu0 %v2924
    %3275 = vmatprep.subr.bf16.mxu0 %v2933
    %3276 = vmatpush1.bf16.msra.mxu0 %v2932
    %3277 = vmatprep.subr.bf16.mxu0 %v2941
    %3278 = vmatpush1.bf16.msra.mxu0 %v2940
    %3279 = vmatprep.subr.bf16.mxu0 %v2949
    %3280 = vmatpush1.bf16.msra.mxu0 %v2948
    %3281 = vmatprep.subr.bf16.mxu0 %v2957
    %3282 = vmatpush1.bf16.msra.mxu0 %v2956
    %3283 = vmatprep.subr.bf16.mxu0 %v2965
    %3284 = vmatpush1.bf16.msra.mxu0 %v2964
    %3285 = vmatprep.subr.bf16.mxu0 %v2973
    %3286 = vmatpush1.bf16.msra.mxu0 %v2972
    %3287 = vmatprep.subr.bf16.mxu0 %v2981
    %3288 = vmatpush1.bf16.msra.mxu0 %v2980
    %3289 = vmatprep.subr.bf16.mxu0 %v2989
    %3290 = vmatpush1.bf16.msra.mxu0 %v2988
    %3291 = vmatprep.subr.bf16.mxu0 %v2997
    %3292 = vmatpush1.bf16.msra.mxu0 %v2996
    %3293 = vmatprep.subr.bf16.mxu0 %v3005
    %3294 = vmatpush1.bf16.msra.mxu0 %v3004
    %3295 = vmatprep.subr.bf16.mxu0 %v3013
    %3296 = vmatpush1.bf16.msra.mxu0 %v3012
    %3297 = vmatprep.mubr.bf16.mxu0 %v2373
    %3298 = vmatmul.mubr.bf16.gmra.mrb[0].mxu0 %v2372
    %v3299 = vpop.f32.mrb[0].mxu0
    %v3300 = vadd.f32 0.0, %v3299
    %v3301 = vpop.f32.mrb[0].mxu0
    %v3302 = vadd.f32 0.0, %v3301
    %v3303 = vpop.f32.mrb[0].mxu0
    %v3304 = vpop.f32.mrb[0].mxu0
    %3305 = vdwg.mxu0
    %s3306 = scalar_lea.vmem [#allocation4], 8
    %v3307 = vld [vmem:[%s3306] sm:$0xf]
    %v3308 = vunpack.c.l.bf16 %v3307
    %v3313 = vcombine.low %v3177, %v3179
    %v3314 = vcombine.low %v3218, %v3220
    %v3316 = vunpack.c.l.s4 1983009808
    %v3317 = vunpack.c.0.s8 %v3316
    %v3318 = vlaneseq
    %v3319 = vshrl.u32 %v3318, 7
    %v3320 = vsub.s32 %v3317, %v3319
    %v3321 = vrot.slane %v3313, %v3320
    %v3323 = vunpack.c.l.s4 1983009808
    %v3324 = vunpack.c.0.s8 %v3323
    %v3325 = vlaneseq
    %v3326 = vshrl.u32 %v3325, 7
    %v3327 = vsub.s32 %v3324, %v3326
    %v3328 = vrot.slane %v3314, %v3327
    %v3329 = vcombine.low %v3321, %v3328
    %v3331 = vadd.f32 %v3308, %v3329
    %v3332 = vmul.f32 %v3331, 0.5
    %v3333 = vtanh.pop %v3332
    %v3334 = vadd.f32 %v3333, 1.0
    %v3335 = vmul.f32 %v3334, 0.5
    %v3337 = vrot.slane %v3331, 2
    %v3339 = vmul.f32 %v3337, 0.5
    %v3340 = vtanh.pop %v3339
    %v3341 = vadd.f32 %v3340, 1.0
    %v3342 = vmul.f32 %v3341, 0.5
    %v3343 = vrot.slane %v3331, 4
    %v3345 = vtanh.pop %v3343
    %v3346 = vrot.slane %v3331, 6
    %v3348 = vmul.f32 %v3346, 0.5
    %v3349 = vtanh.pop %v3348
    %v3350 = vadd.f32 %v3349, 1.0
    %v3351 = vmul.f32 %v3350, 0.5
    %v3352 = vld [vmem:[#allocation3] sm:$0x3]
    %v3353 = vmul.f32 %v3342, %v3352
    %v3354 = vmul.f32 %v3335, %v3345
    %v3355 = vadd.f32 %v3353, %v3354
    %v3356 = vtanh.pop %v3355
    %v3357 = vmul.f32 %v3351, %v3356
    %s3358 = scalar_lea.vmem %s3, 4
    %v3359 = vld [vmem:[%s3358] sm:$0x3]
    %3361 = vset.pattern.permute.xlu0 0
    %3362 = vperm.xlu0 %3361, %v3359
    %v3363 = vpop.permute.xlu0 %3362
    %v3365 = vmul.f32 %v3355, %v3363
    %3366 = vst [vmem:[#allocation3] sm:$0x3] %v3365
    %v3367 = vmul.f32 %v3357, %v3363
    %3368 = vst [vmem:[#allocation2] sm:$0x3] %v3367
    %v3369 = vpack.c.bf16 %v3367, %v3367
    %s3370 = scalar_lea.vmem %s5, 2
    %3371 = vst [vmem:[%s3370] sm:$0x1] %v3369
    %s3372 = scalar_lea.vmem [#allocation5], 20
    %v3373 = vld [vmem:[%s3372] sm:$0xf]
    %v3374 = vunpack.c.l.bf16 %v3373
    %v3379 = vcombine.low %v3259, %v3261
    %v3380 = vcombine.low %v3300, %v3302
    %v3382 = vunpack.c.l.s4 1983009808
    %v3383 = vunpack.c.0.s8 %v3382
    %v3384 = vlaneseq
    %v3385 = vshrl.u32 %v3384, 7
    %v3386 = vsub.s32 %v3383, %v3385
    %v3387 = vrot.slane %v3379, %v3386
    %v3389 = vunpack.c.l.s4 1983009808
    %v3390 = vunpack.c.0.s8 %v3389
    %v3391 = vlaneseq
    %v3392 = vshrl.u32 %v3391, 7
    %v3393 = vsub.s32 %v3390, %v3392
    %v3394 = vrot.slane %v3380, %v3393
    %v3395 = vcombine.low %v3387, %v3394
    %v3397 = vadd.f32 %v3374, %v3395
    %v3398 = vmul.f32 %v3397, 0.5
    %v3399 = vtanh.pop %v3398
    %v3400 = vadd.f32 %v3399, 1.0
    %v3401 = vmul.f32 %v3400, 0.5
    %v3403 = vrot.slane %v3397, 2
    %v3405 = vmul.f32 %v3403, 0.5
    %v3406 = vtanh.pop %v3405
    %v3407 = vadd.f32 %v3406, 1.0
    %v3408 = vmul.f32 %v3407, 0.5
    %v3409 = vrot.slane %v3397, 4
    %v3411 = vtanh.pop %v3409
    %v3412 = vrot.slane %v3397, 6
    %v3414 = vmul.f32 %v3412, 0.5
    %v3415 = vtanh.pop %v3414
    %v3416 = vadd.f32 %v3415, 1.0
    %v3417 = vmul.f32 %v3416, 0.5
    %v3418 = vld [vmem:[#allocation3 + $0x2] sm:$0x3]
    %v3419 = vmul.f32 %v3408, %v3418
    %v3420 = vmul.f32 %v3401, %v3411
    %v3421 = vadd.f32 %v3419, %v3420
    %v3422 = vtanh.pop %v3421
    %v3423 = vmul.f32 %v3417, %v3422
    %s3424 = scalar_lea.vmem %s191, 10
    %v3425 = vld [vmem:[%s3424] sm:$0x3]
    %3427 = vset.pattern.permute.xlu0 0
    %3428 = vperm.xlu0 %3427, %v3425
    %v3429 = vpop.permute.xlu0 %3428
    %v3431 = vmul.f32 %v3421, %v3429
    %3432 = vst [vmem:[#allocation3 + $0x2] sm:$0x3] %v3431
    %v3433 = vmul.f32 %v3423, %v3429
    %3434 = vst [vmem:[#allocation2 + $0x2] sm:$0x3] %v3433
    %v3435 = vpack.c.bf16 %v3433, %v3433
    %s3436 = scalar_lea.vmem %s198, 5
    %3437 = vst [vmem:[%s3436] sm:$0x1] %v3435
    %v3438 = vld [vmem:[#allocation2] sm:$0xf]
    %v3441 = vunpack.c.l.s4 1983009808
    %v3442 = vunpack.c.0.s8 %v3441
    %v3443 = vlaneseq
    %v3444 = vshrl.u32 %v3443, 7
    %v3445 = vsub.s32 %v3442, %v3444
    %v3446 = vrot.slane %v3438, %v3445
    %v3447 = vcombine.high %v3446, %v3446
    %v3450 = vpack.c.bf16 %v3446, %v3446
    %v3451 = vpack.c.bf16 %v3447, %v3447
    %v3452 = vld [vmem:[%s2] sm:$0xff]
    %v3453 = vld [vmem:[%s2 + $0x8] sm:$0xff]
    %v3454 = vld [vmem:[%s2 + $0x10] sm:$0xff]
    %v3455 = vld [vmem:[%s2 + $0x18] sm:$0xff]
    %v3456 = vld [vmem:[%s2 + $0x20] sm:$0xff]
    %v3457 = vld [vmem:[%s2 + $0x28] sm:$0xff]
    %v3458 = vld [vmem:[%s2 + $0x30] sm:$0xff]
    %v3459 = vld [vmem:[%s2 + $0x38] sm:$0xff]
    %v3460 = vld [vmem:[%s2 + $0x40] sm:$0xff]
    %v3461 = vld [vmem:[%s2 + $0x48] sm:$0xff]
    %v3462 = vld [vmem:[%s2 + $0x50] sm:$0xff]
    %v3463 = vld [vmem:[%s2 + $0x58] sm:$0xff]
    %v3464 = vld [vmem:[%s2 + $0x60] sm:$0xff]
    %v3465 = vld [vmem:[%s2 + $0x68] sm:$0xff]
    %v3466 = vld [vmem:[%s2 + $0x70] sm:$0xff]
    %v3467 = vld [vmem:[%s2 + $0x78] sm:$0xff]
    %v3468 = vld [vmem:[%s2 + $0x80] sm:$0xff]
    %v3469 = vld [vmem:[%s2 + $0x88] sm:$0xff]
    %v3470 = vld [vmem:[%s2 + $0x90] sm:$0xff]
    %v3471 = vld [vmem:[%s2 + $0x98] sm:$0xff]
    %v3472 = vld [vmem:[%s2 + $0xa0] sm:$0xff]
    %v3473 = vld [vmem:[%s2 + $0xa8] sm:$0xff]
    %v3474 = vld [vmem:[%s2 + $0xb0] sm:$0xff]
    %v3475 = vld [vmem:[%s2 + $0xb8] sm:$0xff]
    %v3476 = vld [vmem:[%s2 + $0xc0] sm:$0xff]
    %v3477 = vld [vmem:[%s2 + $0xc8] sm:$0xff]
    %v3478 = vld [vmem:[%s2 + $0xd0] sm:$0xff]
    %v3479 = vld [vmem:[%s2 + $0xd8] sm:$0xff]
    %v3480 = vld [vmem:[%s2 + $0xe0] sm:$0xff]
    %v3481 = vld [vmem:[%s2 + $0xe8] sm:$0xff]
    %v3482 = vld [vmem:[%s2 + $0xf0] sm:$0xff]
    %v3483 = vld [vmem:[%s2 + $0xf8] sm:$0xff]
    %v3484 = vld [vmem:[%s2 + $0x100] sm:$0xff]
    %v3485 = vld [vmem:[%s2 + $0x108] sm:$0xff]
    %v3486 = vld [vmem:[%s2 + $0x110] sm:$0xff]
    %v3487 = vld [vmem:[%s2 + $0x118] sm:$0xff]
    %v3488 = vld [vmem:[%s2 + $0x120] sm:$0xff]
    %v3489 = vld [vmem:[%s2 + $0x128] sm:$0xff]
    %v3490 = vld [vmem:[%s2 + $0x130] sm:$0xff]
    %v3491 = vld [vmem:[%s2 + $0x138] sm:$0xff]
    %v3492 = vld [vmem:[%s2 + $0x140] sm:$0xff]
    %v3493 = vld [vmem:[%s2 + $0x148] sm:$0xff]
    %v3494 = vld [vmem:[%s2 + $0x150] sm:$0xff]
    %v3495 = vld [vmem:[%s2 + $0x158] sm:$0xff]
    %v3496 = vld [vmem:[%s2 + $0x160] sm:$0xff]
    %v3497 = vld [vmem:[%s2 + $0x168] sm:$0xff]
    %v3498 = vld [vmem:[%s2 + $0x170] sm:$0xff]
    %v3499 = vld [vmem:[%s2 + $0x178] sm:$0xff]
    %v3500 = vld [vmem:[%s2 + $0x180] sm:$0xff]
    %v3501 = vld [vmem:[%s2 + $0x188] sm:$0xff]
    %v3502 = vld [vmem:[%s2 + $0x190] sm:$0xff]
    %v3503 = vld [vmem:[%s2 + $0x198] sm:$0xff]
    %v3504 = vld [vmem:[%s2 + $0x1a0] sm:$0xff]
    %v3505 = vld [vmem:[%s2 + $0x1a8] sm:$0xff]
    %v3506 = vld [vmem:[%s2 + $0x1b0] sm:$0xff]
    %v3507 = vld [vmem:[%s2 + $0x1b8] sm:$0xff]
    %v3508 = vld [vmem:[%s2 + $0x1c0] sm:$0xff]
    %v3509 = vld [vmem:[%s2 + $0x1c8] sm:$0xff]
    %v3510 = vld [vmem:[%s2 + $0x1d0] sm:$0xff]
    %v3511 = vld [vmem:[%s2 + $0x1d8] sm:$0xff]
    %v3512 = vld [vmem:[%s2 + $0x1e0] sm:$0xff]
    %v3513 = vld [vmem:[%s2 + $0x1e8] sm:$0xff]
    %v3514 = vld [vmem:[%s2 + $0x1f0] sm:$0xff]
    %v3515 = vld [vmem:[%s2 + $0x1f8] sm:$0xff]
    %v3516 = vld [vmem:[%s2 + $0x200] sm:$0xff]
    %v3517 = vld [vmem:[%s2 + $0x208] sm:$0xff]
    %v3518 = vld [vmem:[%s2 + $0x210] sm:$0xff]
    %v3519 = vld [vmem:[%s2 + $0x218] sm:$0xff]
    %v3520 = vld [vmem:[%s2 + $0x220] sm:$0xff]
    %v3521 = vld [vmem:[%s2 + $0x228] sm:$0xff]
    %v3522 = vld [vmem:[%s2 + $0x230] sm:$0xff]
    %v3523 = vld [vmem:[%s2 + $0x238] sm:$0xff]
    %v3524 = vld [vmem:[%s2 + $0x240] sm:$0xff]
    %v3525 = vld [vmem:[%s2 + $0x248] sm:$0xff]
    %v3526 = vld [vmem:[%s2 + $0x250] sm:$0xff]
    %v3527 = vld [vmem:[%s2 + $0x258] sm:$0xff]
    %v3528 = vld [vmem:[%s2 + $0x260] sm:$0xff]
    %v3529 = vld [vmem:[%s2 + $0x268] sm:$0xff]
    %v3530 = vld [vmem:[%s2 + $0x270] sm:$0xff]
    %v3531 = vld [vmem:[%s2 + $0x278] sm:$0xff]
    %v3532 = vld [vmem:[%s2 + $0x280] sm:$0xff]
    %v3533 = vld [vmem:[%s2 + $0x288] sm:$0xff]
    %v3534 = vld [vmem:[%s2 + $0x290] sm:$0xff]
    %v3535 = vld [vmem:[%s2 + $0x298] sm:$0xff]
    %v3536 = vld [vmem:[%s2 + $0x2a0] sm:$0xff]
    %v3537 = vld [vmem:[%s2 + $0x2a8] sm:$0xff]
    %v3538 = vld [vmem:[%s2 + $0x2b0] sm:$0xff]
    %v3539 = vld [vmem:[%s2 + $0x2b8] sm:$0xff]
    %v3540 = vld [vmem:[%s2 + $0x2c0] sm:$0xff]
    %v3541 = vld [vmem:[%s2 + $0x2c8] sm:$0xff]
    %v3542 = vld [vmem:[%s2 + $0x2d0] sm:$0xff]
    %v3543 = vld [vmem:[%s2 + $0x2d8] sm:$0xff]
    %v3544 = vld [vmem:[%s2 + $0x2e0] sm:$0xff]
    %v3545 = vld [vmem:[%s2 + $0x2e8] sm:$0xff]
    %v3546 = vld [vmem:[%s2 + $0x2f0] sm:$0xff]
    %v3547 = vld [vmem:[%s2 + $0x2f8] sm:$0xff]
    %v3548 = vld [vmem:[%s2 + $0x300] sm:$0xff]
    %v3549 = vld [vmem:[%s2 + $0x308] sm:$0xff]
    %v3550 = vld [vmem:[%s2 + $0x310] sm:$0xff]
    %v3551 = vld [vmem:[%s2 + $0x318] sm:$0xff]
    %v3552 = vld [vmem:[%s2 + $0x320] sm:$0xff]
    %v3553 = vld [vmem:[%s2 + $0x328] sm:$0xff]
    %v3554 = vld [vmem:[%s2 + $0x330] sm:$0xff]
    %v3555 = vld [vmem:[%s2 + $0x338] sm:$0xff]
    %v3556 = vld [vmem:[%s2 + $0x340] sm:$0xff]
    %v3557 = vld [vmem:[%s2 + $0x348] sm:$0xff]
    %v3558 = vld [vmem:[%s2 + $0x350] sm:$0xff]
    %v3559 = vld [vmem:[%s2 + $0x358] sm:$0xff]
    %v3560 = vld [vmem:[%s2 + $0x360] sm:$0xff]
    %v3561 = vld [vmem:[%s2 + $0x368] sm:$0xff]
    %v3562 = vld [vmem:[%s2 + $0x370] sm:$0xff]
    %v3563 = vld [vmem:[%s2 + $0x378] sm:$0xff]
    %v3564 = vld [vmem:[%s2 + $0x380] sm:$0xff]
    %v3565 = vld [vmem:[%s2 + $0x388] sm:$0xff]
    %v3566 = vld [vmem:[%s2 + $0x390] sm:$0xff]
    %v3567 = vld [vmem:[%s2 + $0x398] sm:$0xff]
    %v3568 = vld [vmem:[%s2 + $0x3a0] sm:$0xff]
    %v3569 = vld [vmem:[%s2 + $0x3a8] sm:$0xff]
    %v3570 = vld [vmem:[%s2 + $0x3b0] sm:$0xff]
    %v3571 = vld [vmem:[%s2 + $0x3b8] sm:$0xff]
    %v3572 = vld [vmem:[%s2 + $0x3c0] sm:$0xff]
    %v3573 = vld [vmem:[%s2 + $0x3c8] sm:$0xff]
    %v3574 = vld [vmem:[%s2 + $0x3d0] sm:$0xff]
    %v3575 = vld [vmem:[%s2 + $0x3d8] sm:$0xff]
    %v3576 = vld [vmem:[%s2 + $0x3e0] sm:$0xff]
    %v3577 = vld [vmem:[%s2 + $0x3e8] sm:$0xff]
    %v3578 = vld [vmem:[%s2 + $0x3f0] sm:$0xff]
    %v3579 = vld [vmem:[%s2 + $0x3f8] sm:$0xff]
    %v3708 = vunpack.c.l.b16 %v3452
    %v3709 = vunpack.c.h.b16 %v3452
    %v3710 = vunpack.c.l.b16 %v3453
    %v3711 = vunpack.c.h.b16 %v3453
    %v3712 = vunpack.c.l.b16 %v3454
    %v3713 = vunpack.c.h.b16 %v3454
    %v3714 = vunpack.c.l.b16 %v3455
    %v3715 = vunpack.c.h.b16 %v3455
    %v3716 = vunpack.c.l.b16 %v3456
    %v3717 = vunpack.c.h.b16 %v3456
    %v3718 = vunpack.c.l.b16 %v3457
    %v3719 = vunpack.c.h.b16 %v3457
    %v3720 = vunpack.c.l.b16 %v3458
    %v3721 = vunpack.c.h.b16 %v3458
    %v3722 = vunpack.c.l.b16 %v3459
    %v3723 = vunpack.c.h.b16 %v3459
    %v3724 = vunpack.c.l.b16 %v3460
    %v3725 = vunpack.c.h.b16 %v3460
    %v3726 = vunpack.c.l.b16 %v3461
    %v3727 = vunpack.c.h.b16 %v3461
    %v3728 = vunpack.c.l.b16 %v3462
    %v3729 = vunpack.c.h.b16 %v3462
    %v3730 = vunpack.c.l.b16 %v3463
    %v3731 = vunpack.c.h.b16 %v3463
    %v3732 = vunpack.c.l.b16 %v3464
    %v3733 = vunpack.c.h.b16 %v3464
    %v3734 = vunpack.c.l.b16 %v3465
    %v3735 = vunpack.c.h.b16 %v3465
    %v3736 = vunpack.c.l.b16 %v3466
    %v3737 = vunpack.c.h.b16 %v3466
    %v3738 = vunpack.c.l.b16 %v3467
    %v3739 = vunpack.c.h.b16 %v3467
    %v3740 = vunpack.c.l.b16 %v3468
    %v3741 = vunpack.c.h.b16 %v3468
    %v3742 = vunpack.c.l.b16 %v3469
    %v3743 = vunpack.c.h.b16 %v3469
    %v3744 = vunpack.c.l.b16 %v3470
    %v3745 = vunpack.c.h.b16 %v3470
    %v3746 = vunpack.c.l.b16 %v3471
    %v3747 = vunpack.c.h.b16 %v3471
    %v3748 = vunpack.c.l.b16 %v3472
    %v3749 = vunpack.c.h.b16 %v3472
    %v3750 = vunpack.c.l.b16 %v3473
    %v3751 = vunpack.c.h.b16 %v3473
    %v3752 = vunpack.c.l.b16 %v3474
    %v3753 = vunpack.c.h.b16 %v3474
    %v3754 = vunpack.c.l.b16 %v3475
    %v3755 = vunpack.c.h.b16 %v3475
    %v3756 = vunpack.c.l.b16 %v3476
    %v3757 = vunpack.c.h.b16 %v3476
    %v3758 = vunpack.c.l.b16 %v3477
    %v3759 = vunpack.c.h.b16 %v3477
    %v3760 = vunpack.c.l.b16 %v3478
    %v3761 = vunpack.c.h.b16 %v3478
    %v3762 = vunpack.c.l.b16 %v3479
    %v3763 = vunpack.c.h.b16 %v3479
    %v3764 = vunpack.c.l.b16 %v3480
    %v3765 = vunpack.c.h.b16 %v3480
    %v3766 = vunpack.c.l.b16 %v3481
    %v3767 = vunpack.c.h.b16 %v3481
    %v3768 = vunpack.c.l.b16 %v3482
    %v3769 = vunpack.c.h.b16 %v3482
    %v3770 = vunpack.c.l.b16 %v3483
    %v3771 = vunpack.c.h.b16 %v3483
    %v3772 = vunpack.c.l.b16 %v3484
    %v3773 = vunpack.c.h.b16 %v3484
    %v3774 = vunpack.c.l.b16 %v3485
    %v3775 = vunpack.c.h.b16 %v3485
    %v3776 = vunpack.c.l.b16 %v3486
    %v3777 = vunpack.c.h.b16 %v3486
    %v3778 = vunpack.c.l.b16 %v3487
    %v3779 = vunpack.c.h.b16 %v3487
    %v3780 = vunpack.c.l.b16 %v3488
    %v3781 = vunpack.c.h.b16 %v3488
    %v3782 = vunpack.c.l.b16 %v3489
    %v3783 = vunpack.c.h.b16 %v3489
    %v3784 = vunpack.c.l.b16 %v3490
    %v3785 = vunpack.c.h.b16 %v3490
    %v3786 = vunpack.c.l.b16 %v3491
    %v3787 = vunpack.c.h.b16 %v3491
    %v3788 = vunpack.c.l.b16 %v3492
    %v3789 = vunpack.c.h.b16 %v3492
    %v3790 = vunpack.c.l.b16 %v3493
    %v3791 = vunpack.c.h.b16 %v3493
    %v3792 = vunpack.c.l.b16 %v3494
    %v3793 = vunpack.c.h.b16 %v3494
    %v3794 = vunpack.c.l.b16 %v3495
    %v3795 = vunpack.c.h.b16 %v3495
    %v3796 = vunpack.c.l.b16 %v3496
    %v3797 = vunpack.c.h.b16 %v3496
    %v3798 = vunpack.c.l.b16 %v3497
    %v3799 = vunpack.c.h.b16 %v3497
    %v3800 = vunpack.c.l.b16 %v3498
    %v3801 = vunpack.c.h.b16 %v3498
    %v3802 = vunpack.c.l.b16 %v3499
    %v3803 = vunpack.c.h.b16 %v3499
    %v3804 = vunpack.c.l.b16 %v3500
    %v3805 = vunpack.c.h.b16 %v3500
    %v3806 = vunpack.c.l.b16 %v3501
    %v3807 = vunpack.c.h.b16 %v3501
    %v3808 = vunpack.c.l.b16 %v3502
    %v3809 = vunpack.c.h.b16 %v3502
    %v3810 = vunpack.c.l.b16 %v3503
    %v3811 = vunpack.c.h.b16 %v3503
    %v3812 = vunpack.c.l.b16 %v3504
    %v3813 = vunpack.c.h.b16 %v3504
    %v3814 = vunpack.c.l.b16 %v3505
    %v3815 = vunpack.c.h.b16 %v3505
    %v3816 = vunpack.c.l.b16 %v3506
    %v3817 = vunpack.c.h.b16 %v3506
    %v3818 = vunpack.c.l.b16 %v3507
    %v3819 = vunpack.c.h.b16 %v3507
    %v3820 = vunpack.c.l.b16 %v3508
    %v3821 = vunpack.c.h.b16 %v3508
    %v3822 = vunpack.c.l.b16 %v3509
    %v3823 = vunpack.c.h.b16 %v3509
    %v3824 = vunpack.c.l.b16 %v3510
    %v3825 = vunpack.c.h.b16 %v3510
    %v3826 = vunpack.c.l.b16 %v3511
    %v3827 = vunpack.c.h.b16 %v3511
    %v3828 = vunpack.c.l.b16 %v3512
    %v3829 = vunpack.c.h.b16 %v3512
    %v3830 = vunpack.c.l.b16 %v3513
    %v3831 = vunpack.c.h.b16 %v3513
    %v3832 = vunpack.c.l.b16 %v3514
    %v3833 = vunpack.c.h.b16 %v3514
    %v3834 = vunpack.c.l.b16 %v3515
    %v3835 = vunpack.c.h.b16 %v3515
    %v3836 = vunpack.c.l.b16 %v3516
    %v3837 = vunpack.c.h.b16 %v3516
    %v3838 = vunpack.c.l.b16 %v3517
    %v3839 = vunpack.c.h.b16 %v3517
    %v3840 = vunpack.c.l.b16 %v3518
    %v3841 = vunpack.c.h.b16 %v3518
    %v3842 = vunpack.c.l.b16 %v3519
    %v3843 = vunpack.c.h.b16 %v3519
    %v3844 = vunpack.c.l.b16 %v3520
    %v3845 = vunpack.c.h.b16 %v3520
    %v3846 = vunpack.c.l.b16 %v3521
    %v3847 = vunpack.c.h.b16 %v3521
    %v3848 = vunpack.c.l.b16 %v3522
    %v3849 = vunpack.c.h.b16 %v3522
    %v3850 = vunpack.c.l.b16 %v3523
    %v3851 = vunpack.c.h.b16 %v3523
    %v3852 = vunpack.c.l.b16 %v3524
    %v3853 = vunpack.c.h.b16 %v3524
    %v3854 = vunpack.c.l.b16 %v3525
    %v3855 = vunpack.c.h.b16 %v3525
    %v3856 = vunpack.c.l.b16 %v3526
    %v3857 = vunpack.c.h.b16 %v3526
    %v3858 = vunpack.c.l.b16 %v3527
    %v3859 = vunpack.c.h.b16 %v3527
    %v3860 = vunpack.c.l.b16 %v3528
    %v3861 = vunpack.c.h.b16 %v3528
    %v3862 = vunpack.c.l.b16 %v3529
    %v3863 = vunpack.c.h.b16 %v3529
    %v3864 = vunpack.c.l.b16 %v3530
    %v3865 = vunpack.c.h.b16 %v3530
    %v3866 = vunpack.c.l.b16 %v3531
    %v3867 = vunpack.c.h.b16 %v3531
    %v3868 = vunpack.c.l.b16 %v3532
    %v3869 = vunpack.c.h.b16 %v3532
    %v3870 = vunpack.c.l.b16 %v3533
    %v3871 = vunpack.c.h.b16 %v3533
    %v3872 = vunpack.c.l.b16 %v3534
    %v3873 = vunpack.c.h.b16 %v3534
    %v3874 = vunpack.c.l.b16 %v3535
    %v3875 = vunpack.c.h.b16 %v3535
    %v3876 = vunpack.c.l.b16 %v3536
    %v3877 = vunpack.c.h.b16 %v3536
    %v3878 = vunpack.c.l.b16 %v3537
    %v3879 = vunpack.c.h.b16 %v3537
    %v3880 = vunpack.c.l.b16 %v3538
    %v3881 = vunpack.c.h.b16 %v3538
    %v3882 = vunpack.c.l.b16 %v3539
    %v3883 = vunpack.c.h.b16 %v3539
    %v3884 = vunpack.c.l.b16 %v3540
    %v3885 = vunpack.c.h.b16 %v3540
    %v3886 = vunpack.c.l.b16 %v3541
    %v3887 = vunpack.c.h.b16 %v3541
    %v3888 = vunpack.c.l.b16 %v3542
    %v3889 = vunpack.c.h.b16 %v3542
    %v3890 = vunpack.c.l.b16 %v3543
    %v3891 = vunpack.c.h.b16 %v3543
    %v3892 = vunpack.c.l.b16 %v3544
    %v3893 = vunpack.c.h.b16 %v3544
    %v3894 = vunpack.c.l.b16 %v3545
    %v3895 = vunpack.c.h.b16 %v3545
    %v3896 = vunpack.c.l.b16 %v3546
    %v3897 = vunpack.c.h.b16 %v3546
    %v3898 = vunpack.c.l.b16 %v3547
    %v3899 = vunpack.c.h.b16 %v3547
    %v3900 = vunpack.c.l.b16 %v3548
    %v3901 = vunpack.c.h.b16 %v3548
    %v3902 = vunpack.c.l.b16 %v3549
    %v3903 = vunpack.c.h.b16 %v3549
    %v3904 = vunpack.c.l.b16 %v3550
    %v3905 = vunpack.c.h.b16 %v3550
    %v3906 = vunpack.c.l.b16 %v3551
    %v3907 = vunpack.c.h.b16 %v3551
    %v3908 = vunpack.c.l.b16 %v3552
    %v3909 = vunpack.c.h.b16 %v3552
    %v3910 = vunpack.c.l.b16 %v3553
    %v3911 = vunpack.c.h.b16 %v3553
    %v3912 = vunpack.c.l.b16 %v3554
    %v3913 = vunpack.c.h.b16 %v3554
    %v3914 = vunpack.c.l.b16 %v3555
    %v3915 = vunpack.c.h.b16 %v3555
    %v3916 = vunpack.c.l.b16 %v3556
    %v3917 = vunpack.c.h.b16 %v3556
    %v3918 = vunpack.c.l.b16 %v3557
    %v3919 = vunpack.c.h.b16 %v3557
    %v3920 = vunpack.c.l.b16 %v3558
    %v3921 = vunpack.c.h.b16 %v3558
    %v3922 = vunpack.c.l.b16 %v3559
    %v3923 = vunpack.c.h.b16 %v3559
    %v3924 = vunpack.c.l.b16 %v3560
    %v3925 = vunpack.c.h.b16 %v3560
    %v3926 = vunpack.c.l.b16 %v3561
    %v3927 = vunpack.c.h.b16 %v3561
    %v3928 = vunpack.c.l.b16 %v3562
    %v3929 = vunpack.c.h.b16 %v3562
    %v3930 = vunpack.c.l.b16 %v3563
    %v3931 = vunpack.c.h.b16 %v3563
    %v3932 = vunpack.c.l.b16 %v3564
    %v3933 = vunpack.c.h.b16 %v3564
    %v3934 = vunpack.c.l.b16 %v3565
    %v3935 = vunpack.c.h.b16 %v3565
    %v3936 = vunpack.c.l.b16 %v3566
    %v3937 = vunpack.c.h.b16 %v3566
    %v3938 = vunpack.c.l.b16 %v3567
    %v3939 = vunpack.c.h.b16 %v3567
    %v3940 = vunpack.c.l.b16 %v3568
    %v3941 = vunpack.c.h.b16 %v3568
    %v3942 = vunpack.c.l.b16 %v3569
    %v3943 = vunpack.c.h.b16 %v3569
    %v3944 = vunpack.c.l.b16 %v3570
    %v3945 = vunpack.c.h.b16 %v3570
    %v3946 = vunpack.c.l.b16 %v3571
    %v3947 = vunpack.c.h.b16 %v3571
    %v3948 = vunpack.c.l.b16 %v3572
    %v3949 = vunpack.c.h.b16 %v3572
    %v3950 = vunpack.c.l.b16 %v3573
    %v3951 = vunpack.c.h.b16 %v3573
    %v3952 = vunpack.c.l.b16 %v3574
    %v3953 = vunpack.c.h.b16 %v3574
    %v3954 = vunpack.c.l.b16 %v3575
    %v3955 = vunpack.c.h.b16 %v3575
    %v3956 = vunpack.c.l.b16 %v3576
    %v3957 = vunpack.c.h.b16 %v3576
    %v3958 = vunpack.c.l.b16 %v3577
    %v3959 = vunpack.c.h.b16 %v3577
    %v3960 = vunpack.c.l.b16 %v3578
    %v3961 = vunpack.c.h.b16 %v3578
    %v3962 = vunpack.c.l.b16 %v3579
    %v3963 = vunpack.c.h.b16 %v3579
    %v3964 = vpack.c.b16 %v3716, %v3708
    %v3965 = vpack.c.b16 %v3717, %v3709
    %v3966 = vpack.c.b16 %v3718, %v3710
    %v3967 = vpack.c.b16 %v3719, %v3711
    %v3968 = vpack.c.b16 %v3720, %v3712
    %v3969 = vpack.c.b16 %v3721, %v3713
    %v3970 = vpack.c.b16 %v3722, %v3714
    %v3971 = vpack.c.b16 %v3723, %v3715
    %v3972 = vpack.c.b16 %v3732, %v3724
    %v3973 = vpack.c.b16 %v3733, %v3725
    %v3974 = vpack.c.b16 %v3734, %v3726
    %v3975 = vpack.c.b16 %v3735, %v3727
    %v3976 = vpack.c.b16 %v3736, %v3728
    %v3977 = vpack.c.b16 %v3737, %v3729
    %v3978 = vpack.c.b16 %v3738, %v3730
    %v3979 = vpack.c.b16 %v3739, %v3731
    %v3980 = vpack.c.b16 %v3748, %v3740
    %v3981 = vpack.c.b16 %v3749, %v3741
    %v3982 = vpack.c.b16 %v3750, %v3742
    %v3983 = vpack.c.b16 %v3751, %v3743
    %v3984 = vpack.c.b16 %v3752, %v3744
    %v3985 = vpack.c.b16 %v3753, %v3745
    %v3986 = vpack.c.b16 %v3754, %v3746
    %v3987 = vpack.c.b16 %v3755, %v3747
    %v3988 = vpack.c.b16 %v3764, %v3756
    %v3989 = vpack.c.b16 %v3765, %v3757
    %v3990 = vpack.c.b16 %v3766, %v3758
    %v3991 = vpack.c.b16 %v3767, %v3759
    %v3992 = vpack.c.b16 %v3768, %v3760
    %v3993 = vpack.c.b16 %v3769, %v3761
    %v3994 = vpack.c.b16 %v3770, %v3762
    %v3995 = vpack.c.b16 %v3771, %v3763
    %v3996 = vpack.c.b16 %v3780, %v3772
    %v3997 = vpack.c.b16 %v3781, %v3773
    %v3998 = vpack.c.b16 %v3782, %v3774
    %v3999 = vpack.c.b16 %v3783, %v3775
    %v4000 = vpack.c.b16 %v3784, %v3776
    %v4001 = vpack.c.b16 %v3785, %v3777
    %v4002 = vpack.c.b16 %v3786, %v3778
    %v4003 = vpack.c.b16 %v3787, %v3779
    %v4004 = vpack.c.b16 %v3796, %v3788
    %v4005 = vpack.c.b16 %v3797, %v3789
    %v4006 = vpack.c.b16 %v3798, %v3790
    %v4007 = vpack.c.b16 %v3799, %v3791
    %v4008 = vpack.c.b16 %v3800, %v3792
    %v4009 = vpack.c.b16 %v3801, %v3793
    %v4010 = vpack.c.b16 %v3802, %v3794
    %v4011 = vpack.c.b16 %v3803, %v3795
    %v4012 = vpack.c.b16 %v3812, %v3804
    %v4013 = vpack.c.b16 %v3813, %v3805
    %v4014 = vpack.c.b16 %v3814, %v3806
    %v4015 = vpack.c.b16 %v3815, %v3807
    %v4016 = vpack.c.b16 %v3816, %v3808
    %v4017 = vpack.c.b16 %v3817, %v3809
    %v4018 = vpack.c.b16 %v3818, %v3810
    %v4019 = vpack.c.b16 %v3819, %v3811
    %v4020 = vpack.c.b16 %v3828, %v3820
    %v4021 = vpack.c.b16 %v3829, %v3821
    %v4022 = vpack.c.b16 %v3830, %v3822
    %v4023 = vpack.c.b16 %v3831, %v3823
    %v4024 = vpack.c.b16 %v3832, %v3824
    %v4025 = vpack.c.b16 %v3833, %v3825
    %v4026 = vpack.c.b16 %v3834, %v3826
    %v4027 = vpack.c.b16 %v3835, %v3827
    %v4028 = vpack.c.b16 %v3844, %v3836
    %v4029 = vpack.c.b16 %v3845, %v3837
    %v4030 = vpack.c.b16 %v3846, %v3838
    %v4031 = vpack.c.b16 %v3847, %v3839
    %v4032 = vpack.c.b16 %v3848, %v3840
    %v4033 = vpack.c.b16 %v3849, %v3841
    %v4034 = vpack.c.b16 %v3850, %v3842
    %v4035 = vpack.c.b16 %v3851, %v3843
    %v4036 = vpack.c.b16 %v3860, %v3852
    %v4037 = vpack.c.b16 %v3861, %v3853
    %v4038 = vpack.c.b16 %v3862, %v3854
    %v4039 = vpack.c.b16 %v3863, %v3855
    %v4040 = vpack.c.b16 %v3864, %v3856
    %v4041 = vpack.c.b16 %v3865, %v3857
    %v4042 = vpack.c.b16 %v3866, %v3858
    %v4043 = vpack.c.b16 %v3867, %v3859
    %v4044 = vpack.c.b16 %v3876, %v3868
    %v4045 = vpack.c.b16 %v3877, %v3869
    %v4046 = vpack.c.b16 %v3878, %v3870
    %v4047 = vpack.c.b16 %v3879, %v3871
    %v4048 = vpack.c.b16 %v3880, %v3872
    %v4049 = vpack.c.b16 %v3881, %v3873
    %v4050 = vpack.c.b16 %v3882, %v3874
    %v4051 = vpack.c.b16 %v3883, %v3875
    %v4052 = vpack.c.b16 %v3892, %v3884
    %v4053 = vpack.c.b16 %v3893, %v3885
    %v4054 = vpack.c.b16 %v3894, %v3886
    %v4055 = vpack.c.b16 %v3895, %v3887
    %v4056 = vpack.c.b16 %v3896, %v3888
    %v4057 = vpack.c.b16 %v3897, %v3889
    %v4058 = vpack.c.b16 %v3898, %v3890
    %v4059 = vpack.c.b16 %v3899, %v3891
    %v4060 = vpack.c.b16 %v3908, %v3900
    %v4061 = vpack.c.b16 %v3909, %v3901
    %v4062 = vpack.c.b16 %v3910, %v3902
    %v4063 = vpack.c.b16 %v3911, %v3903
    %v4064 = vpack.c.b16 %v3912, %v3904
    %v4065 = vpack.c.b16 %v3913, %v3905
    %v4066 = vpack.c.b16 %v3914, %v3906
    %v4067 = vpack.c.b16 %v3915, %v3907
    %v4068 = vpack.c.b16 %v3924, %v3916
    %v4069 = vpack.c.b16 %v3925, %v3917
    %v4070 = vpack.c.b16 %v3926, %v3918
    %v4071 = vpack.c.b16 %v3927, %v3919
    %v4072 = vpack.c.b16 %v3928, %v3920
    %v4073 = vpack.c.b16 %v3929, %v3921
    %v4074 = vpack.c.b16 %v3930, %v3922
    %v4075 = vpack.c.b16 %v3931, %v3923
    %v4076 = vpack.c.b16 %v3940, %v3932
    %v4077 = vpack.c.b16 %v3941, %v3933
    %v4078 = vpack.c.b16 %v3942, %v3934
    %v4079 = vpack.c.b16 %v3943, %v3935
    %v4080 = vpack.c.b16 %v3944, %v3936
    %v4081 = vpack.c.b16 %v3945, %v3937
    %v4082 = vpack.c.b16 %v3946, %v3938
    %v4083 = vpack.c.b16 %v3947, %v3939
    %v4084 = vpack.c.b16 %v3956, %v3948
    %v4085 = vpack.c.b16 %v3957, %v3949
    %v4086 = vpack.c.b16 %v3958, %v3950
    %v4087 = vpack.c.b16 %v3959, %v3951
    %v4088 = vpack.c.b16 %v3960, %v3952
    %v4089 = vpack.c.b16 %v3961, %v3953
    %v4090 = vpack.c.b16 %v3962, %v3954
    %v4091 = vpack.c.b16 %v3963, %v3955
    %4220 = vmatprep.subr.bf16.mxu0 %v3965
    %4221 = vmatpush1.bf16.msra.mxu0 %v3964
    %4222 = vmatprep.subr.bf16.mxu0 %v3973
    %4223 = vmatpush1.bf16.msra.mxu0 %v3972
    %4224 = vmatprep.subr.bf16.mxu0 %v3981
    %4225 = vmatpush1.bf16.msra.mxu0 %v3980
    %4226 = vmatprep.subr.bf16.mxu0 %v3989
    %4227 = vmatpush1.bf16.msra.mxu0 %v3988
    %4228 = vmatprep.subr.bf16.mxu0 %v3997
    %4229 = vmatpush1.bf16.msra.mxu0 %v3996
    %4230 = vmatprep.subr.bf16.mxu0 %v4005
    %4231 = vmatpush1.bf16.msra.mxu0 %v4004
    %4232 = vmatprep.subr.bf16.mxu0 %v4013
    %4233 = vmatpush1.bf16.msra.mxu0 %v4012
    %4234 = vmatprep.subr.bf16.mxu0 %v4021
    %4235 = vmatpush1.bf16.msra.mxu0 %v4020
    %4236 = vmatprep.subr.bf16.mxu0 %v4029
    %4237 = vmatpush1.bf16.msra.mxu0 %v4028
    %4238 = vmatprep.subr.bf16.mxu0 %v4037
    %4239 = vmatpush1.bf16.msra.mxu0 %v4036
    %4240 = vmatprep.subr.bf16.mxu0 %v4045
    %4241 = vmatpush1.bf16.msra.mxu0 %v4044
    %4242 = vmatprep.subr.bf16.mxu0 %v4053
    %4243 = vmatpush1.bf16.msra.mxu0 %v4052
    %4244 = vmatprep.subr.bf16.mxu0 %v4061
    %4245 = vmatpush1.bf16.msra.mxu0 %v4060
    %4246 = vmatprep.subr.bf16.mxu0 %v4069
    %4247 = vmatpush1.bf16.msra.mxu0 %v4068
    %4248 = vmatprep.subr.bf16.mxu0 %v4077
    %4249 = vmatpush1.bf16.msra.mxu0 %v4076
    %4250 = vmatprep.subr.bf16.mxu0 %v4085
    %4251 = vmatpush1.bf16.msra.mxu0 %v4084
    %4252 = vmatprep.mubr.bf16.mxu0 %v3451
    %4253 = vmatmul.mubr.bf16.gmra.mrb[0].mxu0 %v3450
    %v4254 = vpop.f32.mrb[0].mxu0
    %v4255 = vadd.f32 0.0, %v4254
    %v4256 = vpop.f32.mrb[0].mxu0
    %v4257 = vadd.f32 0.0, %v4256
    %v4258 = vpop.f32.mrb[0].mxu0
    %v4259 = vpop.f32.mrb[0].mxu0
    %4260 = vdwg.mxu0
    %4261 = vmatprep.subr.bf16.mxu0 %v3967
    %4262 = vmatpush1.bf16.msra.mxu0 %v3966
    %4263 = vmatprep.subr.bf16.mxu0 %v3975
    %4264 = vmatpush1.bf16.msra.mxu0 %v3974
    %4265 = vmatprep.subr.bf16.mxu0 %v3983
    %4266 = vmatpush1.bf16.msra.mxu0 %v3982
    %4267 = vmatprep.subr.bf16.mxu0 %v3991
    %4268 = vmatpush1.bf16.msra.mxu0 %v3990
    %4269 = vmatprep.subr.bf16.mxu0 %v3999
    %4270 = vmatpush1.bf16.msra.mxu0 %v3998
    %4271 = vmatprep.subr.bf16.mxu0 %v4007
    %4272 = vmatpush1.bf16.msra.mxu0 %v4006
    %4273 = vmatprep.subr.bf16.mxu0 %v4015
    %4274 = vmatpush1.bf16.msra.mxu0 %v4014
    %4275 = vmatprep.subr.bf16.mxu0 %v4023
    %4276 = vmatpush1.bf16.msra.mxu0 %v4022
    %4277 = vmatprep.subr.bf16.mxu0 %v4031
    %4278 = vmatpush1.bf16.msra.mxu0 %v4030
    %4279 = vmatprep.subr.bf16.mxu0 %v4039
    %4280 = vmatpush1.bf16.msra.mxu0 %v4038
    %4281 = vmatprep.subr.bf16.mxu0 %v4047
    %4282 = vmatpush1.bf16.msra.mxu0 %v4046
    %4283 = vmatprep.subr.bf16.mxu0 %v4055
    %4284 = vmatpush1.bf16.msra.mxu0 %v4054
    %4285 = vmatprep.subr.bf16.mxu0 %v4063
    %4286 = vmatpush1.bf16.msra.mxu0 %v4062
    %4287 = vmatprep.subr.bf16.mxu0 %v4071
    %4288 = vmatpush1.bf16.msra.mxu0 %v4070
    %4289 = vmatprep.subr.bf16.mxu0 %v4079
    %4290 = vmatpush1.bf16.msra.mxu0 %v4078
    %4291 = vmatprep.subr.bf16.mxu0 %v4087
    %4292 = vmatpush1.bf16.msra.mxu0 %v4086
    %4293 = vmatprep.mubr.bf16.mxu0 %v3451
    %4294 = vmatmul.mubr.bf16.gmra.mrb[0].mxu0 %v3450
    %v4295 = vpop.f32.mrb[0].mxu0
    %v4296 = vadd.f32 0.0, %v4295
    %v4297 = vpop.f32.mrb[0].mxu0
    %v4298 = vadd.f32 0.0, %v4297
    %v4299 = vpop.f32.mrb[0].mxu0
    %v4300 = vpop.f32.mrb[0].mxu0
    %4301 = vdwg.mxu0
    %4302 = vmatprep.subr.bf16.mxu0 %v3969
    %4303 = vmatpush1.bf16.msra.mxu0 %v3968
    %4304 = vmatprep.subr.bf16.mxu0 %v3977
    %4305 = vmatpush1.bf16.msra.mxu0 %v3976
    %4306 = vmatprep.subr.bf16.mxu0 %v3985
    %4307 = vmatpush1.bf16.msra.mxu0 %v3984
    %4308 = vmatprep.subr.bf16.mxu0 %v3993
    %4309 = vmatpush1.bf16.msra.mxu0 %v3992
    %4310 = vmatprep.subr.bf16.mxu0 %v4001
    %4311 = vmatpush1.bf16.msra.mxu0 %v4000
    %4312 = vmatprep.subr.bf16.mxu0 %v4009
    %4313 = vmatpush1.bf16.msra.mxu0 %v4008
    %4314 = vmatprep.subr.bf16.mxu0 %v4017
    %4315 = vmatpush1.bf16.msra.mxu0 %v4016
    %4316 = vmatprep.subr.bf16.mxu0 %v4025
    %4317 = vmatpush1.bf16.msra.mxu0 %v4024
    %4318 = vmatprep.subr.bf16.mxu0 %v4033
    %4319 = vmatpush1.bf16.msra.mxu0 %v4032
    %4320 = vmatprep.subr.bf16.mxu0 %v4041
    %4321 = vmatpush1.bf16.msra.mxu0 %v4040
    %4322 = vmatprep.subr.bf16.mxu0 %v4049
    %4323 = vmatpush1.bf16.msra.mxu0 %v4048
    %4324 = vmatprep.subr.bf16.mxu0 %v4057
    %4325 = vmatpush1.bf16.msra.mxu0 %v4056
    %4326 = vmatprep.subr.bf16.mxu0 %v4065
    %4327 = vmatpush1.bf16.msra.mxu0 %v4064
    %4328 = vmatprep.subr.bf16.mxu0 %v4073
    %4329 = vmatpush1.bf16.msra.mxu0 %v4072
    %4330 = vmatprep.subr.bf16.mxu0 %v4081
    %4331 = vmatpush1.bf16.msra.mxu0 %v4080
    %4332 = vmatprep.subr.bf16.mxu0 %v4089
    %4333 = vmatpush1.bf16.msra.mxu0 %v4088
    %4334 = vmatprep.mubr.bf16.mxu0 %v3451
    %4335 = vmatmul.mubr.bf16.gmra.mrb[0].mxu0 %v3450
    %v4336 = vpop.f32.mrb[0].mxu0
    %v4337 = vadd.f32 0.0, %v4336
    %v4338 = vpop.f32.mrb[0].mxu0
    %v4339 = vadd.f32 0.0, %v4338
    %v4340 = vpop.f32.mrb[0].mxu0
    %v4341 = vpop.f32.mrb[0].mxu0
    %4342 = vdwg.mxu0
    %4343 = vmatprep.subr.bf16.mxu0 %v3971
    %4344 = vmatpush1.bf16.msra.mxu0 %v3970
    %4345 = vmatprep.subr.bf16.mxu0 %v3979
    %4346 = vmatpush1.bf16.msra.mxu0 %v3978
    %4347 = vmatprep.subr.bf16.mxu0 %v3987
    %4348 = vmatpush1.bf16.msra.mxu0 %v3986
    %4349 = vmatprep.subr.bf16.mxu0 %v3995
    %4350 = vmatpush1.bf16.msra.mxu0 %v3994
    %4351 = vmatprep.subr.bf16.mxu0 %v4003
    %4352 = vmatpush1.bf16.msra.mxu0 %v4002
    %4353 = vmatprep.subr.bf16.mxu0 %v4011
    %4354 = vmatpush1.bf16.msra.mxu0 %v4010
    %4355 = vmatprep.subr.bf16.mxu0 %v4019
    %4356 = vmatpush1.bf16.msra.mxu0 %v4018
    %4357 = vmatprep.subr.bf16.mxu0 %v4027
    %4358 = vmatpush1.bf16.msra.mxu0 %v4026
    %4359 = vmatprep.subr.bf16.mxu0 %v4035
    %4360 = vmatpush1.bf16.msra.mxu0 %v4034
    %4361 = vmatprep.subr.bf16.mxu0 %v4043
    %4362 = vmatpush1.bf16.msra.mxu0 %v4042
    %4363 = vmatprep.subr.bf16.mxu0 %v4051
    %4364 = vmatpush1.bf16.msra.mxu0 %v4050
    %4365 = vmatprep.subr.bf16.mxu0 %v4059
    %4366 = vmatpush1.bf16.msra.mxu0 %v4058
    %4367 = vmatprep.subr.bf16.mxu0 %v4067
    %4368 = vmatpush1.bf16.msra.mxu0 %v4066
    %4369 = vmatprep.subr.bf16.mxu0 %v4075
    %4370 = vmatpush1.bf16.msra.mxu0 %v4074
    %4371 = vmatprep.subr.bf16.mxu0 %v4083
    %4372 = vmatpush1.bf16.msra.mxu0 %v4082
    %4373 = vmatprep.subr.bf16.mxu0 %v4091
    %4374 = vmatpush1.bf16.msra.mxu0 %v4090
    %4375 = vmatprep.mubr.bf16.mxu0 %v3451
    %4376 = vmatmul.mubr.bf16.gmra.mrb[0].mxu0 %v3450
    %v4377 = vpop.f32.mrb[0].mxu0
    %v4378 = vadd.f32 0.0, %v4377
    %v4379 = vpop.f32.mrb[0].mxu0
    %v4380 = vadd.f32 0.0, %v4379
    %v4381 = vpop.f32.mrb[0].mxu0
    %v4382 = vpop.f32.mrb[0].mxu0
    %4383 = vdwg.mxu0
    %s4384 = scalar_lea.vmem [#allocation4], 12
    %v4385 = vld [vmem:[%s4384] sm:$0xf]
    %v4386 = vunpack.c.l.bf16 %v4385
    %v4391 = vcombine.low %v4255, %v4257
    %v4392 = vcombine.low %v4296, %v4298
    %v4394 = vunpack.c.l.s4 1983009808
    %v4395 = vunpack.c.0.s8 %v4394
    %v4396 = vlaneseq
    %v4397 = vshrl.u32 %v4396, 7
    %v4398 = vsub.s32 %v4395, %v4397
    %v4399 = vrot.slane %v4391, %v4398
    %v4401 = vunpack.c.l.s4 1983009808
    %v4402 = vunpack.c.0.s8 %v4401
    %v4403 = vlaneseq
    %v4404 = vshrl.u32 %v4403, 7
    %v4405 = vsub.s32 %v4402, %v4404
    %v4406 = vrot.slane %v4392, %v4405
    %v4407 = vcombine.low %v4399, %v4406
    %v4409 = vadd.f32 %v4386, %v4407
    %v4410 = vmul.f32 %v4409, 0.5
    %v4411 = vtanh.pop %v4410
    %v4412 = vadd.f32 %v4411, 1.0
    %v4413 = vmul.f32 %v4412, 0.5
    %v4415 = vrot.slane %v4409, 2
    %v4417 = vmul.f32 %v4415, 0.5
    %v4418 = vtanh.pop %v4417
    %v4419 = vadd.f32 %v4418, 1.0
    %v4420 = vmul.f32 %v4419, 0.5
    %v4421 = vrot.slane %v4409, 4
    %v4423 = vtanh.pop %v4421
    %v4424 = vrot.slane %v4409, 6
    %v4426 = vmul.f32 %v4424, 0.5
    %v4427 = vtanh.pop %v4426
    %v4428 = vadd.f32 %v4427, 1.0
    %v4429 = vmul.f32 %v4428, 0.5
    %v4430 = vld [vmem:[#allocation3] sm:$0x3]
    %v4431 = vmul.f32 %v4420, %v4430
    %v4432 = vmul.f32 %v4413, %v4423
    %v4433 = vadd.f32 %v4431, %v4432
    %v4434 = vtanh.pop %v4433
    %v4435 = vmul.f32 %v4429, %v4434
    %s4436 = scalar_lea.vmem %s3, 6
    %v4437 = vld [vmem:[%s4436] sm:$0x3]
    %4439 = vset.pattern.permute.xlu0 0
    %4440 = vperm.xlu0 %4439, %v4437
    %v4441 = vpop.permute.xlu0 %4440
    %v4443 = vmul.f32 %v4433, %v4441
    %4444 = vst [vmem:[#allocation3] sm:$0x3] %v4443
    %v4445 = vmul.f32 %v4435, %v4441
    %4446 = vst [vmem:[#allocation2] sm:$0x3] %v4445
    %v4447 = vpack.c.bf16 %v4445, %v4445
    %s4448 = scalar_lea.vmem %s5, 3
    %4449 = vst [vmem:[%s4448] sm:$0x1] %v4447
    %s4450 = scalar_lea.vmem [#allocation5], 16
    %v4451 = vld [vmem:[%s4450] sm:$0xf]
    %v4452 = vunpack.c.l.bf16 %v4451
    %v4457 = vcombine.low %v4337, %v4339
    %v4458 = vcombine.low %v4378, %v4380
    %v4460 = vunpack.c.l.s4 1983009808
    %v4461 = vunpack.c.0.s8 %v4460
    %v4462 = vlaneseq
    %v4463 = vshrl.u32 %v4462, 7
    %v4464 = vsub.s32 %v4461, %v4463
    %v4465 = vrot.slane %v4457, %v4464
    %v4467 = vunpack.c.l.s4 1983009808
    %v4468 = vunpack.c.0.s8 %v4467
    %v4469 = vlaneseq
    %v4470 = vshrl.u32 %v4469, 7
    %v4471 = vsub.s32 %v4468, %v4470
    %v4472 = vrot.slane %v4458, %v4471
    %v4473 = vcombine.low %v4465, %v4472
    %v4475 = vadd.f32 %v4452, %v4473
    %v4476 = vmul.f32 %v4475, 0.5
    %v4477 = vtanh.pop %v4476
    %v4478 = vadd.f32 %v4477, 1.0
    %v4479 = vmul.f32 %v4478, 0.5
    %v4481 = vrot.slane %v4475, 2
    %v4483 = vmul.f32 %v4481, 0.5
    %v4484 = vtanh.pop %v4483
    %v4485 = vadd.f32 %v4484, 1.0
    %v4486 = vmul.f32 %v4485, 0.5
    %v4487 = vrot.slane %v4475, 4
    %v4489 = vtanh.pop %v4487
    %v4490 = vrot.slane %v4475, 6
    %v4492 = vmul.f32 %v4490, 0.5
    %v4493 = vtanh.pop %v4492
    %v4494 = vadd.f32 %v4493, 1.0
    %v4495 = vmul.f32 %v4494, 0.5
    %v4496 = vld [vmem:[#allocation3 + $0x2] sm:$0x3]
    %v4497 = vmul.f32 %v4486, %v4496
    %v4498 = vmul.f32 %v4479, %v4489
    %v4499 = vadd.f32 %v4497, %v4498
    %v4500 = vtanh.pop %v4499
    %v4501 = vmul.f32 %v4495, %v4500
    %s4502 = scalar_lea.vmem %s191, 8
    %v4503 = vld [vmem:[%s4502] sm:$0x3]
    %4505 = vset.pattern.permute.xlu0 0
    %4506 = vperm.xlu0 %4505, %v4503
    %v4507 = vpop.permute.xlu0 %4506
    %v4509 = vmul.f32 %v4499, %v4507
    %4510 = vst [vmem:[#allocation3 + $0x2] sm:$0x3] %v4509
    %v4511 = vmul.f32 %v4501, %v4507
    %4512 = vst [vmem:[#allocation2 + $0x2] sm:$0x3] %v4511
    %v4513 = vpack.c.bf16 %v4511, %v4511
    %s4514 = scalar_lea.vmem %s198, 4
    %4515 = vst [vmem:[%s4514] sm:$0x1] %v4513
    %v4516 = vld [vmem:[#allocation2] sm:$0xf]
    %v4519 = vunpack.c.l.s4 1983009808
    %v4520 = vunpack.c.0.s8 %v4519
    %v4521 = vlaneseq
    %v4522 = vshrl.u32 %v4521, 7
    %v4523 = vsub.s32 %v4520, %v4522
    %v4524 = vrot.slane %v4516, %v4523
    %v4525 = vcombine.high %v4524, %v4524
    %v4528 = vpack.c.bf16 %v4524, %v4524
    %v4529 = vpack.c.bf16 %v4525, %v4525
    %v4530 = vld [vmem:[%s2] sm:$0xff]
    %v4531 = vld [vmem:[%s2 + $0x8] sm:$0xff]
    %v4532 = vld [vmem:[%s2 + $0x10] sm:$0xff]
    %v4533 = vld [vmem:[%s2 + $0x18] sm:$0xff]
    %v4534 = vld [vmem:[%s2 + $0x20] sm:$0xff]
    %v4535 = vld [vmem:[%s2 + $0x28] sm:$0xff]
    %v4536 = vld [vmem:[%s2 + $0x30] sm:$0xff]
    %v4537 = vld [vmem:[%s2 + $0x38] sm:$0xff]
    %v4538 = vld [vmem:[%s2 + $0x40] sm:$0xff]
    %v4539 = vld [vmem:[%s2 + $0x48] sm:$0xff]
    %v4540 = vld [vmem:[%s2 + $0x50] sm:$0xff]
    %v4541 = vld [vmem:[%s2 + $0x58] sm:$0xff]
    %v4542 = vld [vmem:[%s2 + $0x60] sm:$0xff]
    %v4543 = vld [vmem:[%s2 + $0x68] sm:$0xff]
    %v4544 = vld [vmem:[%s2 + $0x70] sm:$0xff]
    %v4545 = vld [vmem:[%s2 + $0x78] sm:$0xff]
    %v4546 = vld [vmem:[%s2 + $0x80] sm:$0xff]
    %v4547 = vld [vmem:[%s2 + $0x88] sm:$0xff]
    %v4548 = vld [vmem:[%s2 + $0x90] sm:$0xff]
    %v4549 = vld [vmem:[%s2 + $0x98] sm:$0xff]
    %v4550 = vld [vmem:[%s2 + $0xa0] sm:$0xff]
    %v4551 = vld [vmem:[%s2 + $0xa8] sm:$0xff]
    %v4552 = vld [vmem:[%s2 + $0xb0] sm:$0xff]
    %v4553 = vld [vmem:[%s2 + $0xb8] sm:$0xff]
    %v4554 = vld [vmem:[%s2 + $0xc0] sm:$0xff]
    %v4555 = vld [vmem:[%s2 + $0xc8] sm:$0xff]
    %v4556 = vld [vmem:[%s2 + $0xd0] sm:$0xff]
    %v4557 = vld [vmem:[%s2 + $0xd8] sm:$0xff]
    %v4558 = vld [vmem:[%s2 + $0xe0] sm:$0xff]
    %v4559 = vld [vmem:[%s2 + $0xe8] sm:$0xff]
    %v4560 = vld [vmem:[%s2 + $0xf0] sm:$0xff]
    %v4561 = vld [vmem:[%s2 + $0xf8] sm:$0xff]
    %v4562 = vld [vmem:[%s2 + $0x100] sm:$0xff]
    %v4563 = vld [vmem:[%s2 + $0x108] sm:$0xff]
    %v4564 = vld [vmem:[%s2 + $0x110] sm:$0xff]
    %v4565 = vld [vmem:[%s2 + $0x118] sm:$0xff]
    %v4566 = vld [vmem:[%s2 + $0x120] sm:$0xff]
    %v4567 = vld [vmem:[%s2 + $0x128] sm:$0xff]
    %v4568 = vld [vmem:[%s2 + $0x130] sm:$0xff]
    %v4569 = vld [vmem:[%s2 + $0x138] sm:$0xff]
    %v4570 = vld [vmem:[%s2 + $0x140] sm:$0xff]
    %v4571 = vld [vmem:[%s2 + $0x148] sm:$0xff]
    %v4572 = vld [vmem:[%s2 + $0x150] sm:$0xff]
    %v4573 = vld [vmem:[%s2 + $0x158] sm:$0xff]
    %v4574 = vld [vmem:[%s2 + $0x160] sm:$0xff]
    %v4575 = vld [vmem:[%s2 + $0x168] sm:$0xff]
    %v4576 = vld [vmem:[%s2 + $0x170] sm:$0xff]
    %v4577 = vld [vmem:[%s2 + $0x178] sm:$0xff]
    %v4578 = vld [vmem:[%s2 + $0x180] sm:$0xff]
    %v4579 = vld [vmem:[%s2 + $0x188] sm:$0xff]
    %v4580 = vld [vmem:[%s2 + $0x190] sm:$0xff]
    %v4581 = vld [vmem:[%s2 + $0x198] sm:$0xff]
    %v4582 = vld [vmem:[%s2 + $0x1a0] sm:$0xff]
    %v4583 = vld [vmem:[%s2 + $0x1a8] sm:$0xff]
    %v4584 = vld [vmem:[%s2 + $0x1b0] sm:$0xff]
    %v4585 = vld [vmem:[%s2 + $0x1b8] sm:$0xff]
    %v4586 = vld [vmem:[%s2 + $0x1c0] sm:$0xff]
    %v4587 = vld [vmem:[%s2 + $0x1c8] sm:$0xff]
    %v4588 = vld [vmem:[%s2 + $0x1d0] sm:$0xff]
    %v4589 = vld [vmem:[%s2 + $0x1d8] sm:$0xff]
    %v4590 = vld [vmem:[%s2 + $0x1e0] sm:$0xff]
    %v4591 = vld [vmem:[%s2 + $0x1e8] sm:$0xff]
    %v4592 = vld [vmem:[%s2 + $0x1f0] sm:$0xff]
    %v4593 = vld [vmem:[%s2 + $0x1f8] sm:$0xff]
    %v4594 = vld [vmem:[%s2 + $0x200] sm:$0xff]
    %v4595 = vld [vmem:[%s2 + $0x208] sm:$0xff]
    %v4596 = vld [vmem:[%s2 + $0x210] sm:$0xff]
    %v4597 = vld [vmem:[%s2 + $0x218] sm:$0xff]
    %v4598 = vld [vmem:[%s2 + $0x220] sm:$0xff]
    %v4599 = vld [vmem:[%s2 + $0x228] sm:$0xff]
    %v4600 = vld [vmem:[%s2 + $0x230] sm:$0xff]
    %v4601 = vld [vmem:[%s2 + $0x238] sm:$0xff]
    %v4602 = vld [vmem:[%s2 + $0x240] sm:$0xff]
    %v4603 = vld [vmem:[%s2 + $0x248] sm:$0xff]
    %v4604 = vld [vmem:[%s2 + $0x250] sm:$0xff]
    %v4605 = vld [vmem:[%s2 + $0x258] sm:$0xff]
    %v4606 = vld [vmem:[%s2 + $0x260] sm:$0xff]
    %v4607 = vld [vmem:[%s2 + $0x268] sm:$0xff]
    %v4608 = vld [vmem:[%s2 + $0x270] sm:$0xff]
    %v4609 = vld [vmem:[%s2 + $0x278] sm:$0xff]
    %v4610 = vld [vmem:[%s2 + $0x280] sm:$0xff]
    %v4611 = vld [vmem:[%s2 + $0x288] sm:$0xff]
    %v4612 = vld [vmem:[%s2 + $0x290] sm:$0xff]
    %v4613 = vld [vmem:[%s2 + $0x298] sm:$0xff]
    %v4614 = vld [vmem:[%s2 + $0x2a0] sm:$0xff]
    %v4615 = vld [vmem:[%s2 + $0x2a8] sm:$0xff]
    %v4616 = vld [vmem:[%s2 + $0x2b0] sm:$0xff]
    %v4617 = vld [vmem:[%s2 + $0x2b8] sm:$0xff]
    %v4618 = vld [vmem:[%s2 + $0x2c0] sm:$0xff]
    %v4619 = vld [vmem:[%s2 + $0x2c8] sm:$0xff]
    %v4620 = vld [vmem:[%s2 + $0x2d0] sm:$0xff]
    %v4621 = vld [vmem:[%s2 + $0x2d8] sm:$0xff]
    %v4622 = vld [vmem:[%s2 + $0x2e0] sm:$0xff]
    %v4623 = vld [vmem:[%s2 + $0x2e8] sm:$0xff]
    %v4624 = vld [vmem:[%s2 + $0x2f0] sm:$0xff]
    %v4625 = vld [vmem:[%s2 + $0x2f8] sm:$0xff]
    %v4626 = vld [vmem:[%s2 + $0x300] sm:$0xff]
    %v4627 = vld [vmem:[%s2 + $0x308] sm:$0xff]
    %v4628 = vld [vmem:[%s2 + $0x310] sm:$0xff]
    %v4629 = vld [vmem:[%s2 + $0x318] sm:$0xff]
    %v4630 = vld [vmem:[%s2 + $0x320] sm:$0xff]
    %v4631 = vld [vmem:[%s2 + $0x328] sm:$0xff]
    %v4632 = vld [vmem:[%s2 + $0x330] sm:$0xff]
    %v4633 = vld [vmem:[%s2 + $0x338] sm:$0xff]
    %v4634 = vld [vmem:[%s2 + $0x340] sm:$0xff]
    %v4635 = vld [vmem:[%s2 + $0x348] sm:$0xff]
    %v4636 = vld [vmem:[%s2 + $0x350] sm:$0xff]
    %v4637 = vld [vmem:[%s2 + $0x358] sm:$0xff]
    %v4638 = vld [vmem:[%s2 + $0x360] sm:$0xff]
    %v4639 = vld [vmem:[%s2 + $0x368] sm:$0xff]
    %v4640 = vld [vmem:[%s2 + $0x370] sm:$0xff]
    %v4641 = vld [vmem:[%s2 + $0x378] sm:$0xff]
    %v4642 = vld [vmem:[%s2 + $0x380] sm:$0xff]
    %v4643 = vld [vmem:[%s2 + $0x388] sm:$0xff]
    %v4644 = vld [vmem:[%s2 + $0x390] sm:$0xff]
    %v4645 = vld [vmem:[%s2 + $0x398] sm:$0xff]
    %v4646 = vld [vmem:[%s2 + $0x3a0] sm:$0xff]
    %v4647 = vld [vmem:[%s2 + $0x3a8] sm:$0xff]
    %v4648 = vld [vmem:[%s2 + $0x3b0] sm:$0xff]
    %v4649 = vld [vmem:[%s2 + $0x3b8] sm:$0xff]
    %v4650 = vld [vmem:[%s2 + $0x3c0] sm:$0xff]
    %v4651 = vld [vmem:[%s2 + $0x3c8] sm:$0xff]
    %v4652 = vld [vmem:[%s2 + $0x3d0] sm:$0xff]
    %v4653 = vld [vmem:[%s2 + $0x3d8] sm:$0xff]
    %v4654 = vld [vmem:[%s2 + $0x3e0] sm:$0xff]
    %v4655 = vld [vmem:[%s2 + $0x3e8] sm:$0xff]
    %v4656 = vld [vmem:[%s2 + $0x3f0] sm:$0xff]
    %v4657 = vld [vmem:[%s2 + $0x3f8] sm:$0xff]
    %v4786 = vunpack.c.l.b16 %v4530
    %v4787 = vunpack.c.h.b16 %v4530
    %v4788 = vunpack.c.l.b16 %v4531
    %v4789 = vunpack.c.h.b16 %v4531
    %v4790 = vunpack.c.l.b16 %v4532
    %v4791 = vunpack.c.h.b16 %v4532
    %v4792 = vunpack.c.l.b16 %v4533
    %v4793 = vunpack.c.h.b16 %v4533
    %v4794 = vunpack.c.l.b16 %v4534
    %v4795 = vunpack.c.h.b16 %v4534
    %v4796 = vunpack.c.l.b16 %v4535
    %v4797 = vunpack.c.h.b16 %v4535
    %v4798 = vunpack.c.l.b16 %v4536
    %v4799 = vunpack.c.h.b16 %v4536
    %v4800 = vunpack.c.l.b16 %v4537
    %v4801 = vunpack.c.h.b16 %v4537
    %v4802 = vunpack.c.l.b16 %v4538
    %v4803 = vunpack.c.h.b16 %v4538
    %v4804 = vunpack.c.l.b16 %v4539
    %v4805 = vunpack.c.h.b16 %v4539
    %v4806 = vunpack.c.l.b16 %v4540
    %v4807 = vunpack.c.h.b16 %v4540
    %v4808 = vunpack.c.l.b16 %v4541
    %v4809 = vunpack.c.h.b16 %v4541
    %v4810 = vunpack.c.l.b16 %v4542
    %v4811 = vunpack.c.h.b16 %v4542
    %v4812 = vunpack.c.l.b16 %v4543
    %v4813 = vunpack.c.h.b16 %v4543
    %v4814 = vunpack.c.l.b16 %v4544
    %v4815 = vunpack.c.h.b16 %v4544
    %v4816 = vunpack.c.l.b16 %v4545
    %v4817 = vunpack.c.h.b16 %v4545
    %v4818 = vunpack.c.l.b16 %v4546
    %v4819 = vunpack.c.h.b16 %v4546
    %v4820 = vunpack.c.l.b16 %v4547
    %v4821 = vunpack.c.h.b16 %v4547
    %v4822 = vunpack.c.l.b16 %v4548
    %v4823 = vunpack.c.h.b16 %v4548
    %v4824 = vunpack.c.l.b16 %v4549
    %v4825 = vunpack.c.h.b16 %v4549
    %v4826 = vunpack.c.l.b16 %v4550
    %v4827 = vunpack.c.h.b16 %v4550
    %v4828 = vunpack.c.l.b16 %v4551
    %v4829 = vunpack.c.h.b16 %v4551
    %v4830 = vunpack.c.l.b16 %v4552
    %v4831 = vunpack.c.h.b16 %v4552
    %v4832 = vunpack.c.l.b16 %v4553
    %v4833 = vunpack.c.h.b16 %v4553
    %v4834 = vunpack.c.l.b16 %v4554
    %v4835 = vunpack.c.h.b16 %v4554
    %v4836 = vunpack.c.l.b16 %v4555
    %v4837 = vunpack.c.h.b16 %v4555
    %v4838 = vunpack.c.l.b16 %v4556
    %v4839 = vunpack.c.h.b16 %v4556
    %v4840 = vunpack.c.l.b16 %v4557
    %v4841 = vunpack.c.h.b16 %v4557
    %v4842 = vunpack.c.l.b16 %v4558
    %v4843 = vunpack.c.h.b16 %v4558
    %v4844 = vunpack.c.l.b16 %v4559
    %v4845 = vunpack.c.h.b16 %v4559
    %v4846 = vunpack.c.l.b16 %v4560
    %v4847 = vunpack.c.h.b16 %v4560
    %v4848 = vunpack.c.l.b16 %v4561
    %v4849 = vunpack.c.h.b16 %v4561
    %v4850 = vunpack.c.l.b16 %v4562
    %v4851 = vunpack.c.h.b16 %v4562
    %v4852 = vunpack.c.l.b16 %v4563
    %v4853 = vunpack.c.h.b16 %v4563
    %v4854 = vunpack.c.l.b16 %v4564
    %v4855 = vunpack.c.h.b16 %v4564
    %v4856 = vunpack.c.l.b16 %v4565
    %v4857 = vunpack.c.h.b16 %v4565
    %v4858 = vunpack.c.l.b16 %v4566
    %v4859 = vunpack.c.h.b16 %v4566
    %v4860 = vunpack.c.l.b16 %v4567
    %v4861 = vunpack.c.h.b16 %v4567
    %v4862 = vunpack.c.l.b16 %v4568
    %v4863 = vunpack.c.h.b16 %v4568
    %v4864 = vunpack.c.l.b16 %v4569
    %v4865 = vunpack.c.h.b16 %v4569
    %v4866 = vunpack.c.l.b16 %v4570
    %v4867 = vunpack.c.h.b16 %v4570
    %v4868 = vunpack.c.l.b16 %v4571
    %v4869 = vunpack.c.h.b16 %v4571
    %v4870 = vunpack.c.l.b16 %v4572
    %v4871 = vunpack.c.h.b16 %v4572
    %v4872 = vunpack.c.l.b16 %v4573
    %v4873 = vunpack.c.h.b16 %v4573
    %v4874 = vunpack.c.l.b16 %v4574
    %v4875 = vunpack.c.h.b16 %v4574
    %v4876 = vunpack.c.l.b16 %v4575
    %v4877 = vunpack.c.h.b16 %v4575
    %v4878 = vunpack.c.l.b16 %v4576
    %v4879 = vunpack.c.h.b16 %v4576
    %v4880 = vunpack.c.l.b16 %v4577
    %v4881 = vunpack.c.h.b16 %v4577
    %v4882 = vunpack.c.l.b16 %v4578
    %v4883 = vunpack.c.h.b16 %v4578
    %v4884 = vunpack.c.l.b16 %v4579
    %v4885 = vunpack.c.h.b16 %v4579
    %v4886 = vunpack.c.l.b16 %v4580
    %v4887 = vunpack.c.h.b16 %v4580
    %v4888 = vunpack.c.l.b16 %v4581
    %v4889 = vunpack.c.h.b16 %v4581
    %v4890 = vunpack.c.l.b16 %v4582
    %v4891 = vunpack.c.h.b16 %v4582
    %v4892 = vunpack.c.l.b16 %v4583
    %v4893 = vunpack.c.h.b16 %v4583
    %v4894 = vunpack.c.l.b16 %v4584
    %v4895 = vunpack.c.h.b16 %v4584
    %v4896 = vunpack.c.l.b16 %v4585
    %v4897 = vunpack.c.h.b16 %v4585
    %v4898 = vunpack.c.l.b16 %v4586
    %v4899 = vunpack.c.h.b16 %v4586
    %v4900 = vunpack.c.l.b16 %v4587
    %v4901 = vunpack.c.h.b16 %v4587
    %v4902 = vunpack.c.l.b16 %v4588
    %v4903 = vunpack.c.h.b16 %v4588
    %v4904 = vunpack.c.l.b16 %v4589
    %v4905 = vunpack.c.h.b16 %v4589
    %v4906 = vunpack.c.l.b16 %v4590
    %v4907 = vunpack.c.h.b16 %v4590
    %v4908 = vunpack.c.l.b16 %v4591
    %v4909 = vunpack.c.h.b16 %v4591
    %v4910 = vunpack.c.l.b16 %v4592
    %v4911 = vunpack.c.h.b16 %v4592
    %v4912 = vunpack.c.l.b16 %v4593
    %v4913 = vunpack.c.h.b16 %v4593
    %v4914 = vunpack.c.l.b16 %v4594
    %v4915 = vunpack.c.h.b16 %v4594
    %v4916 = vunpack.c.l.b16 %v4595
    %v4917 = vunpack.c.h.b16 %v4595
    %v4918 = vunpack.c.l.b16 %v4596
    %v4919 = vunpack.c.h.b16 %v4596
    %v4920 = vunpack.c.l.b16 %v4597
    %v4921 = vunpack.c.h.b16 %v4597
    %v4922 = vunpack.c.l.b16 %v4598
    %v4923 = vunpack.c.h.b16 %v4598
    %v4924 = vunpack.c.l.b16 %v4599
    %v4925 = vunpack.c.h.b16 %v4599
    %v4926 = vunpack.c.l.b16 %v4600
    %v4927 = vunpack.c.h.b16 %v4600
    %v4928 = vunpack.c.l.b16 %v4601
    %v4929 = vunpack.c.h.b16 %v4601
    %v4930 = vunpack.c.l.b16 %v4602
    %v4931 = vunpack.c.h.b16 %v4602
    %v4932 = vunpack.c.l.b16 %v4603
    %v4933 = vunpack.c.h.b16 %v4603
    %v4934 = vunpack.c.l.b16 %v4604
    %v4935 = vunpack.c.h.b16 %v4604
    %v4936 = vunpack.c.l.b16 %v4605
    %v4937 = vunpack.c.h.b16 %v4605
    %v4938 = vunpack.c.l.b16 %v4606
    %v4939 = vunpack.c.h.b16 %v4606
    %v4940 = vunpack.c.l.b16 %v4607
    %v4941 = vunpack.c.h.b16 %v4607
    %v4942 = vunpack.c.l.b16 %v4608
    %v4943 = vunpack.c.h.b16 %v4608
    %v4944 = vunpack.c.l.b16 %v4609
    %v4945 = vunpack.c.h.b16 %v4609
    %v4946 = vunpack.c.l.b16 %v4610
    %v4947 = vunpack.c.h.b16 %v4610
    %v4948 = vunpack.c.l.b16 %v4611
    %v4949 = vunpack.c.h.b16 %v4611
    %v4950 = vunpack.c.l.b16 %v4612
    %v4951 = vunpack.c.h.b16 %v4612
    %v4952 = vunpack.c.l.b16 %v4613
    %v4953 = vunpack.c.h.b16 %v4613
    %v4954 = vunpack.c.l.b16 %v4614
    %v4955 = vunpack.c.h.b16 %v4614
    %v4956 = vunpack.c.l.b16 %v4615
    %v4957 = vunpack.c.h.b16 %v4615
    %v4958 = vunpack.c.l.b16 %v4616
    %v4959 = vunpack.c.h.b16 %v4616
    %v4960 = vunpack.c.l.b16 %v4617
    %v4961 = vunpack.c.h.b16 %v4617
    %v4962 = vunpack.c.l.b16 %v4618
    %v4963 = vunpack.c.h.b16 %v4618
    %v4964 = vunpack.c.l.b16 %v4619
    %v4965 = vunpack.c.h.b16 %v4619
    %v4966 = vunpack.c.l.b16 %v4620
    %v4967 = vunpack.c.h.b16 %v4620
    %v4968 = vunpack.c.l.b16 %v4621
    %v4969 = vunpack.c.h.b16 %v4621
    %v4970 = vunpack.c.l.b16 %v4622
    %v4971 = vunpack.c.h.b16 %v4622
    %v4972 = vunpack.c.l.b16 %v4623
    %v4973 = vunpack.c.h.b16 %v4623
    %v4974 = vunpack.c.l.b16 %v4624
    %v4975 = vunpack.c.h.b16 %v4624
    %v4976 = vunpack.c.l.b16 %v4625
    %v4977 = vunpack.c.h.b16 %v4625
    %v4978 = vunpack.c.l.b16 %v4626
    %v4979 = vunpack.c.h.b16 %v4626
    %v4980 = vunpack.c.l.b16 %v4627
    %v4981 = vunpack.c.h.b16 %v4627
    %v4982 = vunpack.c.l.b16 %v4628
    %v4983 = vunpack.c.h.b16 %v4628
    %v4984 = vunpack.c.l.b16 %v4629
    %v4985 = vunpack.c.h.b16 %v4629
    %v4986 = vunpack.c.l.b16 %v4630
    %v4987 = vunpack.c.h.b16 %v4630
    %v4988 = vunpack.c.l.b16 %v4631
    %v4989 = vunpack.c.h.b16 %v4631
    %v4990 = vunpack.c.l.b16 %v4632
    %v4991 = vunpack.c.h.b16 %v4632
    %v4992 = vunpack.c.l.b16 %v4633
    %v4993 = vunpack.c.h.b16 %v4633
    %v4994 = vunpack.c.l.b16 %v4634
    %v4995 = vunpack.c.h.b16 %v4634
    %v4996 = vunpack.c.l.b16 %v4635
    %v4997 = vunpack.c.h.b16 %v4635
    %v4998 = vunpack.c.l.b16 %v4636
    %v4999 = vunpack.c.h.b16 %v4636
    %v5000 = vunpack.c.l.b16 %v4637
    %v5001 = vunpack.c.h.b16 %v4637
    %v5002 = vunpack.c.l.b16 %v4638
    %v5003 = vunpack.c.h.b16 %v4638
    %v5004 = vunpack.c.l.b16 %v4639
    %v5005 = vunpack.c.h.b16 %v4639
    %v5006 = vunpack.c.l.b16 %v4640
    %v5007 = vunpack.c.h.b16 %v4640
    %v5008 = vunpack.c.l.b16 %v4641
    %v5009 = vunpack.c.h.b16 %v4641
    %v5010 = vunpack.c.l.b16 %v4642
    %v5011 = vunpack.c.h.b16 %v4642
    %v5012 = vunpack.c.l.b16 %v4643
    %v5013 = vunpack.c.h.b16 %v4643
    %v5014 = vunpack.c.l.b16 %v4644
    %v5015 = vunpack.c.h.b16 %v4644
    %v5016 = vunpack.c.l.b16 %v4645
    %v5017 = vunpack.c.h.b16 %v4645
    %v5018 = vunpack.c.l.b16 %v4646
    %v5019 = vunpack.c.h.b16 %v4646
    %v5020 = vunpack.c.l.b16 %v4647
    %v5021 = vunpack.c.h.b16 %v4647
    %v5022 = vunpack.c.l.b16 %v4648
    %v5023 = vunpack.c.h.b16 %v4648
    %v5024 = vunpack.c.l.b16 %v4649
    %v5025 = vunpack.c.h.b16 %v4649
    %v5026 = vunpack.c.l.b16 %v4650
    %v5027 = vunpack.c.h.b16 %v4650
    %v5028 = vunpack.c.l.b16 %v4651
    %v5029 = vunpack.c.h.b16 %v4651
    %v5030 = vunpack.c.l.b16 %v4652
    %v5031 = vunpack.c.h.b16 %v4652
    %v5032 = vunpack.c.l.b16 %v4653
    %v5033 = vunpack.c.h.b16 %v4653
    %v5034 = vunpack.c.l.b16 %v4654
    %v5035 = vunpack.c.h.b16 %v4654
    %v5036 = vunpack.c.l.b16 %v4655
    %v5037 = vunpack.c.h.b16 %v4655
    %v5038 = vunpack.c.l.b16 %v4656
    %v5039 = vunpack.c.h.b16 %v4656
    %v5040 = vunpack.c.l.b16 %v4657
    %v5041 = vunpack.c.h.b16 %v4657
    %v5042 = vpack.c.b16 %v4794, %v4786
    %v5043 = vpack.c.b16 %v4795, %v4787
    %v5044 = vpack.c.b16 %v4796, %v4788
    %v5045 = vpack.c.b16 %v4797, %v4789
    %v5046 = vpack.c.b16 %v4798, %v4790
    %v5047 = vpack.c.b16 %v4799, %v4791
    %v5048 = vpack.c.b16 %v4800, %v4792
    %v5049 = vpack.c.b16 %v4801, %v4793
    %v5050 = vpack.c.b16 %v4810, %v4802
    %v5051 = vpack.c.b16 %v4811, %v4803
    %v5052 = vpack.c.b16 %v4812, %v4804
    %v5053 = vpack.c.b16 %v4813, %v4805
    %v5054 = vpack.c.b16 %v4814, %v4806
    %v5055 = vpack.c.b16 %v4815, %v4807
    %v5056 = vpack.c.b16 %v4816, %v4808
    %v5057 = vpack.c.b16 %v4817, %v4809
    %v5058 = vpack.c.b16 %v4826, %v4818
    %v5059 = vpack.c.b16 %v4827, %v4819
    %v5060 = vpack.c.b16 %v4828, %v4820
    %v5061 = vpack.c.b16 %v4829, %v4821
    %v5062 = vpack.c.b16 %v4830, %v4822
    %v5063 = vpack.c.b16 %v4831, %v4823
    %v5064 = vpack.c.b16 %v4832, %v4824
    %v5065 = vpack.c.b16 %v4833, %v4825
    %v5066 = vpack.c.b16 %v4842, %v4834
    %v5067 = vpack.c.b16 %v4843, %v4835
    %v5068 = vpack.c.b16 %v4844, %v4836
    %v5069 = vpack.c.b16 %v4845, %v4837
    %v5070 = vpack.c.b16 %v4846, %v4838
    %v5071 = vpack.c.b16 %v4847, %v4839
    %v5072 = vpack.c.b16 %v4848, %v4840
    %v5073 = vpack.c.b16 %v4849, %v4841
    %v5074 = vpack.c.b16 %v4858, %v4850
    %v5075 = vpack.c.b16 %v4859, %v4851
    %v5076 = vpack.c.b16 %v4860, %v4852
    %v5077 = vpack.c.b16 %v4861, %v4853
    %v5078 = vpack.c.b16 %v4862, %v4854
    %v5079 = vpack.c.b16 %v4863, %v4855
    %v5080 = vpack.c.b16 %v4864, %v4856
    %v5081 = vpack.c.b16 %v4865, %v4857
    %v5082 = vpack.c.b16 %v4874, %v4866
    %v5083 = vpack.c.b16 %v4875, %v4867
    %v5084 = vpack.c.b16 %v4876, %v4868
    %v5085 = vpack.c.b16 %v4877, %v4869
    %v5086 = vpack.c.b16 %v4878, %v4870
    %v5087 = vpack.c.b16 %v4879, %v4871
    %v5088 = vpack.c.b16 %v4880, %v4872
    %v5089 = vpack.c.b16 %v4881, %v4873
    %v5090 = vpack.c.b16 %v4890, %v4882
    %v5091 = vpack.c.b16 %v4891, %v4883
    %v5092 = vpack.c.b16 %v4892, %v4884
    %v5093 = vpack.c.b16 %v4893, %v4885
    %v5094 = vpack.c.b16 %v4894, %v4886
    %v5095 = vpack.c.b16 %v4895, %v4887
    %v5096 = vpack.c.b16 %v4896, %v4888
    %v5097 = vpack.c.b16 %v4897, %v4889
    %v5098 = vpack.c.b16 %v4906, %v4898
    %v5099 = vpack.c.b16 %v4907, %v4899
    %v5100 = vpack.c.b16 %v4908, %v4900
    %v5101 = vpack.c.b16 %v4909, %v4901
    %v5102 = vpack.c.b16 %v4910, %v4902
    %v5103 = vpack.c.b16 %v4911, %v4903
    %v5104 = vpack.c.b16 %v4912, %v4904
    %v5105 = vpack.c.b16 %v4913, %v4905
    %v5106 = vpack.c.b16 %v4922, %v4914
    %v5107 = vpack.c.b16 %v4923, %v4915
    %v5108 = vpack.c.b16 %v4924, %v4916
    %v5109 = vpack.c.b16 %v4925, %v4917
    %v5110 = vpack.c.b16 %v4926, %v4918
    %v5111 = vpack.c.b16 %v4927, %v4919
    %v5112 = vpack.c.b16 %v4928, %v4920
    %v5113 = vpack.c.b16 %v4929, %v4921
    %v5114 = vpack.c.b16 %v4938, %v4930
    %v5115 = vpack.c.b16 %v4939, %v4931
    %v5116 = vpack.c.b16 %v4940, %v4932
    %v5117 = vpack.c.b16 %v4941, %v4933
    %v5118 = vpack.c.b16 %v4942, %v4934
    %v5119 = vpack.c.b16 %v4943, %v4935
    %v5120 = vpack.c.b16 %v4944, %v4936
    %v5121 = vpack.c.b16 %v4945, %v4937
    %v5122 = vpack.c.b16 %v4954, %v4946
    %v5123 = vpack.c.b16 %v4955, %v4947
    %v5124 = vpack.c.b16 %v4956, %v4948
    %v5125 = vpack.c.b16 %v4957, %v4949
    %v5126 = vpack.c.b16 %v4958, %v4950
    %v5127 = vpack.c.b16 %v4959, %v4951
    %v5128 = vpack.c.b16 %v4960, %v4952
    %v5129 = vpack.c.b16 %v4961, %v4953
    %v5130 = vpack.c.b16 %v4970, %v4962
    %v5131 = vpack.c.b16 %v4971, %v4963
    %v5132 = vpack.c.b16 %v4972, %v4964
    %v5133 = vpack.c.b16 %v4973, %v4965
    %v5134 = vpack.c.b16 %v4974, %v4966
    %v5135 = vpack.c.b16 %v4975, %v4967
    %v5136 = vpack.c.b16 %v4976, %v4968
    %v5137 = vpack.c.b16 %v4977, %v4969
    %v5138 = vpack.c.b16 %v4986, %v4978
    %v5139 = vpack.c.b16 %v4987, %v4979
    %v5140 = vpack.c.b16 %v4988, %v4980
    %v5141 = vpack.c.b16 %v4989, %v4981
    %v5142 = vpack.c.b16 %v4990, %v4982
    %v5143 = vpack.c.b16 %v4991, %v4983
    %v5144 = vpack.c.b16 %v4992, %v4984
    %v5145 = vpack.c.b16 %v4993, %v4985
    %v5146 = vpack.c.b16 %v5002, %v4994
    %v5147 = vpack.c.b16 %v5003, %v4995
    %v5148 = vpack.c.b16 %v5004, %v4996
    %v5149 = vpack.c.b16 %v5005, %v4997
    %v5150 = vpack.c.b16 %v5006, %v4998
    %v5151 = vpack.c.b16 %v5007, %v4999
    %v5152 = vpack.c.b16 %v5008, %v5000
    %v5153 = vpack.c.b16 %v5009, %v5001
    %v5154 = vpack.c.b16 %v5018, %v5010
    %v5155 = vpack.c.b16 %v5019, %v5011
    %v5156 = vpack.c.b16 %v5020, %v5012
    %v5157 = vpack.c.b16 %v5021, %v5013
    %v5158 = vpack.c.b16 %v5022, %v5014
    %v5159 = vpack.c.b16 %v5023, %v5015
    %v5160 = vpack.c.b16 %v5024, %v5016
    %v5161 = vpack.c.b16 %v5025, %v5017
    %v5162 = vpack.c.b16 %v5034, %v5026
    %v5163 = vpack.c.b16 %v5035, %v5027
    %v5164 = vpack.c.b16 %v5036, %v5028
    %v5165 = vpack.c.b16 %v5037, %v5029
    %v5166 = vpack.c.b16 %v5038, %v5030
    %v5167 = vpack.c.b16 %v5039, %v5031
    %v5168 = vpack.c.b16 %v5040, %v5032
    %v5169 = vpack.c.b16 %v5041, %v5033
    %5298 = vmatprep.subr.bf16.mxu0 %v5043
    %5299 = vmatpush1.bf16.msra.mxu0 %v5042
    %5300 = vmatprep.subr.bf16.mxu0 %v5051
    %5301 = vmatpush1.bf16.msra.mxu0 %v5050
    %5302 = vmatprep.subr.bf16.mxu0 %v5059
    %5303 = vmatpush1.bf16.msra.mxu0 %v5058
    %5304 = vmatprep.subr.bf16.mxu0 %v5067
    %5305 = vmatpush1.bf16.msra.mxu0 %v5066
    %5306 = vmatprep.subr.bf16.mxu0 %v5075
    %5307 = vmatpush1.bf16.msra.mxu0 %v5074
    %5308 = vmatprep.subr.bf16.mxu0 %v5083
    %5309 = vmatpush1.bf16.msra.mxu0 %v5082
    %5310 = vmatprep.subr.bf16.mxu0 %v5091
    %5311 = vmatpush1.bf16.msra.mxu0 %v5090
    %5312 = vmatprep.subr.bf16.mxu0 %v5099
    %5313 = vmatpush1.bf16.msra.mxu0 %v5098
    %5314 = vmatprep.subr.bf16.mxu0 %v5107
    %5315 = vmatpush1.bf16.msra.mxu0 %v5106
    %5316 = vmatprep.subr.bf16.mxu0 %v5115
    %5317 = vmatpush1.bf16.msra.mxu0 %v5114
    %5318 = vmatprep.subr.bf16.mxu0 %v5123
    %5319 = vmatpush1.bf16.msra.mxu0 %v5122
    %5320 = vmatprep.subr.bf16.mxu0 %v5131
    %5321 = vmatpush1.bf16.msra.mxu0 %v5130
    %5322 = vmatprep.subr.bf16.mxu0 %v5139
    %5323 = vmatpush1.bf16.msra.mxu0 %v5138
    %5324 = vmatprep.subr.bf16.mxu0 %v5147
    %5325 = vmatpush1.bf16.msra.mxu0 %v5146
    %5326 = vmatprep.subr.bf16.mxu0 %v5155
    %5327 = vmatpush1.bf16.msra.mxu0 %v5154
    %5328 = vmatprep.subr.bf16.mxu0 %v5163
    %5329 = vmatpush1.bf16.msra.mxu0 %v5162
    %5330 = vmatprep.mubr.bf16.mxu0 %v4529
    %5331 = vmatmul.mubr.bf16.gmra.mrb[0].mxu0 %v4528
    %v5332 = vpop.f32.mrb[0].mxu0
    %v5333 = vadd.f32 0.0, %v5332
    %v5334 = vpop.f32.mrb[0].mxu0
    %v5335 = vadd.f32 0.0, %v5334
    %v5336 = vpop.f32.mrb[0].mxu0
    %v5337 = vpop.f32.mrb[0].mxu0
    %5338 = vdwg.mxu0
    %5339 = vmatprep.subr.bf16.mxu0 %v5045
    %5340 = vmatpush1.bf16.msra.mxu0 %v5044
    %5341 = vmatprep.subr.bf16.mxu0 %v5053
    %5342 = vmatpush1.bf16.msra.mxu0 %v5052
    %5343 = vmatprep.subr.bf16.mxu0 %v5061
    %5344 = vmatpush1.bf16.msra.mxu0 %v5060
    %5345 = vmatprep.subr.bf16.mxu0 %v5069
    %5346 = vmatpush1.bf16.msra.mxu0 %v5068
    %5347 = vmatprep.subr.bf16.mxu0 %v5077
    %5348 = vmatpush1.bf16.msra.mxu0 %v5076
    %5349 = vmatprep.subr.bf16.mxu0 %v5085
    %5350 = vmatpush1.bf16.msra.mxu0 %v5084
    %5351 = vmatprep.subr.bf16.mxu0 %v5093
    %5352 = vmatpush1.bf16.msra.mxu0 %v5092
    %5353 = vmatprep.subr.bf16.mxu0 %v5101
    %5354 = vmatpush1.bf16.msra.mxu0 %v5100
    %5355 = vmatprep.subr.bf16.mxu0 %v5109
    %5356 = vmatpush1.bf16.msra.mxu0 %v5108
    %5357 = vmatprep.subr.bf16.mxu0 %v5117
    %5358 = vmatpush1.bf16.msra.mxu0 %v5116
    %5359 = vmatprep.subr.bf16.mxu0 %v5125
    %5360 = vmatpush1.bf16.msra.mxu0 %v5124
    %5361 = vmatprep.subr.bf16.mxu0 %v5133
    %5362 = vmatpush1.bf16.msra.mxu0 %v5132
    %5363 = vmatprep.subr.bf16.mxu0 %v5141
    %5364 = vmatpush1.bf16.msra.mxu0 %v5140
    %5365 = vmatprep.subr.bf16.mxu0 %v5149
    %5366 = vmatpush1.bf16.msra.mxu0 %v5148
    %5367 = vmatprep.subr.bf16.mxu0 %v5157
    %5368 = vmatpush1.bf16.msra.mxu0 %v5156
    %5369 = vmatprep.subr.bf16.mxu0 %v5165
    %5370 = vmatpush1.bf16.msra.mxu0 %v5164
    %5371 = vmatprep.mubr.bf16.mxu0 %v4529
    %5372 = vmatmul.mubr.bf16.gmra.mrb[0].mxu0 %v4528
    %v5373 = vpop.f32.mrb[0].mxu0
    %v5374 = vadd.f32 0.0, %v5373
    %v5375 = vpop.f32.mrb[0].mxu0
    %v5376 = vadd.f32 0.0, %v5375
    %v5377 = vpop.f32.mrb[0].mxu0
    %v5378 = vpop.f32.mrb[0].mxu0
    %5379 = vdwg.mxu0
    %5380 = vmatprep.subr.bf16.mxu0 %v5047
    %5381 = vmatpush1.bf16.msra.mxu0 %v5046
    %5382 = vmatprep.subr.bf16.mxu0 %v5055
    %5383 = vmatpush1.bf16.msra.mxu0 %v5054
    %5384 = vmatprep.subr.bf16.mxu0 %v5063
    %5385 = vmatpush1.bf16.msra.mxu0 %v5062
    %5386 = vmatprep.subr.bf16.mxu0 %v5071
    %5387 = vmatpush1.bf16.msra.mxu0 %v5070
    %5388 = vmatprep.subr.bf16.mxu0 %v5079
    %5389 = vmatpush1.bf16.msra.mxu0 %v5078
    %5390 = vmatprep.subr.bf16.mxu0 %v5087
    %5391 = vmatpush1.bf16.msra.mxu0 %v5086
    %5392 = vmatprep.subr.bf16.mxu0 %v5095
    %5393 = vmatpush1.bf16.msra.mxu0 %v5094
    %5394 = vmatprep.subr.bf16.mxu0 %v5103
    %5395 = vmatpush1.bf16.msra.mxu0 %v5102
    %5396 = vmatprep.subr.bf16.mxu0 %v5111
    %5397 = vmatpush1.bf16.msra.mxu0 %v5110
    %5398 = vmatprep.subr.bf16.mxu0 %v5119
    %5399 = vmatpush1.bf16.msra.mxu0 %v5118
    %5400 = vmatprep.subr.bf16.mxu0 %v5127
    %5401 = vmatpush1.bf16.msra.mxu0 %v5126
    %5402 = vmatprep.subr.bf16.mxu0 %v5135
    %5403 = vmatpush1.bf16.msra.mxu0 %v5134
    %5404 = vmatprep.subr.bf16.mxu0 %v5143
    %5405 = vmatpush1.bf16.msra.mxu0 %v5142
    %5406 = vmatprep.subr.bf16.mxu0 %v5151
    %5407 = vmatpush1.bf16.msra.mxu0 %v5150
    %5408 = vmatprep.subr.bf16.mxu0 %v5159
    %5409 = vmatpush1.bf16.msra.mxu0 %v5158
    %5410 = vmatprep.subr.bf16.mxu0 %v5167
    %5411 = vmatpush1.bf16.msra.mxu0 %v5166
    %5412 = vmatprep.mubr.bf16.mxu0 %v4529
    %5413 = vmatmul.mubr.bf16.gmra.mrb[0].mxu0 %v4528
    %v5414 = vpop.f32.mrb[0].mxu0
    %v5415 = vadd.f32 0.0, %v5414
    %v5416 = vpop.f32.mrb[0].mxu0
    %v5417 = vadd.f32 0.0, %v5416
    %v5418 = vpop.f32.mrb[0].mxu0
    %v5419 = vpop.f32.mrb[0].mxu0
    %5420 = vdwg.mxu0
    %5421 = vmatprep.subr.bf16.mxu0 %v5049
    %5422 = vmatpush1.bf16.msra.mxu0 %v5048
    %5423 = vmatprep.subr.bf16.mxu0 %v5057
    %5424 = vmatpush1.bf16.msra.mxu0 %v5056
    %5425 = vmatprep.subr.bf16.mxu0 %v5065
    %5426 = vmatpush1.bf16.msra.mxu0 %v5064
    %5427 = vmatprep.subr.bf16.mxu0 %v5073
    %5428 = vmatpush1.bf16.msra.mxu0 %v5072
    %5429 = vmatprep.subr.bf16.mxu0 %v5081
    %5430 = vmatpush1.bf16.msra.mxu0 %v5080
    %5431 = vmatprep.subr.bf16.mxu0 %v5089
    %5432 = vmatpush1.bf16.msra.mxu0 %v5088
    %5433 = vmatprep.subr.bf16.mxu0 %v5097
    %5434 = vmatpush1.bf16.msra.mxu0 %v5096
    %5435 = vmatprep.subr.bf16.mxu0 %v5105
    %5436 = vmatpush1.bf16.msra.mxu0 %v5104
    %5437 = vmatprep.subr.bf16.mxu0 %v5113
    %5438 = vmatpush1.bf16.msra.mxu0 %v5112
    %5439 = vmatprep.subr.bf16.mxu0 %v5121
    %5440 = vmatpush1.bf16.msra.mxu0 %v5120
    %5441 = vmatprep.subr.bf16.mxu0 %v5129
    %5442 = vmatpush1.bf16.msra.mxu0 %v5128
    %5443 = vmatprep.subr.bf16.mxu0 %v5137
    %5444 = vmatpush1.bf16.msra.mxu0 %v5136
    %5445 = vmatprep.subr.bf16.mxu0 %v5145
    %5446 = vmatpush1.bf16.msra.mxu0 %v5144
    %5447 = vmatprep.subr.bf16.mxu0 %v5153
    %5448 = vmatpush1.bf16.msra.mxu0 %v5152
    %5449 = vmatprep.subr.bf16.mxu0 %v5161
    %5450 = vmatpush1.bf16.msra.mxu0 %v5160
    %5451 = vmatprep.subr.bf16.mxu0 %v5169
    %5452 = vmatpush1.bf16.msra.mxu0 %v5168
    %5453 = vmatprep.mubr.bf16.mxu0 %v4529
    %5454 = vmatmul.mubr.bf16.gmra.mrb[0].mxu0 %v4528
    %v5455 = vpop.f32.mrb[0].mxu0
    %v5456 = vadd.f32 0.0, %v5455
    %v5457 = vpop.f32.mrb[0].mxu0
    %v5458 = vadd.f32 0.0, %v5457
    %v5459 = vpop.f32.mrb[0].mxu0
    %v5460 = vpop.f32.mrb[0].mxu0
    %5461 = vdwg.mxu0
    %s5462 = scalar_lea.vmem [#allocation4], 16
    %v5463 = vld [vmem:[%s5462] sm:$0xf]
    %v5464 = vunpack.c.l.bf16 %v5463
    %v5469 = vcombine.low %v5333, %v5335
    %v5470 = vcombine.low %v5374, %v5376
    %v5472 = vunpack.c.l.s4 1983009808
    %v5473 = vunpack.c.0.s8 %v5472
    %v5474 = vlaneseq
    %v5475 = vshrl.u32 %v5474, 7
    %v5476 = vsub.s32 %v5473, %v5475
    %v5477 = vrot.slane %v5469, %v5476
    %v5479 = vunpack.c.l.s4 1983009808
    %v5480 = vunpack.c.0.s8 %v5479
    %v5481 = vlaneseq
    %v5482 = vshrl.u32 %v5481, 7
    %v5483 = vsub.s32 %v5480, %v5482
    %v5484 = vrot.slane %v5470, %v5483
    %v5485 = vcombine.low %v5477, %v5484
    %v5487 = vadd.f32 %v5464, %v5485
    %v5488 = vmul.f32 %v5487, 0.5
    %v5489 = vtanh.pop %v5488
    %v5490 = vadd.f32 %v5489, 1.0
    %v5491 = vmul.f32 %v5490, 0.5
    %v5493 = vrot.slane %v5487, 2
    %v5495 = vmul.f32 %v5493, 0.5
    %v5496 = vtanh.pop %v5495
    %v5497 = vadd.f32 %v5496, 1.0
    %v5498 = vmul.f32 %v5497, 0.5
    %v5499 = vrot.slane %v5487, 4
    %v5501 = vtanh.pop %v5499
    %v5502 = vrot.slane %v5487, 6
    %v5504 = vmul.f32 %v5502, 0.5
    %v5505 = vtanh.pop %v5504
    %v5506 = vadd.f32 %v5505, 1.0
    %v5507 = vmul.f32 %v5506, 0.5
    %v5508 = vld [vmem:[#allocation3] sm:$0x3]
    %v5509 = vmul.f32 %v5498, %v5508
    %v5510 = vmul.f32 %v5491, %v5501
    %v5511 = vadd.f32 %v5509, %v5510
    %v5512 = vtanh.pop %v5511
    %v5513 = vmul.f32 %v5507, %v5512
    %s5514 = scalar_lea.vmem %s3, 8
    %v5515 = vld [vmem:[%s5514] sm:$0x3]
    %5517 = vset.pattern.permute.xlu0 0
    %5518 = vperm.xlu0 %5517, %v5515
    %v5519 = vpop.permute.xlu0 %5518
    %v5521 = vmul.f32 %v5511, %v5519
    %5522 = vst [vmem:[#allocation3] sm:$0x3] %v5521
    %v5523 = vmul.f32 %v5513, %v5519
    %5524 = vst [vmem:[#allocation2] sm:$0x3] %v5523
    %v5525 = vpack.c.bf16 %v5523, %v5523
    %s5526 = scalar_lea.vmem %s5, 4
    %5527 = vst [vmem:[%s5526] sm:$0x1] %v5525
    %s5528 = scalar_lea.vmem [#allocation5], 12
    %v5529 = vld [vmem:[%s5528] sm:$0xf]
    %v5530 = vunpack.c.l.bf16 %v5529
    %v5535 = vcombine.low %v5415, %v5417
    %v5536 = vcombine.low %v5456, %v5458
    %v5538 = vunpack.c.l.s4 1983009808
    %v5539 = vunpack.c.0.s8 %v5538
    %v5540 = vlaneseq
    %v5541 = vshrl.u32 %v5540, 7
    %v5542 = vsub.s32 %v5539, %v5541
    %v5543 = vrot.slane %v5535, %v5542
    %v5545 = vunpack.c.l.s4 1983009808
    %v5546 = vunpack.c.0.s8 %v5545
    %v5547 = vlaneseq
    %v5548 = vshrl.u32 %v5547, 7
    %v5549 = vsub.s32 %v5546, %v5548
    %v5550 = vrot.slane %v5536, %v5549
    %v5551 = vcombine.low %v5543, %v5550
    %v5553 = vadd.f32 %v5530, %v5551
    %v5554 = vmul.f32 %v5553, 0.5
    %v5555 = vtanh.pop %v5554
    %v5556 = vadd.f32 %v5555, 1.0
    %v5557 = vmul.f32 %v5556, 0.5
    %v5559 = vrot.slane %v5553, 2
    %v5561 = vmul.f32 %v5559, 0.5
    %v5562 = vtanh.pop %v5561
    %v5563 = vadd.f32 %v5562, 1.0
    %v5564 = vmul.f32 %v5563, 0.5
    %v5565 = vrot.slane %v5553, 4
    %v5567 = vtanh.pop %v5565
    %v5568 = vrot.slane %v5553, 6
    %v5570 = vmul.f32 %v5568, 0.5
    %v5571 = vtanh.pop %v5570
    %v5572 = vadd.f32 %v5571, 1.0
    %v5573 = vmul.f32 %v5572, 0.5
    %v5574 = vld [vmem:[#allocation3 + $0x2] sm:$0x3]
    %v5575 = vmul.f32 %v5564, %v5574
    %v5576 = vmul.f32 %v5557, %v5567
    %v5577 = vadd.f32 %v5575, %v5576
    %v5578 = vtanh.pop %v5577
    %v5579 = vmul.f32 %v5573, %v5578
    %s5580 = scalar_lea.vmem %s191, 6
    %v5581 = vld [vmem:[%s5580] sm:$0x3]
    %5583 = vset.pattern.permute.xlu0 0
    %5584 = vperm.xlu0 %5583, %v5581
    %v5585 = vpop.permute.xlu0 %5584
    %v5587 = vmul.f32 %v5577, %v5585
    %5588 = vst [vmem:[#allocation3 + $0x2] sm:$0x3] %v5587
    %v5589 = vmul.f32 %v5579, %v5585
    %5590 = vst [vmem:[#allocation2 + $0x2] sm:$0x3] %v5589
    %v5591 = vpack.c.bf16 %v5589, %v5589
    %s5592 = scalar_lea.vmem %s198, 3
    %5593 = vst [vmem:[%s5592] sm:$0x1] %v5591
    %v5594 = vld [vmem:[#allocation2] sm:$0xf]
    %v5597 = vunpack.c.l.s4 1983009808
    %v5598 = vunpack.c.0.s8 %v5597
    %v5599 = vlaneseq
    %v5600 = vshrl.u32 %v5599, 7
    %v5601 = vsub.s32 %v5598, %v5600
    %v5602 = vrot.slane %v5594, %v5601
    %v5603 = vcombine.high %v5602, %v5602
    %v5606 = vpack.c.bf16 %v5602, %v5602
    %v5607 = vpack.c.bf16 %v5603, %v5603
    %v5608 = vld [vmem:[%s2] sm:$0xff]
    %v5609 = vld [vmem:[%s2 + $0x8] sm:$0xff]
    %v5610 = vld [vmem:[%s2 + $0x10] sm:$0xff]
    %v5611 = vld [vmem:[%s2 + $0x18] sm:$0xff]
    %v5612 = vld [vmem:[%s2 + $0x20] sm:$0xff]
    %v5613 = vld [vmem:[%s2 + $0x28] sm:$0xff]
    %v5614 = vld [vmem:[%s2 + $0x30] sm:$0xff]
    %v5615 = vld [vmem:[%s2 + $0x38] sm:$0xff]
    %v5616 = vld [vmem:[%s2 + $0x40] sm:$0xff]
    %v5617 = vld [vmem:[%s2 + $0x48] sm:$0xff]
    %v5618 = vld [vmem:[%s2 + $0x50] sm:$0xff]
    %v5619 = vld [vmem:[%s2 + $0x58] sm:$0xff]
    %v5620 = vld [vmem:[%s2 + $0x60] sm:$0xff]
    %v5621 = vld [vmem:[%s2 + $0x68] sm:$0xff]
    %v5622 = vld [vmem:[%s2 + $0x70] sm:$0xff]
    %v5623 = vld [vmem:[%s2 + $0x78] sm:$0xff]
    %v5624 = vld [vmem:[%s2 + $0x80] sm:$0xff]
    %v5625 = vld [vmem:[%s2 + $0x88] sm:$0xff]
    %v5626 = vld [vmem:[%s2 + $0x90] sm:$0xff]
    %v5627 = vld [vmem:[%s2 + $0x98] sm:$0xff]
    %v5628 = vld [vmem:[%s2 + $0xa0] sm:$0xff]
    %v5629 = vld [vmem:[%s2 + $0xa8] sm:$0xff]
    %v5630 = vld [vmem:[%s2 + $0xb0] sm:$0xff]
    %v5631 = vld [vmem:[%s2 + $0xb8] sm:$0xff]
    %v5632 = vld [vmem:[%s2 + $0xc0] sm:$0xff]
    %v5633 = vld [vmem:[%s2 + $0xc8] sm:$0xff]
    %v5634 = vld [vmem:[%s2 + $0xd0] sm:$0xff]
    %v5635 = vld [vmem:[%s2 + $0xd8] sm:$0xff]
    %v5636 = vld [vmem:[%s2 + $0xe0] sm:$0xff]
    %v5637 = vld [vmem:[%s2 + $0xe8] sm:$0xff]
    %v5638 = vld [vmem:[%s2 + $0xf0] sm:$0xff]
    %v5639 = vld [vmem:[%s2 + $0xf8] sm:$0xff]
    %v5640 = vld [vmem:[%s2 + $0x100] sm:$0xff]
    %v5641 = vld [vmem:[%s2 + $0x108] sm:$0xff]
    %v5642 = vld [vmem:[%s2 + $0x110] sm:$0xff]
    %v5643 = vld [vmem:[%s2 + $0x118] sm:$0xff]
    %v5644 = vld [vmem:[%s2 + $0x120] sm:$0xff]
    %v5645 = vld [vmem:[%s2 + $0x128] sm:$0xff]
    %v5646 = vld [vmem:[%s2 + $0x130] sm:$0xff]
    %v5647 = vld [vmem:[%s2 + $0x138] sm:$0xff]
    %v5648 = vld [vmem:[%s2 + $0x140] sm:$0xff]
    %v5649 = vld [vmem:[%s2 + $0x148] sm:$0xff]
    %v5650 = vld [vmem:[%s2 + $0x150] sm:$0xff]
    %v5651 = vld [vmem:[%s2 + $0x158] sm:$0xff]
    %v5652 = vld [vmem:[%s2 + $0x160] sm:$0xff]
    %v5653 = vld [vmem:[%s2 + $0x168] sm:$0xff]
    %v5654 = vld [vmem:[%s2 + $0x170] sm:$0xff]
    %v5655 = vld [vmem:[%s2 + $0x178] sm:$0xff]
    %v5656 = vld [vmem:[%s2 + $0x180] sm:$0xff]
    %v5657 = vld [vmem:[%s2 + $0x188] sm:$0xff]
    %v5658 = vld [vmem:[%s2 + $0x190] sm:$0xff]
    %v5659 = vld [vmem:[%s2 + $0x198] sm:$0xff]
    %v5660 = vld [vmem:[%s2 + $0x1a0] sm:$0xff]
    %v5661 = vld [vmem:[%s2 + $0x1a8] sm:$0xff]
    %v5662 = vld [vmem:[%s2 + $0x1b0] sm:$0xff]
    %v5663 = vld [vmem:[%s2 + $0x1b8] sm:$0xff]
    %v5664 = vld [vmem:[%s2 + $0x1c0] sm:$0xff]
    %v5665 = vld [vmem:[%s2 + $0x1c8] sm:$0xff]
    %v5666 = vld [vmem:[%s2 + $0x1d0] sm:$0xff]
    %v5667 = vld [vmem:[%s2 + $0x1d8] sm:$0xff]
    %v5668 = vld [vmem:[%s2 + $0x1e0] sm:$0xff]
    %v5669 = vld [vmem:[%s2 + $0x1e8] sm:$0xff]
    %v5670 = vld [vmem:[%s2 + $0x1f0] sm:$0xff]
    %v5671 = vld [vmem:[%s2 + $0x1f8] sm:$0xff]
    %v5672 = vld [vmem:[%s2 + $0x200] sm:$0xff]
    %v5673 = vld [vmem:[%s2 + $0x208] sm:$0xff]
    %v5674 = vld [vmem:[%s2 + $0x210] sm:$0xff]
    %v5675 = vld [vmem:[%s2 + $0x218] sm:$0xff]
    %v5676 = vld [vmem:[%s2 + $0x220] sm:$0xff]
    %v5677 = vld [vmem:[%s2 + $0x228] sm:$0xff]
    %v5678 = vld [vmem:[%s2 + $0x230] sm:$0xff]
    %v5679 = vld [vmem:[%s2 + $0x238] sm:$0xff]
    %v5680 = vld [vmem:[%s2 + $0x240] sm:$0xff]
    %v5681 = vld [vmem:[%s2 + $0x248] sm:$0xff]
    %v5682 = vld [vmem:[%s2 + $0x250] sm:$0xff]
    %v5683 = vld [vmem:[%s2 + $0x258] sm:$0xff]
    %v5684 = vld [vmem:[%s2 + $0x260] sm:$0xff]
    %v5685 = vld [vmem:[%s2 + $0x268] sm:$0xff]
    %v5686 = vld [vmem:[%s2 + $0x270] sm:$0xff]
    %v5687 = vld [vmem:[%s2 + $0x278] sm:$0xff]
    %v5688 = vld [vmem:[%s2 + $0x280] sm:$0xff]
    %v5689 = vld [vmem:[%s2 + $0x288] sm:$0xff]
    %v5690 = vld [vmem:[%s2 + $0x290] sm:$0xff]
    %v5691 = vld [vmem:[%s2 + $0x298] sm:$0xff]
    %v5692 = vld [vmem:[%s2 + $0x2a0] sm:$0xff]
    %v5693 = vld [vmem:[%s2 + $0x2a8] sm:$0xff]
    %v5694 = vld [vmem:[%s2 + $0x2b0] sm:$0xff]
    %v5695 = vld [vmem:[%s2 + $0x2b8] sm:$0xff]
    %v5696 = vld [vmem:[%s2 + $0x2c0] sm:$0xff]
    %v5697 = vld [vmem:[%s2 + $0x2c8] sm:$0xff]
    %v5698 = vld [vmem:[%s2 + $0x2d0] sm:$0xff]
    %v5699 = vld [vmem:[%s2 + $0x2d8] sm:$0xff]
    %v5700 = vld [vmem:[%s2 + $0x2e0] sm:$0xff]
    %v5701 = vld [vmem:[%s2 + $0x2e8] sm:$0xff]
    %v5702 = vld [vmem:[%s2 + $0x2f0] sm:$0xff]
    %v5703 = vld [vmem:[%s2 + $0x2f8] sm:$0xff]
    %v5704 = vld [vmem:[%s2 + $0x300] sm:$0xff]
    %v5705 = vld [vmem:[%s2 + $0x308] sm:$0xff]
    %v5706 = vld [vmem:[%s2 + $0x310] sm:$0xff]
    %v5707 = vld [vmem:[%s2 + $0x318] sm:$0xff]
    %v5708 = vld [vmem:[%s2 + $0x320] sm:$0xff]
    %v5709 = vld [vmem:[%s2 + $0x328] sm:$0xff]
    %v5710 = vld [vmem:[%s2 + $0x330] sm:$0xff]
    %v5711 = vld [vmem:[%s2 + $0x338] sm:$0xff]
    %v5712 = vld [vmem:[%s2 + $0x340] sm:$0xff]
    %v5713 = vld [vmem:[%s2 + $0x348] sm:$0xff]
    %v5714 = vld [vmem:[%s2 + $0x350] sm:$0xff]
    %v5715 = vld [vmem:[%s2 + $0x358] sm:$0xff]
    %v5716 = vld [vmem:[%s2 + $0x360] sm:$0xff]
    %v5717 = vld [vmem:[%s2 + $0x368] sm:$0xff]
    %v5718 = vld [vmem:[%s2 + $0x370] sm:$0xff]
    %v5719 = vld [vmem:[%s2 + $0x378] sm:$0xff]
    %v5720 = vld [vmem:[%s2 + $0x380] sm:$0xff]
    %v5721 = vld [vmem:[%s2 + $0x388] sm:$0xff]
    %v5722 = vld [vmem:[%s2 + $0x390] sm:$0xff]
    %v5723 = vld [vmem:[%s2 + $0x398] sm:$0xff]
    %v5724 = vld [vmem:[%s2 + $0x3a0] sm:$0xff]
    %v5725 = vld [vmem:[%s2 + $0x3a8] sm:$0xff]
    %v5726 = vld [vmem:[%s2 + $0x3b0] sm:$0xff]
    %v5727 = vld [vmem:[%s2 + $0x3b8] sm:$0xff]
    %v5728 = vld [vmem:[%s2 + $0x3c0] sm:$0xff]
    %v5729 = vld [vmem:[%s2 + $0x3c8] sm:$0xff]
    %v5730 = vld [vmem:[%s2 + $0x3d0] sm:$0xff]
    %v5731 = vld [vmem:[%s2 + $0x3d8] sm:$0xff]
    %v5732 = vld [vmem:[%s2 + $0x3e0] sm:$0xff]
    %v5733 = vld [vmem:[%s2 + $0x3e8] sm:$0xff]
    %v5734 = vld [vmem:[%s2 + $0x3f0] sm:$0xff]
    %v5735 = vld [vmem:[%s2 + $0x3f8] sm:$0xff]
    %v5864 = vunpack.c.l.b16 %v5608
    %v5865 = vunpack.c.h.b16 %v5608
    %v5866 = vunpack.c.l.b16 %v5609
    %v5867 = vunpack.c.h.b16 %v5609
    %v5868 = vunpack.c.l.b16 %v5610
    %v5869 = vunpack.c.h.b16 %v5610
    %v5870 = vunpack.c.l.b16 %v5611
    %v5871 = vunpack.c.h.b16 %v5611
    %v5872 = vunpack.c.l.b16 %v5612
    %v5873 = vunpack.c.h.b16 %v5612
    %v5874 = vunpack.c.l.b16 %v5613
    %v5875 = vunpack.c.h.b16 %v5613
    %v5876 = vunpack.c.l.b16 %v5614
    %v5877 = vunpack.c.h.b16 %v5614
    %v5878 = vunpack.c.l.b16 %v5615
    %v5879 = vunpack.c.h.b16 %v5615
    %v5880 = vunpack.c.l.b16 %v5616
    %v5881 = vunpack.c.h.b16 %v5616
    %v5882 = vunpack.c.l.b16 %v5617
    %v5883 = vunpack.c.h.b16 %v5617
    %v5884 = vunpack.c.l.b16 %v5618
    %v5885 = vunpack.c.h.b16 %v5618
    %v5886 = vunpack.c.l.b16 %v5619
    %v5887 = vunpack.c.h.b16 %v5619
    %v5888 = vunpack.c.l.b16 %v5620
    %v5889 = vunpack.c.h.b16 %v5620
    %v5890 = vunpack.c.l.b16 %v5621
    %v5891 = vunpack.c.h.b16 %v5621
    %v5892 = vunpack.c.l.b16 %v5622
    %v5893 = vunpack.c.h.b16 %v5622
    %v5894 = vunpack.c.l.b16 %v5623
    %v5895 = vunpack.c.h.b16 %v5623
    %v5896 = vunpack.c.l.b16 %v5624
    %v5897 = vunpack.c.h.b16 %v5624
    %v5898 = vunpack.c.l.b16 %v5625
    %v5899 = vunpack.c.h.b16 %v5625
    %v5900 = vunpack.c.l.b16 %v5626
    %v5901 = vunpack.c.h.b16 %v5626
    %v5902 = vunpack.c.l.b16 %v5627
    %v5903 = vunpack.c.h.b16 %v5627
    %v5904 = vunpack.c.l.b16 %v5628
    %v5905 = vunpack.c.h.b16 %v5628
    %v5906 = vunpack.c.l.b16 %v5629
    %v5907 = vunpack.c.h.b16 %v5629
    %v5908 = vunpack.c.l.b16 %v5630
    %v5909 = vunpack.c.h.b16 %v5630
    %v5910 = vunpack.c.l.b16 %v5631
    %v5911 = vunpack.c.h.b16 %v5631
    %v5912 = vunpack.c.l.b16 %v5632
    %v5913 = vunpack.c.h.b16 %v5632
    %v5914 = vunpack.c.l.b16 %v5633
    %v5915 = vunpack.c.h.b16 %v5633
    %v5916 = vunpack.c.l.b16 %v5634
    %v5917 = vunpack.c.h.b16 %v5634
    %v5918 = vunpack.c.l.b16 %v5635
    %v5919 = vunpack.c.h.b16 %v5635
    %v5920 = vunpack.c.l.b16 %v5636
    %v5921 = vunpack.c.h.b16 %v5636
    %v5922 = vunpack.c.l.b16 %v5637
    %v5923 = vunpack.c.h.b16 %v5637
    %v5924 = vunpack.c.l.b16 %v5638
    %v5925 = vunpack.c.h.b16 %v5638
    %v5926 = vunpack.c.l.b16 %v5639
    %v5927 = vunpack.c.h.b16 %v5639
    %v5928 = vunpack.c.l.b16 %v5640
    %v5929 = vunpack.c.h.b16 %v5640
    %v5930 = vunpack.c.l.b16 %v5641
    %v5931 = vunpack.c.h.b16 %v5641
    %v5932 = vunpack.c.l.b16 %v5642
    %v5933 = vunpack.c.h.b16 %v5642
    %v5934 = vunpack.c.l.b16 %v5643
    %v5935 = vunpack.c.h.b16 %v5643
    %v5936 = vunpack.c.l.b16 %v5644
    %v5937 = vunpack.c.h.b16 %v5644
    %v5938 = vunpack.c.l.b16 %v5645
    %v5939 = vunpack.c.h.b16 %v5645
    %v5940 = vunpack.c.l.b16 %v5646
    %v5941 = vunpack.c.h.b16 %v5646
    %v5942 = vunpack.c.l.b16 %v5647
    %v5943 = vunpack.c.h.b16 %v5647
    %v5944 = vunpack.c.l.b16 %v5648
    %v5945 = vunpack.c.h.b16 %v5648
    %v5946 = vunpack.c.l.b16 %v5649
    %v5947 = vunpack.c.h.b16 %v5649
    %v5948 = vunpack.c.l.b16 %v5650
    %v5949 = vunpack.c.h.b16 %v5650
    %v5950 = vunpack.c.l.b16 %v5651
    %v5951 = vunpack.c.h.b16 %v5651
    %v5952 = vunpack.c.l.b16 %v5652
    %v5953 = vunpack.c.h.b16 %v5652
    %v5954 = vunpack.c.l.b16 %v5653
    %v5955 = vunpack.c.h.b16 %v5653
    %v5956 = vunpack.c.l.b16 %v5654
    %v5957 = vunpack.c.h.b16 %v5654
    %v5958 = vunpack.c.l.b16 %v5655
    %v5959 = vunpack.c.h.b16 %v5655
    %v5960 = vunpack.c.l.b16 %v5656
    %v5961 = vunpack.c.h.b16 %v5656
    %v5962 = vunpack.c.l.b16 %v5657
    %v5963 = vunpack.c.h.b16 %v5657
    %v5964 = vunpack.c.l.b16 %v5658
    %v5965 = vunpack.c.h.b16 %v5658
    %v5966 = vunpack.c.l.b16 %v5659
    %v5967 = vunpack.c.h.b16 %v5659
    %v5968 = vunpack.c.l.b16 %v5660
    %v5969 = vunpack.c.h.b16 %v5660
    %v5970 = vunpack.c.l.b16 %v5661
    %v5971 = vunpack.c.h.b16 %v5661
    %v5972 = vunpack.c.l.b16 %v5662
    %v5973 = vunpack.c.h.b16 %v5662
    %v5974 = vunpack.c.l.b16 %v5663
    %v5975 = vunpack.c.h.b16 %v5663
    %v5976 = vunpack.c.l.b16 %v5664
    %v5977 = vunpack.c.h.b16 %v5664
    %v5978 = vunpack.c.l.b16 %v5665
    %v5979 = vunpack.c.h.b16 %v5665
    %v5980 = vunpack.c.l.b16 %v5666
    %v5981 = vunpack.c.h.b16 %v5666
    %v5982 = vunpack.c.l.b16 %v5667
    %v5983 = vunpack.c.h.b16 %v5667
    %v5984 = vunpack.c.l.b16 %v5668
    %v5985 = vunpack.c.h.b16 %v5668
    %v5986 = vunpack.c.l.b16 %v5669
    %v5987 = vunpack.c.h.b16 %v5669
    %v5988 = vunpack.c.l.b16 %v5670
    %v5989 = vunpack.c.h.b16 %v5670
    %v5990 = vunpack.c.l.b16 %v5671
    %v5991 = vunpack.c.h.b16 %v5671
    %v5992 = vunpack.c.l.b16 %v5672
    %v5993 = vunpack.c.h.b16 %v5672
    %v5994 = vunpack.c.l.b16 %v5673
    %v5995 = vunpack.c.h.b16 %v5673
    %v5996 = vunpack.c.l.b16 %v5674
    %v5997 = vunpack.c.h.b16 %v5674
    %v5998 = vunpack.c.l.b16 %v5675
    %v5999 = vunpack.c.h.b16 %v5675
    %v6000 = vunpack.c.l.b16 %v5676
    %v6001 = vunpack.c.h.b16 %v5676
    %v6002 = vunpack.c.l.b16 %v5677
    %v6003 = vunpack.c.h.b16 %v5677
    %v6004 = vunpack.c.l.b16 %v5678
    %v6005 = vunpack.c.h.b16 %v5678
    %v6006 = vunpack.c.l.b16 %v5679
    %v6007 = vunpack.c.h.b16 %v5679
    %v6008 = vunpack.c.l.b16 %v5680
    %v6009 = vunpack.c.h.b16 %v5680
    %v6010 = vunpack.c.l.b16 %v5681
    %v6011 = vunpack.c.h.b16 %v5681
    %v6012 = vunpack.c.l.b16 %v5682
    %v6013 = vunpack.c.h.b16 %v5682
    %v6014 = vunpack.c.l.b16 %v5683
    %v6015 = vunpack.c.h.b16 %v5683
    %v6016 = vunpack.c.l.b16 %v5684
    %v6017 = vunpack.c.h.b16 %v5684
    %v6018 = vunpack.c.l.b16 %v5685
    %v6019 = vunpack.c.h.b16 %v5685
    %v6020 = vunpack.c.l.b16 %v5686
    %v6021 = vunpack.c.h.b16 %v5686
    %v6022 = vunpack.c.l.b16 %v5687
    %v6023 = vunpack.c.h.b16 %v5687
    %v6024 = vunpack.c.l.b16 %v5688
    %v6025 = vunpack.c.h.b16 %v5688
    %v6026 = vunpack.c.l.b16 %v5689
    %v6027 = vunpack.c.h.b16 %v5689
    %v6028 = vunpack.c.l.b16 %v5690
    %v6029 = vunpack.c.h.b16 %v5690
    %v6030 = vunpack.c.l.b16 %v5691
    %v6031 = vunpack.c.h.b16 %v5691
    %v6032 = vunpack.c.l.b16 %v5692
    %v6033 = vunpack.c.h.b16 %v5692
    %v6034 = vunpack.c.l.b16 %v5693
    %v6035 = vunpack.c.h.b16 %v5693
    %v6036 = vunpack.c.l.b16 %v5694
    %v6037 = vunpack.c.h.b16 %v5694
    %v6038 = vunpack.c.l.b16 %v5695
    %v6039 = vunpack.c.h.b16 %v5695
    %v6040 = vunpack.c.l.b16 %v5696
    %v6041 = vunpack.c.h.b16 %v5696
    %v6042 = vunpack.c.l.b16 %v5697
    %v6043 = vunpack.c.h.b16 %v5697
    %v6044 = vunpack.c.l.b16 %v5698
    %v6045 = vunpack.c.h.b16 %v5698
    %v6046 = vunpack.c.l.b16 %v5699
    %v6047 = vunpack.c.h.b16 %v5699
    %v6048 = vunpack.c.l.b16 %v5700
    %v6049 = vunpack.c.h.b16 %v5700
    %v6050 = vunpack.c.l.b16 %v5701
    %v6051 = vunpack.c.h.b16 %v5701
    %v6052 = vunpack.c.l.b16 %v5702
    %v6053 = vunpack.c.h.b16 %v5702
    %v6054 = vunpack.c.l.b16 %v5703
    %v6055 = vunpack.c.h.b16 %v5703
    %v6056 = vunpack.c.l.b16 %v5704
    %v6057 = vunpack.c.h.b16 %v5704
    %v6058 = vunpack.c.l.b16 %v5705
    %v6059 = vunpack.c.h.b16 %v5705
    %v6060 = vunpack.c.l.b16 %v5706
    %v6061 = vunpack.c.h.b16 %v5706
    %v6062 = vunpack.c.l.b16 %v5707
    %v6063 = vunpack.c.h.b16 %v5707
    %v6064 = vunpack.c.l.b16 %v5708
    %v6065 = vunpack.c.h.b16 %v5708
    %v6066 = vunpack.c.l.b16 %v5709
    %v6067 = vunpack.c.h.b16 %v5709
    %v6068 = vunpack.c.l.b16 %v5710
    %v6069 = vunpack.c.h.b16 %v5710
    %v6070 = vunpack.c.l.b16 %v5711
    %v6071 = vunpack.c.h.b16 %v5711
    %v6072 = vunpack.c.l.b16 %v5712
    %v6073 = vunpack.c.h.b16 %v5712
    %v6074 = vunpack.c.l.b16 %v5713
    %v6075 = vunpack.c.h.b16 %v5713
    %v6076 = vunpack.c.l.b16 %v5714
    %v6077 = vunpack.c.h.b16 %v5714
    %v6078 = vunpack.c.l.b16 %v5715
    %v6079 = vunpack.c.h.b16 %v5715
    %v6080 = vunpack.c.l.b16 %v5716
    %v6081 = vunpack.c.h.b16 %v5716
    %v6082 = vunpack.c.l.b16 %v5717
    %v6083 = vunpack.c.h.b16 %v5717
    %v6084 = vunpack.c.l.b16 %v5718
    %v6085 = vunpack.c.h.b16 %v5718
    %v6086 = vunpack.c.l.b16 %v5719
    %v6087 = vunpack.c.h.b16 %v5719
    %v6088 = vunpack.c.l.b16 %v5720
    %v6089 = vunpack.c.h.b16 %v5720
    %v6090 = vunpack.c.l.b16 %v5721
    %v6091 = vunpack.c.h.b16 %v5721
    %v6092 = vunpack.c.l.b16 %v5722
    %v6093 = vunpack.c.h.b16 %v5722
    %v6094 = vunpack.c.l.b16 %v5723
    %v6095 = vunpack.c.h.b16 %v5723
    %v6096 = vunpack.c.l.b16 %v5724
    %v6097 = vunpack.c.h.b16 %v5724
    %v6098 = vunpack.c.l.b16 %v5725
    %v6099 = vunpack.c.h.b16 %v5725
    %v6100 = vunpack.c.l.b16 %v5726
    %v6101 = vunpack.c.h.b16 %v5726
    %v6102 = vunpack.c.l.b16 %v5727
    %v6103 = vunpack.c.h.b16 %v5727
    %v6104 = vunpack.c.l.b16 %v5728
    %v6105 = vunpack.c.h.b16 %v5728
    %v6106 = vunpack.c.l.b16 %v5729
    %v6107 = vunpack.c.h.b16 %v5729
    %v6108 = vunpack.c.l.b16 %v5730
    %v6109 = vunpack.c.h.b16 %v5730
    %v6110 = vunpack.c.l.b16 %v5731
    %v6111 = vunpack.c.h.b16 %v5731
    %v6112 = vunpack.c.l.b16 %v5732
    %v6113 = vunpack.c.h.b16 %v5732
    %v6114 = vunpack.c.l.b16 %v5733
    %v6115 = vunpack.c.h.b16 %v5733
    %v6116 = vunpack.c.l.b16 %v5734
    %v6117 = vunpack.c.h.b16 %v5734
    %v6118 = vunpack.c.l.b16 %v5735
    %v6119 = vunpack.c.h.b16 %v5735
    %v6120 = vpack.c.b16 %v5872, %v5864
    %v6121 = vpack.c.b16 %v5873, %v5865
    %v6122 = vpack.c.b16 %v5874, %v5866
    %v6123 = vpack.c.b16 %v5875, %v5867
    %v6124 = vpack.c.b16 %v5876, %v5868
    %v6125 = vpack.c.b16 %v5877, %v5869
    %v6126 = vpack.c.b16 %v5878, %v5870
    %v6127 = vpack.c.b16 %v5879, %v5871
    %v6128 = vpack.c.b16 %v5888, %v5880
    %v6129 = vpack.c.b16 %v5889, %v5881
    %v6130 = vpack.c.b16 %v5890, %v5882
    %v6131 = vpack.c.b16 %v5891, %v5883
    %v6132 = vpack.c.b16 %v5892, %v5884
    %v6133 = vpack.c.b16 %v5893, %v5885
    %v6134 = vpack.c.b16 %v5894, %v5886
    %v6135 = vpack.c.b16 %v5895, %v5887
    %v6136 = vpack.c.b16 %v5904, %v5896
    %v6137 = vpack.c.b16 %v5905, %v5897
    %v6138 = vpack.c.b16 %v5906, %v5898
    %v6139 = vpack.c.b16 %v5907, %v5899
    %v6140 = vpack.c.b16 %v5908, %v5900
    %v6141 = vpack.c.b16 %v5909, %v5901
    %v6142 = vpack.c.b16 %v5910, %v5902
    %v6143 = vpack.c.b16 %v5911, %v5903
    %v6144 = vpack.c.b16 %v5920, %v5912
    %v6145 = vpack.c.b16 %v5921, %v5913
    %v6146 = vpack.c.b16 %v5922, %v5914
    %v6147 = vpack.c.b16 %v5923, %v5915
    %v6148 = vpack.c.b16 %v5924, %v5916
    %v6149 = vpack.c.b16 %v5925, %v5917
    %v6150 = vpack.c.b16 %v5926, %v5918
    %v6151 = vpack.c.b16 %v5927, %v5919
    %v6152 = vpack.c.b16 %v5936, %v5928
    %v6153 = vpack.c.b16 %v5937, %v5929
    %v6154 = vpack.c.b16 %v5938, %v5930
    %v6155 = vpack.c.b16 %v5939, %v5931
    %v6156 = vpack.c.b16 %v5940, %v5932
    %v6157 = vpack.c.b16 %v5941, %v5933
    %v6158 = vpack.c.b16 %v5942, %v5934
    %v6159 = vpack.c.b16 %v5943, %v5935
    %v6160 = vpack.c.b16 %v5952, %v5944
    %v6161 = vpack.c.b16 %v5953, %v5945
    %v6162 = vpack.c.b16 %v5954, %v5946
    %v6163 = vpack.c.b16 %v5955, %v5947
    %v6164 = vpack.c.b16 %v5956, %v5948
    %v6165 = vpack.c.b16 %v5957, %v5949
    %v6166 = vpack.c.b16 %v5958, %v5950
    %v6167 = vpack.c.b16 %v5959, %v5951
    %v6168 = vpack.c.b16 %v5968, %v5960
    %v6169 = vpack.c.b16 %v5969, %v5961
    %v6170 = vpack.c.b16 %v5970, %v5962
    %v6171 = vpack.c.b16 %v5971, %v5963
    %v6172 = vpack.c.b16 %v5972, %v5964
    %v6173 = vpack.c.b16 %v5973, %v5965
    %v6174 = vpack.c.b16 %v5974, %v5966
    %v6175 = vpack.c.b16 %v5975, %v5967
    %v6176 = vpack.c.b16 %v5984, %v5976
    %v6177 = vpack.c.b16 %v5985, %v5977
    %v6178 = vpack.c.b16 %v5986, %v5978
    %v6179 = vpack.c.b16 %v5987, %v5979
    %v6180 = vpack.c.b16 %v5988, %v5980
    %v6181 = vpack.c.b16 %v5989, %v5981
    %v6182 = vpack.c.b16 %v5990, %v5982
    %v6183 = vpack.c.b16 %v5991, %v5983
    %v6184 = vpack.c.b16 %v6000, %v5992
    %v6185 = vpack.c.b16 %v6001, %v5993
    %v6186 = vpack.c.b16 %v6002, %v5994
    %v6187 = vpack.c.b16 %v6003, %v5995
    %v6188 = vpack.c.b16 %v6004, %v5996
    %v6189 = vpack.c.b16 %v6005, %v5997
    %v6190 = vpack.c.b16 %v6006, %v5998
    %v6191 = vpack.c.b16 %v6007, %v5999
    %v6192 = vpack.c.b16 %v6016, %v6008
    %v6193 = vpack.c.b16 %v6017, %v6009
    %v6194 = vpack.c.b16 %v6018, %v6010
    %v6195 = vpack.c.b16 %v6019, %v6011
    %v6196 = vpack.c.b16 %v6020, %v6012
    %v6197 = vpack.c.b16 %v6021, %v6013
    %v6198 = vpack.c.b16 %v6022, %v6014
    %v6199 = vpack.c.b16 %v6023, %v6015
    %v6200 = vpack.c.b16 %v6032, %v6024
    %v6201 = vpack.c.b16 %v6033, %v6025
    %v6202 = vpack.c.b16 %v6034, %v6026
    %v6203 = vpack.c.b16 %v6035, %v6027
    %v6204 = vpack.c.b16 %v6036, %v6028
    %v6205 = vpack.c.b16 %v6037, %v6029
    %v6206 = vpack.c.b16 %v6038, %v6030
    %v6207 = vpack.c.b16 %v6039, %v6031
    %v6208 = vpack.c.b16 %v6048, %v6040
    %v6209 = vpack.c.b16 %v6049, %v6041
    %v6210 = vpack.c.b16 %v6050, %v6042
    %v6211 = vpack.c.b16 %v6051, %v6043
    %v6212 = vpack.c.b16 %v6052, %v6044
    %v6213 = vpack.c.b16 %v6053, %v6045
    %v6214 = vpack.c.b16 %v6054, %v6046
    %v6215 = vpack.c.b16 %v6055, %v6047
    %v6216 = vpack.c.b16 %v6064, %v6056
    %v6217 = vpack.c.b16 %v6065, %v6057
    %v6218 = vpack.c.b16 %v6066, %v6058
    %v6219 = vpack.c.b16 %v6067, %v6059
    %v6220 = vpack.c.b16 %v6068, %v6060
    %v6221 = vpack.c.b16 %v6069, %v6061
    %v6222 = vpack.c.b16 %v6070, %v6062
    %v6223 = vpack.c.b16 %v6071, %v6063
    %v6224 = vpack.c.b16 %v6080, %v6072
    %v6225 = vpack.c.b16 %v6081, %v6073
    %v6226 = vpack.c.b16 %v6082, %v6074
    %v6227 = vpack.c.b16 %v6083, %v6075
    %v6228 = vpack.c.b16 %v6084, %v6076
    %v6229 = vpack.c.b16 %v6085, %v6077
    %v6230 = vpack.c.b16 %v6086, %v6078
    %v6231 = vpack.c.b16 %v6087, %v6079
    %v6232 = vpack.c.b16 %v6096, %v6088
    %v6233 = vpack.c.b16 %v6097, %v6089
    %v6234 = vpack.c.b16 %v6098, %v6090
    %v6235 = vpack.c.b16 %v6099, %v6091
    %v6236 = vpack.c.b16 %v6100, %v6092
    %v6237 = vpack.c.b16 %v6101, %v6093
    %v6238 = vpack.c.b16 %v6102, %v6094
    %v6239 = vpack.c.b16 %v6103, %v6095
    %v6240 = vpack.c.b16 %v6112, %v6104
    %v6241 = vpack.c.b16 %v6113, %v6105
    %v6242 = vpack.c.b16 %v6114, %v6106
    %v6243 = vpack.c.b16 %v6115, %v6107
    %v6244 = vpack.c.b16 %v6116, %v6108
    %v6245 = vpack.c.b16 %v6117, %v6109
    %v6246 = vpack.c.b16 %v6118, %v6110
    %v6247 = vpack.c.b16 %v6119, %v6111
    %6376 = vmatprep.subr.bf16.mxu0 %v6121
    %6377 = vmatpush1.bf16.msra.mxu0 %v6120
    %6378 = vmatprep.subr.bf16.mxu0 %v6129
    %6379 = vmatpush1.bf16.msra.mxu0 %v6128
    %6380 = vmatprep.subr.bf16.mxu0 %v6137
    %6381 = vmatpush1.bf16.msra.mxu0 %v6136
    %6382 = vmatprep.subr.bf16.mxu0 %v6145
    %6383 = vmatpush1.bf16.msra.mxu0 %v6144
    %6384 = vmatprep.subr.bf16.mxu0 %v6153
    %6385 = vmatpush1.bf16.msra.mxu0 %v6152
    %6386 = vmatprep.subr.bf16.mxu0 %v6161
    %6387 = vmatpush1.bf16.msra.mxu0 %v6160
    %6388 = vmatprep.subr.bf16.mxu0 %v6169
    %6389 = vmatpush1.bf16.msra.mxu0 %v6168
    %6390 = vmatprep.subr.bf16.mxu0 %v6177
    %6391 = vmatpush1.bf16.msra.mxu0 %v6176
    %6392 = vmatprep.subr.bf16.mxu0 %v6185
    %6393 = vmatpush1.bf16.msra.mxu0 %v6184
    %6394 = vmatprep.subr.bf16.mxu0 %v6193
    %6395 = vmatpush1.bf16.msra.mxu0 %v6192
    %6396 = vmatprep.subr.bf16.mxu0 %v6201
    %6397 = vmatpush1.bf16.msra.mxu0 %v6200
    %6398 = vmatprep.subr.bf16.mxu0 %v6209
    %6399 = vmatpush1.bf16.msra.mxu0 %v6208
    %6400 = vmatprep.subr.bf16.mxu0 %v6217
    %6401 = vmatpush1.bf16.msra.mxu0 %v6216
    %6402 = vmatprep.subr.bf16.mxu0 %v6225
    %6403 = vmatpush1.bf16.msra.mxu0 %v6224
    %6404 = vmatprep.subr.bf16.mxu0 %v6233
    %6405 = vmatpush1.bf16.msra.mxu0 %v6232
    %6406 = vmatprep.subr.bf16.mxu0 %v6241
    %6407 = vmatpush1.bf16.msra.mxu0 %v6240
    %6408 = vmatprep.mubr.bf16.mxu0 %v5607
    %6409 = vmatmul.mubr.bf16.gmra.mrb[0].mxu0 %v5606
    %v6410 = vpop.f32.mrb[0].mxu0
    %v6411 = vadd.f32 0.0, %v6410
    %v6412 = vpop.f32.mrb[0].mxu0
    %v6413 = vadd.f32 0.0, %v6412
    %v6414 = vpop.f32.mrb[0].mxu0
    %v6415 = vpop.f32.mrb[0].mxu0
    %6416 = vdwg.mxu0
    %6417 = vmatprep.subr.bf16.mxu0 %v6123
    %6418 = vmatpush1.bf16.msra.mxu0 %v6122
    %6419 = vmatprep.subr.bf16.mxu0 %v6131
    %6420 = vmatpush1.bf16.msra.mxu0 %v6130
    %6421 = vmatprep.subr.bf16.mxu0 %v6139
    %6422 = vmatpush1.bf16.msra.mxu0 %v6138
    %6423 = vmatprep.subr.bf16.mxu0 %v6147
    %6424 = vmatpush1.bf16.msra.mxu0 %v6146
    %6425 = vmatprep.subr.bf16.mxu0 %v6155
    %6426 = vmatpush1.bf16.msra.mxu0 %v6154
    %6427 = vmatprep.subr.bf16.mxu0 %v6163
    %6428 = vmatpush1.bf16.msra.mxu0 %v6162
    %6429 = vmatprep.subr.bf16.mxu0 %v6171
    %6430 = vmatpush1.bf16.msra.mxu0 %v6170
    %6431 = vmatprep.subr.bf16.mxu0 %v6179
    %6432 = vmatpush1.bf16.msra.mxu0 %v6178
    %6433 = vmatprep.subr.bf16.mxu0 %v6187
    %6434 = vmatpush1.bf16.msra.mxu0 %v6186
    %6435 = vmatprep.subr.bf16.mxu0 %v6195
    %6436 = vmatpush1.bf16.msra.mxu0 %v6194
    %6437 = vmatprep.subr.bf16.mxu0 %v6203
    %6438 = vmatpush1.bf16.msra.mxu0 %v6202
    %6439 = vmatprep.subr.bf16.mxu0 %v6211
    %6440 = vmatpush1.bf16.msra.mxu0 %v6210
    %6441 = vmatprep.subr.bf16.mxu0 %v6219
    %6442 = vmatpush1.bf16.msra.mxu0 %v6218
    %6443 = vmatprep.subr.bf16.mxu0 %v6227
    %6444 = vmatpush1.bf16.msra.mxu0 %v6226
    %6445 = vmatprep.subr.bf16.mxu0 %v6235
    %6446 = vmatpush1.bf16.msra.mxu0 %v6234
    %6447 = vmatprep.subr.bf16.mxu0 %v6243
    %6448 = vmatpush1.bf16.msra.mxu0 %v6242
    %6449 = vmatprep.mubr.bf16.mxu0 %v5607
    %6450 = vmatmul.mubr.bf16.gmra.mrb[0].mxu0 %v5606
    %v6451 = vpop.f32.mrb[0].mxu0
    %v6452 = vadd.f32 0.0, %v6451
    %v6453 = vpop.f32.mrb[0].mxu0
    %v6454 = vadd.f32 0.0, %v6453
    %v6455 = vpop.f32.mrb[0].mxu0
    %v6456 = vpop.f32.mrb[0].mxu0
    %6457 = vdwg.mxu0
    %6458 = vmatprep.subr.bf16.mxu0 %v6125
    %6459 = vmatpush1.bf16.msra.mxu0 %v6124
    %6460 = vmatprep.subr.bf16.mxu0 %v6133
    %6461 = vmatpush1.bf16.msra.mxu0 %v6132
    %6462 = vmatprep.subr.bf16.mxu0 %v6141
    %6463 = vmatpush1.bf16.msra.mxu0 %v6140
    %6464 = vmatprep.subr.bf16.mxu0 %v6149
    %6465 = vmatpush1.bf16.msra.mxu0 %v6148
    %6466 = vmatprep.subr.bf16.mxu0 %v6157
    %6467 = vmatpush1.bf16.msra.mxu0 %v6156
    %6468 = vmatprep.subr.bf16.mxu0 %v6165
    %6469 = vmatpush1.bf16.msra.mxu0 %v6164
    %6470 = vmatprep.subr.bf16.mxu0 %v6173
    %6471 = vmatpush1.bf16.msra.mxu0 %v6172
    %6472 = vmatprep.subr.bf16.mxu0 %v6181
    %6473 = vmatpush1.bf16.msra.mxu0 %v6180
    %6474 = vmatprep.subr.bf16.mxu0 %v6189
    %6475 = vmatpush1.bf16.msra.mxu0 %v6188
    %6476 = vmatprep.subr.bf16.mxu0 %v6197
    %6477 = vmatpush1.bf16.msra.mxu0 %v6196
    %6478 = vmatprep.subr.bf16.mxu0 %v6205
    %6479 = vmatpush1.bf16.msra.mxu0 %v6204
    %6480 = vmatprep.subr.bf16.mxu0 %v6213
    %6481 = vmatpush1.bf16.msra.mxu0 %v6212
    %6482 = vmatprep.subr.bf16.mxu0 %v6221
    %6483 = vmatpush1.bf16.msra.mxu0 %v6220
    %6484 = vmatprep.subr.bf16.mxu0 %v6229
    %6485 = vmatpush1.bf16.msra.mxu0 %v6228
    %6486 = vmatprep.subr.bf16.mxu0 %v6237
    %6487 = vmatpush1.bf16.msra.mxu0 %v6236
    %6488 = vmatprep.subr.bf16.mxu0 %v6245
    %6489 = vmatpush1.bf16.msra.mxu0 %v6244
    %6490 = vmatprep.mubr.bf16.mxu0 %v5607
    %6491 = vmatmul.mubr.bf16.gmra.mrb[0].mxu0 %v5606
    %v6492 = vpop.f32.mrb[0].mxu0
    %v6493 = vadd.f32 0.0, %v6492
    %v6494 = vpop.f32.mrb[0].mxu0
    %v6495 = vadd.f32 0.0, %v6494
    %v6496 = vpop.f32.mrb[0].mxu0
    %v6497 = vpop.f32.mrb[0].mxu0
    %6498 = vdwg.mxu0
    %6499 = vmatprep.subr.bf16.mxu0 %v6127
    %6500 = vmatpush1.bf16.msra.mxu0 %v6126
    %6501 = vmatprep.subr.bf16.mxu0 %v6135
    %6502 = vmatpush1.bf16.msra.mxu0 %v6134
    %6503 = vmatprep.subr.bf16.mxu0 %v6143
    %6504 = vmatpush1.bf16.msra.mxu0 %v6142
    %6505 = vmatprep.subr.bf16.mxu0 %v6151
    %6506 = vmatpush1.bf16.msra.mxu0 %v6150
    %6507 = vmatprep.subr.bf16.mxu0 %v6159
    %6508 = vmatpush1.bf16.msra.mxu0 %v6158
    %6509 = vmatprep.subr.bf16.mxu0 %v6167
    %6510 = vmatpush1.bf16.msra.mxu0 %v6166
    %6511 = vmatprep.subr.bf16.mxu0 %v6175
    %6512 = vmatpush1.bf16.msra.mxu0 %v6174
    %6513 = vmatprep.subr.bf16.mxu0 %v6183
    %6514 = vmatpush1.bf16.msra.mxu0 %v6182
    %6515 = vmatprep.subr.bf16.mxu0 %v6191
    %6516 = vmatpush1.bf16.msra.mxu0 %v6190
    %6517 = vmatprep.subr.bf16.mxu0 %v6199
    %6518 = vmatpush1.bf16.msra.mxu0 %v6198
    %6519 = vmatprep.subr.bf16.mxu0 %v6207
    %6520 = vmatpush1.bf16.msra.mxu0 %v6206
    %6521 = vmatprep.subr.bf16.mxu0 %v6215
    %6522 = vmatpush1.bf16.msra.mxu0 %v6214
    %6523 = vmatprep.subr.bf16.mxu0 %v6223
    %6524 = vmatpush1.bf16.msra.mxu0 %v6222
    %6525 = vmatprep.subr.bf16.mxu0 %v6231
    %6526 = vmatpush1.bf16.msra.mxu0 %v6230
    %6527 = vmatprep.subr.bf16.mxu0 %v6239
    %6528 = vmatpush1.bf16.msra.mxu0 %v6238
    %6529 = vmatprep.subr.bf16.mxu0 %v6247
    %6530 = vmatpush1.bf16.msra.mxu0 %v6246
    %6531 = vmatprep.mubr.bf16.mxu0 %v5607
    %6532 = vmatmul.mubr.bf16.gmra.mrb[0].mxu0 %v5606
    %v6533 = vpop.f32.mrb[0].mxu0
    %v6534 = vadd.f32 0.0, %v6533
    %v6535 = vpop.f32.mrb[0].mxu0
    %v6536 = vadd.f32 0.0, %v6535
    %v6537 = vpop.f32.mrb[0].mxu0
    %v6538 = vpop.f32.mrb[0].mxu0
    %6539 = vdwg.mxu0
    %s6540 = scalar_lea.vmem [#allocation4], 20
    %v6541 = vld [vmem:[%s6540] sm:$0xf]
    %v6542 = vunpack.c.l.bf16 %v6541
    %v6547 = vcombine.low %v6411, %v6413
    %v6548 = vcombine.low %v6452, %v6454
    %v6550 = vunpack.c.l.s4 1983009808
    %v6551 = vunpack.c.0.s8 %v6550
    %v6552 = vlaneseq
    %v6553 = vshrl.u32 %v6552, 7
    %v6554 = vsub.s32 %v6551, %v6553
    %v6555 = vrot.slane %v6547, %v6554
    %v6557 = vunpack.c.l.s4 1983009808
    %v6558 = vunpack.c.0.s8 %v6557
    %v6559 = vlaneseq
    %v6560 = vshrl.u32 %v6559, 7
    %v6561 = vsub.s32 %v6558, %v6560
    %v6562 = vrot.slane %v6548, %v6561
    %v6563 = vcombine.low %v6555, %v6562
    %v6565 = vadd.f32 %v6542, %v6563
    %v6566 = vmul.f32 %v6565, 0.5
    %v6567 = vtanh.pop %v6566
    %v6568 = vadd.f32 %v6567, 1.0
    %v6569 = vmul.f32 %v6568, 0.5
    %v6571 = vrot.slane %v6565, 2
    %v6573 = vmul.f32 %v6571, 0.5
    %v6574 = vtanh.pop %v6573
    %v6575 = vadd.f32 %v6574, 1.0
    %v6576 = vmul.f32 %v6575, 0.5
    %v6577 = vrot.slane %v6565, 4
    %v6579 = vtanh.pop %v6577
    %v6580 = vrot.slane %v6565, 6
    %v6582 = vmul.f32 %v6580, 0.5
    %v6583 = vtanh.pop %v6582
    %v6584 = vadd.f32 %v6583, 1.0
    %v6585 = vmul.f32 %v6584, 0.5
    %v6586 = vld [vmem:[#allocation3] sm:$0x3]
    %v6587 = vmul.f32 %v6576, %v6586
    %v6588 = vmul.f32 %v6569, %v6579
    %v6589 = vadd.f32 %v6587, %v6588
    %v6590 = vtanh.pop %v6589
    %v6591 = vmul.f32 %v6585, %v6590
    %s6592 = scalar_lea.vmem %s3, 10
    %v6593 = vld [vmem:[%s6592] sm:$0x3]
    %6595 = vset.pattern.permute.xlu0 0
    %6596 = vperm.xlu0 %6595, %v6593
    %v6597 = vpop.permute.xlu0 %6596
    %v6599 = vmul.f32 %v6589, %v6597
    %6600 = vst [vmem:[#allocation3] sm:$0x3] %v6599
    %v6601 = vmul.f32 %v6591, %v6597
    %6602 = vst [vmem:[#allocation2] sm:$0x3] %v6601
    %v6603 = vpack.c.bf16 %v6601, %v6601
    %s6604 = scalar_lea.vmem %s5, 5
    %6605 = vst [vmem:[%s6604] sm:$0x1] %v6603
    %s6606 = scalar_lea.vmem [#allocation5], 8
    %v6607 = vld [vmem:[%s6606] sm:$0xf]
    %v6608 = vunpack.c.l.bf16 %v6607
    %v6613 = vcombine.low %v6493, %v6495
    %v6614 = vcombine.low %v6534, %v6536
    %v6616 = vunpack.c.l.s4 1983009808
    %v6617 = vunpack.c.0.s8 %v6616
    %v6618 = vlaneseq
    %v6619 = vshrl.u32 %v6618, 7
    %v6620 = vsub.s32 %v6617, %v6619
    %v6621 = vrot.slane %v6613, %v6620
    %v6623 = vunpack.c.l.s4 1983009808
    %v6624 = vunpack.c.0.s8 %v6623
    %v6625 = vlaneseq
    %v6626 = vshrl.u32 %v6625, 7
    %v6627 = vsub.s32 %v6624, %v6626
    %v6628 = vrot.slane %v6614, %v6627
    %v6629 = vcombine.low %v6621, %v6628
    %v6631 = vadd.f32 %v6608, %v6629
    %v6632 = vmul.f32 %v6631, 0.5
    %v6633 = vtanh.pop %v6632
    %v6634 = vadd.f32 %v6633, 1.0
    %v6635 = vmul.f32 %v6634, 0.5
    %v6637 = vrot.slane %v6631, 2
    %v6639 = vmul.f32 %v6637, 0.5
    %v6640 = vtanh.pop %v6639
    %v6641 = vadd.f32 %v6640, 1.0
    %v6642 = vmul.f32 %v6641, 0.5
    %v6643 = vrot.slane %v6631, 4
    %v6645 = vtanh.pop %v6643
    %v6646 = vrot.slane %v6631, 6
    %v6648 = vmul.f32 %v6646, 0.5
    %v6649 = vtanh.pop %v6648
    %v6650 = vadd.f32 %v6649, 1.0
    %v6651 = vmul.f32 %v6650, 0.5
    %v6652 = vld [vmem:[#allocation3 + $0x2] sm:$0x3]
    %v6653 = vmul.f32 %v6642, %v6652
    %v6654 = vmul.f32 %v6635, %v6645
    %v6655 = vadd.f32 %v6653, %v6654
    %v6656 = vtanh.pop %v6655
    %v6657 = vmul.f32 %v6651, %v6656
    %s6658 = scalar_lea.vmem %s191, 4
    %v6659 = vld [vmem:[%s6658] sm:$0x3]
    %6661 = vset.pattern.permute.xlu0 0
    %6662 = vperm.xlu0 %6661, %v6659
    %v6663 = vpop.permute.xlu0 %6662
    %v6665 = vmul.f32 %v6655, %v6663
    %6666 = vst [vmem:[#allocation3 + $0x2] sm:$0x3] %v6665
    %v6667 = vmul.f32 %v6657, %v6663
    %6668 = vst [vmem:[#allocation2 + $0x2] sm:$0x3] %v6667
    %v6669 = vpack.c.bf16 %v6667, %v6667
    %s6670 = scalar_lea.vmem %s198, 2
    %6671 = vst [vmem:[%s6670] sm:$0x1] %v6669
    %v6672 = vld [vmem:[#allocation2] sm:$0xf]
    %v6675 = vunpack.c.l.s4 1983009808
    %v6676 = vunpack.c.0.s8 %v6675
    %v6677 = vlaneseq
    %v6678 = vshrl.u32 %v6677, 7
    %v6679 = vsub.s32 %v6676, %v6678
    %v6680 = vrot.slane %v6672, %v6679
    %v6681 = vcombine.high %v6680, %v6680
    %v6684 = vpack.c.bf16 %v6680, %v6680
    %v6685 = vpack.c.bf16 %v6681, %v6681
    %v6686 = vld [vmem:[%s2] sm:$0xff]
    %v6687 = vld [vmem:[%s2 + $0x8] sm:$0xff]
    %v6688 = vld [vmem:[%s2 + $0x10] sm:$0xff]
    %v6689 = vld [vmem:[%s2 + $0x18] sm:$0xff]
    %v6690 = vld [vmem:[%s2 + $0x20] sm:$0xff]
    %v6691 = vld [vmem:[%s2 + $0x28] sm:$0xff]
    %v6692 = vld [vmem:[%s2 + $0x30] sm:$0xff]
    %v6693 = vld [vmem:[%s2 + $0x38] sm:$0xff]
    %v6694 = vld [vmem:[%s2 + $0x40] sm:$0xff]
    %v6695 = vld [vmem:[%s2 + $0x48] sm:$0xff]
    %v6696 = vld [vmem:[%s2 + $0x50] sm:$0xff]
    %v6697 = vld [vmem:[%s2 + $0x58] sm:$0xff]
    %v6698 = vld [vmem:[%s2 + $0x60] sm:$0xff]
    %v6699 = vld [vmem:[%s2 + $0x68] sm:$0xff]
    %v6700 = vld [vmem:[%s2 + $0x70] sm:$0xff]
    %v6701 = vld [vmem:[%s2 + $0x78] sm:$0xff]
    %v6702 = vld [vmem:[%s2 + $0x80] sm:$0xff]
    %v6703 = vld [vmem:[%s2 + $0x88] sm:$0xff]
    %v6704 = vld [vmem:[%s2 + $0x90] sm:$0xff]
    %v6705 = vld [vmem:[%s2 + $0x98] sm:$0xff]
    %v6706 = vld [vmem:[%s2 + $0xa0] sm:$0xff]
    %v6707 = vld [vmem:[%s2 + $0xa8] sm:$0xff]
    %v6708 = vld [vmem:[%s2 + $0xb0] sm:$0xff]
    %v6709 = vld [vmem:[%s2 + $0xb8] sm:$0xff]
    %v6710 = vld [vmem:[%s2 + $0xc0] sm:$0xff]
    %v6711 = vld [vmem:[%s2 + $0xc8] sm:$0xff]
    %v6712 = vld [vmem:[%s2 + $0xd0] sm:$0xff]
    %v6713 = vld [vmem:[%s2 + $0xd8] sm:$0xff]
    %v6714 = vld [vmem:[%s2 + $0xe0] sm:$0xff]
    %v6715 = vld [vmem:[%s2 + $0xe8] sm:$0xff]
    %v6716 = vld [vmem:[%s2 + $0xf0] sm:$0xff]
    %v6717 = vld [vmem:[%s2 + $0xf8] sm:$0xff]
    %v6718 = vld [vmem:[%s2 + $0x100] sm:$0xff]
    %v6719 = vld [vmem:[%s2 + $0x108] sm:$0xff]
    %v6720 = vld [vmem:[%s2 + $0x110] sm:$0xff]
    %v6721 = vld [vmem:[%s2 + $0x118] sm:$0xff]
    %v6722 = vld [vmem:[%s2 + $0x120] sm:$0xff]
    %v6723 = vld [vmem:[%s2 + $0x128] sm:$0xff]
    %v6724 = vld [vmem:[%s2 + $0x130] sm:$0xff]
    %v6725 = vld [vmem:[%s2 + $0x138] sm:$0xff]
    %v6726 = vld [vmem:[%s2 + $0x140] sm:$0xff]
    %v6727 = vld [vmem:[%s2 + $0x148] sm:$0xff]
    %v6728 = vld [vmem:[%s2 + $0x150] sm:$0xff]
    %v6729 = vld [vmem:[%s2 + $0x158] sm:$0xff]
    %v6730 = vld [vmem:[%s2 + $0x160] sm:$0xff]
    %v6731 = vld [vmem:[%s2 + $0x168] sm:$0xff]
    %v6732 = vld [vmem:[%s2 + $0x170] sm:$0xff]
    %v6733 = vld [vmem:[%s2 + $0x178] sm:$0xff]
    %v6734 = vld [vmem:[%s2 + $0x180] sm:$0xff]
    %v6735 = vld [vmem:[%s2 + $0x188] sm:$0xff]
    %v6736 = vld [vmem:[%s2 + $0x190] sm:$0xff]
    %v6737 = vld [vmem:[%s2 + $0x198] sm:$0xff]
    %v6738 = vld [vmem:[%s2 + $0x1a0] sm:$0xff]
    %v6739 = vld [vmem:[%s2 + $0x1a8] sm:$0xff]
    %v6740 = vld [vmem:[%s2 + $0x1b0] sm:$0xff]
    %v6741 = vld [vmem:[%s2 + $0x1b8] sm:$0xff]
    %v6742 = vld [vmem:[%s2 + $0x1c0] sm:$0xff]
    %v6743 = vld [vmem:[%s2 + $0x1c8] sm:$0xff]
    %v6744 = vld [vmem:[%s2 + $0x1d0] sm:$0xff]
    %v6745 = vld [vmem:[%s2 + $0x1d8] sm:$0xff]
    %v6746 = vld [vmem:[%s2 + $0x1e0] sm:$0xff]
    %v6747 = vld [vmem:[%s2 + $0x1e8] sm:$0xff]
    %v6748 = vld [vmem:[%s2 + $0x1f0] sm:$0xff]
    %v6749 = vld [vmem:[%s2 + $0x1f8] sm:$0xff]
    %v6750 = vld [vmem:[%s2 + $0x200] sm:$0xff]
    %v6751 = vld [vmem:[%s2 + $0x208] sm:$0xff]
    %v6752 = vld [vmem:[%s2 + $0x210] sm:$0xff]
    %v6753 = vld [vmem:[%s2 + $0x218] sm:$0xff]
    %v6754 = vld [vmem:[%s2 + $0x220] sm:$0xff]
    %v6755 = vld [vmem:[%s2 + $0x228] sm:$0xff]
    %v6756 = vld [vmem:[%s2 + $0x230] sm:$0xff]
    %v6757 = vld [vmem:[%s2 + $0x238] sm:$0xff]
    %v6758 = vld [vmem:[%s2 + $0x240] sm:$0xff]
    %v6759 = vld [vmem:[%s2 + $0x248] sm:$0xff]
    %v6760 = vld [vmem:[%s2 + $0x250] sm:$0xff]
    %v6761 = vld [vmem:[%s2 + $0x258] sm:$0xff]
    %v6762 = vld [vmem:[%s2 + $0x260] sm:$0xff]
    %v6763 = vld [vmem:[%s2 + $0x268] sm:$0xff]
    %v6764 = vld [vmem:[%s2 + $0x270] sm:$0xff]
    %v6765 = vld [vmem:[%s2 + $0x278] sm:$0xff]
    %v6766 = vld [vmem:[%s2 + $0x280] sm:$0xff]
    %v6767 = vld [vmem:[%s2 + $0x288] sm:$0xff]
    %v6768 = vld [vmem:[%s2 + $0x290] sm:$0xff]
    %v6769 = vld [vmem:[%s2 + $0x298] sm:$0xff]
    %v6770 = vld [vmem:[%s2 + $0x2a0] sm:$0xff]
    %v6771 = vld [vmem:[%s2 + $0x2a8] sm:$0xff]
    %v6772 = vld [vmem:[%s2 + $0x2b0] sm:$0xff]
    %v6773 = vld [vmem:[%s2 + $0x2b8] sm:$0xff]
    %v6774 = vld [vmem:[%s2 + $0x2c0] sm:$0xff]
    %v6775 = vld [vmem:[%s2 + $0x2c8] sm:$0xff]
    %v6776 = vld [vmem:[%s2 + $0x2d0] sm:$0xff]
    %v6777 = vld [vmem:[%s2 + $0x2d8] sm:$0xff]
    %v6778 = vld [vmem:[%s2 + $0x2e0] sm:$0xff]
    %v6779 = vld [vmem:[%s2 + $0x2e8] sm:$0xff]
    %v6780 = vld [vmem:[%s2 + $0x2f0] sm:$0xff]
    %v6781 = vld [vmem:[%s2 + $0x2f8] sm:$0xff]
    %v6782 = vld [vmem:[%s2 + $0x300] sm:$0xff]
    %v6783 = vld [vmem:[%s2 + $0x308] sm:$0xff]
    %v6784 = vld [vmem:[%s2 + $0x310] sm:$0xff]
    %v6785 = vld [vmem:[%s2 + $0x318] sm:$0xff]
    %v6786 = vld [vmem:[%s2 + $0x320] sm:$0xff]
    %v6787 = vld [vmem:[%s2 + $0x328] sm:$0xff]
    %v6788 = vld [vmem:[%s2 + $0x330] sm:$0xff]
    %v6789 = vld [vmem:[%s2 + $0x338] sm:$0xff]
    %v6790 = vld [vmem:[%s2 + $0x340] sm:$0xff]
    %v6791 = vld [vmem:[%s2 + $0x348] sm:$0xff]
    %v6792 = vld [vmem:[%s2 + $0x350] sm:$0xff]
    %v6793 = vld [vmem:[%s2 + $0x358] sm:$0xff]
    %v6794 = vld [vmem:[%s2 + $0x360] sm:$0xff]
    %v6795 = vld [vmem:[%s2 + $0x368] sm:$0xff]
    %v6796 = vld [vmem:[%s2 + $0x370] sm:$0xff]
    %v6797 = vld [vmem:[%s2 + $0x378] sm:$0xff]
    %v6798 = vld [vmem:[%s2 + $0x380] sm:$0xff]
    %v6799 = vld [vmem:[%s2 + $0x388] sm:$0xff]
    %v6800 = vld [vmem:[%s2 + $0x390] sm:$0xff]
    %v6801 = vld [vmem:[%s2 + $0x398] sm:$0xff]
    %v6802 = vld [vmem:[%s2 + $0x3a0] sm:$0xff]
    %v6803 = vld [vmem:[%s2 + $0x3a8] sm:$0xff]
    %v6804 = vld [vmem:[%s2 + $0x3b0] sm:$0xff]
    %v6805 = vld [vmem:[%s2 + $0x3b8] sm:$0xff]
    %v6806 = vld [vmem:[%s2 + $0x3c0] sm:$0xff]
    %v6807 = vld [vmem:[%s2 + $0x3c8] sm:$0xff]
    %v6808 = vld [vmem:[%s2 + $0x3d0] sm:$0xff]
    %v6809 = vld [vmem:[%s2 + $0x3d8] sm:$0xff]
    %v6810 = vld [vmem:[%s2 + $0x3e0] sm:$0xff]
    %v6811 = vld [vmem:[%s2 + $0x3e8] sm:$0xff]
    %v6812 = vld [vmem:[%s2 + $0x3f0] sm:$0xff]
    %v6813 = vld [vmem:[%s2 + $0x3f8] sm:$0xff]
    %v6942 = vunpack.c.l.b16 %v6686
    %v6943 = vunpack.c.h.b16 %v6686
    %v6944 = vunpack.c.l.b16 %v6687
    %v6945 = vunpack.c.h.b16 %v6687
    %v6946 = vunpack.c.l.b16 %v6688
    %v6947 = vunpack.c.h.b16 %v6688
    %v6948 = vunpack.c.l.b16 %v6689
    %v6949 = vunpack.c.h.b16 %v6689
    %v6950 = vunpack.c.l.b16 %v6690
    %v6951 = vunpack.c.h.b16 %v6690
    %v6952 = vunpack.c.l.b16 %v6691
    %v6953 = vunpack.c.h.b16 %v6691
    %v6954 = vunpack.c.l.b16 %v6692
    %v6955 = vunpack.c.h.b16 %v6692
    %v6956 = vunpack.c.l.b16 %v6693
    %v6957 = vunpack.c.h.b16 %v6693
    %v6958 = vunpack.c.l.b16 %v6694
    %v6959 = vunpack.c.h.b16 %v6694
    %v6960 = vunpack.c.l.b16 %v6695
    %v6961 = vunpack.c.h.b16 %v6695
    %v6962 = vunpack.c.l.b16 %v6696
    %v6963 = vunpack.c.h.b16 %v6696
    %v6964 = vunpack.c.l.b16 %v6697
    %v6965 = vunpack.c.h.b16 %v6697
    %v6966 = vunpack.c.l.b16 %v6698
    %v6967 = vunpack.c.h.b16 %v6698
    %v6968 = vunpack.c.l.b16 %v6699
    %v6969 = vunpack.c.h.b16 %v6699
    %v6970 = vunpack.c.l.b16 %v6700
    %v6971 = vunpack.c.h.b16 %v6700
    %v6972 = vunpack.c.l.b16 %v6701
    %v6973 = vunpack.c.h.b16 %v6701
    %v6974 = vunpack.c.l.b16 %v6702
    %v6975 = vunpack.c.h.b16 %v6702
    %v6976 = vunpack.c.l.b16 %v6703
    %v6977 = vunpack.c.h.b16 %v6703
    %v6978 = vunpack.c.l.b16 %v6704
    %v6979 = vunpack.c.h.b16 %v6704
    %v6980 = vunpack.c.l.b16 %v6705
    %v6981 = vunpack.c.h.b16 %v6705
    %v6982 = vunpack.c.l.b16 %v6706
    %v6983 = vunpack.c.h.b16 %v6706
    %v6984 = vunpack.c.l.b16 %v6707
    %v6985 = vunpack.c.h.b16 %v6707
    %v6986 = vunpack.c.l.b16 %v6708
    %v6987 = vunpack.c.h.b16 %v6708
    %v6988 = vunpack.c.l.b16 %v6709
    %v6989 = vunpack.c.h.b16 %v6709
    %v6990 = vunpack.c.l.b16 %v6710
    %v6991 = vunpack.c.h.b16 %v6710
    %v6992 = vunpack.c.l.b16 %v6711
    %v6993 = vunpack.c.h.b16 %v6711
    %v6994 = vunpack.c.l.b16 %v6712
    %v6995 = vunpack.c.h.b16 %v6712
    %v6996 = vunpack.c.l.b16 %v6713
    %v6997 = vunpack.c.h.b16 %v6713
    %v6998 = vunpack.c.l.b16 %v6714
    %v6999 = vunpack.c.h.b16 %v6714
    %v7000 = vunpack.c.l.b16 %v6715
    %v7001 = vunpack.c.h.b16 %v6715
    %v7002 = vunpack.c.l.b16 %v6716
    %v7003 = vunpack.c.h.b16 %v6716
    %v7004 = vunpack.c.l.b16 %v6717
    %v7005 = vunpack.c.h.b16 %v6717
    %v7006 = vunpack.c.l.b16 %v6718
    %v7007 = vunpack.c.h.b16 %v6718
    %v7008 = vunpack.c.l.b16 %v6719
    %v7009 = vunpack.c.h.b16 %v6719
    %v7010 = vunpack.c.l.b16 %v6720
    %v7011 = vunpack.c.h.b16 %v6720
    %v7012 = vunpack.c.l.b16 %v6721
    %v7013 = vunpack.c.h.b16 %v6721
    %v7014 = vunpack.c.l.b16 %v6722
    %v7015 = vunpack.c.h.b16 %v6722
    %v7016 = vunpack.c.l.b16 %v6723
    %v7017 = vunpack.c.h.b16 %v6723
    %v7018 = vunpack.c.l.b16 %v6724
    %v7019 = vunpack.c.h.b16 %v6724
    %v7020 = vunpack.c.l.b16 %v6725
    %v7021 = vunpack.c.h.b16 %v6725
    %v7022 = vunpack.c.l.b16 %v6726
    %v7023 = vunpack.c.h.b16 %v6726
    %v7024 = vunpack.c.l.b16 %v6727
    %v7025 = vunpack.c.h.b16 %v6727
    %v7026 = vunpack.c.l.b16 %v6728
    %v7027 = vunpack.c.h.b16 %v6728
    %v7028 = vunpack.c.l.b16 %v6729
    %v7029 = vunpack.c.h.b16 %v6729
    %v7030 = vunpack.c.l.b16 %v6730
    %v7031 = vunpack.c.h.b16 %v6730
    %v7032 = vunpack.c.l.b16 %v6731
    %v7033 = vunpack.c.h.b16 %v6731
    %v7034 = vunpack.c.l.b16 %v6732
    %v7035 = vunpack.c.h.b16 %v6732
    %v7036 = vunpack.c.l.b16 %v6733
    %v7037 = vunpack.c.h.b16 %v6733
    %v7038 = vunpack.c.l.b16 %v6734
    %v7039 = vunpack.c.h.b16 %v6734
    %v7040 = vunpack.c.l.b16 %v6735
    %v7041 = vunpack.c.h.b16 %v6735
    %v7042 = vunpack.c.l.b16 %v6736
    %v7043 = vunpack.c.h.b16 %v6736
    %v7044 = vunpack.c.l.b16 %v6737
    %v7045 = vunpack.c.h.b16 %v6737
    %v7046 = vunpack.c.l.b16 %v6738
    %v7047 = vunpack.c.h.b16 %v6738
    %v7048 = vunpack.c.l.b16 %v6739
    %v7049 = vunpack.c.h.b16 %v6739
    %v7050 = vunpack.c.l.b16 %v6740
    %v7051 = vunpack.c.h.b16 %v6740
    %v7052 = vunpack.c.l.b16 %v6741
    %v7053 = vunpack.c.h.b16 %v6741
    %v7054 = vunpack.c.l.b16 %v6742
    %v7055 = vunpack.c.h.b16 %v6742
    %v7056 = vunpack.c.l.b16 %v6743
    %v7057 = vunpack.c.h.b16 %v6743
    %v7058 = vunpack.c.l.b16 %v6744
    %v7059 = vunpack.c.h.b16 %v6744
    %v7060 = vunpack.c.l.b16 %v6745
    %v7061 = vunpack.c.h.b16 %v6745
    %v7062 = vunpack.c.l.b16 %v6746
    %v7063 = vunpack.c.h.b16 %v6746
    %v7064 = vunpack.c.l.b16 %v6747
    %v7065 = vunpack.c.h.b16 %v6747
    %v7066 = vunpack.c.l.b16 %v6748
    %v7067 = vunpack.c.h.b16 %v6748
    %v7068 = vunpack.c.l.b16 %v6749
    %v7069 = vunpack.c.h.b16 %v6749
    %v7070 = vunpack.c.l.b16 %v6750
    %v7071 = vunpack.c.h.b16 %v6750
    %v7072 = vunpack.c.l.b16 %v6751
    %v7073 = vunpack.c.h.b16 %v6751
    %v7074 = vunpack.c.l.b16 %v6752
    %v7075 = vunpack.c.h.b16 %v6752
    %v7076 = vunpack.c.l.b16 %v6753
    %v7077 = vunpack.c.h.b16 %v6753
    %v7078 = vunpack.c.l.b16 %v6754
    %v7079 = vunpack.c.h.b16 %v6754
    %v7080 = vunpack.c.l.b16 %v6755
    %v7081 = vunpack.c.h.b16 %v6755
    %v7082 = vunpack.c.l.b16 %v6756
    %v7083 = vunpack.c.h.b16 %v6756
    %v7084 = vunpack.c.l.b16 %v6757
    %v7085 = vunpack.c.h.b16 %v6757
    %v7086 = vunpack.c.l.b16 %v6758
    %v7087 = vunpack.c.h.b16 %v6758
    %v7088 = vunpack.c.l.b16 %v6759
    %v7089 = vunpack.c.h.b16 %v6759
    %v7090 = vunpack.c.l.b16 %v6760
    %v7091 = vunpack.c.h.b16 %v6760
    %v7092 = vunpack.c.l.b16 %v6761
    %v7093 = vunpack.c.h.b16 %v6761
    %v7094 = vunpack.c.l.b16 %v6762
    %v7095 = vunpack.c.h.b16 %v6762
    %v7096 = vunpack.c.l.b16 %v6763
    %v7097 = vunpack.c.h.b16 %v6763
    %v7098 = vunpack.c.l.b16 %v6764
    %v7099 = vunpack.c.h.b16 %v6764
    %v7100 = vunpack.c.l.b16 %v6765
    %v7101 = vunpack.c.h.b16 %v6765
    %v7102 = vunpack.c.l.b16 %v6766
    %v7103 = vunpack.c.h.b16 %v6766
    %v7104 = vunpack.c.l.b16 %v6767
    %v7105 = vunpack.c.h.b16 %v6767
    %v7106 = vunpack.c.l.b16 %v6768
    %v7107 = vunpack.c.h.b16 %v6768
    %v7108 = vunpack.c.l.b16 %v6769
    %v7109 = vunpack.c.h.b16 %v6769
    %v7110 = vunpack.c.l.b16 %v6770
    %v7111 = vunpack.c.h.b16 %v6770
    %v7112 = vunpack.c.l.b16 %v6771
    %v7113 = vunpack.c.h.b16 %v6771
    %v7114 = vunpack.c.l.b16 %v6772
    %v7115 = vunpack.c.h.b16 %v6772
    %v7116 = vunpack.c.l.b16 %v6773
    %v7117 = vunpack.c.h.b16 %v6773
    %v7118 = vunpack.c.l.b16 %v6774
    %v7119 = vunpack.c.h.b16 %v6774
    %v7120 = vunpack.c.l.b16 %v6775
    %v7121 = vunpack.c.h.b16 %v6775
    %v7122 = vunpack.c.l.b16 %v6776
    %v7123 = vunpack.c.h.b16 %v6776
    %v7124 = vunpack.c.l.b16 %v6777
    %v7125 = vunpack.c.h.b16 %v6777
    %v7126 = vunpack.c.l.b16 %v6778
    %v7127 = vunpack.c.h.b16 %v6778
    %v7128 = vunpack.c.l.b16 %v6779
    %v7129 = vunpack.c.h.b16 %v6779
    %v7130 = vunpack.c.l.b16 %v6780
    %v7131 = vunpack.c.h.b16 %v6780
    %v7132 = vunpack.c.l.b16 %v6781
    %v7133 = vunpack.c.h.b16 %v6781
    %v7134 = vunpack.c.l.b16 %v6782
    %v7135 = vunpack.c.h.b16 %v6782
    %v7136 = vunpack.c.l.b16 %v6783
    %v7137 = vunpack.c.h.b16 %v6783
    %v7138 = vunpack.c.l.b16 %v6784
    %v7139 = vunpack.c.h.b16 %v6784
    %v7140 = vunpack.c.l.b16 %v6785
    %v7141 = vunpack.c.h.b16 %v6785
    %v7142 = vunpack.c.l.b16 %v6786
    %v7143 = vunpack.c.h.b16 %v6786
    %v7144 = vunpack.c.l.b16 %v6787
    %v7145 = vunpack.c.h.b16 %v6787
    %v7146 = vunpack.c.l.b16 %v6788
    %v7147 = vunpack.c.h.b16 %v6788
    %v7148 = vunpack.c.l.b16 %v6789
    %v7149 = vunpack.c.h.b16 %v6789
    %v7150 = vunpack.c.l.b16 %v6790
    %v7151 = vunpack.c.h.b16 %v6790
    %v7152 = vunpack.c.l.b16 %v6791
    %v7153 = vunpack.c.h.b16 %v6791
    %v7154 = vunpack.c.l.b16 %v6792
    %v7155 = vunpack.c.h.b16 %v6792
    %v7156 = vunpack.c.l.b16 %v6793
    %v7157 = vunpack.c.h.b16 %v6793
    %v7158 = vunpack.c.l.b16 %v6794
    %v7159 = vunpack.c.h.b16 %v6794
    %v7160 = vunpack.c.l.b16 %v6795
    %v7161 = vunpack.c.h.b16 %v6795
    %v7162 = vunpack.c.l.b16 %v6796
    %v7163 = vunpack.c.h.b16 %v6796
    %v7164 = vunpack.c.l.b16 %v6797
    %v7165 = vunpack.c.h.b16 %v6797
    %v7166 = vunpack.c.l.b16 %v6798
    %v7167 = vunpack.c.h.b16 %v6798
    %v7168 = vunpack.c.l.b16 %v6799
    %v7169 = vunpack.c.h.b16 %v6799
    %v7170 = vunpack.c.l.b16 %v6800
    %v7171 = vunpack.c.h.b16 %v6800
    %v7172 = vunpack.c.l.b16 %v6801
    %v7173 = vunpack.c.h.b16 %v6801
    %v7174 = vunpack.c.l.b16 %v6802
    %v7175 = vunpack.c.h.b16 %v6802
    %v7176 = vunpack.c.l.b16 %v6803
    %v7177 = vunpack.c.h.b16 %v6803
    %v7178 = vunpack.c.l.b16 %v6804
    %v7179 = vunpack.c.h.b16 %v6804
    %v7180 = vunpack.c.l.b16 %v6805
    %v7181 = vunpack.c.h.b16 %v6805
    %v7182 = vunpack.c.l.b16 %v6806
    %v7183 = vunpack.c.h.b16 %v6806
    %v7184 = vunpack.c.l.b16 %v6807
    %v7185 = vunpack.c.h.b16 %v6807
    %v7186 = vunpack.c.l.b16 %v6808
    %v7187 = vunpack.c.h.b16 %v6808
    %v7188 = vunpack.c.l.b16 %v6809
    %v7189 = vunpack.c.h.b16 %v6809
    %v7190 = vunpack.c.l.b16 %v6810
    %v7191 = vunpack.c.h.b16 %v6810
    %v7192 = vunpack.c.l.b16 %v6811
    %v7193 = vunpack.c.h.b16 %v6811
    %v7194 = vunpack.c.l.b16 %v6812
    %v7195 = vunpack.c.h.b16 %v6812
    %v7196 = vunpack.c.l.b16 %v6813
    %v7197 = vunpack.c.h.b16 %v6813
    %v7198 = vpack.c.b16 %v6950, %v6942
    %v7199 = vpack.c.b16 %v6951, %v6943
    %v7200 = vpack.c.b16 %v6952, %v6944
    %v7201 = vpack.c.b16 %v6953, %v6945
    %v7202 = vpack.c.b16 %v6954, %v6946
    %v7203 = vpack.c.b16 %v6955, %v6947
    %v7204 = vpack.c.b16 %v6956, %v6948
    %v7205 = vpack.c.b16 %v6957, %v6949
    %v7206 = vpack.c.b16 %v6966, %v6958
    %v7207 = vpack.c.b16 %v6967, %v6959
    %v7208 = vpack.c.b16 %v6968, %v6960
    %v7209 = vpack.c.b16 %v6969, %v6961
    %v7210 = vpack.c.b16 %v6970, %v6962
    %v7211 = vpack.c.b16 %v6971, %v6963
    %v7212 = vpack.c.b16 %v6972, %v6964
    %v7213 = vpack.c.b16 %v6973, %v6965
    %v7214 = vpack.c.b16 %v6982, %v6974
    %v7215 = vpack.c.b16 %v6983, %v6975
    %v7216 = vpack.c.b16 %v6984, %v6976
    %v7217 = vpack.c.b16 %v6985, %v6977
    %v7218 = vpack.c.b16 %v6986, %v6978
    %v7219 = vpack.c.b16 %v6987, %v6979
    %v7220 = vpack.c.b16 %v6988, %v6980
    %v7221 = vpack.c.b16 %v6989, %v6981
    %v7222 = vpack.c.b16 %v6998, %v6990
    %v7223 = vpack.c.b16 %v6999, %v6991
    %v7224 = vpack.c.b16 %v7000, %v6992
    %v7225 = vpack.c.b16 %v7001, %v6993
    %v7226 = vpack.c.b16 %v7002, %v6994
    %v7227 = vpack.c.b16 %v7003, %v6995
    %v7228 = vpack.c.b16 %v7004, %v6996
    %v7229 = vpack.c.b16 %v7005, %v6997
    %v7230 = vpack.c.b16 %v7014, %v7006
    %v7231 = vpack.c.b16 %v7015, %v7007
    %v7232 = vpack.c.b16 %v7016, %v7008
    %v7233 = vpack.c.b16 %v7017, %v7009
    %v7234 = vpack.c.b16 %v7018, %v7010
    %v7235 = vpack.c.b16 %v7019, %v7011
    %v7236 = vpack.c.b16 %v7020, %v7012
    %v7237 = vpack.c.b16 %v7021, %v7013
    %v7238 = vpack.c.b16 %v7030, %v7022
    %v7239 = vpack.c.b16 %v7031, %v7023
    %v7240 = vpack.c.b16 %v7032, %v7024
    %v7241 = vpack.c.b16 %v7033, %v7025
    %v7242 = vpack.c.b16 %v7034, %v7026
    %v7243 = vpack.c.b16 %v7035, %v7027
    %v7244 = vpack.c.b16 %v7036, %v7028
    %v7245 = vpack.c.b16 %v7037, %v7029
    %v7246 = vpack.c.b16 %v7046, %v7038
    %v7247 = vpack.c.b16 %v7047, %v7039
    %v7248 = vpack.c.b16 %v7048, %v7040
    %v7249 = vpack.c.b16 %v7049, %v7041
    %v7250 = vpack.c.b16 %v7050, %v7042
    %v7251 = vpack.c.b16 %v7051, %v7043
    %v7252 = vpack.c.b16 %v7052, %v7044
    %v7253 = vpack.c.b16 %v7053, %v7045
    %v7254 = vpack.c.b16 %v7062, %v7054
    %v7255 = vpack.c.b16 %v7063, %v7055
    %v7256 = vpack.c.b16 %v7064, %v7056
    %v7257 = vpack.c.b16 %v7065, %v7057
    %v7258 = vpack.c.b16 %v7066, %v7058
    %v7259 = vpack.c.b16 %v7067, %v7059
    %v7260 = vpack.c.b16 %v7068, %v7060
    %v7261 = vpack.c.b16 %v7069, %v7061
    %v7262 = vpack.c.b16 %v7078, %v7070
    %v7263 = vpack.c.b16 %v7079, %v7071
    %v7264 = vpack.c.b16 %v7080, %v7072
    %v7265 = vpack.c.b16 %v7081, %v7073
    %v7266 = vpack.c.b16 %v7082, %v7074
    %v7267 = vpack.c.b16 %v7083, %v7075
    %v7268 = vpack.c.b16 %v7084, %v7076
    %v7269 = vpack.c.b16 %v7085, %v7077
    %v7270 = vpack.c.b16 %v7094, %v7086
    %v7271 = vpack.c.b16 %v7095, %v7087
    %v7272 = vpack.c.b16 %v7096, %v7088
    %v7273 = vpack.c.b16 %v7097, %v7089
    %v7274 = vpack.c.b16 %v7098, %v7090
    %v7275 = vpack.c.b16 %v7099, %v7091
    %v7276 = vpack.c.b16 %v7100, %v7092
    %v7277 = vpack.c.b16 %v7101, %v7093
    %v7278 = vpack.c.b16 %v7110, %v7102
    %v7279 = vpack.c.b16 %v7111, %v7103
    %v7280 = vpack.c.b16 %v7112, %v7104
    %v7281 = vpack.c.b16 %v7113, %v7105
    %v7282 = vpack.c.b16 %v7114, %v7106
    %v7283 = vpack.c.b16 %v7115, %v7107
    %v7284 = vpack.c.b16 %v7116, %v7108
    %v7285 = vpack.c.b16 %v7117, %v7109
    %v7286 = vpack.c.b16 %v7126, %v7118
    %v7287 = vpack.c.b16 %v7127, %v7119
    %v7288 = vpack.c.b16 %v7128, %v7120
    %v7289 = vpack.c.b16 %v7129, %v7121
    %v7290 = vpack.c.b16 %v7130, %v7122
    %v7291 = vpack.c.b16 %v7131, %v7123
    %v7292 = vpack.c.b16 %v7132, %v7124
    %v7293 = vpack.c.b16 %v7133, %v7125
    %v7294 = vpack.c.b16 %v7142, %v7134
    %v7295 = vpack.c.b16 %v7143, %v7135
    %v7296 = vpack.c.b16 %v7144, %v7136
    %v7297 = vpack.c.b16 %v7145, %v7137
    %v7298 = vpack.c.b16 %v7146, %v7138
    %v7299 = vpack.c.b16 %v7147, %v7139
    %v7300 = vpack.c.b16 %v7148, %v7140
    %v7301 = vpack.c.b16 %v7149, %v7141
    %v7302 = vpack.c.b16 %v7158, %v7150
    %v7303 = vpack.c.b16 %v7159, %v7151
    %v7304 = vpack.c.b16 %v7160, %v7152
    %v7305 = vpack.c.b16 %v7161, %v7153
    %v7306 = vpack.c.b16 %v7162, %v7154
    %v7307 = vpack.c.b16 %v7163, %v7155
    %v7308 = vpack.c.b16 %v7164, %v7156
    %v7309 = vpack.c.b16 %v7165, %v7157
    %v7310 = vpack.c.b16 %v7174, %v7166
    %v7311 = vpack.c.b16 %v7175, %v7167
    %v7312 = vpack.c.b16 %v7176, %v7168
    %v7313 = vpack.c.b16 %v7177, %v7169
    %v7314 = vpack.c.b16 %v7178, %v7170
    %v7315 = vpack.c.b16 %v7179, %v7171
    %v7316 = vpack.c.b16 %v7180, %v7172
    %v7317 = vpack.c.b16 %v7181, %v7173
    %v7318 = vpack.c.b16 %v7190, %v7182
    %v7319 = vpack.c.b16 %v7191, %v7183
    %v7320 = vpack.c.b16 %v7192, %v7184
    %v7321 = vpack.c.b16 %v7193, %v7185
    %v7322 = vpack.c.b16 %v7194, %v7186
    %v7323 = vpack.c.b16 %v7195, %v7187
    %v7324 = vpack.c.b16 %v7196, %v7188
    %v7325 = vpack.c.b16 %v7197, %v7189
    %7454 = vmatprep.subr.bf16.mxu0 %v7199
    %7455 = vmatpush1.bf16.msra.mxu0 %v7198
    %7456 = vmatprep.subr.bf16.mxu0 %v7207
    %7457 = vmatpush1.bf16.msra.mxu0 %v7206
    %7458 = vmatprep.subr.bf16.mxu0 %v7215
    %7459 = vmatpush1.bf16.msra.mxu0 %v7214
    %7460 = vmatprep.subr.bf16.mxu0 %v7223
    %7461 = vmatpush1.bf16.msra.mxu0 %v7222
    %7462 = vmatprep.subr.bf16.mxu0 %v7231
    %7463 = vmatpush1.bf16.msra.mxu0 %v7230
    %7464 = vmatprep.subr.bf16.mxu0 %v7239
    %7465 = vmatpush1.bf16.msra.mxu0 %v7238
    %7466 = vmatprep.subr.bf16.mxu0 %v7247
    %7467 = vmatpush1.bf16.msra.mxu0 %v7246
    %7468 = vmatprep.subr.bf16.mxu0 %v7255
    %7469 = vmatpush1.bf16.msra.mxu0 %v7254
    %7470 = vmatprep.subr.bf16.mxu0 %v7263
    %7471 = vmatpush1.bf16.msra.mxu0 %v7262
    %7472 = vmatprep.subr.bf16.mxu0 %v7271
    %7473 = vmatpush1.bf16.msra.mxu0 %v7270
    %7474 = vmatprep.subr.bf16.mxu0 %v7279
    %7475 = vmatpush1.bf16.msra.mxu0 %v7278
    %7476 = vmatprep.subr.bf16.mxu0 %v7287
    %7477 = vmatpush1.bf16.msra.mxu0 %v7286
    %7478 = vmatprep.subr.bf16.mxu0 %v7295
    %7479 = vmatpush1.bf16.msra.mxu0 %v7294
    %7480 = vmatprep.subr.bf16.mxu0 %v7303
    %7481 = vmatpush1.bf16.msra.mxu0 %v7302
    %7482 = vmatprep.subr.bf16.mxu0 %v7311
    %7483 = vmatpush1.bf16.msra.mxu0 %v7310
    %7484 = vmatprep.subr.bf16.mxu0 %v7319
    %7485 = vmatpush1.bf16.msra.mxu0 %v7318
    %7486 = vmatprep.mubr.bf16.mxu0 %v6685
    %7487 = vmatmul.mubr.bf16.gmra.mrb[0].mxu0 %v6684
    %v7488 = vpop.f32.mrb[0].mxu0
    %v7489 = vadd.f32 0.0, %v7488
    %v7490 = vpop.f32.mrb[0].mxu0
    %v7491 = vadd.f32 0.0, %v7490
    %v7492 = vpop.f32.mrb[0].mxu0
    %v7493 = vpop.f32.mrb[0].mxu0
    %7494 = vdwg.mxu0
    %7495 = vmatprep.subr.bf16.mxu0 %v7201
    %7496 = vmatpush1.bf16.msra.mxu0 %v7200
    %7497 = vmatprep.subr.bf16.mxu0 %v7209
    %7498 = vmatpush1.bf16.msra.mxu0 %v7208
    %7499 = vmatprep.subr.bf16.mxu0 %v7217
    %7500 = vmatpush1.bf16.msra.mxu0 %v7216
    %7501 = vmatprep.subr.bf16.mxu0 %v7225
    %7502 = vmatpush1.bf16.msra.mxu0 %v7224
    %7503 = vmatprep.subr.bf16.mxu0 %v7233
    %7504 = vmatpush1.bf16.msra.mxu0 %v7232
    %7505 = vmatprep.subr.bf16.mxu0 %v7241
    %7506 = vmatpush1.bf16.msra.mxu0 %v7240
    %7507 = vmatprep.subr.bf16.mxu0 %v7249
    %7508 = vmatpush1.bf16.msra.mxu0 %v7248
    %7509 = vmatprep.subr.bf16.mxu0 %v7257
    %7510 = vmatpush1.bf16.msra.mxu0 %v7256
    %7511 = vmatprep.subr.bf16.mxu0 %v7265
    %7512 = vmatpush1.bf16.msra.mxu0 %v7264
    %7513 = vmatprep.subr.bf16.mxu0 %v7273
    %7514 = vmatpush1.bf16.msra.mxu0 %v7272
    %7515 = vmatprep.subr.bf16.mxu0 %v7281
    %7516 = vmatpush1.bf16.msra.mxu0 %v7280
    %7517 = vmatprep.subr.bf16.mxu0 %v7289
    %7518 = vmatpush1.bf16.msra.mxu0 %v7288
    %7519 = vmatprep.subr.bf16.mxu0 %v7297
    %7520 = vmatpush1.bf16.msra.mxu0 %v7296
    %7521 = vmatprep.subr.bf16.mxu0 %v7305
    %7522 = vmatpush1.bf16.msra.mxu0 %v7304
    %7523 = vmatprep.subr.bf16.mxu0 %v7313
    %7524 = vmatpush1.bf16.msra.mxu0 %v7312
    %7525 = vmatprep.subr.bf16.mxu0 %v7321
    %7526 = vmatpush1.bf16.msra.mxu0 %v7320
    %7527 = vmatprep.mubr.bf16.mxu0 %v6685
    %7528 = vmatmul.mubr.bf16.gmra.mrb[0].mxu0 %v6684
    %v7529 = vpop.f32.mrb[0].mxu0
    %v7530 = vadd.f32 0.0, %v7529
    %v7531 = vpop.f32.mrb[0].mxu0
    %v7532 = vadd.f32 0.0, %v7531
    %v7533 = vpop.f32.mrb[0].mxu0
    %v7534 = vpop.f32.mrb[0].mxu0
    %7535 = vdwg.mxu0
    %7536 = vmatprep.subr.bf16.mxu0 %v7203
    %7537 = vmatpush1.bf16.msra.mxu0 %v7202
    %7538 = vmatprep.subr.bf16.mxu0 %v7211
    %7539 = vmatpush1.bf16.msra.mxu0 %v7210
    %7540 = vmatprep.subr.bf16.mxu0 %v7219
    %7541 = vmatpush1.bf16.msra.mxu0 %v7218
    %7542 = vmatprep.subr.bf16.mxu0 %v7227
    %7543 = vmatpush1.bf16.msra.mxu0 %v7226
    %7544 = vmatprep.subr.bf16.mxu0 %v7235
    %7545 = vmatpush1.bf16.msra.mxu0 %v7234
    %7546 = vmatprep.subr.bf16.mxu0 %v7243
    %7547 = vmatpush1.bf16.msra.mxu0 %v7242
    %7548 = vmatprep.subr.bf16.mxu0 %v7251
    %7549 = vmatpush1.bf16.msra.mxu0 %v7250
    %7550 = vmatprep.subr.bf16.mxu0 %v7259
    %7551 = vmatpush1.bf16.msra.mxu0 %v7258
    %7552 = vmatprep.subr.bf16.mxu0 %v7267
    %7553 = vmatpush1.bf16.msra.mxu0 %v7266
    %7554 = vmatprep.subr.bf16.mxu0 %v7275
    %7555 = vmatpush1.bf16.msra.mxu0 %v7274
    %7556 = vmatprep.subr.bf16.mxu0 %v7283
    %7557 = vmatpush1.bf16.msra.mxu0 %v7282
    %7558 = vmatprep.subr.bf16.mxu0 %v7291
    %7559 = vmatpush1.bf16.msra.mxu0 %v7290
    %7560 = vmatprep.subr.bf16.mxu0 %v7299
    %7561 = vmatpush1.bf16.msra.mxu0 %v7298
    %7562 = vmatprep.subr.bf16.mxu0 %v7307
    %7563 = vmatpush1.bf16.msra.mxu0 %v7306
    %7564 = vmatprep.subr.bf16.mxu0 %v7315
    %7565 = vmatpush1.bf16.msra.mxu0 %v7314
    %7566 = vmatprep.subr.bf16.mxu0 %v7323
    %7567 = vmatpush1.bf16.msra.mxu0 %v7322
    %7568 = vmatprep.mubr.bf16.mxu0 %v6685
    %7569 = vmatmul.mubr.bf16.gmra.mrb[0].mxu0 %v6684
    %v7570 = vpop.f32.mrb[0].mxu0
    %v7571 = vadd.f32 0.0, %v7570
    %v7572 = vpop.f32.mrb[0].mxu0
    %v7573 = vadd.f32 0.0, %v7572
    %v7574 = vpop.f32.mrb[0].mxu0
    %v7575 = vpop.f32.mrb[0].mxu0
    %7576 = vdwg.mxu0
    %7577 = vmatprep.subr.bf16.mxu0 %v7205
    %7578 = vmatpush1.bf16.msra.mxu0 %v7204
    %7579 = vmatprep.subr.bf16.mxu0 %v7213
    %7580 = vmatpush1.bf16.msra.mxu0 %v7212
    %7581 = vmatprep.subr.bf16.mxu0 %v7221
    %7582 = vmatpush1.bf16.msra.mxu0 %v7220
    %7583 = vmatprep.subr.bf16.mxu0 %v7229
    %7584 = vmatpush1.bf16.msra.mxu0 %v7228
    %7585 = vmatprep.subr.bf16.mxu0 %v7237
    %7586 = vmatpush1.bf16.msra.mxu0 %v7236
    %7587 = vmatprep.subr.bf16.mxu0 %v7245
    %7588 = vmatpush1.bf16.msra.mxu0 %v7244
    %7589 = vmatprep.subr.bf16.mxu0 %v7253
    %7590 = vmatpush1.bf16.msra.mxu0 %v7252
    %7591 = vmatprep.subr.bf16.mxu0 %v7261
    %7592 = vmatpush1.bf16.msra.mxu0 %v7260
    %7593 = vmatprep.subr.bf16.mxu0 %v7269
    %7594 = vmatpush1.bf16.msra.mxu0 %v7268
    %7595 = vmatprep.subr.bf16.mxu0 %v7277
    %7596 = vmatpush1.bf16.msra.mxu0 %v7276
    %7597 = vmatprep.subr.bf16.mxu0 %v7285
    %7598 = vmatpush1.bf16.msra.mxu0 %v7284
    %7599 = vmatprep.subr.bf16.mxu0 %v7293
    %7600 = vmatpush1.bf16.msra.mxu0 %v7292
    %7601 = vmatprep.subr.bf16.mxu0 %v7301
    %7602 = vmatpush1.bf16.msra.mxu0 %v7300
    %7603 = vmatprep.subr.bf16.mxu0 %v7309
    %7604 = vmatpush1.bf16.msra.mxu0 %v7308
    %7605 = vmatprep.subr.bf16.mxu0 %v7317
    %7606 = vmatpush1.bf16.msra.mxu0 %v7316
    %7607 = vmatprep.subr.bf16.mxu0 %v7325
    %7608 = vmatpush1.bf16.msra.mxu0 %v7324
    %7609 = vmatprep.mubr.bf16.mxu0 %v6685
    %7610 = vmatmul.mubr.bf16.gmra.mrb[0].mxu0 %v6684
    %v7611 = vpop.f32.mrb[0].mxu0
    %v7612 = vadd.f32 0.0, %v7611
    %v7613 = vpop.f32.mrb[0].mxu0
    %v7614 = vadd.f32 0.0, %v7613
    %v7615 = vpop.f32.mrb[0].mxu0
    %v7616 = vpop.f32.mrb[0].mxu0
    %7617 = vdwg.mxu0
    %s7618 = scalar_lea.vmem [#allocation4], 24
    %v7619 = vld [vmem:[%s7618] sm:$0xf]
    %v7620 = vunpack.c.l.bf16 %v7619
    %v7625 = vcombine.low %v7489, %v7491
    %v7626 = vcombine.low %v7530, %v7532
    %v7628 = vunpack.c.l.s4 1983009808
    %v7629 = vunpack.c.0.s8 %v7628
    %v7630 = vlaneseq
    %v7631 = vshrl.u32 %v7630, 7
    %v7632 = vsub.s32 %v7629, %v7631
    %v7633 = vrot.slane %v7625, %v7632
    %v7635 = vunpack.c.l.s4 1983009808
    %v7636 = vunpack.c.0.s8 %v7635
    %v7637 = vlaneseq
    %v7638 = vshrl.u32 %v7637, 7
    %v7639 = vsub.s32 %v7636, %v7638
    %v7640 = vrot.slane %v7626, %v7639
    %v7641 = vcombine.low %v7633, %v7640
    %v7643 = vadd.f32 %v7620, %v7641
    %v7644 = vmul.f32 %v7643, 0.5
    %v7645 = vtanh.pop %v7644
    %v7646 = vadd.f32 %v7645, 1.0
    %v7647 = vmul.f32 %v7646, 0.5
    %v7649 = vrot.slane %v7643, 2
    %v7651 = vmul.f32 %v7649, 0.5
    %v7652 = vtanh.pop %v7651
    %v7653 = vadd.f32 %v7652, 1.0
    %v7654 = vmul.f32 %v7653, 0.5
    %v7655 = vrot.slane %v7643, 4
    %v7657 = vtanh.pop %v7655
    %v7658 = vrot.slane %v7643, 6
    %v7660 = vmul.f32 %v7658, 0.5
    %v7661 = vtanh.pop %v7660
    %v7662 = vadd.f32 %v7661, 1.0
    %v7663 = vmul.f32 %v7662, 0.5
    %v7664 = vld [vmem:[#allocation3] sm:$0x3]
    %v7665 = vmul.f32 %v7654, %v7664
    %v7666 = vmul.f32 %v7647, %v7657
    %v7667 = vadd.f32 %v7665, %v7666
    %v7668 = vtanh.pop %v7667
    %v7669 = vmul.f32 %v7663, %v7668
    %s7670 = scalar_lea.vmem %s3, 12
    %v7671 = vld [vmem:[%s7670] sm:$0x3]
    %7673 = vset.pattern.permute.xlu0 0
    %7674 = vperm.xlu0 %7673, %v7671
    %v7675 = vpop.permute.xlu0 %7674
    %v7677 = vmul.f32 %v7667, %v7675
    %7678 = vst [vmem:[#allocation3] sm:$0x3] %v7677
    %v7679 = vmul.f32 %v7669, %v7675
    %7680 = vst [vmem:[#allocation2] sm:$0x3] %v7679
    %v7681 = vpack.c.bf16 %v7679, %v7679
    %s7682 = scalar_lea.vmem %s5, 6
    %7683 = vst [vmem:[%s7682] sm:$0x1] %v7681
    %s7684 = scalar_lea.vmem [#allocation5], 4
    %v7685 = vld [vmem:[%s7684] sm:$0xf]
    %v7686 = vunpack.c.l.bf16 %v7685
    %v7691 = vcombine.low %v7571, %v7573
    %v7692 = vcombine.low %v7612, %v7614
    %v7694 = vunpack.c.l.s4 1983009808
    %v7695 = vunpack.c.0.s8 %v7694
    %v7696 = vlaneseq
    %v7697 = vshrl.u32 %v7696, 7
    %v7698 = vsub.s32 %v7695, %v7697
    %v7699 = vrot.slane %v7691, %v7698
    %v7701 = vunpack.c.l.s4 1983009808
    %v7702 = vunpack.c.0.s8 %v7701
    %v7703 = vlaneseq
    %v7704 = vshrl.u32 %v7703, 7
    %v7705 = vsub.s32 %v7702, %v7704
    %v7706 = vrot.slane %v7692, %v7705
    %v7707 = vcombine.low %v7699, %v7706
    %v7709 = vadd.f32 %v7686, %v7707
    %v7710 = vmul.f32 %v7709, 0.5
    %v7711 = vtanh.pop %v7710
    %v7712 = vadd.f32 %v7711, 1.0
    %v7713 = vmul.f32 %v7712, 0.5
    %v7715 = vrot.slane %v7709, 2
    %v7717 = vmul.f32 %v7715, 0.5
    %v7718 = vtanh.pop %v7717
    %v7719 = vadd.f32 %v7718, 1.0
    %v7720 = vmul.f32 %v7719, 0.5
    %v7721 = vrot.slane %v7709, 4
    %v7723 = vtanh.pop %v7721
    %v7724 = vrot.slane %v7709, 6
    %v7726 = vmul.f32 %v7724, 0.5
    %v7727 = vtanh.pop %v7726
    %v7728 = vadd.f32 %v7727, 1.0
    %v7729 = vmul.f32 %v7728, 0.5
    %v7730 = vld [vmem:[#allocation3 + $0x2] sm:$0x3]
    %v7731 = vmul.f32 %v7720, %v7730
    %v7732 = vmul.f32 %v7713, %v7723
    %v7733 = vadd.f32 %v7731, %v7732
    %v7734 = vtanh.pop %v7733
    %v7735 = vmul.f32 %v7729, %v7734
    %s7736 = scalar_lea.vmem %s191, 2
    %v7737 = vld [vmem:[%s7736] sm:$0x3]
    %7739 = vset.pattern.permute.xlu0 0
    %7740 = vperm.xlu0 %7739, %v7737
    %v7741 = vpop.permute.xlu0 %7740
    %v7743 = vmul.f32 %v7733, %v7741
    %7744 = vst [vmem:[#allocation3 + $0x2] sm:$0x3] %v7743
    %v7745 = vmul.f32 %v7735, %v7741
    %7746 = vst [vmem:[#allocation2 + $0x2] sm:$0x3] %v7745
    %v7747 = vpack.c.bf16 %v7745, %v7745
    %s7748 = scalar_lea.vmem %s198, 1
    %7749 = vst [vmem:[%s7748] sm:$0x1] %v7747
    %v7750 = vld [vmem:[#allocation2] sm:$0xf]
    %v7753 = vunpack.c.l.s4 1983009808
    %v7754 = vunpack.c.0.s8 %v7753
    %v7755 = vlaneseq
    %v7756 = vshrl.u32 %v7755, 7
    %v7757 = vsub.s32 %v7754, %v7756
    %v7758 = vrot.slane %v7750, %v7757
    %v7759 = vcombine.high %v7758, %v7758
    %v7762 = vpack.c.bf16 %v7758, %v7758
    %v7763 = vpack.c.bf16 %v7759, %v7759
    %v7764 = vld [vmem:[%s2] sm:$0xff]
    %v7765 = vld [vmem:[%s2 + $0x8] sm:$0xff]
    %v7766 = vld [vmem:[%s2 + $0x10] sm:$0xff]
    %v7767 = vld [vmem:[%s2 + $0x18] sm:$0xff]
    %v7768 = vld [vmem:[%s2 + $0x20] sm:$0xff]
    %v7769 = vld [vmem:[%s2 + $0x28] sm:$0xff]
    %v7770 = vld [vmem:[%s2 + $0x30] sm:$0xff]
    %v7771 = vld [vmem:[%s2 + $0x38] sm:$0xff]
    %v7772 = vld [vmem:[%s2 + $0x40] sm:$0xff]
    %v7773 = vld [vmem:[%s2 + $0x48] sm:$0xff]
    %v7774 = vld [vmem:[%s2 + $0x50] sm:$0xff]
    %v7775 = vld [vmem:[%s2 + $0x58] sm:$0xff]
    %v7776 = vld [vmem:[%s2 + $0x60] sm:$0xff]
    %v7777 = vld [vmem:[%s2 + $0x68] sm:$0xff]
    %v7778 = vld [vmem:[%s2 + $0x70] sm:$0xff]
    %v7779 = vld [vmem:[%s2 + $0x78] sm:$0xff]
    %v7780 = vld [vmem:[%s2 + $0x80] sm:$0xff]
    %v7781 = vld [vmem:[%s2 + $0x88] sm:$0xff]
    %v7782 = vld [vmem:[%s2 + $0x90] sm:$0xff]
    %v7783 = vld [vmem:[%s2 + $0x98] sm:$0xff]
    %v7784 = vld [vmem:[%s2 + $0xa0] sm:$0xff]
    %v7785 = vld [vmem:[%s2 + $0xa8] sm:$0xff]
    %v7786 = vld [vmem:[%s2 + $0xb0] sm:$0xff]
    %v7787 = vld [vmem:[%s2 + $0xb8] sm:$0xff]
    %v7788 = vld [vmem:[%s2 + $0xc0] sm:$0xff]
    %v7789 = vld [vmem:[%s2 + $0xc8] sm:$0xff]
    %v7790 = vld [vmem:[%s2 + $0xd0] sm:$0xff]
    %v7791 = vld [vmem:[%s2 + $0xd8] sm:$0xff]
    %v7792 = vld [vmem:[%s2 + $0xe0] sm:$0xff]
    %v7793 = vld [vmem:[%s2 + $0xe8] sm:$0xff]
    %v7794 = vld [vmem:[%s2 + $0xf0] sm:$0xff]
    %v7795 = vld [vmem:[%s2 + $0xf8] sm:$0xff]
    %v7796 = vld [vmem:[%s2 + $0x100] sm:$0xff]
    %v7797 = vld [vmem:[%s2 + $0x108] sm:$0xff]
    %v7798 = vld [vmem:[%s2 + $0x110] sm:$0xff]
    %v7799 = vld [vmem:[%s2 + $0x118] sm:$0xff]
    %v7800 = vld [vmem:[%s2 + $0x120] sm:$0xff]
    %v7801 = vld [vmem:[%s2 + $0x128] sm:$0xff]
    %v7802 = vld [vmem:[%s2 + $0x130] sm:$0xff]
    %v7803 = vld [vmem:[%s2 + $0x138] sm:$0xff]
    %v7804 = vld [vmem:[%s2 + $0x140] sm:$0xff]
    %v7805 = vld [vmem:[%s2 + $0x148] sm:$0xff]
    %v7806 = vld [vmem:[%s2 + $0x150] sm:$0xff]
    %v7807 = vld [vmem:[%s2 + $0x158] sm:$0xff]
    %v7808 = vld [vmem:[%s2 + $0x160] sm:$0xff]
    %v7809 = vld [vmem:[%s2 + $0x168] sm:$0xff]
    %v7810 = vld [vmem:[%s2 + $0x170] sm:$0xff]
    %v7811 = vld [vmem:[%s2 + $0x178] sm:$0xff]
    %v7812 = vld [vmem:[%s2 + $0x180] sm:$0xff]
    %v7813 = vld [vmem:[%s2 + $0x188] sm:$0xff]
    %v7814 = vld [vmem:[%s2 + $0x190] sm:$0xff]
    %v7815 = vld [vmem:[%s2 + $0x198] sm:$0xff]
    %v7816 = vld [vmem:[%s2 + $0x1a0] sm:$0xff]
    %v7817 = vld [vmem:[%s2 + $0x1a8] sm:$0xff]
    %v7818 = vld [vmem:[%s2 + $0x1b0] sm:$0xff]
    %v7819 = vld [vmem:[%s2 + $0x1b8] sm:$0xff]
    %v7820 = vld [vmem:[%s2 + $0x1c0] sm:$0xff]
    %v7821 = vld [vmem:[%s2 + $0x1c8] sm:$0xff]
    %v7822 = vld [vmem:[%s2 + $0x1d0] sm:$0xff]
    %v7823 = vld [vmem:[%s2 + $0x1d8] sm:$0xff]
    %v7824 = vld [vmem:[%s2 + $0x1e0] sm:$0xff]
    %v7825 = vld [vmem:[%s2 + $0x1e8] sm:$0xff]
    %v7826 = vld [vmem:[%s2 + $0x1f0] sm:$0xff]
    %v7827 = vld [vmem:[%s2 + $0x1f8] sm:$0xff]
    %v7828 = vld [vmem:[%s2 + $0x200] sm:$0xff]
    %v7829 = vld [vmem:[%s2 + $0x208] sm:$0xff]
    %v7830 = vld [vmem:[%s2 + $0x210] sm:$0xff]
    %v7831 = vld [vmem:[%s2 + $0x218] sm:$0xff]
    %v7832 = vld [vmem:[%s2 + $0x220] sm:$0xff]
    %v7833 = vld [vmem:[%s2 + $0x228] sm:$0xff]
    %v7834 = vld [vmem:[%s2 + $0x230] sm:$0xff]
    %v7835 = vld [vmem:[%s2 + $0x238] sm:$0xff]
    %v7836 = vld [vmem:[%s2 + $0x240] sm:$0xff]
    %v7837 = vld [vmem:[%s2 + $0x248] sm:$0xff]
    %v7838 = vld [vmem:[%s2 + $0x250] sm:$0xff]
    %v7839 = vld [vmem:[%s2 + $0x258] sm:$0xff]
    %v7840 = vld [vmem:[%s2 + $0x260] sm:$0xff]
    %v7841 = vld [vmem:[%s2 + $0x268] sm:$0xff]
    %v7842 = vld [vmem:[%s2 + $0x270] sm:$0xff]
    %v7843 = vld [vmem:[%s2 + $0x278] sm:$0xff]
    %v7844 = vld [vmem:[%s2 + $0x280] sm:$0xff]
    %v7845 = vld [vmem:[%s2 + $0x288] sm:$0xff]
    %v7846 = vld [vmem:[%s2 + $0x290] sm:$0xff]
    %v7847 = vld [vmem:[%s2 + $0x298] sm:$0xff]
    %v7848 = vld [vmem:[%s2 + $0x2a0] sm:$0xff]
    %v7849 = vld [vmem:[%s2 + $0x2a8] sm:$0xff]
    %v7850 = vld [vmem:[%s2 + $0x2b0] sm:$0xff]
    %v7851 = vld [vmem:[%s2 + $0x2b8] sm:$0xff]
    %v7852 = vld [vmem:[%s2 + $0x2c0] sm:$0xff]
    %v7853 = vld [vmem:[%s2 + $0x2c8] sm:$0xff]
    %v7854 = vld [vmem:[%s2 + $0x2d0] sm:$0xff]
    %v7855 = vld [vmem:[%s2 + $0x2d8] sm:$0xff]
    %v7856 = vld [vmem:[%s2 + $0x2e0] sm:$0xff]
    %v7857 = vld [vmem:[%s2 + $0x2e8] sm:$0xff]
    %v7858 = vld [vmem:[%s2 + $0x2f0] sm:$0xff]
    %v7859 = vld [vmem:[%s2 + $0x2f8] sm:$0xff]
    %v7860 = vld [vmem:[%s2 + $0x300] sm:$0xff]
    %v7861 = vld [vmem:[%s2 + $0x308] sm:$0xff]
    %v7862 = vld [vmem:[%s2 + $0x310] sm:$0xff]
    %v7863 = vld [vmem:[%s2 + $0x318] sm:$0xff]
    %v7864 = vld [vmem:[%s2 + $0x320] sm:$0xff]
    %v7865 = vld [vmem:[%s2 + $0x328] sm:$0xff]
    %v7866 = vld [vmem:[%s2 + $0x330] sm:$0xff]
    %v7867 = vld [vmem:[%s2 + $0x338] sm:$0xff]
    %v7868 = vld [vmem:[%s2 + $0x340] sm:$0xff]
    %v7869 = vld [vmem:[%s2 + $0x348] sm:$0xff]
    %v7870 = vld [vmem:[%s2 + $0x350] sm:$0xff]
    %v7871 = vld [vmem:[%s2 + $0x358] sm:$0xff]
    %v7872 = vld [vmem:[%s2 + $0x360] sm:$0xff]
    %v7873 = vld [vmem:[%s2 + $0x368] sm:$0xff]
    %v7874 = vld [vmem:[%s2 + $0x370] sm:$0xff]
    %v7875 = vld [vmem:[%s2 + $0x378] sm:$0xff]
    %v7876 = vld [vmem:[%s2 + $0x380] sm:$0xff]
    %v7877 = vld [vmem:[%s2 + $0x388] sm:$0xff]
    %v7878 = vld [vmem:[%s2 + $0x390] sm:$0xff]
    %v7879 = vld [vmem:[%s2 + $0x398] sm:$0xff]
    %v7880 = vld [vmem:[%s2 + $0x3a0] sm:$0xff]
    %v7881 = vld [vmem:[%s2 + $0x3a8] sm:$0xff]
    %v7882 = vld [vmem:[%s2 + $0x3b0] sm:$0xff]
    %v7883 = vld [vmem:[%s2 + $0x3b8] sm:$0xff]
    %v7884 = vld [vmem:[%s2 + $0x3c0] sm:$0xff]
    %v7885 = vld [vmem:[%s2 + $0x3c8] sm:$0xff]
    %v7886 = vld [vmem:[%s2 + $0x3d0] sm:$0xff]
    %v7887 = vld [vmem:[%s2 + $0x3d8] sm:$0xff]
    %v7888 = vld [vmem:[%s2 + $0x3e0] sm:$0xff]
    %v7889 = vld [vmem:[%s2 + $0x3e8] sm:$0xff]
    %v7890 = vld [vmem:[%s2 + $0x3f0] sm:$0xff]
    %v7891 = vld [vmem:[%s2 + $0x3f8] sm:$0xff]
    %v8020 = vunpack.c.l.b16 %v7764
    %v8021 = vunpack.c.h.b16 %v7764
    %v8022 = vunpack.c.l.b16 %v7765
    %v8023 = vunpack.c.h.b16 %v7765
    %v8024 = vunpack.c.l.b16 %v7766
    %v8025 = vunpack.c.h.b16 %v7766
    %v8026 = vunpack.c.l.b16 %v7767
    %v8027 = vunpack.c.h.b16 %v7767
    %v8028 = vunpack.c.l.b16 %v7768
    %v8029 = vunpack.c.h.b16 %v7768
    %v8030 = vunpack.c.l.b16 %v7769
    %v8031 = vunpack.c.h.b16 %v7769
    %v8032 = vunpack.c.l.b16 %v7770
    %v8033 = vunpack.c.h.b16 %v7770
    %v8034 = vunpack.c.l.b16 %v7771
    %v8035 = vunpack.c.h.b16 %v7771
    %v8036 = vunpack.c.l.b16 %v7772
    %v8037 = vunpack.c.h.b16 %v7772
    %v8038 = vunpack.c.l.b16 %v7773
    %v8039 = vunpack.c.h.b16 %v7773
    %v8040 = vunpack.c.l.b16 %v7774
    %v8041 = vunpack.c.h.b16 %v7774
    %v8042 = vunpack.c.l.b16 %v7775
    %v8043 = vunpack.c.h.b16 %v7775
    %v8044 = vunpack.c.l.b16 %v7776
    %v8045 = vunpack.c.h.b16 %v7776
    %v8046 = vunpack.c.l.b16 %v7777
    %v8047 = vunpack.c.h.b16 %v7777
    %v8048 = vunpack.c.l.b16 %v7778
    %v8049 = vunpack.c.h.b16 %v7778
    %v8050 = vunpack.c.l.b16 %v7779
    %v8051 = vunpack.c.h.b16 %v7779
    %v8052 = vunpack.c.l.b16 %v7780
    %v8053 = vunpack.c.h.b16 %v7780
    %v8054 = vunpack.c.l.b16 %v7781
    %v8055 = vunpack.c.h.b16 %v7781
    %v8056 = vunpack.c.l.b16 %v7782
    %v8057 = vunpack.c.h.b16 %v7782
    %v8058 = vunpack.c.l.b16 %v7783
    %v8059 = vunpack.c.h.b16 %v7783
    %v8060 = vunpack.c.l.b16 %v7784
    %v8061 = vunpack.c.h.b16 %v7784
    %v8062 = vunpack.c.l.b16 %v7785
    %v8063 = vunpack.c.h.b16 %v7785
    %v8064 = vunpack.c.l.b16 %v7786
    %v8065 = vunpack.c.h.b16 %v7786
    %v8066 = vunpack.c.l.b16 %v7787
    %v8067 = vunpack.c.h.b16 %v7787
    %v8068 = vunpack.c.l.b16 %v7788
    %v8069 = vunpack.c.h.b16 %v7788
    %v8070 = vunpack.c.l.b16 %v7789
    %v8071 = vunpack.c.h.b16 %v7789
    %v8072 = vunpack.c.l.b16 %v7790
    %v8073 = vunpack.c.h.b16 %v7790
    %v8074 = vunpack.c.l.b16 %v7791
    %v8075 = vunpack.c.h.b16 %v7791
    %v8076 = vunpack.c.l.b16 %v7792
    %v8077 = vunpack.c.h.b16 %v7792
    %v8078 = vunpack.c.l.b16 %v7793
    %v8079 = vunpack.c.h.b16 %v7793
    %v8080 = vunpack.c.l.b16 %v7794
    %v8081 = vunpack.c.h.b16 %v7794
    %v8082 = vunpack.c.l.b16 %v7795
    %v8083 = vunpack.c.h.b16 %v7795
    %v8084 = vunpack.c.l.b16 %v7796
    %v8085 = vunpack.c.h.b16 %v7796
    %v8086 = vunpack.c.l.b16 %v7797
    %v8087 = vunpack.c.h.b16 %v7797
    %v8088 = vunpack.c.l.b16 %v7798
    %v8089 = vunpack.c.h.b16 %v7798
    %v8090 = vunpack.c.l.b16 %v7799
    %v8091 = vunpack.c.h.b16 %v7799
    %v8092 = vunpack.c.l.b16 %v7800
    %v8093 = vunpack.c.h.b16 %v7800
    %v8094 = vunpack.c.l.b16 %v7801
    %v8095 = vunpack.c.h.b16 %v7801
    %v8096 = vunpack.c.l.b16 %v7802
    %v8097 = vunpack.c.h.b16 %v7802
    %v8098 = vunpack.c.l.b16 %v7803
    %v8099 = vunpack.c.h.b16 %v7803
    %v8100 = vunpack.c.l.b16 %v7804
    %v8101 = vunpack.c.h.b16 %v7804
    %v8102 = vunpack.c.l.b16 %v7805
    %v8103 = vunpack.c.h.b16 %v7805
    %v8104 = vunpack.c.l.b16 %v7806
    %v8105 = vunpack.c.h.b16 %v7806
    %v8106 = vunpack.c.l.b16 %v7807
    %v8107 = vunpack.c.h.b16 %v7807
    %v8108 = vunpack.c.l.b16 %v7808
    %v8109 = vunpack.c.h.b16 %v7808
    %v8110 = vunpack.c.l.b16 %v7809
    %v8111 = vunpack.c.h.b16 %v7809
    %v8112 = vunpack.c.l.b16 %v7810
    %v8113 = vunpack.c.h.b16 %v7810
    %v8114 = vunpack.c.l.b16 %v7811
    %v8115 = vunpack.c.h.b16 %v7811
    %v8116 = vunpack.c.l.b16 %v7812
    %v8117 = vunpack.c.h.b16 %v7812
    %v8118 = vunpack.c.l.b16 %v7813
    %v8119 = vunpack.c.h.b16 %v7813
    %v8120 = vunpack.c.l.b16 %v7814
    %v8121 = vunpack.c.h.b16 %v7814
    %v8122 = vunpack.c.l.b16 %v7815
    %v8123 = vunpack.c.h.b16 %v7815
    %v8124 = vunpack.c.l.b16 %v7816
    %v8125 = vunpack.c.h.b16 %v7816
    %v8126 = vunpack.c.l.b16 %v7817
    %v8127 = vunpack.c.h.b16 %v7817
    %v8128 = vunpack.c.l.b16 %v7818
    %v8129 = vunpack.c.h.b16 %v7818
    %v8130 = vunpack.c.l.b16 %v7819
    %v8131 = vunpack.c.h.b16 %v7819
    %v8132 = vunpack.c.l.b16 %v7820
    %v8133 = vunpack.c.h.b16 %v7820
    %v8134 = vunpack.c.l.b16 %v7821
    %v8135 = vunpack.c.h.b16 %v7821
    %v8136 = vunpack.c.l.b16 %v7822
    %v8137 = vunpack.c.h.b16 %v7822
    %v8138 = vunpack.c.l.b16 %v7823
    %v8139 = vunpack.c.h.b16 %v7823
    %v8140 = vunpack.c.l.b16 %v7824
    %v8141 = vunpack.c.h.b16 %v7824
    %v8142 = vunpack.c.l.b16 %v7825
    %v8143 = vunpack.c.h.b16 %v7825
    %v8144 = vunpack.c.l.b16 %v7826
    %v8145 = vunpack.c.h.b16 %v7826
    %v8146 = vunpack.c.l.b16 %v7827
    %v8147 = vunpack.c.h.b16 %v7827
    %v8148 = vunpack.c.l.b16 %v7828
    %v8149 = vunpack.c.h.b16 %v7828
    %v8150 = vunpack.c.l.b16 %v7829
    %v8151 = vunpack.c.h.b16 %v7829
    %v8152 = vunpack.c.l.b16 %v7830
    %v8153 = vunpack.c.h.b16 %v7830
    %v8154 = vunpack.c.l.b16 %v7831
    %v8155 = vunpack.c.h.b16 %v7831
    %v8156 = vunpack.c.l.b16 %v7832
    %v8157 = vunpack.c.h.b16 %v7832
    %v8158 = vunpack.c.l.b16 %v7833
    %v8159 = vunpack.c.h.b16 %v7833
    %v8160 = vunpack.c.l.b16 %v7834
    %v8161 = vunpack.c.h.b16 %v7834
    %v8162 = vunpack.c.l.b16 %v7835
    %v8163 = vunpack.c.h.b16 %v7835
    %v8164 = vunpack.c.l.b16 %v7836
    %v8165 = vunpack.c.h.b16 %v7836
    %v8166 = vunpack.c.l.b16 %v7837
    %v8167 = vunpack.c.h.b16 %v7837
    %v8168 = vunpack.c.l.b16 %v7838
    %v8169 = vunpack.c.h.b16 %v7838
    %v8170 = vunpack.c.l.b16 %v7839
    %v8171 = vunpack.c.h.b16 %v7839
    %v8172 = vunpack.c.l.b16 %v7840
    %v8173 = vunpack.c.h.b16 %v7840
    %v8174 = vunpack.c.l.b16 %v7841
    %v8175 = vunpack.c.h.b16 %v7841
    %v8176 = vunpack.c.l.b16 %v7842
    %v8177 = vunpack.c.h.b16 %v7842
    %v8178 = vunpack.c.l.b16 %v7843
    %v8179 = vunpack.c.h.b16 %v7843
    %v8180 = vunpack.c.l.b16 %v7844
    %v8181 = vunpack.c.h.b16 %v7844
    %v8182 = vunpack.c.l.b16 %v7845
    %v8183 = vunpack.c.h.b16 %v7845
    %v8184 = vunpack.c.l.b16 %v7846
    %v8185 = vunpack.c.h.b16 %v7846
    %v8186 = vunpack.c.l.b16 %v7847
    %v8187 = vunpack.c.h.b16 %v7847
    %v8188 = vunpack.c.l.b16 %v7848
    %v8189 = vunpack.c.h.b16 %v7848
    %v8190 = vunpack.c.l.b16 %v7849
    %v8191 = vunpack.c.h.b16 %v7849
    %v8192 = vunpack.c.l.b16 %v7850
    %v8193 = vunpack.c.h.b16 %v7850
    %v8194 = vunpack.c.l.b16 %v7851
    %v8195 = vunpack.c.h.b16 %v7851
    %v8196 = vunpack.c.l.b16 %v7852
    %v8197 = vunpack.c.h.b16 %v7852
    %v8198 = vunpack.c.l.b16 %v7853
    %v8199 = vunpack.c.h.b16 %v7853
    %v8200 = vunpack.c.l.b16 %v7854
    %v8201 = vunpack.c.h.b16 %v7854
    %v8202 = vunpack.c.l.b16 %v7855
    %v8203 = vunpack.c.h.b16 %v7855
    %v8204 = vunpack.c.l.b16 %v7856
    %v8205 = vunpack.c.h.b16 %v7856
    %v8206 = vunpack.c.l.b16 %v7857
    %v8207 = vunpack.c.h.b16 %v7857
    %v8208 = vunpack.c.l.b16 %v7858
    %v8209 = vunpack.c.h.b16 %v7858
    %v8210 = vunpack.c.l.b16 %v7859
    %v8211 = vunpack.c.h.b16 %v7859
    %v8212 = vunpack.c.l.b16 %v7860
    %v8213 = vunpack.c.h.b16 %v7860
    %v8214 = vunpack.c.l.b16 %v7861
    %v8215 = vunpack.c.h.b16 %v7861
    %v8216 = vunpack.c.l.b16 %v7862
    %v8217 = vunpack.c.h.b16 %v7862
    %v8218 = vunpack.c.l.b16 %v7863
    %v8219 = vunpack.c.h.b16 %v7863
    %v8220 = vunpack.c.l.b16 %v7864
    %v8221 = vunpack.c.h.b16 %v7864
    %v8222 = vunpack.c.l.b16 %v7865
    %v8223 = vunpack.c.h.b16 %v7865
    %v8224 = vunpack.c.l.b16 %v7866
    %v8225 = vunpack.c.h.b16 %v7866
    %v8226 = vunpack.c.l.b16 %v7867
    %v8227 = vunpack.c.h.b16 %v7867
    %v8228 = vunpack.c.l.b16 %v7868
    %v8229 = vunpack.c.h.b16 %v7868
    %v8230 = vunpack.c.l.b16 %v7869
    %v8231 = vunpack.c.h.b16 %v7869
    %v8232 = vunpack.c.l.b16 %v7870
    %v8233 = vunpack.c.h.b16 %v7870
    %v8234 = vunpack.c.l.b16 %v7871
    %v8235 = vunpack.c.h.b16 %v7871
    %v8236 = vunpack.c.l.b16 %v7872
    %v8237 = vunpack.c.h.b16 %v7872
    %v8238 = vunpack.c.l.b16 %v7873
    %v8239 = vunpack.c.h.b16 %v7873
    %v8240 = vunpack.c.l.b16 %v7874
    %v8241 = vunpack.c.h.b16 %v7874
    %v8242 = vunpack.c.l.b16 %v7875
    %v8243 = vunpack.c.h.b16 %v7875
    %v8244 = vunpack.c.l.b16 %v7876
    %v8245 = vunpack.c.h.b16 %v7876
    %v8246 = vunpack.c.l.b16 %v7877
    %v8247 = vunpack.c.h.b16 %v7877
    %v8248 = vunpack.c.l.b16 %v7878
    %v8249 = vunpack.c.h.b16 %v7878
    %v8250 = vunpack.c.l.b16 %v7879
    %v8251 = vunpack.c.h.b16 %v7879
    %v8252 = vunpack.c.l.b16 %v7880
    %v8253 = vunpack.c.h.b16 %v7880
    %v8254 = vunpack.c.l.b16 %v7881
    %v8255 = vunpack.c.h.b16 %v7881
    %v8256 = vunpack.c.l.b16 %v7882
    %v8257 = vunpack.c.h.b16 %v7882
    %v8258 = vunpack.c.l.b16 %v7883
    %v8259 = vunpack.c.h.b16 %v7883
    %v8260 = vunpack.c.l.b16 %v7884
    %v8261 = vunpack.c.h.b16 %v7884
    %v8262 = vunpack.c.l.b16 %v7885
    %v8263 = vunpack.c.h.b16 %v7885
    %v8264 = vunpack.c.l.b16 %v7886
    %v8265 = vunpack.c.h.b16 %v7886
    %v8266 = vunpack.c.l.b16 %v7887
    %v8267 = vunpack.c.h.b16 %v7887
    %v8268 = vunpack.c.l.b16 %v7888
    %v8269 = vunpack.c.h.b16 %v7888
    %v8270 = vunpack.c.l.b16 %v7889
    %v8271 = vunpack.c.h.b16 %v7889
    %v8272 = vunpack.c.l.b16 %v7890
    %v8273 = vunpack.c.h.b16 %v7890
    %v8274 = vunpack.c.l.b16 %v7891
    %v8275 = vunpack.c.h.b16 %v7891
    %v8276 = vpack.c.b16 %v8028, %v8020
    %v8277 = vpack.c.b16 %v8029, %v8021
    %v8278 = vpack.c.b16 %v8030, %v8022
    %v8279 = vpack.c.b16 %v8031, %v8023
    %v8280 = vpack.c.b16 %v8032, %v8024
    %v8281 = vpack.c.b16 %v8033, %v8025
    %v8282 = vpack.c.b16 %v8034, %v8026
    %v8283 = vpack.c.b16 %v8035, %v8027
    %v8284 = vpack.c.b16 %v8044, %v8036
    %v8285 = vpack.c.b16 %v8045, %v8037
    %v8286 = vpack.c.b16 %v8046, %v8038
    %v8287 = vpack.c.b16 %v8047, %v8039
    %v8288 = vpack.c.b16 %v8048, %v8040
    %v8289 = vpack.c.b16 %v8049, %v8041
    %v8290 = vpack.c.b16 %v8050, %v8042
    %v8291 = vpack.c.b16 %v8051, %v8043
    %v8292 = vpack.c.b16 %v8060, %v8052
    %v8293 = vpack.c.b16 %v8061, %v8053
    %v8294 = vpack.c.b16 %v8062, %v8054
    %v8295 = vpack.c.b16 %v8063, %v8055
    %v8296 = vpack.c.b16 %v8064, %v8056
    %v8297 = vpack.c.b16 %v8065, %v8057
    %v8298 = vpack.c.b16 %v8066, %v8058
    %v8299 = vpack.c.b16 %v8067, %v8059
    %v8300 = vpack.c.b16 %v8076, %v8068
    %v8301 = vpack.c.b16 %v8077, %v8069
    %v8302 = vpack.c.b16 %v8078, %v8070
    %v8303 = vpack.c.b16 %v8079, %v8071
    %v8304 = vpack.c.b16 %v8080, %v8072
    %v8305 = vpack.c.b16 %v8081, %v8073
    %v8306 = vpack.c.b16 %v8082, %v8074
    %v8307 = vpack.c.b16 %v8083, %v8075
    %v8308 = vpack.c.b16 %v8092, %v8084
    %v8309 = vpack.c.b16 %v8093, %v8085
    %v8310 = vpack.c.b16 %v8094, %v8086
    %v8311 = vpack.c.b16 %v8095, %v8087
    %v8312 = vpack.c.b16 %v8096, %v8088
    %v8313 = vpack.c.b16 %v8097, %v8089
    %v8314 = vpack.c.b16 %v8098, %v8090
    %v8315 = vpack.c.b16 %v8099, %v8091
    %v8316 = vpack.c.b16 %v8108, %v8100
    %v8317 = vpack.c.b16 %v8109, %v8101
    %v8318 = vpack.c.b16 %v8110, %v8102
    %v8319 = vpack.c.b16 %v8111, %v8103
    %v8320 = vpack.c.b16 %v8112, %v8104
    %v8321 = vpack.c.b16 %v8113, %v8105
    %v8322 = vpack.c.b16 %v8114, %v8106
    %v8323 = vpack.c.b16 %v8115, %v8107
    %v8324 = vpack.c.b16 %v8124, %v8116
    %v8325 = vpack.c.b16 %v8125, %v8117
    %v8326 = vpack.c.b16 %v8126, %v8118
    %v8327 = vpack.c.b16 %v8127, %v8119
    %v8328 = vpack.c.b16 %v8128, %v8120
    %v8329 = vpack.c.b16 %v8129, %v8121
    %v8330 = vpack.c.b16 %v8130, %v8122
    %v8331 = vpack.c.b16 %v8131, %v8123
    %v8332 = vpack.c.b16 %v8140, %v8132
    %v8333 = vpack.c.b16 %v8141, %v8133
    %v8334 = vpack.c.b16 %v8142, %v8134
    %v8335 = vpack.c.b16 %v8143, %v8135
    %v8336 = vpack.c.b16 %v8144, %v8136
    %v8337 = vpack.c.b16 %v8145, %v8137
    %v8338 = vpack.c.b16 %v8146, %v8138
    %v8339 = vpack.c.b16 %v8147, %v8139
    %v8340 = vpack.c.b16 %v8156, %v8148
    %v8341 = vpack.c.b16 %v8157, %v8149
    %v8342 = vpack.c.b16 %v8158, %v8150
    %v8343 = vpack.c.b16 %v8159, %v8151
    %v8344 = vpack.c.b16 %v8160, %v8152
    %v8345 = vpack.c.b16 %v8161, %v8153
    %v8346 = vpack.c.b16 %v8162, %v8154
    %v8347 = vpack.c.b16 %v8163, %v8155
    %v8348 = vpack.c.b16 %v8172, %v8164
    %v8349 = vpack.c.b16 %v8173, %v8165
    %v8350 = vpack.c.b16 %v8174, %v8166
    %v8351 = vpack.c.b16 %v8175, %v8167
    %v8352 = vpack.c.b16 %v8176, %v8168
    %v8353 = vpack.c.b16 %v8177, %v8169
    %v8354 = vpack.c.b16 %v8178, %v8170
    %v8355 = vpack.c.b16 %v8179, %v8171
    %v8356 = vpack.c.b16 %v8188, %v8180
    %v8357 = vpack.c.b16 %v8189, %v8181
    %v8358 = vpack.c.b16 %v8190, %v8182
    %v8359 = vpack.c.b16 %v8191, %v8183
    %v8360 = vpack.c.b16 %v8192, %v8184
    %v8361 = vpack.c.b16 %v8193, %v8185
    %v8362 = vpack.c.b16 %v8194, %v8186
    %v8363 = vpack.c.b16 %v8195, %v8187
    %v8364 = vpack.c.b16 %v8204, %v8196
    %v8365 = vpack.c.b16 %v8205, %v8197
    %v8366 = vpack.c.b16 %v8206, %v8198
    %v8367 = vpack.c.b16 %v8207, %v8199
    %v8368 = vpack.c.b16 %v8208, %v8200
    %v8369 = vpack.c.b16 %v8209, %v8201
    %v8370 = vpack.c.b16 %v8210, %v8202
    %v8371 = vpack.c.b16 %v8211, %v8203
    %v8372 = vpack.c.b16 %v8220, %v8212
    %v8373 = vpack.c.b16 %v8221, %v8213
    %v8374 = vpack.c.b16 %v8222, %v8214
    %v8375 = vpack.c.b16 %v8223, %v8215
    %v8376 = vpack.c.b16 %v8224, %v8216
    %v8377 = vpack.c.b16 %v8225, %v8217
    %v8378 = vpack.c.b16 %v8226, %v8218
    %v8379 = vpack.c.b16 %v8227, %v8219
    %v8380 = vpack.c.b16 %v8236, %v8228
    %v8381 = vpack.c.b16 %v8237, %v8229
    %v8382 = vpack.c.b16 %v8238, %v8230
    %v8383 = vpack.c.b16 %v8239, %v8231
    %v8384 = vpack.c.b16 %v8240, %v8232
    %v8385 = vpack.c.b16 %v8241, %v8233
    %v8386 = vpack.c.b16 %v8242, %v8234
    %v8387 = vpack.c.b16 %v8243, %v8235
    %v8388 = vpack.c.b16 %v8252, %v8244
    %v8389 = vpack.c.b16 %v8253, %v8245
    %v8390 = vpack.c.b16 %v8254, %v8246
    %v8391 = vpack.c.b16 %v8255, %v8247
    %v8392 = vpack.c.b16 %v8256, %v8248
    %v8393 = vpack.c.b16 %v8257, %v8249
    %v8394 = vpack.c.b16 %v8258, %v8250
    %v8395 = vpack.c.b16 %v8259, %v8251
    %v8396 = vpack.c.b16 %v8268, %v8260
    %v8397 = vpack.c.b16 %v8269, %v8261
    %v8398 = vpack.c.b16 %v8270, %v8262
    %v8399 = vpack.c.b16 %v8271, %v8263
    %v8400 = vpack.c.b16 %v8272, %v8264
    %v8401 = vpack.c.b16 %v8273, %v8265
    %v8402 = vpack.c.b16 %v8274, %v8266
    %v8403 = vpack.c.b16 %v8275, %v8267
    %8532 = vmatprep.subr.bf16.mxu0 %v8277
    %8533 = vmatpush1.bf16.msra.mxu0 %v8276
    %8534 = vmatprep.subr.bf16.mxu0 %v8285
    %8535 = vmatpush1.bf16.msra.mxu0 %v8284
    %8536 = vmatprep.subr.bf16.mxu0 %v8293
    %8537 = vmatpush1.bf16.msra.mxu0 %v8292
    %8538 = vmatprep.subr.bf16.mxu0 %v8301
    %8539 = vmatpush1.bf16.msra.mxu0 %v8300
    %8540 = vmatprep.subr.bf16.mxu0 %v8309
    %8541 = vmatpush1.bf16.msra.mxu0 %v8308
    %8542 = vmatprep.subr.bf16.mxu0 %v8317
    %8543 = vmatpush1.bf16.msra.mxu0 %v8316
    %8544 = vmatprep.subr.bf16.mxu0 %v8325
    %8545 = vmatpush1.bf16.msra.mxu0 %v8324
    %8546 = vmatprep.subr.bf16.mxu0 %v8333
    %8547 = vmatpush1.bf16.msra.mxu0 %v8332
    %8548 = vmatprep.subr.bf16.mxu0 %v8341
    %8549 = vmatpush1.bf16.msra.mxu0 %v8340
    %8550 = vmatprep.subr.bf16.mxu0 %v8349
    %8551 = vmatpush1.bf16.msra.mxu0 %v8348
    %8552 = vmatprep.subr.bf16.mxu0 %v8357
    %8553 = vmatpush1.bf16.msra.mxu0 %v8356
    %8554 = vmatprep.subr.bf16.mxu0 %v8365
    %8555 = vmatpush1.bf16.msra.mxu0 %v8364
    %8556 = vmatprep.subr.bf16.mxu0 %v8373
    %8557 = vmatpush1.bf16.msra.mxu0 %v8372
    %8558 = vmatprep.subr.bf16.mxu0 %v8381
    %8559 = vmatpush1.bf16.msra.mxu0 %v8380
    %8560 = vmatprep.subr.bf16.mxu0 %v8389
    %8561 = vmatpush1.bf16.msra.mxu0 %v8388
    %8562 = vmatprep.subr.bf16.mxu0 %v8397
    %8563 = vmatpush1.bf16.msra.mxu0 %v8396
    %8564 = vmatprep.mubr.bf16.mxu0 %v7763
    %8565 = vmatmul.mubr.bf16.gmra.mrb[0].mxu0 %v7762
    %v8566 = vpop.f32.mrb[0].mxu0
    %v8567 = vadd.f32 0.0, %v8566
    %v8568 = vpop.f32.mrb[0].mxu0
    %v8569 = vadd.f32 0.0, %v8568
    %v8570 = vpop.f32.mrb[0].mxu0
    %v8571 = vpop.f32.mrb[0].mxu0
    %8572 = vdwg.mxu0
    %8573 = vmatprep.subr.bf16.mxu0 %v8279
    %8574 = vmatpush1.bf16.msra.mxu0 %v8278
    %8575 = vmatprep.subr.bf16.mxu0 %v8287
    %8576 = vmatpush1.bf16.msra.mxu0 %v8286
    %8577 = vmatprep.subr.bf16.mxu0 %v8295
    %8578 = vmatpush1.bf16.msra.mxu0 %v8294
    %8579 = vmatprep.subr.bf16.mxu0 %v8303
    %8580 = vmatpush1.bf16.msra.mxu0 %v8302
    %8581 = vmatprep.subr.bf16.mxu0 %v8311
    %8582 = vmatpush1.bf16.msra.mxu0 %v8310
    %8583 = vmatprep.subr.bf16.mxu0 %v8319
    %8584 = vmatpush1.bf16.msra.mxu0 %v8318
    %8585 = vmatprep.subr.bf16.mxu0 %v8327
    %8586 = vmatpush1.bf16.msra.mxu0 %v8326
    %8587 = vmatprep.subr.bf16.mxu0 %v8335
    %8588 = vmatpush1.bf16.msra.mxu0 %v8334
    %8589 = vmatprep.subr.bf16.mxu0 %v8343
    %8590 = vmatpush1.bf16.msra.mxu0 %v8342
    %8591 = vmatprep.subr.bf16.mxu0 %v8351
    %8592 = vmatpush1.bf16.msra.mxu0 %v8350
    %8593 = vmatprep.subr.bf16.mxu0 %v8359
    %8594 = vmatpush1.bf16.msra.mxu0 %v8358
    %8595 = vmatprep.subr.bf16.mxu0 %v8367
    %8596 = vmatpush1.bf16.msra.mxu0 %v8366
    %8597 = vmatprep.subr.bf16.mxu0 %v8375
    %8598 = vmatpush1.bf16.msra.mxu0 %v8374
    %8599 = vmatprep.subr.bf16.mxu0 %v8383
    %8600 = vmatpush1.bf16.msra.mxu0 %v8382
    %8601 = vmatprep.subr.bf16.mxu0 %v8391
    %8602 = vmatpush1.bf16.msra.mxu0 %v8390
    %8603 = vmatprep.subr.bf16.mxu0 %v8399
    %8604 = vmatpush1.bf16.msra.mxu0 %v8398
    %8605 = vmatprep.mubr.bf16.mxu0 %v7763
    %8606 = vmatmul.mubr.bf16.gmra.mrb[0].mxu0 %v7762
    %v8607 = vpop.f32.mrb[0].mxu0
    %v8608 = vadd.f32 0.0, %v8607
    %v8609 = vpop.f32.mrb[0].mxu0
    %v8610 = vadd.f32 0.0, %v8609
    %v8611 = vpop.f32.mrb[0].mxu0
    %v8612 = vpop.f32.mrb[0].mxu0
    %8613 = vdwg.mxu0
    %8614 = vmatprep.subr.bf16.mxu0 %v8281
    %8615 = vmatpush1.bf16.msra.mxu0 %v8280
    %8616 = vmatprep.subr.bf16.mxu0 %v8289
    %8617 = vmatpush1.bf16.msra.mxu0 %v8288
    %8618 = vmatprep.subr.bf16.mxu0 %v8297
    %8619 = vmatpush1.bf16.msra.mxu0 %v8296
    %8620 = vmatprep.subr.bf16.mxu0 %v8305
    %8621 = vmatpush1.bf16.msra.mxu0 %v8304
    %8622 = vmatprep.subr.bf16.mxu0 %v8313
    %8623 = vmatpush1.bf16.msra.mxu0 %v8312
    %8624 = vmatprep.subr.bf16.mxu0 %v8321
    %8625 = vmatpush1.bf16.msra.mxu0 %v8320
    %8626 = vmatprep.subr.bf16.mxu0 %v8329
    %8627 = vmatpush1.bf16.msra.mxu0 %v8328
    %8628 = vmatprep.subr.bf16.mxu0 %v8337
    %8629 = vmatpush1.bf16.msra.mxu0 %v8336
    %8630 = vmatprep.subr.bf16.mxu0 %v8345
    %8631 = vmatpush1.bf16.msra.mxu0 %v8344
    %8632 = vmatprep.subr.bf16.mxu0 %v8353
    %8633 = vmatpush1.bf16.msra.mxu0 %v8352
    %8634 = vmatprep.subr.bf16.mxu0 %v8361
    %8635 = vmatpush1.bf16.msra.mxu0 %v8360
    %8636 = vmatprep.subr.bf16.mxu0 %v8369
    %8637 = vmatpush1.bf16.msra.mxu0 %v8368
    %8638 = vmatprep.subr.bf16.mxu0 %v8377
    %8639 = vmatpush1.bf16.msra.mxu0 %v8376
    %8640 = vmatprep.subr.bf16.mxu0 %v8385
    %8641 = vmatpush1.bf16.msra.mxu0 %v8384
    %8642 = vmatprep.subr.bf16.mxu0 %v8393
    %8643 = vmatpush1.bf16.msra.mxu0 %v8392
    %8644 = vmatprep.subr.bf16.mxu0 %v8401
    %8645 = vmatpush1.bf16.msra.mxu0 %v8400
    %8646 = vmatprep.mubr.bf16.mxu0 %v7763
    %8647 = vmatmul.mubr.bf16.gmra.mrb[0].mxu0 %v7762
    %v8648 = vpop.f32.mrb[0].mxu0
    %v8649 = vadd.f32 0.0, %v8648
    %v8650 = vpop.f32.mrb[0].mxu0
    %v8651 = vadd.f32 0.0, %v8650
    %v8652 = vpop.f32.mrb[0].mxu0
    %v8653 = vpop.f32.mrb[0].mxu0
    %8654 = vdwg.mxu0
    %8655 = vmatprep.subr.bf16.mxu0 %v8283
    %8656 = vmatpush1.bf16.msra.mxu0 %v8282
    %8657 = vmatprep.subr.bf16.mxu0 %v8291
    %8658 = vmatpush1.bf16.msra.mxu0 %v8290
    %8659 = vmatprep.subr.bf16.mxu0 %v8299
    %8660 = vmatpush1.bf16.msra.mxu0 %v8298
    %8661 = vmatprep.subr.bf16.mxu0 %v8307
    %8662 = vmatpush1.bf16.msra.mxu0 %v8306
    %8663 = vmatprep.subr.bf16.mxu0 %v8315
    %8664 = vmatpush1.bf16.msra.mxu0 %v8314
    %8665 = vmatprep.subr.bf16.mxu0 %v8323
    %8666 = vmatpush1.bf16.msra.mxu0 %v8322
    %8667 = vmatprep.subr.bf16.mxu0 %v8331
    %8668 = vmatpush1.bf16.msra.mxu0 %v8330
    %8669 = vmatprep.subr.bf16.mxu0 %v8339
    %8670 = vmatpush1.bf16.msra.mxu0 %v8338
    %8671 = vmatprep.subr.bf16.mxu0 %v8347
    %8672 = vmatpush1.bf16.msra.mxu0 %v8346
    %8673 = vmatprep.subr.bf16.mxu0 %v8355
    %8674 = vmatpush1.bf16.msra.mxu0 %v8354
    %8675 = vmatprep.subr.bf16.mxu0 %v8363
    %8676 = vmatpush1.bf16.msra.mxu0 %v8362
    %8677 = vmatprep.subr.bf16.mxu0 %v8371
    %8678 = vmatpush1.bf16.msra.mxu0 %v8370
    %8679 = vmatprep.subr.bf16.mxu0 %v8379
    %8680 = vmatpush1.bf16.msra.mxu0 %v8378
    %8681 = vmatprep.subr.bf16.mxu0 %v8387
    %8682 = vmatpush1.bf16.msra.mxu0 %v8386
    %8683 = vmatprep.subr.bf16.mxu0 %v8395
    %8684 = vmatpush1.bf16.msra.mxu0 %v8394
    %8685 = vmatprep.subr.bf16.mxu0 %v8403
    %8686 = vmatpush1.bf16.msra.mxu0 %v8402
    %8687 = vmatprep.mubr.bf16.mxu0 %v7763
    %8688 = vmatmul.mubr.bf16.gmra.mrb[0].mxu0 %v7762
    %v8689 = vpop.f32.mrb[0].mxu0
    %v8690 = vadd.f32 0.0, %v8689
    %v8691 = vpop.f32.mrb[0].mxu0
    %v8692 = vadd.f32 0.0, %v8691
    %v8693 = vpop.f32.mrb[0].mxu0
    %v8694 = vpop.f32.mrb[0].mxu0
    %8695 = vdwg.mxu0
    %s8696 = scalar_lea.vmem [#allocation4], 28
    %v8697 = vld [vmem:[%s8696] sm:$0xf]
    %v8698 = vunpack.c.l.bf16 %v8697
    %v8703 = vcombine.low %v8567, %v8569
    %v8704 = vcombine.low %v8608, %v8610
    %v8706 = vunpack.c.l.s4 1983009808
    %v8707 = vunpack.c.0.s8 %v8706
    %v8708 = vlaneseq
    %v8709 = vshrl.u32 %v8708, 7
    %v8710 = vsub.s32 %v8707, %v8709
    %v8711 = vrot.slane %v8703, %v8710
    %v8713 = vunpack.c.l.s4 1983009808
    %v8714 = vunpack.c.0.s8 %v8713
    %v8715 = vlaneseq
    %v8716 = vshrl.u32 %v8715, 7
    %v8717 = vsub.s32 %v8714, %v8716
    %v8718 = vrot.slane %v8704, %v8717
    %v8719 = vcombine.low %v8711, %v8718
    %v8721 = vadd.f32 %v8698, %v8719
    %v8722 = vmul.f32 %v8721, 0.5
    %v8723 = vtanh.pop %v8722
    %v8724 = vadd.f32 %v8723, 1.0
    %v8725 = vmul.f32 %v8724, 0.5
    %v8727 = vrot.slane %v8721, 2
    %v8729 = vmul.f32 %v8727, 0.5
    %v8730 = vtanh.pop %v8729
    %v8731 = vadd.f32 %v8730, 1.0
    %v8732 = vmul.f32 %v8731, 0.5
    %v8733 = vrot.slane %v8721, 4
    %v8735 = vtanh.pop %v8733
    %v8736 = vrot.slane %v8721, 6
    %v8738 = vmul.f32 %v8736, 0.5
    %v8739 = vtanh.pop %v8738
    %v8740 = vadd.f32 %v8739, 1.0
    %v8741 = vmul.f32 %v8740, 0.5
    %v8742 = vld [vmem:[#allocation3] sm:$0x3]
    %v8743 = vmul.f32 %v8732, %v8742
    %v8744 = vmul.f32 %v8725, %v8735
    %v8745 = vadd.f32 %v8743, %v8744
    %v8746 = vtanh.pop %v8745
    %v8747 = vmul.f32 %v8741, %v8746
    %s8748 = scalar_lea.vmem %s3, 14
    %v8749 = vld [vmem:[%s8748] sm:$0x3]
    %8751 = vset.pattern.permute.xlu0 0
    %8752 = vperm.xlu0 %8751, %v8749
    %v8753 = vpop.permute.xlu0 %8752
    %v8755 = vmul.f32 %v8745, %v8753
    %8756 = vst [vmem:[#allocation3] sm:$0x3] %v8755
    %v8757 = vmul.f32 %v8747, %v8753
    %8758 = vst [vmem:[#allocation2] sm:$0x3] %v8757
    %v8759 = vpack.c.bf16 %v8757, %v8757
    %s8760 = scalar_lea.vmem %s5, 7
    %8761 = vst [vmem:[%s8760] sm:$0x1] %v8759
    %v8762 = vld [vmem:[#allocation5] sm:$0xf]
    %v8763 = vunpack.c.l.bf16 %v8762
    %v8768 = vcombine.low %v8649, %v8651
    %v8769 = vcombine.low %v8690, %v8692
    %v8771 = vunpack.c.l.s4 1983009808
    %v8772 = vunpack.c.0.s8 %v8771
    %v8773 = vlaneseq
    %v8774 = vshrl.u32 %v8773, 7
    %v8775 = vsub.s32 %v8772, %v8774
    %v8776 = vrot.slane %v8768, %v8775
    %v8778 = vunpack.c.l.s4 1983009808
    %v8779 = vunpack.c.0.s8 %v8778
    %v8780 = vlaneseq
    %v8781 = vshrl.u32 %v8780, 7
    %v8782 = vsub.s32 %v8779, %v8781
    %v8783 = vrot.slane %v8769, %v8782
    %v8784 = vcombine.low %v8776, %v8783
    %v8786 = vadd.f32 %v8763, %v8784
    %v8787 = vmul.f32 %v8786, 0.5
    %v8788 = vtanh.pop %v8787
    %v8789 = vadd.f32 %v8788, 1.0
    %v8790 = vmul.f32 %v8789, 0.5
    %v8792 = vrot.slane %v8786, 2
    %v8794 = vmul.f32 %v8792, 0.5
    %v8795 = vtanh.pop %v8794
    %v8796 = vadd.f32 %v8795, 1.0
    %v8797 = vmul.f32 %v8796, 0.5
    %v8798 = vrot.slane %v8786, 4
    %v8800 = vtanh.pop %v8798
    %v8801 = vrot.slane %v8786, 6
    %v8803 = vmul.f32 %v8801, 0.5
    %v8804 = vtanh.pop %v8803
    %v8805 = vadd.f32 %v8804, 1.0
    %v8806 = vmul.f32 %v8805, 0.5
    %v8807 = vld [vmem:[#allocation3 + $0x2] sm:$0x3]
    %v8808 = vmul.f32 %v8797, %v8807
    %v8809 = vmul.f32 %v8790, %v8800
    %v8810 = vadd.f32 %v8808, %v8809
    %v8811 = vtanh.pop %v8810
    %v8812 = vmul.f32 %v8806, %v8811
    %v8813 = vld [vmem:[%s191] sm:$0x3]
    %8815 = vset.pattern.permute.xlu0 0
    %8816 = vperm.xlu0 %8815, %v8813
    %v8817 = vpop.permute.xlu0 %8816
    %v8819 = vmul.f32 %v8810, %v8817
    %8820 = vst [vmem:[#allocation3 + $0x2] sm:$0x3] %v8819
    %v8821 = vmul.f32 %v8812, %v8817
    %8822 = vst [vmem:[#allocation2 + $0x2] sm:$0x3] %v8821
    %v8823 = vpack.c.bf16 %v8821, %v8821
    %8824 = vst [vmem:[%s198] sm:$0x1] %v8823
    %s8825 = ssub.s32 0, 0
    %s8826 = smul.u32 8, %s8825
    %p8827 = scmp.lt.s32.totalorder %s8826, 7
    %s8828 = scalar_select %p8827, %s8826, 7
    %s8829 = scalar_lea.vmem %s6, %s8828
    // Predicated region
    $region108: #{cws_forward.5} parent=1 // pred_check
      _
    $region109: #{cws_forward.5} parent=1 // pred_check_branch
      %8831 = sbr.rel (0) target = $region111
    $region110: #{cws_forward.5} parent=1 // pred_region
      _
    $region111: #{cws_forward.5} parent=1 // pred_fallthru
      _
    // Predicated region
    $region112: #{cws_forward.5} parent=1 // pred_check
      _
    $region113: #{cws_forward.5} parent=1 // pred_check_branch
      %8833 = sbr.rel (0) target = $region115
    $region114: #{cws_forward.5} parent=1 // pred_region
      %s8834 = ssub.s32 0, 0
      %s8835 = smul.u32 8, %s8834
    $region115: #{cws_forward.5} parent=1 // pred_fallthru
      _
    // Predicated region
    $region116: #{cws_forward.5} parent=1 // pred_check
      _
    $region117: #{cws_forward.5} parent=1 // pred_check_branch
      %8837 = sbr.rel (0) target = $region119
    $region118: #{cws_forward.5} parent=1 // pred_region
      _
    $region119: #{cws_forward.5} parent=1 // pred_fallthru
      _
    // Predicated region
    $region120: #{cws_forward.5} parent=1 // pred_check
      _
    $region121: #{cws_forward.5} parent=1 // pred_check_branch
      %8839 = sbr.rel (0) target = $region123
    $region122: #{cws_forward.5} parent=1 // pred_region
      %s8840 = ssub.s32 0, 0
      %s8841 = smul.u32 8, %s8840
      %p8842 = scmp.lt.s32.totalorder %s8841, 7
      %s8843 = scalar_select %p8842, %s8841, 7
      %s8844 = scalar_lea.vmem %s6, %s8843
    $region123: #{cws_forward.5} parent=1 // pred_fallthru
      _

</llo_original>
